<compile_context>
chip_gen: v7x
topology: tpu7x:2x2x1
jax: 0.10.0
libtpu: 0.0.40
codegen_flags: <defaults>
</compile_context>

<pallas_src>
import jax
import jax.numpy as jnp
from jax.experimental import pallas as pl
from jax.experimental.pallas import tpu as pltpu

_HIGHEST = jax.lax.Precision.HIGHEST


def get_max_s(in_feats):
    """Largest divisor of in_feats in [1, 10] that is not in_feats itself."""
    for i in range(10, 0, -1):
        if in_feats % i == 0 and i != in_feats:
            return i
    return 1


def _gtan_psa_kernel(x_ref, w1_ref, b1_ref, w2_ref, b2_ref, out_ref):
    """One batch tile.

    x_ref  : (S, TN, Cs)  all S chunks of this batch tile (chunk-major layout)
    w1_ref : (Cs, Os)     shared fc weight, (in, out) orientation
    b1_ref : (1, Os)      shared fc bias (f32)
    w2_ref : (Os, Opad)   fc2 weight, (in, out), zero-padded to lane-dense Opad
    b2_ref : (1, Opad)    fc2 bias (f32, zero-padded)
    out_ref: (TN, Opad)   output tile
    """
    S = x_ref.shape[0]
    w1 = w1_ref[...]
    b1 = b1_ref[...]

    fused = jnp.zeros(x_ref.shape[1:], jnp.float32)       # (TN, Cs)
    for s in range(S):                                     # S <= 10, unrolled
        xs = x_ref[s]                                      # (TN, Cs)
        logits = jnp.dot(xs, w1, preferred_element_type=jnp.float32,
                         precision=_HIGHEST) + b1          # (TN, Os)
        # row softmax (torch: F.softmax(self.fc(h_i), dim=1)), exact divide
        m = jnp.max(logits, axis=-1, keepdims=True)
        e = jnp.exp(logits - m)
        w = e / jnp.sum(e, axis=-1, keepdims=True)
        # h_fused += softmax(fc(h_s)) * h_s   (requires Os == Cs, as in torch)
        fused = fused + w * xs.astype(jnp.float32)

    out = jnp.dot(fused.astype(w2_ref.dtype), w2_ref[...],
                  preferred_element_type=jnp.float32,
                  precision=_HIGHEST) + b2_ref[...]
    out_ref[...] = out.astype(out_ref.dtype)


def _pick_tile_n(n):
    """Largest tile in {512,...,8} dividing n; else the full batch."""
    for t in (512, 256, 128, 64, 32, 16, 8):
        if n % t == 0:
            return t
    return n


def gtan_psa_pallas(h, params, *, tile_n=None, compute_dtype=jnp.float32):
    """GTANWithPSA forward.

    h      : (N, in_feats)
    params : dict with
        w1 : (Cs, Os)        = fc.weight.T     b1 : (Os,)        = fc.bias
        w2 : (Os, out_feats) = fc2.weight.T    b2 : (out_feats,) = fc2.bias
    where S = get_max_s(in_feats), Cs = in_feats // S, Os = out_feats // S.
    """
    N, C = h.shape
    S = get_max_s(C)
    Cs = C // S
    Cs_w, Os = params["w1"].shape
    O = params["w2"].shape[1]
    assert Cs_w == Cs, "fc input width must be in_feats // S"
    assert params["w2"].shape[0] == Os
    # Same broadcast requirement as the PyTorch module's `w * h_i`.
    assert Os == Cs, "out_feats // S must equal in_feats // S"

    if tile_n is None:
        tile_n = _pick_tile_n(N)
    assert N % tile_n == 0
    assert tile_n == N or tile_n % 8 == 0, "batch tile must be a multiple of 8"
    n_tiles = N // tile_n

    # chunk-major layout: x3[s, n, :] == h[n, s*Cs:(s+1)*Cs]
    x3 = h.reshape(N, S, Cs).transpose(1, 0, 2).astype(compute_dtype)

    # lane-dense output: zero-pad out_feats up to a multiple of 128
    O_pad = ((O + 127) // 128) * 128
    w1 = params["w1"].astype(compute_dtype)
    b1 = params["b1"].reshape(1, Os).astype(jnp.float32)
    w2 = params["w2"].astype(compute_dtype)
    b2 = params["b2"].reshape(1, O).astype(jnp.float32)
    if O_pad != O:
        w2 = jnp.pad(w2, ((0, 0), (0, O_pad - O)))
        b2 = jnp.pad(b2, ((0, 0), (0, O_pad - O)))

    rep = lambda i: (0, 0)  # weights/biases: same block every grid step

    out = pl.pallas_call(
        _gtan_psa_kernel,
        out_shape=jax.ShapeDtypeStruct((N, O_pad), h.dtype),
        grid_spec=pltpu.PrefetchScalarGridSpec(
            num_scalar_prefetch=0,
            grid=(n_tiles,),
            in_specs=[
                pl.BlockSpec((S, tile_n, Cs), lambda i: (0, i, 0)),  # x chunks
                pl.BlockSpec((Cs, Os), rep),                         # w1
                pl.BlockSpec((1, Os), rep),                          # b1
                pl.BlockSpec((Os, O_pad), rep),                      # w2
                pl.BlockSpec((1, O_pad), rep),                       # b2
            ],
            out_specs=pl.BlockSpec((tile_n, O_pad), lambda i: (i, 0)),
        ),
        compiler_params=pltpu.CompilerParams(
            dimension_semantics=("parallel",)),
    )(x3, w1, b1, w2, b2)

    return out[:, :O] if O_pad != O else out


def gtan_psa_reference(h, params):
    """Pure-JAX reference mirroring the PyTorch forward."""
    N, C = h.shape
    S = get_max_s(C)
    chunks = jnp.split(h, S, axis=1)
    fused = 0.0
    for hc in chunks:
        logits = jnp.dot(hc, params["w1"], precision=_HIGHEST) + params["b1"]
        w = jax.nn.softmax(logits, axis=1)
        fused = fused + w * hc
    return jnp.dot(fused, params["w2"], precision=_HIGHEST) + params["b2"]


def init_params(key, in_feats, out_feats, dtype=jnp.float32):
    S = get_max_s(in_feats)
    cs = in_feats // S
    os_ = out_feats // S
    k1, k2, k3, k4 = jax.random.split(key, 4)
    s1 = 1.0 / (cs ** 0.5)
    s2 = 1.0 / (os_ ** 0.5)
    return {
        # weights stored in (in, out) orientation so the kernel does x @ W + b
        "w1": jax.random.uniform(k1, (cs, os_), dtype, -s1, s1),
        "b1": jax.random.uniform(k2, (os_,), dtype, -s1, s1),
        "w2": jax.random.uniform(k3, (os_, out_feats), dtype, -s2, s2),
        "b2": jax.random.uniform(k4, (out_feats,), dtype, -s2, s2),
    }


if __name__ == "__main__":
    key = jax.random.PRNGKey(0)
    k_x, k_p = jax.random.split(key)

    N, in_feats, out_feats = 128, 64, 64     # S = 8, per-chunk width Cs = Os = 8
    h = jax.random.normal(k_x, (N, in_feats), dtype=jnp.float32)
    params = init_params(k_p, in_feats, out_feats)

    ref = gtan_psa_reference(h, params)

    # default tiling: whole batch in one grid step
    out = gtan_psa_pallas(h, params)
    out = jax.block_until_ready(out)
    assert out.shape == (N, out_feats)
    assert jnp.allclose(out, ref, atol=1e-3, rtol=1e-3), "f32 mismatch vs reference"

    # smaller batch tiles: grid = (4,), exercises BlockSpec pipelining
    out_t = gtan_psa_pallas(h, params, tile_n=32)
    out_t = jax.block_until_ready(out_t)
    assert jnp.allclose(out_t, ref, atol=1e-3, rtol=1e-3), "tiled mismatch vs reference"

    print("KERNEL_OK")
</pallas_src>

<mosaic_0001>
module attributes {stable_mosaic.version = 11 : i64} {
  func.func @_gtan_psa_kernel(%arg0: i32, %arg1: memref<8x128x8xf32, #tpu.memory_space<vmem>>, %arg2: memref<8x8xf32, #tpu.memory_space<vmem>>, %arg3: memref<1x8xf32, #tpu.memory_space<vmem>>, %arg4: memref<8x128xf32, #tpu.memory_space<vmem>>, %arg5: memref<1x128xf32, #tpu.memory_space<vmem>>, %arg6: memref<128x128xf32, #tpu.memory_space<vmem>>) attributes {dimension_semantics = [#tpu.dimension_semantics<parallel>], iteration_bounds = array<i64: 1>, scalar_prefetch = 0 : i64, scratch_operands = 0 : i64, tpu.core_type = #tpu.core_type<tc>, window_params = [{transform_indices = @transform_0, window_bounds = array<i64: 8, 128, 8>}, {pipeline_mode = #tpu.pipeline_mode<synchronous>, transform_indices = @transform_1, window_bounds = array<i64: 8, 8>}, {pipeline_mode = #tpu.pipeline_mode<synchronous>, transform_indices = @transform_2, window_bounds = array<i64: 1, 8>}, {pipeline_mode = #tpu.pipeline_mode<synchronous>, transform_indices = @transform_3, window_bounds = array<i64: 8, 128>}, {pipeline_mode = #tpu.pipeline_mode<synchronous>, transform_indices = @transform_4, window_bounds = array<i64: 1, 128>}, {transform_indices = @transform_5, window_bounds = array<i64: 128, 128>}]} {
    %c0 = arith.constant 0 : index
    %c0_0 = arith.constant 0 : index
    %0 = vector.load %arg2[%c0, %c0_0] : memref<8x8xf32, #tpu.memory_space<vmem>>, vector<8x8xf32>
    %c0_1 = arith.constant 0 : index
    %c0_2 = arith.constant 0 : index
    %1 = vector.load %arg3[%c0_1, %c0_2] : memref<1x8xf32, #tpu.memory_space<vmem>>, vector<1x8xf32>
    %cst = arith.constant 0.000000e+00 : f32
    %2 = vector.broadcast %cst : f32 to vector<128x8xf32>
    %c0_3 = arith.constant 0 : index
    %c0_4 = arith.constant 0 : index
    %c0_5 = arith.constant 0 : index
    %3 = vector.load %arg1[%c0_3, %c0_4, %c0_5] : memref<8x128x8xf32, #tpu.memory_space<vmem>>, vector<1x128x8xf32>
    %4 = vector.shape_cast %3 : vector<1x128x8xf32> to vector<128x8xf32>
    %cst_6 = arith.constant dense<0.000000e+00> : vector<128x8xf32>
    %5 = tpu.matmul %4, %0, %cst_6 {dimension_numbers = #tpu.dot_dimension_numbers<[1], [0], [0], [1], [0, 0, 1, 1], [], []>, precision = #tpu.contract_precision<fp32>} : vector<128x8xf32>, vector<8x8xf32>, vector<128x8xf32> -> vector<128x8xf32>
    %6 = vector.broadcast %1 : vector<1x8xf32> to vector<128x8xf32>
    %7 = arith.addf %5, %6 : vector<128x8xf32>
    %cst_7 = arith.constant dense<0xFF800000> : vector<128xf32>
    %8 = vector.multi_reduction <maximumf>, %7, %cst_7 [1] : vector<128x8xf32> to vector<128xf32>
    %9 = vector.shape_cast %8 : vector<128xf32> to vector<128x1xf32>
    %10 = vector.broadcast %9 : vector<128x1xf32> to vector<128x8xf32>
    %11 = arith.subf %7, %10 : vector<128x8xf32>
    %12 = math.exp %11 : vector<128x8xf32>
    %cst_8 = arith.constant dense<0.000000e+00> : vector<128xf32>
    %13 = vector.multi_reduction <add>, %12, %cst_8 [1] : vector<128x8xf32> to vector<128xf32>
    %14 = vector.shape_cast %13 : vector<128xf32> to vector<128x1xf32>
    %15 = vector.broadcast %14 : vector<128x1xf32> to vector<128x8xf32>
    %16 = arith.divf %12, %15 : vector<128x8xf32>
    %17 = arith.mulf %16, %4 : vector<128x8xf32>
    %18 = arith.addf %2, %17 : vector<128x8xf32>
    %c1 = arith.constant 1 : index
    %c0_9 = arith.constant 0 : index
    %c0_10 = arith.constant 0 : index
    %19 = vector.load %arg1[%c1, %c0_9, %c0_10] : memref<8x128x8xf32, #tpu.memory_space<vmem>>, vector<1x128x8xf32>
    %20 = vector.shape_cast %19 : vector<1x128x8xf32> to vector<128x8xf32>
    %cst_11 = arith.constant dense<0.000000e+00> : vector<128x8xf32>
    %21 = tpu.matmul %20, %0, %cst_11 {dimension_numbers = #tpu.dot_dimension_numbers<[1], [0], [0], [1], [0, 0, 1, 1], [], []>, precision = #tpu.contract_precision<fp32>} : vector<128x8xf32>, vector<8x8xf32>, vector<128x8xf32> -> vector<128x8xf32>
    %22 = vector.broadcast %1 : vector<1x8xf32> to vector<128x8xf32>
    %23 = arith.addf %21, %22 : vector<128x8xf32>
    %cst_12 = arith.constant dense<0xFF800000> : vector<128xf32>
    %24 = vector.multi_reduction <maximumf>, %23, %cst_12 [1] : vector<128x8xf32> to vector<128xf32>
    %25 = vector.shape_cast %24 : vector<128xf32> to vector<128x1xf32>
    %26 = vector.broadcast %25 : vector<128x1xf32> to vector<128x8xf32>
    %27 = arith.subf %23, %26 : vector<128x8xf32>
    %28 = math.exp %27 : vector<128x8xf32>
    %cst_13 = arith.constant dense<0.000000e+00> : vector<128xf32>
    %29 = vector.multi_reduction <add>, %28, %cst_13 [1] : vector<128x8xf32> to vector<128xf32>
    %30 = vector.shape_cast %29 : vector<128xf32> to vector<128x1xf32>
    %31 = vector.broadcast %30 : vector<128x1xf32> to vector<128x8xf32>
    %32 = arith.divf %28, %31 : vector<128x8xf32>
    %33 = arith.mulf %32, %20 : vector<128x8xf32>
    %34 = arith.addf %18, %33 : vector<128x8xf32>
    %c2 = arith.constant 2 : index
    %c0_14 = arith.constant 0 : index
    %c0_15 = arith.constant 0 : index
    %35 = vector.load %arg1[%c2, %c0_14, %c0_15] : memref<8x128x8xf32, #tpu.memory_space<vmem>>, vector<1x128x8xf32>
    %36 = vector.shape_cast %35 : vector<1x128x8xf32> to vector<128x8xf32>
    %cst_16 = arith.constant dense<0.000000e+00> : vector<128x8xf32>
    %37 = tpu.matmul %36, %0, %cst_16 {dimension_numbers = #tpu.dot_dimension_numbers<[1], [0], [0], [1], [0, 0, 1, 1], [], []>, precision = #tpu.contract_precision<fp32>} : vector<128x8xf32>, vector<8x8xf32>, vector<128x8xf32> -> vector<128x8xf32>
    %38 = vector.broadcast %1 : vector<1x8xf32> to vector<128x8xf32>
    %39 = arith.addf %37, %38 : vector<128x8xf32>
    %cst_17 = arith.constant dense<0xFF800000> : vector<128xf32>
    %40 = vector.multi_reduction <maximumf>, %39, %cst_17 [1] : vector<128x8xf32> to vector<128xf32>
    %41 = vector.shape_cast %40 : vector<128xf32> to vector<128x1xf32>
    %42 = vector.broadcast %41 : vector<128x1xf32> to vector<128x8xf32>
    %43 = arith.subf %39, %42 : vector<128x8xf32>
    %44 = math.exp %43 : vector<128x8xf32>
    %cst_18 = arith.constant dense<0.000000e+00> : vector<128xf32>
    %45 = vector.multi_reduction <add>, %44, %cst_18 [1] : vector<128x8xf32> to vector<128xf32>
    %46 = vector.shape_cast %45 : vector<128xf32> to vector<128x1xf32>
    %47 = vector.broadcast %46 : vector<128x1xf32> to vector<128x8xf32>
    %48 = arith.divf %44, %47 : vector<128x8xf32>
    %49 = arith.mulf %48, %36 : vector<128x8xf32>
    %50 = arith.addf %34, %49 : vector<128x8xf32>
    %c3 = arith.constant 3 : index
    %c0_19 = arith.constant 0 : index
    %c0_20 = arith.constant 0 : index
    %51 = vector.load %arg1[%c3, %c0_19, %c0_20] : memref<8x128x8xf32, #tpu.memory_space<vmem>>, vector<1x128x8xf32>
    %52 = vector.shape_cast %51 : vector<1x128x8xf32> to vector<128x8xf32>
    %cst_21 = arith.constant dense<0.000000e+00> : vector<128x8xf32>
    %53 = tpu.matmul %52, %0, %cst_21 {dimension_numbers = #tpu.dot_dimension_numbers<[1], [0], [0], [1], [0, 0, 1, 1], [], []>, precision = #tpu.contract_precision<fp32>} : vector<128x8xf32>, vector<8x8xf32>, vector<128x8xf32> -> vector<128x8xf32>
    %54 = vector.broadcast %1 : vector<1x8xf32> to vector<128x8xf32>
    %55 = arith.addf %53, %54 : vector<128x8xf32>
    %cst_22 = arith.constant dense<0xFF800000> : vector<128xf32>
    %56 = vector.multi_reduction <maximumf>, %55, %cst_22 [1] : vector<128x8xf32> to vector<128xf32>
    %57 = vector.shape_cast %56 : vector<128xf32> to vector<128x1xf32>
    %58 = vector.broadcast %57 : vector<128x1xf32> to vector<128x8xf32>
    %59 = arith.subf %55, %58 : vector<128x8xf32>
    %60 = math.exp %59 : vector<128x8xf32>
    %cst_23 = arith.constant dense<0.000000e+00> : vector<128xf32>
    %61 = vector.multi_reduction <add>, %60, %cst_23 [1] : vector<128x8xf32> to vector<128xf32>
    %62 = vector.shape_cast %61 : vector<128xf32> to vector<128x1xf32>
    %63 = vector.broadcast %62 : vector<128x1xf32> to vector<128x8xf32>
    %64 = arith.divf %60, %63 : vector<128x8xf32>
    %65 = arith.mulf %64, %52 : vector<128x8xf32>
    %66 = arith.addf %50, %65 : vector<128x8xf32>
    %c4 = arith.constant 4 : index
    %c0_24 = arith.constant 0 : index
    %c0_25 = arith.constant 0 : index
    %67 = vector.load %arg1[%c4, %c0_24, %c0_25] : memref<8x128x8xf32, #tpu.memory_space<vmem>>, vector<1x128x8xf32>
    %68 = vector.shape_cast %67 : vector<1x128x8xf32> to vector<128x8xf32>
    %cst_26 = arith.constant dense<0.000000e+00> : vector<128x8xf32>
    %69 = tpu.matmul %68, %0, %cst_26 {dimension_numbers = #tpu.dot_dimension_numbers<[1], [0], [0], [1], [0, 0, 1, 1], [], []>, precision = #tpu.contract_precision<fp32>} : vector<128x8xf32>, vector<8x8xf32>, vector<128x8xf32> -> vector<128x8xf32>
    %70 = vector.broadcast %1 : vector<1x8xf32> to vector<128x8xf32>
    %71 = arith.addf %69, %70 : vector<128x8xf32>
    %cst_27 = arith.constant dense<0xFF800000> : vector<128xf32>
    %72 = vector.multi_reduction <maximumf>, %71, %cst_27 [1] : vector<128x8xf32> to vector<128xf32>
    %73 = vector.shape_cast %72 : vector<128xf32> to vector<128x1xf32>
    %74 = vector.broadcast %73 : vector<128x1xf32> to vector<128x8xf32>
    %75 = arith.subf %71, %74 : vector<128x8xf32>
    %76 = math.exp %75 : vector<128x8xf32>
    %cst_28 = arith.constant dense<0.000000e+00> : vector<128xf32>
    %77 = vector.multi_reduction <add>, %76, %cst_28 [1] : vector<128x8xf32> to vector<128xf32>
    %78 = vector.shape_cast %77 : vector<128xf32> to vector<128x1xf32>
    %79 = vector.broadcast %78 : vector<128x1xf32> to vector<128x8xf32>
    %80 = arith.divf %76, %79 : vector<128x8xf32>
    %81 = arith.mulf %80, %68 : vector<128x8xf32>
    %82 = arith.addf %66, %81 : vector<128x8xf32>
    %c5 = arith.constant 5 : index
    %c0_29 = arith.constant 0 : index
    %c0_30 = arith.constant 0 : index
    %83 = vector.load %arg1[%c5, %c0_29, %c0_30] : memref<8x128x8xf32, #tpu.memory_space<vmem>>, vector<1x128x8xf32>
    %84 = vector.shape_cast %83 : vector<1x128x8xf32> to vector<128x8xf32>
    %cst_31 = arith.constant dense<0.000000e+00> : vector<128x8xf32>
    %85 = tpu.matmul %84, %0, %cst_31 {dimension_numbers = #tpu.dot_dimension_numbers<[1], [0], [0], [1], [0, 0, 1, 1], [], []>, precision = #tpu.contract_precision<fp32>} : vector<128x8xf32>, vector<8x8xf32>, vector<128x8xf32> -> vector<128x8xf32>
    %86 = vector.broadcast %1 : vector<1x8xf32> to vector<128x8xf32>
    %87 = arith.addf %85, %86 : vector<128x8xf32>
    %cst_32 = arith.constant dense<0xFF800000> : vector<128xf32>
    %88 = vector.multi_reduction <maximumf>, %87, %cst_32 [1] : vector<128x8xf32> to vector<128xf32>
    %89 = vector.shape_cast %88 : vector<128xf32> to vector<128x1xf32>
    %90 = vector.broadcast %89 : vector<128x1xf32> to vector<128x8xf32>
    %91 = arith.subf %87, %90 : vector<128x8xf32>
    %92 = math.exp %91 : vector<128x8xf32>
    %cst_33 = arith.constant dense<0.000000e+00> : vector<128xf32>
    %93 = vector.multi_reduction <add>, %92, %cst_33 [1] : vector<128x8xf32> to vector<128xf32>
    %94 = vector.shape_cast %93 : vector<128xf32> to vector<128x1xf32>
    %95 = vector.broadcast %94 : vector<128x1xf32> to vector<128x8xf32>
    %96 = arith.divf %92, %95 : vector<128x8xf32>
    %97 = arith.mulf %96, %84 : vector<128x8xf32>
    %98 = arith.addf %82, %97 : vector<128x8xf32>
    %c6 = arith.constant 6 : index
    %c0_34 = arith.constant 0 : index
    %c0_35 = arith.constant 0 : index
    %99 = vector.load %arg1[%c6, %c0_34, %c0_35] : memref<8x128x8xf32, #tpu.memory_space<vmem>>, vector<1x128x8xf32>
    %100 = vector.shape_cast %99 : vector<1x128x8xf32> to vector<128x8xf32>
    %cst_36 = arith.constant dense<0.000000e+00> : vector<128x8xf32>
    %101 = tpu.matmul %100, %0, %cst_36 {dimension_numbers = #tpu.dot_dimension_numbers<[1], [0], [0], [1], [0, 0, 1, 1], [], []>, precision = #tpu.contract_precision<fp32>} : vector<128x8xf32>, vector<8x8xf32>, vector<128x8xf32> -> vector<128x8xf32>
    %102 = vector.broadcast %1 : vector<1x8xf32> to vector<128x8xf32>
    %103 = arith.addf %101, %102 : vector<128x8xf32>
    %cst_37 = arith.constant dense<0xFF800000> : vector<128xf32>
    %104 = vector.multi_reduction <maximumf>, %103, %cst_37 [1] : vector<128x8xf32> to vector<128xf32>
    %105 = vector.shape_cast %104 : vector<128xf32> to vector<128x1xf32>
    %106 = vector.broadcast %105 : vector<128x1xf32> to vector<128x8xf32>
    %107 = arith.subf %103, %106 : vector<128x8xf32>
    %108 = math.exp %107 : vector<128x8xf32>
    %cst_38 = arith.constant dense<0.000000e+00> : vector<128xf32>
    %109 = vector.multi_reduction <add>, %108, %cst_38 [1] : vector<128x8xf32> to vector<128xf32>
    %110 = vector.shape_cast %109 : vector<128xf32> to vector<128x1xf32>
    %111 = vector.broadcast %110 : vector<128x1xf32> to vector<128x8xf32>
    %112 = arith.divf %108, %111 : vector<128x8xf32>
    %113 = arith.mulf %112, %100 : vector<128x8xf32>
    %114 = arith.addf %98, %113 : vector<128x8xf32>
    %c7 = arith.constant 7 : index
    %c0_39 = arith.constant 0 : index
    %c0_40 = arith.constant 0 : index
    %115 = vector.load %arg1[%c7, %c0_39, %c0_40] : memref<8x128x8xf32, #tpu.memory_space<vmem>>, vector<1x128x8xf32>
    %116 = vector.shape_cast %115 : vector<1x128x8xf32> to vector<128x8xf32>
    %cst_41 = arith.constant dense<0.000000e+00> : vector<128x8xf32>
    %117 = tpu.matmul %116, %0, %cst_41 {dimension_numbers = #tpu.dot_dimension_numbers<[1], [0], [0], [1], [0, 0, 1, 1], [], []>, precision = #tpu.contract_precision<fp32>} : vector<128x8xf32>, vector<8x8xf32>, vector<128x8xf32> -> vector<128x8xf32>
    %118 = vector.broadcast %1 : vector<1x8xf32> to vector<128x8xf32>
    %119 = arith.addf %117, %118 : vector<128x8xf32>
    %cst_42 = arith.constant dense<0xFF800000> : vector<128xf32>
    %120 = vector.multi_reduction <maximumf>, %119, %cst_42 [1] : vector<128x8xf32> to vector<128xf32>
    %121 = vector.shape_cast %120 : vector<128xf32> to vector<128x1xf32>
    %122 = vector.broadcast %121 : vector<128x1xf32> to vector<128x8xf32>
    %123 = arith.subf %119, %122 : vector<128x8xf32>
    %124 = math.exp %123 : vector<128x8xf32>
    %cst_43 = arith.constant dense<0.000000e+00> : vector<128xf32>
    %125 = vector.multi_reduction <add>, %124, %cst_43 [1] : vector<128x8xf32> to vector<128xf32>
    %126 = vector.shape_cast %125 : vector<128xf32> to vector<128x1xf32>
    %127 = vector.broadcast %126 : vector<128x1xf32> to vector<128x8xf32>
    %128 = arith.divf %124, %127 : vector<128x8xf32>
    %129 = arith.mulf %128, %116 : vector<128x8xf32>
    %130 = arith.addf %114, %129 : vector<128x8xf32>
    %c0_44 = arith.constant 0 : index
    %c0_45 = arith.constant 0 : index
    %131 = vector.load %arg4[%c0_44, %c0_45] : memref<8x128xf32, #tpu.memory_space<vmem>>, vector<8x128xf32>
    %cst_46 = arith.constant dense<0.000000e+00> : vector<128x128xf32>
    %132 = tpu.matmul %130, %131, %cst_46 {dimension_numbers = #tpu.dot_dimension_numbers<[1], [0], [0], [1], [0, 0, 1, 1], [], []>, precision = #tpu.contract_precision<fp32>} : vector<128x8xf32>, vector<8x128xf32>, vector<128x128xf32> -> vector<128x128xf32>
    %c0_47 = arith.constant 0 : index
    %c0_48 = arith.constant 0 : index
    %133 = vector.load %arg5[%c0_47, %c0_48] : memref<1x128xf32, #tpu.memory_space<vmem>>, vector<1x128xf32>
    %134 = vector.broadcast %133 : vector<1x128xf32> to vector<128x128xf32>
    %135 = arith.addf %132, %134 : vector<128x128xf32>
    %c0_49 = arith.constant 0 : index
    %c0_50 = arith.constant 0 : index
    %136 = vector.load %arg6[%c0_49, %c0_50] : memref<128x128xf32, #tpu.memory_space<vmem>>, vector<128x128xf32>
    tpu.vector_store %arg6[%c0_49, %c0_50], %135 {strides = array<i32>} : memref<128x128xf32, #tpu.memory_space<vmem>>, vector<128x128xf32>,
    return
  }
  func.func @transform_0(%arg0: i32) -> (i32, i32, i32) {
    %c0_i32 = arith.constant 0 : i32
    %c0_i32_0 = arith.constant 0 : i32
    %c0_i32_1 = arith.constant 0 : i32
    return %c0_i32, %arg0, %c0_i32_0 : i32, i32, i32
  }
  func.func @transform_1(%arg0: i32) -> (i32, i32) {
    %c0_i32 = arith.constant 0 : i32
    %c0_i32_0 = arith.constant 0 : i32
    %c0_i32_1 = arith.constant 0 : i32
    return %c0_i32, %c0_i32_0 : i32, i32
  }
  func.func @transform_2(%arg0: i32) -> (i32, i32) {
    %c0_i32 = arith.constant 0 : i32
    %c0_i32_0 = arith.constant 0 : i32
    %c0_i32_1 = arith.constant 0 : i32
    return %c0_i32, %c0_i32_0 : i32, i32
  }
  func.func @transform_3(%arg0: i32) -> (i32, i32) {
    %c0_i32 = arith.constant 0 : i32
    %c0_i32_0 = arith.constant 0 : i32
    %c0_i32_1 = arith.constant 0 : i32
    return %c0_i32, %c0_i32_0 : i32, i32
  }
  func.func @transform_4(%arg0: i32) -> (i32, i32) {
    %c0_i32 = arith.constant 0 : i32
    %c0_i32_0 = arith.constant 0 : i32
    %c0_i32_1 = arith.constant 0 : i32
    return %c0_i32, %c0_i32_0 : i32, i32
  }
  func.func @transform_5(%arg0: i32) -> (i32, i32) {
    %c0_i32 = arith.constant 0 : i32
    %c0_i32_0 = arith.constant 0 : i32
    return %arg0, %c0_i32 : i32, i32
  }
}

</mosaic_0001>

<llo_original>
// kernel: tpu_custom_call.1
$region0: #{tpu_custom_call.1}
  #allocation0 [shape = 'u32[]', space=smem, size = 0x4, offset = 0x4, fixed_abs, tag = 'smem constant byte address 0x4 - core index']
  #allocation1 [shape = 'u32[144,128]{1,0:T(1,128)}', space=vmem, size = 0x12000, scoped, tag = 'internal scratch']
  %s0 = inlined_call_operand.vmem [shape: f32[8,128,8], index: 0, kind: input, shape index: {}]
  %s1 = inlined_call_operand.vmem [shape: f32[8,8], index: 1, kind: input, shape index: {}]
  %s2 = inlined_call_operand.vmem [shape: f32[1,8], index: 2, kind: input, shape index: {}]
  %s3 = inlined_call_operand.vmem [shape: f32[8,128], index: 3, kind: input, shape index: {}]
  %s4 = inlined_call_operand.vmem [shape: f32[1,128], index: 4, kind: input, shape index: {}]
  %s5 = inlined_call_operand.hbm [shape: f32[128,128], index: 5, kind: output, shape index: {}]
  %s6 = sld [smem:[#allocation0]]
  $region30: #{tpu_custom_call.1} parent=0
    _
  %s8 = ssub.s32 1, %s6
  %s9 = scalar_select 0, %s8, %s6
  $region1: #{tpu_custom_call.1} parent=0
    #allocation2 [shape = 'u8[65536]{0}', space=vmem, size = 0x10000, scoped, tag = 'output window, operand 0, single buffered']
    #allocation3 [shape = 's32[1]{0}', space=sflag, size = 0x4, scoped, tag = 'scoped memory for tpu_custom_call.1']
    %10 = vsyncpa [#allocation3], 0
    // Predicated region
    $region2: #{tpu_custom_call.1} parent=1 // pred_check
      _
    $region3: #{tpu_custom_call.1} parent=1 // pred_check_branch
      %12 = sbr.rel (0) target = $region5
    $region4: #{tpu_custom_call.1} parent=1 // pred_region
      _
    $region5: #{tpu_custom_call.1} parent=1 // pred_fallthru
      _
    // Predicated region
    $region6: #{tpu_custom_call.1} parent=1 // pred_check
      _
    $region7: #{tpu_custom_call.1} parent=1 // pred_check_branch
      %14 = sbr.rel (0) target = $region9
    $region8: #{tpu_custom_call.1} parent=1 // pred_region
      _
    $region9: #{tpu_custom_call.1} parent=1 // pred_fallthru
      _
    // Predicated region
    $region10: #{tpu_custom_call.1} parent=1 // pred_check
      _
    $region11: #{tpu_custom_call.1} parent=1 // pred_check_branch
      %16 = sbr.rel (0) target = $region13
    $region12: #{tpu_custom_call.1} parent=1 // pred_region
      _
    $region13: #{tpu_custom_call.1} parent=1 // pred_fallthru
      _
    // Predicated region
    $region14: #{tpu_custom_call.1} parent=1 // pred_check
      _
    $region15: #{tpu_custom_call.1} parent=1 // pred_check_branch
      %18 = sbr.rel (0) target = $region17
    $region16: #{tpu_custom_call.1} parent=1 // pred_region
      _
    $region17: #{tpu_custom_call.1} parent=1 // pred_fallthru
      _
    // Predicated region
    $region18: #{tpu_custom_call.1} parent=1 // pred_check
      _
    $region19: #{tpu_custom_call.1} parent=1 // pred_check_branch
      %20 = sbr.rel (0) target = $region21
    $region20: #{tpu_custom_call.1} parent=1 // pred_region
      _
    $region21: #{tpu_custom_call.1} parent=1 // pred_fallthru
      _
    %v21 = vld [vmem:[%s1] sm:$0xff]
    %v22 = vld [vmem:[%s2] sm:$0x1]
    %v23 = vld [vmem:[%s0] sm:$0xff]
    %v24 = vld [vmem:[%s0 + $0x8] sm:$0xff]
    %v25 = vld [vmem:[%s0 + $0x10] sm:$0xff]
    %v26 = vld [vmem:[%s0 + $0x18] sm:$0xff]
    %v27 = vld [vmem:[%s0 + $0x20] sm:$0xff]
    %v28 = vld [vmem:[%s0 + $0x28] sm:$0xff]
    %v29 = vld [vmem:[%s0 + $0x30] sm:$0xff]
    %v30 = vld [vmem:[%s0 + $0x38] sm:$0xff]
    %v31 = vld [vmem:[%s0 + $0x40] sm:$0xff]
    %v32 = vld [vmem:[%s0 + $0x48] sm:$0xff]
    %v33 = vld [vmem:[%s0 + $0x50] sm:$0xff]
    %v34 = vld [vmem:[%s0 + $0x58] sm:$0xff]
    %v35 = vld [vmem:[%s0 + $0x60] sm:$0xff]
    %v36 = vld [vmem:[%s0 + $0x68] sm:$0xff]
    %v37 = vld [vmem:[%s0 + $0x70] sm:$0xff]
    %v38 = vld [vmem:[%s0 + $0x78] sm:$0xff]
    %v40 = vlaneseq
    %v41 = vshrl.u32 %v40, 7
    %v42 = vsub.s32 0, %v41
    %v43 = vrot.slane %v22, %v42
    %vm45 = vcmask 64512
    %v47 = vsel %vm45, %v23, 0
    %v50 = vsel %vm45, %v24, 0
    %v53 = vsel %vm45, %v25, 0
    %v56 = vsel %vm45, %v26, 0
    %v59 = vsel %vm45, %v27, 0
    %v62 = vsel %vm45, %v28, 0
    %v65 = vsel %vm45, %v29, 0
    %v68 = vsel %vm45, %v30, 0
    %v71 = vsel %vm45, %v31, 0
    %v74 = vsel %vm45, %v32, 0
    %v77 = vsel %vm45, %v33, 0
    %v80 = vsel %vm45, %v34, 0
    %v83 = vsel %vm45, %v35, 0
    %v86 = vsel %vm45, %v36, 0
    %v89 = vsel %vm45, %v37, 0
    %v92 = vsel %vm45, %v38, 0
    %94 = vmatprep.subr.mxu0 0.0
    %v95 = vand.u32 %v21, 4294901760
    %96 = vmatpush1.msra.mxu0 %v95
    %97 = vmatprep.subr.mxu0 0.0
    %98 = vmatpush1.msra.mxu0 0.0
    %99 = vmatprep.subr.mxu0 0.0
    %100 = vmatpush1.msra.mxu0 0.0
    %101 = vmatprep.subr.mxu0 0.0
    %102 = vmatpush1.msra.mxu0 0.0
    %103 = vmatprep.subr.mxu0 0.0
    %104 = vmatpush1.msra.mxu0 0.0
    %105 = vmatprep.subr.mxu0 0.0
    %106 = vmatpush1.msra.mxu0 0.0
    %107 = vmatprep.subr.mxu0 0.0
    %108 = vmatpush1.msra.mxu0 0.0
    %109 = vmatprep.subr.mxu0 0.0
    %110 = vmatpush1.msra.mxu0 0.0
    %111 = vmatprep.subr.mxu0 0.0
    %112 = vmatpush1.msra.mxu0 0.0
    %113 = vmatprep.subr.mxu0 0.0
    %114 = vmatpush1.msra.mxu0 0.0
    %115 = vmatprep.subr.mxu0 0.0
    %116 = vmatpush1.msra.mxu0 0.0
    %117 = vmatprep.subr.mxu0 0.0
    %118 = vmatpush1.msra.mxu0 0.0
    %119 = vmatprep.subr.mxu0 0.0
    %120 = vmatpush1.msra.mxu0 0.0
    %121 = vmatprep.subr.mxu0 0.0
    %122 = vmatpush1.msra.mxu0 0.0
    %123 = vmatprep.subr.mxu0 0.0
    %124 = vmatpush1.msra.mxu0 0.0
    %125 = vmatprep.subr.mxu0 0.0
    %126 = vmatpush1.msra.mxu0 0.0
    %127 = vmatprep.subr.mxu0 0.0
    %128 = vmatpush1.msra.mxu0 0.0
    %129 = vmatprep.subr.mxu0 0.0
    %130 = vmatpush1.msra.mxu0 0.0
    %131 = vmatprep.subr.mxu0 0.0
    %132 = vmatpush1.msra.mxu0 0.0
    %133 = vmatprep.subr.mxu0 0.0
    %134 = vmatpush1.msra.mxu0 0.0
    %135 = vmatprep.subr.mxu0 0.0
    %136 = vmatpush1.msra.mxu0 0.0
    %137 = vmatprep.subr.mxu0 0.0
    %138 = vmatpush1.msra.mxu0 0.0
    %139 = vmatprep.subr.mxu0 0.0
    %140 = vmatpush1.msra.mxu0 0.0
    %141 = vmatprep.subr.mxu0 0.0
    %142 = vmatpush1.msra.mxu0 0.0
    %143 = vmatprep.subr.mxu0 0.0
    %144 = vmatpush1.msra.mxu0 0.0
    %145 = vmatprep.subr.mxu0 0.0
    %146 = vmatpush1.msra.mxu0 0.0
    %147 = vmatprep.subr.mxu0 0.0
    %148 = vmatpush1.msra.mxu0 0.0
    %149 = vmatprep.subr.mxu0 0.0
    %150 = vmatpush1.msra.mxu0 0.0
    %151 = vmatprep.subr.mxu0 0.0
    %152 = vmatpush1.msra.mxu0 0.0
    %153 = vmatprep.subr.mxu0 0.0
    %154 = vmatpush1.msra.mxu0 0.0
    %155 = vmatprep.subr.mxu0 0.0
    %156 = vmatpush1.msra.mxu0 0.0
    %157 = vmatprep.subr.mxu0 0.0
    %158 = vmatpush1.msra.mxu0 0.0
    %159 = vmatprep.mubr.f32.mxu0 0.0
    %v160 = vand.u32 %v47, 4294901760
    %v161 = vsub.f32 %v47, %v160
    %v162 = vand.u32 %v161, 4294901760
    %v163 = vsub.f32 %v161, %v162
    %v164 = vand.u32 %v163, 4294901760
    %165 = vmatmul.mubr.f32.gmra.mrb[0].mxu0 %v164
    %v166 = vpop.f32.mrb[0].mxu0
    %v167 = vadd.f32 %v43, %v166
    %v168 = vpop.f32.mrb[0].mxu0
    %169 = vmatprep.mubr.f32.mxu0 0.0
    %v170 = vand.u32 %v50, 4294901760
    %v171 = vsub.f32 %v50, %v170
    %v172 = vand.u32 %v171, 4294901760
    %v173 = vsub.f32 %v171, %v172
    %v174 = vand.u32 %v173, 4294901760
    %175 = vmatmul.mubr.f32.gmra.mrb[0].mxu0 %v174
    %v176 = vpop.f32.mrb[0].mxu0
    %v177 = vadd.f32 %v43, %v176
    %v178 = vpop.f32.mrb[0].mxu0
    %179 = vmatprep.mubr.f32.mxu0 0.0
    %v180 = vand.u32 %v53, 4294901760
    %v181 = vsub.f32 %v53, %v180
    %v182 = vand.u32 %v181, 4294901760
    %v183 = vsub.f32 %v181, %v182
    %v184 = vand.u32 %v183, 4294901760
    %185 = vmatmul.mubr.f32.gmra.mrb[0].mxu0 %v184
    %v186 = vpop.f32.mrb[0].mxu0
    %v187 = vadd.f32 %v43, %v186
    %v188 = vpop.f32.mrb[0].mxu0
    %189 = vmatprep.mubr.f32.mxu0 0.0
    %v190 = vand.u32 %v56, 4294901760
    %v191 = vsub.f32 %v56, %v190
    %v192 = vand.u32 %v191, 4294901760
    %v193 = vsub.f32 %v191, %v192
    %v194 = vand.u32 %v193, 4294901760
    %195 = vmatmul.mubr.f32.gmra.mrb[0].mxu0 %v194
    %v196 = vpop.f32.mrb[0].mxu0
    %v197 = vadd.f32 %v43, %v196
    %v198 = vpop.f32.mrb[0].mxu0
    %199 = vmatprep.mubr.f32.mxu0 0.0
    %v200 = vand.u32 %v59, 4294901760
    %v201 = vsub.f32 %v59, %v200
    %v202 = vand.u32 %v201, 4294901760
    %v203 = vsub.f32 %v201, %v202
    %v204 = vand.u32 %v203, 4294901760
    %205 = vmatmul.mubr.f32.gmra.mrb[0].mxu0 %v204
    %v206 = vpop.f32.mrb[0].mxu0
    %v207 = vadd.f32 %v43, %v206
    %v208 = vpop.f32.mrb[0].mxu0
    %209 = vmatprep.mubr.f32.mxu0 0.0
    %v210 = vand.u32 %v62, 4294901760
    %v211 = vsub.f32 %v62, %v210
    %v212 = vand.u32 %v211, 4294901760
    %v213 = vsub.f32 %v211, %v212
    %v214 = vand.u32 %v213, 4294901760
    %215 = vmatmul.mubr.f32.gmra.mrb[0].mxu0 %v214
    %v216 = vpop.f32.mrb[0].mxu0
    %v217 = vadd.f32 %v43, %v216
    %v218 = vpop.f32.mrb[0].mxu0
    %219 = vmatprep.mubr.f32.mxu0 0.0
    %v220 = vand.u32 %v65, 4294901760
    %v221 = vsub.f32 %v65, %v220
    %v222 = vand.u32 %v221, 4294901760
    %v223 = vsub.f32 %v221, %v222
    %v224 = vand.u32 %v223, 4294901760
    %225 = vmatmul.mubr.f32.gmra.mrb[0].mxu0 %v224
    %v226 = vpop.f32.mrb[0].mxu0
    %v227 = vadd.f32 %v43, %v226
    %v228 = vpop.f32.mrb[0].mxu0
    %229 = vmatprep.mubr.f32.mxu0 0.0
    %v230 = vand.u32 %v68, 4294901760
    %v231 = vsub.f32 %v68, %v230
    %v232 = vand.u32 %v231, 4294901760
    %v233 = vsub.f32 %v231, %v232
    %v234 = vand.u32 %v233, 4294901760
    %235 = vmatmul.mubr.f32.gmra.mrb[0].mxu0 %v234
    %v236 = vpop.f32.mrb[0].mxu0
    %v237 = vadd.f32 %v43, %v236
    %v238 = vpop.f32.mrb[0].mxu0
    %239 = vmatprep.mubr.f32.mxu0 0.0
    %v240 = vand.u32 %v71, 4294901760
    %v241 = vsub.f32 %v71, %v240
    %v242 = vand.u32 %v241, 4294901760
    %v243 = vsub.f32 %v241, %v242
    %v244 = vand.u32 %v243, 4294901760
    %245 = vmatmul.mubr.f32.gmra.mrb[0].mxu0 %v244
    %v246 = vpop.f32.mrb[0].mxu0
    %v247 = vadd.f32 %v43, %v246
    %v248 = vpop.f32.mrb[0].mxu0
    %249 = vmatprep.mubr.f32.mxu0 0.0
    %v250 = vand.u32 %v74, 4294901760
    %v251 = vsub.f32 %v74, %v250
    %v252 = vand.u32 %v251, 4294901760
    %v253 = vsub.f32 %v251, %v252
    %v254 = vand.u32 %v253, 4294901760
    %255 = vmatmul.mubr.f32.gmra.mrb[0].mxu0 %v254
    %v256 = vpop.f32.mrb[0].mxu0
    %v257 = vadd.f32 %v43, %v256
    %v258 = vpop.f32.mrb[0].mxu0
    %259 = vmatprep.mubr.f32.mxu0 0.0
    %v260 = vand.u32 %v77, 4294901760
    %v261 = vsub.f32 %v77, %v260
    %v262 = vand.u32 %v261, 4294901760
    %v263 = vsub.f32 %v261, %v262
    %v264 = vand.u32 %v263, 4294901760
    %265 = vmatmul.mubr.f32.gmra.mrb[0].mxu0 %v264
    %v266 = vpop.f32.mrb[0].mxu0
    %v267 = vadd.f32 %v43, %v266
    %v268 = vpop.f32.mrb[0].mxu0
    %269 = vmatprep.mubr.f32.mxu0 0.0
    %v270 = vand.u32 %v80, 4294901760
    %v271 = vsub.f32 %v80, %v270
    %v272 = vand.u32 %v271, 4294901760
    %v273 = vsub.f32 %v271, %v272
    %v274 = vand.u32 %v273, 4294901760
    %275 = vmatmul.mubr.f32.gmra.mrb[0].mxu0 %v274
    %v276 = vpop.f32.mrb[0].mxu0
    %v277 = vadd.f32 %v43, %v276
    %v278 = vpop.f32.mrb[0].mxu0
    %279 = vmatprep.mubr.f32.mxu0 0.0
    %v280 = vand.u32 %v83, 4294901760
    %v281 = vsub.f32 %v83, %v280
    %v282 = vand.u32 %v281, 4294901760
    %v283 = vsub.f32 %v281, %v282
    %v284 = vand.u32 %v283, 4294901760
    %285 = vmatmul.mubr.f32.gmra.mrb[0].mxu0 %v284
    %v286 = vpop.f32.mrb[0].mxu0
    %v287 = vadd.f32 %v43, %v286
    %v288 = vpop.f32.mrb[0].mxu0
    %289 = vmatprep.mubr.f32.mxu0 0.0
    %v290 = vand.u32 %v86, 4294901760
    %v291 = vsub.f32 %v86, %v290
    %v292 = vand.u32 %v291, 4294901760
    %v293 = vsub.f32 %v291, %v292
    %v294 = vand.u32 %v293, 4294901760
    %295 = vmatmul.mubr.f32.gmra.mrb[0].mxu0 %v294
    %v296 = vpop.f32.mrb[0].mxu0
    %v297 = vadd.f32 %v43, %v296
    %v298 = vpop.f32.mrb[0].mxu0
    %299 = vmatprep.mubr.f32.mxu0 0.0
    %v300 = vand.u32 %v89, 4294901760
    %v301 = vsub.f32 %v89, %v300
    %v302 = vand.u32 %v301, 4294901760
    %v303 = vsub.f32 %v301, %v302
    %v304 = vand.u32 %v303, 4294901760
    %305 = vmatmul.mubr.f32.gmra.mrb[0].mxu0 %v304
    %v306 = vpop.f32.mrb[0].mxu0
    %v307 = vadd.f32 %v43, %v306
    %v308 = vpop.f32.mrb[0].mxu0
    %309 = vmatprep.mubr.f32.mxu0 0.0
    %v310 = vand.u32 %v92, 4294901760
    %v311 = vsub.f32 %v92, %v310
    %v312 = vand.u32 %v311, 4294901760
    %v313 = vsub.f32 %v311, %v312
    %v314 = vand.u32 %v313, 4294901760
    %315 = vmatmul.mubr.f32.gmra.mrb[0].mxu0 %v314
    %v316 = vpop.f32.mrb[0].mxu0
    %v317 = vadd.f32 %v43, %v316
    %v318 = vpop.f32.mrb[0].mxu0
    %319 = vdwg.mxu0
    %320 = vmatprep.subr.mxu0 0.0
    %v321 = vand.u32 %v21, 4294901760
    %v322 = vsub.f32 %v21, %v321
    %v323 = vand.u32 %v322, 4294901760
    %v324 = vsub.f32 %v322, %v323
    %v325 = vand.u32 %v324, 4294901760
    %326 = vmatpush1.msra.mxu0 %v325
    %327 = vmatprep.subr.mxu0 0.0
    %328 = vmatpush1.msra.mxu0 0.0
    %329 = vmatprep.subr.mxu0 0.0
    %330 = vmatpush1.msra.mxu0 0.0
    %331 = vmatprep.subr.mxu0 0.0
    %332 = vmatpush1.msra.mxu0 0.0
    %333 = vmatprep.subr.mxu0 0.0
    %334 = vmatpush1.msra.mxu0 0.0
    %335 = vmatprep.subr.mxu0 0.0
    %336 = vmatpush1.msra.mxu0 0.0
    %337 = vmatprep.subr.mxu0 0.0
    %338 = vmatpush1.msra.mxu0 0.0
    %339 = vmatprep.subr.mxu0 0.0
    %340 = vmatpush1.msra.mxu0 0.0
    %341 = vmatprep.subr.mxu0 0.0
    %342 = vmatpush1.msra.mxu0 0.0
    %343 = vmatprep.subr.mxu0 0.0
    %344 = vmatpush1.msra.mxu0 0.0
    %345 = vmatprep.subr.mxu0 0.0
    %346 = vmatpush1.msra.mxu0 0.0
    %347 = vmatprep.subr.mxu0 0.0
    %348 = vmatpush1.msra.mxu0 0.0
    %349 = vmatprep.subr.mxu0 0.0
    %350 = vmatpush1.msra.mxu0 0.0
    %351 = vmatprep.subr.mxu0 0.0
    %352 = vmatpush1.msra.mxu0 0.0
    %353 = vmatprep.subr.mxu0 0.0
    %354 = vmatpush1.msra.mxu0 0.0
    %355 = vmatprep.subr.mxu0 0.0
    %356 = vmatpush1.msra.mxu0 0.0
    %357 = vmatprep.subr.mxu0 0.0
    %358 = vmatpush1.msra.mxu0 0.0
    %359 = vmatprep.subr.mxu0 0.0
    %360 = vmatpush1.msra.mxu0 0.0
    %361 = vmatprep.subr.mxu0 0.0
    %362 = vmatpush1.msra.mxu0 0.0
    %363 = vmatprep.subr.mxu0 0.0
    %364 = vmatpush1.msra.mxu0 0.0
    %365 = vmatprep.subr.mxu0 0.0
    %366 = vmatpush1.msra.mxu0 0.0
    %367 = vmatprep.subr.mxu0 0.0
    %368 = vmatpush1.msra.mxu0 0.0
    %369 = vmatprep.subr.mxu0 0.0
    %370 = vmatpush1.msra.mxu0 0.0
    %371 = vmatprep.subr.mxu0 0.0
    %372 = vmatpush1.msra.mxu0 0.0
    %373 = vmatprep.subr.mxu0 0.0
    %374 = vmatpush1.msra.mxu0 0.0
    %375 = vmatprep.subr.mxu0 0.0
    %376 = vmatpush1.msra.mxu0 0.0
    %377 = vmatprep.subr.mxu0 0.0
    %378 = vmatpush1.msra.mxu0 0.0
    %379 = vmatprep.subr.mxu0 0.0
    %380 = vmatpush1.msra.mxu0 0.0
    %381 = vmatprep.subr.mxu0 0.0
    %382 = vmatpush1.msra.mxu0 0.0
    %383 = vmatprep.subr.mxu0 0.0
    %384 = vmatpush1.msra.mxu0 0.0
    %385 = vmatprep.subr.mxu0 0.0
    %386 = vmatpush1.msra.mxu0 0.0
    %387 = vmatprep.subr.mxu0 0.0
    %388 = vmatpush1.msra.mxu0 0.0
    %389 = vmatprep.mubr.f32.mxu0 0.0
    %v390 = vand.u32 %v47, 4294901760
    %391 = vmatmul.mubr.f32.gmra.mrb[0].mxu0 %v390
    %v392 = vpop.f32.mrb[0].mxu0
    %v393 = vadd.f32 %v167, %v392
    %v394 = vpop.f32.mrb[0].mxu0
    %395 = vmatprep.mubr.f32.mxu0 0.0
    %v396 = vand.u32 %v50, 4294901760
    %397 = vmatmul.mubr.f32.gmra.mrb[0].mxu0 %v396
    %v398 = vpop.f32.mrb[0].mxu0
    %v399 = vadd.f32 %v177, %v398
    %v400 = vpop.f32.mrb[0].mxu0
    %401 = vmatprep.mubr.f32.mxu0 0.0
    %v402 = vand.u32 %v53, 4294901760
    %403 = vmatmul.mubr.f32.gmra.mrb[0].mxu0 %v402
    %v404 = vpop.f32.mrb[0].mxu0
    %v405 = vadd.f32 %v187, %v404
    %v406 = vpop.f32.mrb[0].mxu0
    %407 = vmatprep.mubr.f32.mxu0 0.0
    %v408 = vand.u32 %v56, 4294901760
    %409 = vmatmul.mubr.f32.gmra.mrb[0].mxu0 %v408
    %v410 = vpop.f32.mrb[0].mxu0
    %v411 = vadd.f32 %v197, %v410
    %v412 = vpop.f32.mrb[0].mxu0
    %413 = vmatprep.mubr.f32.mxu0 0.0
    %v414 = vand.u32 %v59, 4294901760
    %415 = vmatmul.mubr.f32.gmra.mrb[0].mxu0 %v414
    %v416 = vpop.f32.mrb[0].mxu0
    %v417 = vadd.f32 %v207, %v416
    %v418 = vpop.f32.mrb[0].mxu0
    %419 = vmatprep.mubr.f32.mxu0 0.0
    %v420 = vand.u32 %v62, 4294901760
    %421 = vmatmul.mubr.f32.gmra.mrb[0].mxu0 %v420
    %v422 = vpop.f32.mrb[0].mxu0
    %v423 = vadd.f32 %v217, %v422
    %v424 = vpop.f32.mrb[0].mxu0
    %425 = vmatprep.mubr.f32.mxu0 0.0
    %v426 = vand.u32 %v65, 4294901760
    %427 = vmatmul.mubr.f32.gmra.mrb[0].mxu0 %v426
    %v428 = vpop.f32.mrb[0].mxu0
    %v429 = vadd.f32 %v227, %v428
    %v430 = vpop.f32.mrb[0].mxu0
    %431 = vmatprep.mubr.f32.mxu0 0.0
    %v432 = vand.u32 %v68, 4294901760
    %433 = vmatmul.mubr.f32.gmra.mrb[0].mxu0 %v432
    %v434 = vpop.f32.mrb[0].mxu0
    %v435 = vadd.f32 %v237, %v434
    %v436 = vpop.f32.mrb[0].mxu0
    %437 = vmatprep.mubr.f32.mxu0 0.0
    %v438 = vand.u32 %v71, 4294901760
    %439 = vmatmul.mubr.f32.gmra.mrb[0].mxu0 %v438
    %v440 = vpop.f32.mrb[0].mxu0
    %v441 = vadd.f32 %v247, %v440
    %v442 = vpop.f32.mrb[0].mxu0
    %443 = vmatprep.mubr.f32.mxu0 0.0
    %v444 = vand.u32 %v74, 4294901760
    %445 = vmatmul.mubr.f32.gmra.mrb[0].mxu0 %v444
    %v446 = vpop.f32.mrb[0].mxu0
    %v447 = vadd.f32 %v257, %v446
    %v448 = vpop.f32.mrb[0].mxu0
    %449 = vmatprep.mubr.f32.mxu0 0.0
    %v450 = vand.u32 %v77, 4294901760
    %451 = vmatmul.mubr.f32.gmra.mrb[0].mxu0 %v450
    %v452 = vpop.f32.mrb[0].mxu0
    %v453 = vadd.f32 %v267, %v452
    %v454 = vpop.f32.mrb[0].mxu0
    %455 = vmatprep.mubr.f32.mxu0 0.0
    %v456 = vand.u32 %v80, 4294901760
    %457 = vmatmul.mubr.f32.gmra.mrb[0].mxu0 %v456
    %v458 = vpop.f32.mrb[0].mxu0
    %v459 = vadd.f32 %v277, %v458
    %v460 = vpop.f32.mrb[0].mxu0
    %461 = vmatprep.mubr.f32.mxu0 0.0
    %v462 = vand.u32 %v83, 4294901760
    %463 = vmatmul.mubr.f32.gmra.mrb[0].mxu0 %v462
    %v464 = vpop.f32.mrb[0].mxu0
    %v465 = vadd.f32 %v287, %v464
    %v466 = vpop.f32.mrb[0].mxu0
    %467 = vmatprep.mubr.f32.mxu0 0.0
    %v468 = vand.u32 %v86, 4294901760
    %469 = vmatmul.mubr.f32.gmra.mrb[0].mxu0 %v468
    %v470 = vpop.f32.mrb[0].mxu0
    %v471 = vadd.f32 %v297, %v470
    %v472 = vpop.f32.mrb[0].mxu0
    %473 = vmatprep.mubr.f32.mxu0 0.0
    %v474 = vand.u32 %v89, 4294901760
    %475 = vmatmul.mubr.f32.gmra.mrb[0].mxu0 %v474
    %v476 = vpop.f32.mrb[0].mxu0
    %v477 = vadd.f32 %v307, %v476
    %v478 = vpop.f32.mrb[0].mxu0
    %479 = vmatprep.mubr.f32.mxu0 0.0
    %v480 = vand.u32 %v92, 4294901760
    %481 = vmatmul.mubr.f32.gmra.mrb[0].mxu0 %v480
    %v482 = vpop.f32.mrb[0].mxu0
    %v483 = vadd.f32 %v317, %v482
    %v484 = vpop.f32.mrb[0].mxu0
    %485 = vdwg.mxu0
    %486 = vmatprep.subr.mxu0 0.0
    %v487 = vand.u32 %v21, 4294901760
    %v488 = vsub.f32 %v21, %v487
    %489 = vmatpush1.msra.mxu0 %v488
    %490 = vmatprep.subr.mxu0 0.0
    %491 = vmatpush1.msra.mxu0 0.0
    %492 = vmatprep.subr.mxu0 0.0
    %493 = vmatpush1.msra.mxu0 0.0
    %494 = vmatprep.subr.mxu0 0.0
    %495 = vmatpush1.msra.mxu0 0.0
    %496 = vmatprep.subr.mxu0 0.0
    %497 = vmatpush1.msra.mxu0 0.0
    %498 = vmatprep.subr.mxu0 0.0
    %499 = vmatpush1.msra.mxu0 0.0
    %500 = vmatprep.subr.mxu0 0.0
    %501 = vmatpush1.msra.mxu0 0.0
    %502 = vmatprep.subr.mxu0 0.0
    %503 = vmatpush1.msra.mxu0 0.0
    %504 = vmatprep.subr.mxu0 0.0
    %505 = vmatpush1.msra.mxu0 0.0
    %506 = vmatprep.subr.mxu0 0.0
    %507 = vmatpush1.msra.mxu0 0.0
    %508 = vmatprep.subr.mxu0 0.0
    %509 = vmatpush1.msra.mxu0 0.0
    %510 = vmatprep.subr.mxu0 0.0
    %511 = vmatpush1.msra.mxu0 0.0
    %512 = vmatprep.subr.mxu0 0.0
    %513 = vmatpush1.msra.mxu0 0.0
    %514 = vmatprep.subr.mxu0 0.0
    %515 = vmatpush1.msra.mxu0 0.0
    %516 = vmatprep.subr.mxu0 0.0
    %517 = vmatpush1.msra.mxu0 0.0
    %518 = vmatprep.subr.mxu0 0.0
    %519 = vmatpush1.msra.mxu0 0.0
    %520 = vmatprep.subr.mxu0 0.0
    %521 = vmatpush1.msra.mxu0 0.0
    %522 = vmatprep.subr.mxu0 0.0
    %523 = vmatpush1.msra.mxu0 0.0
    %524 = vmatprep.subr.mxu0 0.0
    %525 = vmatpush1.msra.mxu0 0.0
    %526 = vmatprep.subr.mxu0 0.0
    %527 = vmatpush1.msra.mxu0 0.0
    %528 = vmatprep.subr.mxu0 0.0
    %529 = vmatpush1.msra.mxu0 0.0
    %530 = vmatprep.subr.mxu0 0.0
    %531 = vmatpush1.msra.mxu0 0.0
    %532 = vmatprep.subr.mxu0 0.0
    %533 = vmatpush1.msra.mxu0 0.0
    %534 = vmatprep.subr.mxu0 0.0
    %535 = vmatpush1.msra.mxu0 0.0
    %536 = vmatprep.subr.mxu0 0.0
    %537 = vmatpush1.msra.mxu0 0.0
    %538 = vmatprep.subr.mxu0 0.0
    %539 = vmatpush1.msra.mxu0 0.0
    %540 = vmatprep.subr.mxu0 0.0
    %541 = vmatpush1.msra.mxu0 0.0
    %542 = vmatprep.subr.mxu0 0.0
    %543 = vmatpush1.msra.mxu0 0.0
    %544 = vmatprep.subr.mxu0 0.0
    %545 = vmatpush1.msra.mxu0 0.0
    %546 = vmatprep.subr.mxu0 0.0
    %547 = vmatpush1.msra.mxu0 0.0
    %548 = vmatprep.subr.mxu0 0.0
    %549 = vmatpush1.msra.mxu0 0.0
    %550 = vmatprep.subr.mxu0 0.0
    %551 = vmatpush1.msra.mxu0 0.0
    %552 = vmatprep.mubr.f32.mxu0 0.0
    %v553 = vand.u32 %v47, 4294901760
    %v554 = vsub.f32 %v47, %v553
    %555 = vmatmul.mubr.f32.gmra.mrb[0].mxu0 %v554
    %v556 = vpop.f32.mrb[0].mxu0
    %v557 = vadd.f32 %v393, %v556
    %v558 = vpop.f32.mrb[0].mxu0
    %559 = vmatprep.mubr.f32.mxu0 0.0
    %v560 = vand.u32 %v50, 4294901760
    %v561 = vsub.f32 %v50, %v560
    %562 = vmatmul.mubr.f32.gmra.mrb[0].mxu0 %v561
    %v563 = vpop.f32.mrb[0].mxu0
    %v564 = vadd.f32 %v399, %v563
    %v565 = vpop.f32.mrb[0].mxu0
    %566 = vmatprep.mubr.f32.mxu0 0.0
    %v567 = vand.u32 %v53, 4294901760
    %v568 = vsub.f32 %v53, %v567
    %569 = vmatmul.mubr.f32.gmra.mrb[0].mxu0 %v568
    %v570 = vpop.f32.mrb[0].mxu0
    %v571 = vadd.f32 %v405, %v570
    %v572 = vpop.f32.mrb[0].mxu0
    %573 = vmatprep.mubr.f32.mxu0 0.0
    %v574 = vand.u32 %v56, 4294901760
    %v575 = vsub.f32 %v56, %v574
    %576 = vmatmul.mubr.f32.gmra.mrb[0].mxu0 %v575
    %v577 = vpop.f32.mrb[0].mxu0
    %v578 = vadd.f32 %v411, %v577
    %v579 = vpop.f32.mrb[0].mxu0
    %580 = vmatprep.mubr.f32.mxu0 0.0
    %v581 = vand.u32 %v59, 4294901760
    %v582 = vsub.f32 %v59, %v581
    %583 = vmatmul.mubr.f32.gmra.mrb[0].mxu0 %v582
    %v584 = vpop.f32.mrb[0].mxu0
    %v585 = vadd.f32 %v417, %v584
    %v586 = vpop.f32.mrb[0].mxu0
    %587 = vmatprep.mubr.f32.mxu0 0.0
    %v588 = vand.u32 %v62, 4294901760
    %v589 = vsub.f32 %v62, %v588
    %590 = vmatmul.mubr.f32.gmra.mrb[0].mxu0 %v589
    %v591 = vpop.f32.mrb[0].mxu0
    %v592 = vadd.f32 %v423, %v591
    %v593 = vpop.f32.mrb[0].mxu0
    %594 = vmatprep.mubr.f32.mxu0 0.0
    %v595 = vand.u32 %v65, 4294901760
    %v596 = vsub.f32 %v65, %v595
    %597 = vmatmul.mubr.f32.gmra.mrb[0].mxu0 %v596
    %v598 = vpop.f32.mrb[0].mxu0
    %v599 = vadd.f32 %v429, %v598
    %v600 = vpop.f32.mrb[0].mxu0
    %601 = vmatprep.mubr.f32.mxu0 0.0
    %v602 = vand.u32 %v68, 4294901760
    %v603 = vsub.f32 %v68, %v602
    %604 = vmatmul.mubr.f32.gmra.mrb[0].mxu0 %v603
    %v605 = vpop.f32.mrb[0].mxu0
    %v606 = vadd.f32 %v435, %v605
    %v607 = vpop.f32.mrb[0].mxu0
    %608 = vmatprep.mubr.f32.mxu0 0.0
    %v609 = vand.u32 %v71, 4294901760
    %v610 = vsub.f32 %v71, %v609
    %611 = vmatmul.mubr.f32.gmra.mrb[0].mxu0 %v610
    %v612 = vpop.f32.mrb[0].mxu0
    %v613 = vadd.f32 %v441, %v612
    %v614 = vpop.f32.mrb[0].mxu0
    %615 = vmatprep.mubr.f32.mxu0 0.0
    %v616 = vand.u32 %v74, 4294901760
    %v617 = vsub.f32 %v74, %v616
    %618 = vmatmul.mubr.f32.gmra.mrb[0].mxu0 %v617
    %v619 = vpop.f32.mrb[0].mxu0
    %v620 = vadd.f32 %v447, %v619
    %v621 = vpop.f32.mrb[0].mxu0
    %622 = vmatprep.mubr.f32.mxu0 0.0
    %v623 = vand.u32 %v77, 4294901760
    %v624 = vsub.f32 %v77, %v623
    %625 = vmatmul.mubr.f32.gmra.mrb[0].mxu0 %v624
    %v626 = vpop.f32.mrb[0].mxu0
    %v627 = vadd.f32 %v453, %v626
    %v628 = vpop.f32.mrb[0].mxu0
    %629 = vmatprep.mubr.f32.mxu0 0.0
    %v630 = vand.u32 %v80, 4294901760
    %v631 = vsub.f32 %v80, %v630
    %632 = vmatmul.mubr.f32.gmra.mrb[0].mxu0 %v631
    %v633 = vpop.f32.mrb[0].mxu0
    %v634 = vadd.f32 %v459, %v633
    %v635 = vpop.f32.mrb[0].mxu0
    %636 = vmatprep.mubr.f32.mxu0 0.0
    %v637 = vand.u32 %v83, 4294901760
    %v638 = vsub.f32 %v83, %v637
    %639 = vmatmul.mubr.f32.gmra.mrb[0].mxu0 %v638
    %v640 = vpop.f32.mrb[0].mxu0
    %v641 = vadd.f32 %v465, %v640
    %v642 = vpop.f32.mrb[0].mxu0
    %643 = vmatprep.mubr.f32.mxu0 0.0
    %v644 = vand.u32 %v86, 4294901760
    %v645 = vsub.f32 %v86, %v644
    %646 = vmatmul.mubr.f32.gmra.mrb[0].mxu0 %v645
    %v647 = vpop.f32.mrb[0].mxu0
    %v648 = vadd.f32 %v471, %v647
    %v649 = vpop.f32.mrb[0].mxu0
    %650 = vmatprep.mubr.f32.mxu0 0.0
    %v651 = vand.u32 %v89, 4294901760
    %v652 = vsub.f32 %v89, %v651
    %653 = vmatmul.mubr.f32.gmra.mrb[0].mxu0 %v652
    %v654 = vpop.f32.mrb[0].mxu0
    %v655 = vadd.f32 %v477, %v654
    %v656 = vpop.f32.mrb[0].mxu0
    %657 = vmatprep.mubr.f32.mxu0 0.0
    %v658 = vand.u32 %v92, 4294901760
    %v659 = vsub.f32 %v92, %v658
    %660 = vmatmul.mubr.f32.gmra.mrb[0].mxu0 %v659
    %v661 = vpop.f32.mrb[0].mxu0
    %v662 = vadd.f32 %v483, %v661
    %v663 = vpop.f32.mrb[0].mxu0
    %664 = vdwg.mxu0
    %665 = vmatprep.subr.mxu0 0.0
    %v666 = vand.u32 %v21, 4294901760
    %667 = vmatpush1.msra.mxu0 %v666
    %668 = vmatprep.subr.mxu0 0.0
    %669 = vmatpush1.msra.mxu0 0.0
    %670 = vmatprep.subr.mxu0 0.0
    %671 = vmatpush1.msra.mxu0 0.0
    %672 = vmatprep.subr.mxu0 0.0
    %673 = vmatpush1.msra.mxu0 0.0
    %674 = vmatprep.subr.mxu0 0.0
    %675 = vmatpush1.msra.mxu0 0.0
    %676 = vmatprep.subr.mxu0 0.0
    %677 = vmatpush1.msra.mxu0 0.0
    %678 = vmatprep.subr.mxu0 0.0
    %679 = vmatpush1.msra.mxu0 0.0
    %680 = vmatprep.subr.mxu0 0.0
    %681 = vmatpush1.msra.mxu0 0.0
    %682 = vmatprep.subr.mxu0 0.0
    %683 = vmatpush1.msra.mxu0 0.0
    %684 = vmatprep.subr.mxu0 0.0
    %685 = vmatpush1.msra.mxu0 0.0
    %686 = vmatprep.subr.mxu0 0.0
    %687 = vmatpush1.msra.mxu0 0.0
    %688 = vmatprep.subr.mxu0 0.0
    %689 = vmatpush1.msra.mxu0 0.0
    %690 = vmatprep.subr.mxu0 0.0
    %691 = vmatpush1.msra.mxu0 0.0
    %692 = vmatprep.subr.mxu0 0.0
    %693 = vmatpush1.msra.mxu0 0.0
    %694 = vmatprep.subr.mxu0 0.0
    %695 = vmatpush1.msra.mxu0 0.0
    %696 = vmatprep.subr.mxu0 0.0
    %697 = vmatpush1.msra.mxu0 0.0
    %698 = vmatprep.subr.mxu0 0.0
    %699 = vmatpush1.msra.mxu0 0.0
    %700 = vmatprep.subr.mxu0 0.0
    %701 = vmatpush1.msra.mxu0 0.0
    %702 = vmatprep.subr.mxu0 0.0
    %703 = vmatpush1.msra.mxu0 0.0
    %704 = vmatprep.subr.mxu0 0.0
    %705 = vmatpush1.msra.mxu0 0.0
    %706 = vmatprep.subr.mxu0 0.0
    %707 = vmatpush1.msra.mxu0 0.0
    %708 = vmatprep.subr.mxu0 0.0
    %709 = vmatpush1.msra.mxu0 0.0
    %710 = vmatprep.subr.mxu0 0.0
    %711 = vmatpush1.msra.mxu0 0.0
    %712 = vmatprep.subr.mxu0 0.0
    %713 = vmatpush1.msra.mxu0 0.0
    %714 = vmatprep.subr.mxu0 0.0
    %715 = vmatpush1.msra.mxu0 0.0
    %716 = vmatprep.subr.mxu0 0.0
    %717 = vmatpush1.msra.mxu0 0.0
    %718 = vmatprep.subr.mxu0 0.0
    %719 = vmatpush1.msra.mxu0 0.0
    %720 = vmatprep.subr.mxu0 0.0
    %721 = vmatpush1.msra.mxu0 0.0
    %722 = vmatprep.subr.mxu0 0.0
    %723 = vmatpush1.msra.mxu0 0.0
    %724 = vmatprep.subr.mxu0 0.0
    %725 = vmatpush1.msra.mxu0 0.0
    %726 = vmatprep.subr.mxu0 0.0
    %727 = vmatpush1.msra.mxu0 0.0
    %728 = vmatprep.subr.mxu0 0.0
    %729 = vmatpush1.msra.mxu0 0.0
    %730 = vmatprep.mubr.f32.mxu0 0.0
    %v731 = vand.u32 %v47, 4294901760
    %v732 = vsub.f32 %v47, %v731
    %v733 = vand.u32 %v732, 4294901760
    %734 = vmatmul.mubr.f32.gmra.mrb[0].mxu0 %v733
    %v735 = vpop.f32.mrb[0].mxu0
    %v736 = vadd.f32 %v557, %v735
    %v737 = vpop.f32.mrb[0].mxu0
    %738 = vmatprep.mubr.f32.mxu0 0.0
    %v739 = vand.u32 %v50, 4294901760
    %v740 = vsub.f32 %v50, %v739
    %v741 = vand.u32 %v740, 4294901760
    %742 = vmatmul.mubr.f32.gmra.mrb[0].mxu0 %v741
    %v743 = vpop.f32.mrb[0].mxu0
    %v744 = vadd.f32 %v564, %v743
    %v745 = vpop.f32.mrb[0].mxu0
    %746 = vmatprep.mubr.f32.mxu0 0.0
    %v747 = vand.u32 %v53, 4294901760
    %v748 = vsub.f32 %v53, %v747
    %v749 = vand.u32 %v748, 4294901760
    %750 = vmatmul.mubr.f32.gmra.mrb[0].mxu0 %v749
    %v751 = vpop.f32.mrb[0].mxu0
    %v752 = vadd.f32 %v571, %v751
    %v753 = vpop.f32.mrb[0].mxu0
    %754 = vmatprep.mubr.f32.mxu0 0.0
    %v755 = vand.u32 %v56, 4294901760
    %v756 = vsub.f32 %v56, %v755
    %v757 = vand.u32 %v756, 4294901760
    %758 = vmatmul.mubr.f32.gmra.mrb[0].mxu0 %v757
    %v759 = vpop.f32.mrb[0].mxu0
    %v760 = vadd.f32 %v578, %v759
    %v761 = vpop.f32.mrb[0].mxu0
    %762 = vmatprep.mubr.f32.mxu0 0.0
    %v763 = vand.u32 %v59, 4294901760
    %v764 = vsub.f32 %v59, %v763
    %v765 = vand.u32 %v764, 4294901760
    %766 = vmatmul.mubr.f32.gmra.mrb[0].mxu0 %v765
    %v767 = vpop.f32.mrb[0].mxu0
    %v768 = vadd.f32 %v585, %v767
    %v769 = vpop.f32.mrb[0].mxu0
    %770 = vmatprep.mubr.f32.mxu0 0.0
    %v771 = vand.u32 %v62, 4294901760
    %v772 = vsub.f32 %v62, %v771
    %v773 = vand.u32 %v772, 4294901760
    %774 = vmatmul.mubr.f32.gmra.mrb[0].mxu0 %v773
    %v775 = vpop.f32.mrb[0].mxu0
    %v776 = vadd.f32 %v592, %v775
    %v777 = vpop.f32.mrb[0].mxu0
    %778 = vmatprep.mubr.f32.mxu0 0.0
    %v779 = vand.u32 %v65, 4294901760
    %v780 = vsub.f32 %v65, %v779
    %v781 = vand.u32 %v780, 4294901760
    %782 = vmatmul.mubr.f32.gmra.mrb[0].mxu0 %v781
    %v783 = vpop.f32.mrb[0].mxu0
    %v784 = vadd.f32 %v599, %v783
    %v785 = vpop.f32.mrb[0].mxu0
    %786 = vmatprep.mubr.f32.mxu0 0.0
    %v787 = vand.u32 %v68, 4294901760
    %v788 = vsub.f32 %v68, %v787
    %v789 = vand.u32 %v788, 4294901760
    %790 = vmatmul.mubr.f32.gmra.mrb[0].mxu0 %v789
    %v791 = vpop.f32.mrb[0].mxu0
    %v792 = vadd.f32 %v606, %v791
    %v793 = vpop.f32.mrb[0].mxu0
    %794 = vmatprep.mubr.f32.mxu0 0.0
    %v795 = vand.u32 %v71, 4294901760
    %v796 = vsub.f32 %v71, %v795
    %v797 = vand.u32 %v796, 4294901760
    %798 = vmatmul.mubr.f32.gmra.mrb[0].mxu0 %v797
    %v799 = vpop.f32.mrb[0].mxu0
    %v800 = vadd.f32 %v613, %v799
    %v801 = vpop.f32.mrb[0].mxu0
    %802 = vmatprep.mubr.f32.mxu0 0.0
    %v803 = vand.u32 %v74, 4294901760
    %v804 = vsub.f32 %v74, %v803
    %v805 = vand.u32 %v804, 4294901760
    %806 = vmatmul.mubr.f32.gmra.mrb[0].mxu0 %v805
    %v807 = vpop.f32.mrb[0].mxu0
    %v808 = vadd.f32 %v620, %v807
    %v809 = vpop.f32.mrb[0].mxu0
    %810 = vmatprep.mubr.f32.mxu0 0.0
    %v811 = vand.u32 %v77, 4294901760
    %v812 = vsub.f32 %v77, %v811
    %v813 = vand.u32 %v812, 4294901760
    %814 = vmatmul.mubr.f32.gmra.mrb[0].mxu0 %v813
    %v815 = vpop.f32.mrb[0].mxu0
    %v816 = vadd.f32 %v627, %v815
    %v817 = vpop.f32.mrb[0].mxu0
    %818 = vmatprep.mubr.f32.mxu0 0.0
    %v819 = vand.u32 %v80, 4294901760
    %v820 = vsub.f32 %v80, %v819
    %v821 = vand.u32 %v820, 4294901760
    %822 = vmatmul.mubr.f32.gmra.mrb[0].mxu0 %v821
    %v823 = vpop.f32.mrb[0].mxu0
    %v824 = vadd.f32 %v634, %v823
    %v825 = vpop.f32.mrb[0].mxu0
    %826 = vmatprep.mubr.f32.mxu0 0.0
    %v827 = vand.u32 %v83, 4294901760
    %v828 = vsub.f32 %v83, %v827
    %v829 = vand.u32 %v828, 4294901760
    %830 = vmatmul.mubr.f32.gmra.mrb[0].mxu0 %v829
    %v831 = vpop.f32.mrb[0].mxu0
    %v832 = vadd.f32 %v641, %v831
    %v833 = vpop.f32.mrb[0].mxu0
    %834 = vmatprep.mubr.f32.mxu0 0.0
    %v835 = vand.u32 %v86, 4294901760
    %v836 = vsub.f32 %v86, %v835
    %v837 = vand.u32 %v836, 4294901760
    %838 = vmatmul.mubr.f32.gmra.mrb[0].mxu0 %v837
    %v839 = vpop.f32.mrb[0].mxu0
    %v840 = vadd.f32 %v648, %v839
    %v841 = vpop.f32.mrb[0].mxu0
    %842 = vmatprep.mubr.f32.mxu0 0.0
    %v843 = vand.u32 %v89, 4294901760
    %v844 = vsub.f32 %v89, %v843
    %v845 = vand.u32 %v844, 4294901760
    %846 = vmatmul.mubr.f32.gmra.mrb[0].mxu0 %v845
    %v847 = vpop.f32.mrb[0].mxu0
    %v848 = vadd.f32 %v655, %v847
    %v849 = vpop.f32.mrb[0].mxu0
    %850 = vmatprep.mubr.f32.mxu0 0.0
    %v851 = vand.u32 %v92, 4294901760
    %v852 = vsub.f32 %v92, %v851
    %v853 = vand.u32 %v852, 4294901760
    %854 = vmatmul.mubr.f32.gmra.mrb[0].mxu0 %v853
    %v855 = vpop.f32.mrb[0].mxu0
    %v856 = vadd.f32 %v662, %v855
    %v857 = vpop.f32.mrb[0].mxu0
    %858 = vdwg.mxu0
    %859 = vmatprep.subr.mxu0 0.0
    %v860 = vand.u32 %v21, 4294901760
    %v861 = vsub.f32 %v21, %v860
    %v862 = vand.u32 %v861, 4294901760
    %863 = vmatpush1.msra.mxu0 %v862
    %864 = vmatprep.subr.mxu0 0.0
    %865 = vmatpush1.msra.mxu0 0.0
    %866 = vmatprep.subr.mxu0 0.0
    %867 = vmatpush1.msra.mxu0 0.0
    %868 = vmatprep.subr.mxu0 0.0
    %869 = vmatpush1.msra.mxu0 0.0
    %870 = vmatprep.subr.mxu0 0.0
    %871 = vmatpush1.msra.mxu0 0.0
    %872 = vmatprep.subr.mxu0 0.0
    %873 = vmatpush1.msra.mxu0 0.0
    %874 = vmatprep.subr.mxu0 0.0
    %875 = vmatpush1.msra.mxu0 0.0
    %876 = vmatprep.subr.mxu0 0.0
    %877 = vmatpush1.msra.mxu0 0.0
    %878 = vmatprep.subr.mxu0 0.0
    %879 = vmatpush1.msra.mxu0 0.0
    %880 = vmatprep.subr.mxu0 0.0
    %881 = vmatpush1.msra.mxu0 0.0
    %882 = vmatprep.subr.mxu0 0.0
    %883 = vmatpush1.msra.mxu0 0.0
    %884 = vmatprep.subr.mxu0 0.0
    %885 = vmatpush1.msra.mxu0 0.0
    %886 = vmatprep.subr.mxu0 0.0
    %887 = vmatpush1.msra.mxu0 0.0
    %888 = vmatprep.subr.mxu0 0.0
    %889 = vmatpush1.msra.mxu0 0.0
    %890 = vmatprep.subr.mxu0 0.0
    %891 = vmatpush1.msra.mxu0 0.0
    %892 = vmatprep.subr.mxu0 0.0
    %893 = vmatpush1.msra.mxu0 0.0
    %894 = vmatprep.subr.mxu0 0.0
    %895 = vmatpush1.msra.mxu0 0.0
    %896 = vmatprep.subr.mxu0 0.0
    %897 = vmatpush1.msra.mxu0 0.0
    %898 = vmatprep.subr.mxu0 0.0
    %899 = vmatpush1.msra.mxu0 0.0
    %900 = vmatprep.subr.mxu0 0.0
    %901 = vmatpush1.msra.mxu0 0.0
    %902 = vmatprep.subr.mxu0 0.0
    %903 = vmatpush1.msra.mxu0 0.0
    %904 = vmatprep.subr.mxu0 0.0
    %905 = vmatpush1.msra.mxu0 0.0
    %906 = vmatprep.subr.mxu0 0.0
    %907 = vmatpush1.msra.mxu0 0.0
    %908 = vmatprep.subr.mxu0 0.0
    %909 = vmatpush1.msra.mxu0 0.0
    %910 = vmatprep.subr.mxu0 0.0
    %911 = vmatpush1.msra.mxu0 0.0
    %912 = vmatprep.subr.mxu0 0.0
    %913 = vmatpush1.msra.mxu0 0.0
    %914 = vmatprep.subr.mxu0 0.0
    %915 = vmatpush1.msra.mxu0 0.0
    %916 = vmatprep.subr.mxu0 0.0
    %917 = vmatpush1.msra.mxu0 0.0
    %918 = vmatprep.subr.mxu0 0.0
    %919 = vmatpush1.msra.mxu0 0.0
    %920 = vmatprep.subr.mxu0 0.0
    %921 = vmatpush1.msra.mxu0 0.0
    %922 = vmatprep.subr.mxu0 0.0
    %923 = vmatpush1.msra.mxu0 0.0
    %924 = vmatprep.subr.mxu0 0.0
    %925 = vmatpush1.msra.mxu0 0.0
    %926 = vmatprep.mubr.f32.mxu0 0.0
    %v927 = vand.u32 %v47, 4294901760
    %928 = vmatmul.mubr.f32.gmra.mrb[0].mxu0 %v927
    %v929 = vpop.f32.mrb[0].mxu0
    %v930 = vadd.f32 %v736, %v929
    %v931 = vpop.f32.mrb[0].mxu0
    %932 = vmatprep.mubr.f32.mxu0 0.0
    %v933 = vand.u32 %v50, 4294901760
    %934 = vmatmul.mubr.f32.gmra.mrb[0].mxu0 %v933
    %v935 = vpop.f32.mrb[0].mxu0
    %v936 = vadd.f32 %v744, %v935
    %v937 = vpop.f32.mrb[0].mxu0
    %938 = vmatprep.mubr.f32.mxu0 0.0
    %v939 = vand.u32 %v53, 4294901760
    %940 = vmatmul.mubr.f32.gmra.mrb[0].mxu0 %v939
    %v941 = vpop.f32.mrb[0].mxu0
    %v942 = vadd.f32 %v752, %v941
    %v943 = vpop.f32.mrb[0].mxu0
    %944 = vmatprep.mubr.f32.mxu0 0.0
    %v945 = vand.u32 %v56, 4294901760
    %946 = vmatmul.mubr.f32.gmra.mrb[0].mxu0 %v945
    %v947 = vpop.f32.mrb[0].mxu0
    %v948 = vadd.f32 %v760, %v947
    %v949 = vpop.f32.mrb[0].mxu0
    %950 = vmatprep.mubr.f32.mxu0 0.0
    %v951 = vand.u32 %v59, 4294901760
    %952 = vmatmul.mubr.f32.gmra.mrb[0].mxu0 %v951
    %v953 = vpop.f32.mrb[0].mxu0
    %v954 = vadd.f32 %v768, %v953
    %v955 = vpop.f32.mrb[0].mxu0
    %956 = vmatprep.mubr.f32.mxu0 0.0
    %v957 = vand.u32 %v62, 4294901760
    %958 = vmatmul.mubr.f32.gmra.mrb[0].mxu0 %v957
    %v959 = vpop.f32.mrb[0].mxu0
    %v960 = vadd.f32 %v776, %v959
    %v961 = vpop.f32.mrb[0].mxu0
    %962 = vmatprep.mubr.f32.mxu0 0.0
    %v963 = vand.u32 %v65, 4294901760
    %964 = vmatmul.mubr.f32.gmra.mrb[0].mxu0 %v963
    %v965 = vpop.f32.mrb[0].mxu0
    %v966 = vadd.f32 %v784, %v965
    %v967 = vpop.f32.mrb[0].mxu0
    %968 = vmatprep.mubr.f32.mxu0 0.0
    %v969 = vand.u32 %v68, 4294901760
    %970 = vmatmul.mubr.f32.gmra.mrb[0].mxu0 %v969
    %v971 = vpop.f32.mrb[0].mxu0
    %v972 = vadd.f32 %v792, %v971
    %v973 = vpop.f32.mrb[0].mxu0
    %974 = vmatprep.mubr.f32.mxu0 0.0
    %v975 = vand.u32 %v71, 4294901760
    %976 = vmatmul.mubr.f32.gmra.mrb[0].mxu0 %v975
    %v977 = vpop.f32.mrb[0].mxu0
    %v978 = vadd.f32 %v800, %v977
    %v979 = vpop.f32.mrb[0].mxu0
    %980 = vmatprep.mubr.f32.mxu0 0.0
    %v981 = vand.u32 %v74, 4294901760
    %982 = vmatmul.mubr.f32.gmra.mrb[0].mxu0 %v981
    %v983 = vpop.f32.mrb[0].mxu0
    %v984 = vadd.f32 %v808, %v983
    %v985 = vpop.f32.mrb[0].mxu0
    %986 = vmatprep.mubr.f32.mxu0 0.0
    %v987 = vand.u32 %v77, 4294901760
    %988 = vmatmul.mubr.f32.gmra.mrb[0].mxu0 %v987
    %v989 = vpop.f32.mrb[0].mxu0
    %v990 = vadd.f32 %v816, %v989
    %v991 = vpop.f32.mrb[0].mxu0
    %992 = vmatprep.mubr.f32.mxu0 0.0
    %v993 = vand.u32 %v80, 4294901760
    %994 = vmatmul.mubr.f32.gmra.mrb[0].mxu0 %v993
    %v995 = vpop.f32.mrb[0].mxu0
    %v996 = vadd.f32 %v824, %v995
    %v997 = vpop.f32.mrb[0].mxu0
    %998 = vmatprep.mubr.f32.mxu0 0.0
    %v999 = vand.u32 %v83, 4294901760
    %1000 = vmatmul.mubr.f32.gmra.mrb[0].mxu0 %v999
    %v1001 = vpop.f32.mrb[0].mxu0
    %v1002 = vadd.f32 %v832, %v1001
    %v1003 = vpop.f32.mrb[0].mxu0
    %1004 = vmatprep.mubr.f32.mxu0 0.0
    %v1005 = vand.u32 %v86, 4294901760
    %1006 = vmatmul.mubr.f32.gmra.mrb[0].mxu0 %v1005
    %v1007 = vpop.f32.mrb[0].mxu0
    %v1008 = vadd.f32 %v840, %v1007
    %v1009 = vpop.f32.mrb[0].mxu0
    %1010 = vmatprep.mubr.f32.mxu0 0.0
    %v1011 = vand.u32 %v89, 4294901760
    %1012 = vmatmul.mubr.f32.gmra.mrb[0].mxu0 %v1011
    %v1013 = vpop.f32.mrb[0].mxu0
    %v1014 = vadd.f32 %v848, %v1013
    %v1015 = vpop.f32.mrb[0].mxu0
    %1016 = vmatprep.mubr.f32.mxu0 0.0
    %v1017 = vand.u32 %v92, 4294901760
    %1018 = vmatmul.mubr.f32.gmra.mrb[0].mxu0 %v1017
    %v1019 = vpop.f32.mrb[0].mxu0
    %v1020 = vadd.f32 %v856, %v1019
    %v1021 = vpop.f32.mrb[0].mxu0
    %1022 = vdwg.mxu0
    %1023 = vmatprep.subr.mxu0 0.0
    %v1024 = vand.u32 %v21, 4294901760
    %1025 = vmatpush1.msra.mxu0 %v1024
    %1026 = vmatprep.subr.mxu0 0.0
    %1027 = vmatpush1.msra.mxu0 0.0
    %1028 = vmatprep.subr.mxu0 0.0
    %1029 = vmatpush1.msra.mxu0 0.0
    %1030 = vmatprep.subr.mxu0 0.0
    %1031 = vmatpush1.msra.mxu0 0.0
    %1032 = vmatprep.subr.mxu0 0.0
    %1033 = vmatpush1.msra.mxu0 0.0
    %1034 = vmatprep.subr.mxu0 0.0
    %1035 = vmatpush1.msra.mxu0 0.0
    %1036 = vmatprep.subr.mxu0 0.0
    %1037 = vmatpush1.msra.mxu0 0.0
    %1038 = vmatprep.subr.mxu0 0.0
    %1039 = vmatpush1.msra.mxu0 0.0
    %1040 = vmatprep.subr.mxu0 0.0
    %1041 = vmatpush1.msra.mxu0 0.0
    %1042 = vmatprep.subr.mxu0 0.0
    %1043 = vmatpush1.msra.mxu0 0.0
    %1044 = vmatprep.subr.mxu0 0.0
    %1045 = vmatpush1.msra.mxu0 0.0
    %1046 = vmatprep.subr.mxu0 0.0
    %1047 = vmatpush1.msra.mxu0 0.0
    %1048 = vmatprep.subr.mxu0 0.0
    %1049 = vmatpush1.msra.mxu0 0.0
    %1050 = vmatprep.subr.mxu0 0.0
    %1051 = vmatpush1.msra.mxu0 0.0
    %1052 = vmatprep.subr.mxu0 0.0
    %1053 = vmatpush1.msra.mxu0 0.0
    %1054 = vmatprep.subr.mxu0 0.0
    %1055 = vmatpush1.msra.mxu0 0.0
    %1056 = vmatprep.subr.mxu0 0.0
    %1057 = vmatpush1.msra.mxu0 0.0
    %1058 = vmatprep.subr.mxu0 0.0
    %1059 = vmatpush1.msra.mxu0 0.0
    %1060 = vmatprep.subr.mxu0 0.0
    %1061 = vmatpush1.msra.mxu0 0.0
    %1062 = vmatprep.subr.mxu0 0.0
    %1063 = vmatpush1.msra.mxu0 0.0
    %1064 = vmatprep.subr.mxu0 0.0
    %1065 = vmatpush1.msra.mxu0 0.0
    %1066 = vmatprep.subr.mxu0 0.0
    %1067 = vmatpush1.msra.mxu0 0.0
    %1068 = vmatprep.subr.mxu0 0.0
    %1069 = vmatpush1.msra.mxu0 0.0
    %1070 = vmatprep.subr.mxu0 0.0
    %1071 = vmatpush1.msra.mxu0 0.0
    %1072 = vmatprep.subr.mxu0 0.0
    %1073 = vmatpush1.msra.mxu0 0.0
    %1074 = vmatprep.subr.mxu0 0.0
    %1075 = vmatpush1.msra.mxu0 0.0
    %1076 = vmatprep.subr.mxu0 0.0
    %1077 = vmatpush1.msra.mxu0 0.0
    %1078 = vmatprep.subr.mxu0 0.0
    %1079 = vmatpush1.msra.mxu0 0.0
    %1080 = vmatprep.subr.mxu0 0.0
    %1081 = vmatpush1.msra.mxu0 0.0
    %1082 = vmatprep.subr.mxu0 0.0
    %1083 = vmatpush1.msra.mxu0 0.0
    %1084 = vmatprep.subr.mxu0 0.0
    %1085 = vmatpush1.msra.mxu0 0.0
    %1086 = vmatprep.subr.mxu0 0.0
    %1087 = vmatpush1.msra.mxu0 0.0
    %1088 = vmatprep.mubr.f32.mxu0 0.0
    %v1089 = vand.u32 %v47, 4294901760
    %1090 = vmatmul.mubr.f32.gmra.mrb[0].mxu0 %v1089
    %v1091 = vpop.f32.mrb[0].mxu0
    %v1092 = vadd.f32 %v930, %v1091
    %v1093 = vpop.f32.mrb[0].mxu0
    %1094 = vmatprep.mubr.f32.mxu0 0.0
    %v1095 = vand.u32 %v50, 4294901760
    %1096 = vmatmul.mubr.f32.gmra.mrb[0].mxu0 %v1095
    %v1097 = vpop.f32.mrb[0].mxu0
    %v1098 = vadd.f32 %v936, %v1097
    %v1099 = vpop.f32.mrb[0].mxu0
    %1100 = vmatprep.mubr.f32.mxu0 0.0
    %v1101 = vand.u32 %v53, 4294901760
    %1102 = vmatmul.mubr.f32.gmra.mrb[0].mxu0 %v1101
    %v1103 = vpop.f32.mrb[0].mxu0
    %v1104 = vadd.f32 %v942, %v1103
    %v1105 = vpop.f32.mrb[0].mxu0
    %1106 = vmatprep.mubr.f32.mxu0 0.0
    %v1107 = vand.u32 %v56, 4294901760
    %1108 = vmatmul.mubr.f32.gmra.mrb[0].mxu0 %v1107
    %v1109 = vpop.f32.mrb[0].mxu0
    %v1110 = vadd.f32 %v948, %v1109
    %v1111 = vpop.f32.mrb[0].mxu0
    %1112 = vmatprep.mubr.f32.mxu0 0.0
    %v1113 = vand.u32 %v59, 4294901760
    %1114 = vmatmul.mubr.f32.gmra.mrb[0].mxu0 %v1113
    %v1115 = vpop.f32.mrb[0].mxu0
    %v1116 = vadd.f32 %v954, %v1115
    %v1117 = vpop.f32.mrb[0].mxu0
    %1118 = vmatprep.mubr.f32.mxu0 0.0
    %v1119 = vand.u32 %v62, 4294901760
    %1120 = vmatmul.mubr.f32.gmra.mrb[0].mxu0 %v1119
    %v1121 = vpop.f32.mrb[0].mxu0
    %v1122 = vadd.f32 %v960, %v1121
    %v1123 = vpop.f32.mrb[0].mxu0
    %1124 = vmatprep.mubr.f32.mxu0 0.0
    %v1125 = vand.u32 %v65, 4294901760
    %1126 = vmatmul.mubr.f32.gmra.mrb[0].mxu0 %v1125
    %v1127 = vpop.f32.mrb[0].mxu0
    %v1128 = vadd.f32 %v966, %v1127
    %v1129 = vpop.f32.mrb[0].mxu0
    %1130 = vmatprep.mubr.f32.mxu0 0.0
    %v1131 = vand.u32 %v68, 4294901760
    %1132 = vmatmul.mubr.f32.gmra.mrb[0].mxu0 %v1131
    %v1133 = vpop.f32.mrb[0].mxu0
    %v1134 = vadd.f32 %v972, %v1133
    %v1135 = vpop.f32.mrb[0].mxu0
    %1136 = vmatprep.mubr.f32.mxu0 0.0
    %v1137 = vand.u32 %v71, 4294901760
    %1138 = vmatmul.mubr.f32.gmra.mrb[0].mxu0 %v1137
    %v1139 = vpop.f32.mrb[0].mxu0
    %v1140 = vadd.f32 %v978, %v1139
    %v1141 = vpop.f32.mrb[0].mxu0
    %1142 = vmatprep.mubr.f32.mxu0 0.0
    %v1143 = vand.u32 %v74, 4294901760
    %1144 = vmatmul.mubr.f32.gmra.mrb[0].mxu0 %v1143
    %v1145 = vpop.f32.mrb[0].mxu0
    %v1146 = vadd.f32 %v984, %v1145
    %v1147 = vpop.f32.mrb[0].mxu0
    %1148 = vmatprep.mubr.f32.mxu0 0.0
    %v1149 = vand.u32 %v77, 4294901760
    %1150 = vmatmul.mubr.f32.gmra.mrb[0].mxu0 %v1149
    %v1151 = vpop.f32.mrb[0].mxu0
    %v1152 = vadd.f32 %v990, %v1151
    %v1153 = vpop.f32.mrb[0].mxu0
    %1154 = vmatprep.mubr.f32.mxu0 0.0
    %v1155 = vand.u32 %v80, 4294901760
    %1156 = vmatmul.mubr.f32.gmra.mrb[0].mxu0 %v1155
    %v1157 = vpop.f32.mrb[0].mxu0
    %v1158 = vadd.f32 %v996, %v1157
    %v1159 = vpop.f32.mrb[0].mxu0
    %1160 = vmatprep.mubr.f32.mxu0 0.0
    %v1161 = vand.u32 %v83, 4294901760
    %1162 = vmatmul.mubr.f32.gmra.mrb[0].mxu0 %v1161
    %v1163 = vpop.f32.mrb[0].mxu0
    %v1164 = vadd.f32 %v1002, %v1163
    %v1165 = vpop.f32.mrb[0].mxu0
    %1166 = vmatprep.mubr.f32.mxu0 0.0
    %v1167 = vand.u32 %v86, 4294901760
    %1168 = vmatmul.mubr.f32.gmra.mrb[0].mxu0 %v1167
    %v1169 = vpop.f32.mrb[0].mxu0
    %v1170 = vadd.f32 %v1008, %v1169
    %v1171 = vpop.f32.mrb[0].mxu0
    %1172 = vmatprep.mubr.f32.mxu0 0.0
    %v1173 = vand.u32 %v89, 4294901760
    %1174 = vmatmul.mubr.f32.gmra.mrb[0].mxu0 %v1173
    %v1175 = vpop.f32.mrb[0].mxu0
    %v1176 = vadd.f32 %v1014, %v1175
    %v1177 = vpop.f32.mrb[0].mxu0
    %1178 = vmatprep.mubr.f32.mxu0 0.0
    %v1179 = vand.u32 %v92, 4294901760
    %1180 = vmatmul.mubr.f32.gmra.mrb[0].mxu0 %v1179
    %v1181 = vpop.f32.mrb[0].mxu0
    %v1182 = vadd.f32 %v1020, %v1181
    %v1183 = vpop.f32.mrb[0].mxu0
    %1184 = vdwg.mxu0
    %v1185 = vsel %vm45, %v1092, -inf
    %1186 = vmax.xlane.f32.xlu0 %v1185
    %v1187 = vpop.xlane.xlu0 %1186
    %v1188 = vsel %vm45, %v1098, -inf
    %1189 = vmax.xlane.f32.xlu0 %v1188
    %v1190 = vpop.xlane.xlu0 %1189
    %v1191 = vsel %vm45, %v1104, -inf
    %1192 = vmax.xlane.f32.xlu0 %v1191
    %v1193 = vpop.xlane.xlu0 %1192
    %v1194 = vsel %vm45, %v1110, -inf
    %1195 = vmax.xlane.f32.xlu0 %v1194
    %v1196 = vpop.xlane.xlu0 %1195
    %v1197 = vsel %vm45, %v1116, -inf
    %1198 = vmax.xlane.f32.xlu0 %v1197
    %v1199 = vpop.xlane.xlu0 %1198
    %v1200 = vsel %vm45, %v1122, -inf
    %1201 = vmax.xlane.f32.xlu0 %v1200
    %v1202 = vpop.xlane.xlu0 %1201
    %v1203 = vsel %vm45, %v1128, -inf
    %1204 = vmax.xlane.f32.xlu0 %v1203
    %v1205 = vpop.xlane.xlu0 %1204
    %v1206 = vsel %vm45, %v1134, -inf
    %1207 = vmax.xlane.f32.xlu0 %v1206
    %v1208 = vpop.xlane.xlu0 %1207
    %v1209 = vsel %vm45, %v1140, -inf
    %1210 = vmax.xlane.f32.xlu0 %v1209
    %v1211 = vpop.xlane.xlu0 %1210
    %v1212 = vsel %vm45, %v1146, -inf
    %1213 = vmax.xlane.f32.xlu0 %v1212
    %v1214 = vpop.xlane.xlu0 %1213
    %v1215 = vsel %vm45, %v1152, -inf
    %1216 = vmax.xlane.f32.xlu0 %v1215
    %v1217 = vpop.xlane.xlu0 %1216
    %v1218 = vsel %vm45, %v1158, -inf
    %1219 = vmax.xlane.f32.xlu0 %v1218
    %v1220 = vpop.xlane.xlu0 %1219
    %v1221 = vsel %vm45, %v1164, -inf
    %1222 = vmax.xlane.f32.xlu0 %v1221
    %v1223 = vpop.xlane.xlu0 %1222
    %v1224 = vsel %vm45, %v1170, -inf
    %1225 = vmax.xlane.f32.xlu0 %v1224
    %v1226 = vpop.xlane.xlu0 %1225
    %v1227 = vsel %vm45, %v1176, -inf
    %1228 = vmax.xlane.f32.xlu0 %v1227
    %v1229 = vpop.xlane.xlu0 %1228
    %v1230 = vsel %vm45, %v1182, -inf
    %1231 = vmax.xlane.f32.xlu0 %v1230
    %v1232 = vpop.xlane.xlu0 %1231
    %v1233 = vsub.f32 %v1092, %v1187
    %v1234 = vsub.f32 %v1098, %v1190
    %v1235 = vsub.f32 %v1104, %v1193
    %v1236 = vsub.f32 %v1110, %v1196
    %v1237 = vsub.f32 %v1116, %v1199
    %v1238 = vsub.f32 %v1122, %v1202
    %v1239 = vsub.f32 %v1128, %v1205
    %v1240 = vsub.f32 %v1134, %v1208
    %v1241 = vsub.f32 %v1140, %v1211
    %v1242 = vsub.f32 %v1146, %v1214
    %v1243 = vsub.f32 %v1152, %v1217
    %v1244 = vsub.f32 %v1158, %v1220
    %v1245 = vsub.f32 %v1164, %v1223
    %v1246 = vsub.f32 %v1170, %v1226
    %v1247 = vsub.f32 %v1176, %v1229
    %v1248 = vsub.f32 %v1182, %v1232
    %v1249 = vmul.f32 %v1233, 1.442695
    %v1250 = vpow.pop %v1249
    %v1251 = vmul.f32 %v1234, 1.442695
    %v1252 = vpow.pop %v1251
    %v1253 = vmul.f32 %v1235, 1.442695
    %v1254 = vpow.pop %v1253
    %v1255 = vmul.f32 %v1236, 1.442695
    %v1256 = vpow.pop %v1255
    %v1257 = vmul.f32 %v1237, 1.442695
    %v1258 = vpow.pop %v1257
    %v1259 = vmul.f32 %v1238, 1.442695
    %v1260 = vpow.pop %v1259
    %v1261 = vmul.f32 %v1239, 1.442695
    %v1262 = vpow.pop %v1261
    %v1263 = vmul.f32 %v1240, 1.442695
    %v1264 = vpow.pop %v1263
    %v1265 = vmul.f32 %v1241, 1.442695
    %v1266 = vpow.pop %v1265
    %v1267 = vmul.f32 %v1242, 1.442695
    %v1268 = vpow.pop %v1267
    %v1269 = vmul.f32 %v1243, 1.442695
    %v1270 = vpow.pop %v1269
    %v1271 = vmul.f32 %v1244, 1.442695
    %v1272 = vpow.pop %v1271
    %v1273 = vmul.f32 %v1245, 1.442695
    %v1274 = vpow.pop %v1273
    %v1275 = vmul.f32 %v1246, 1.442695
    %v1276 = vpow.pop %v1275
    %v1277 = vmul.f32 %v1247, 1.442695
    %v1278 = vpow.pop %v1277
    %v1279 = vmul.f32 %v1248, 1.442695
    %v1280 = vpow.pop %v1279
    %v1281 = vsel %vm45, %v1250, 0.0
    %1282 = vadd.xlane.f32.xlu0 %v1281
    %v1283 = vpop.xlane.xlu0 %1282
    %v1284 = vsel %vm45, %v1252, 0.0
    %1285 = vadd.xlane.f32.xlu0 %v1284
    %v1286 = vpop.xlane.xlu0 %1285
    %v1287 = vsel %vm45, %v1254, 0.0
    %1288 = vadd.xlane.f32.xlu0 %v1287
    %v1289 = vpop.xlane.xlu0 %1288
    %v1290 = vsel %vm45, %v1256, 0.0
    %1291 = vadd.xlane.f32.xlu0 %v1290
    %v1292 = vpop.xlane.xlu0 %1291
    %v1293 = vsel %vm45, %v1258, 0.0
    %1294 = vadd.xlane.f32.xlu0 %v1293
    %v1295 = vpop.xlane.xlu0 %1294
    %v1296 = vsel %vm45, %v1260, 0.0
    %1297 = vadd.xlane.f32.xlu0 %v1296
    %v1298 = vpop.xlane.xlu0 %1297
    %v1299 = vsel %vm45, %v1262, 0.0
    %1300 = vadd.xlane.f32.xlu0 %v1299
    %v1301 = vpop.xlane.xlu0 %1300
    %v1302 = vsel %vm45, %v1264, 0.0
    %1303 = vadd.xlane.f32.xlu0 %v1302
    %v1304 = vpop.xlane.xlu0 %1303
    %v1305 = vsel %vm45, %v1266, 0.0
    %1306 = vadd.xlane.f32.xlu0 %v1305
    %v1307 = vpop.xlane.xlu0 %1306
    %v1308 = vsel %vm45, %v1268, 0.0
    %1309 = vadd.xlane.f32.xlu0 %v1308
    %v1310 = vpop.xlane.xlu0 %1309
    %v1311 = vsel %vm45, %v1270, 0.0
    %1312 = vadd.xlane.f32.xlu0 %v1311
    %v1313 = vpop.xlane.xlu0 %1312
    %v1314 = vsel %vm45, %v1272, 0.0
    %1315 = vadd.xlane.f32.xlu0 %v1314
    %v1316 = vpop.xlane.xlu0 %1315
    %v1317 = vsel %vm45, %v1274, 0.0
    %1318 = vadd.xlane.f32.xlu0 %v1317
    %v1319 = vpop.xlane.xlu0 %1318
    %v1320 = vsel %vm45, %v1276, 0.0
    %1321 = vadd.xlane.f32.xlu0 %v1320
    %v1322 = vpop.xlane.xlu0 %1321
    %v1323 = vsel %vm45, %v1278, 0.0
    %1324 = vadd.xlane.f32.xlu0 %v1323
    %v1325 = vpop.xlane.xlu0 %1324
    %v1326 = vsel %vm45, %v1280, 0.0
    %1327 = vadd.xlane.f32.xlu0 %v1326
    %v1328 = vpop.xlane.xlu0 %1327
    %v1329 = vrcp.pop %v1283
    %v1330 = vmul.f32 %v1250, %v1329
    %v1331 = vrcp.pop %v1286
    %v1332 = vmul.f32 %v1252, %v1331
    %v1333 = vrcp.pop %v1289
    %v1334 = vmul.f32 %v1254, %v1333
    %v1335 = vrcp.pop %v1292
    %v1336 = vmul.f32 %v1256, %v1335
    %v1337 = vrcp.pop %v1295
    %v1338 = vmul.f32 %v1258, %v1337
    %v1339 = vrcp.pop %v1298
    %v1340 = vmul.f32 %v1260, %v1339
    %v1341 = vrcp.pop %v1301
    %v1342 = vmul.f32 %v1262, %v1341
    %v1343 = vrcp.pop %v1304
    %v1344 = vmul.f32 %v1264, %v1343
    %v1345 = vrcp.pop %v1307
    %v1346 = vmul.f32 %v1266, %v1345
    %v1347 = vrcp.pop %v1310
    %v1348 = vmul.f32 %v1268, %v1347
    %v1349 = vrcp.pop %v1313
    %v1350 = vmul.f32 %v1270, %v1349
    %v1351 = vrcp.pop %v1316
    %v1352 = vmul.f32 %v1272, %v1351
    %v1353 = vrcp.pop %v1319
    %v1354 = vmul.f32 %v1274, %v1353
    %v1355 = vrcp.pop %v1322
    %v1356 = vmul.f32 %v1276, %v1355
    %v1357 = vrcp.pop %v1325
    %v1358 = vmul.f32 %v1278, %v1357
    %v1359 = vrcp.pop %v1328
    %v1360 = vmul.f32 %v1280, %v1359
    %v1361 = vmul.f32 %v1330, %v23
    %v1362 = vmul.f32 %v1332, %v24
    %v1363 = vmul.f32 %v1334, %v25
    %v1364 = vmul.f32 %v1336, %v26
    %v1365 = vmul.f32 %v1338, %v27
    %v1366 = vmul.f32 %v1340, %v28
    %v1367 = vmul.f32 %v1342, %v29
    %v1368 = vmul.f32 %v1344, %v30
    %v1369 = vmul.f32 %v1346, %v31
    %v1370 = vmul.f32 %v1348, %v32
    %v1371 = vmul.f32 %v1350, %v33
    %v1372 = vmul.f32 %v1352, %v34
    %v1373 = vmul.f32 %v1354, %v35
    %v1374 = vmul.f32 %v1356, %v36
    %v1375 = vmul.f32 %v1358, %v37
    %v1376 = vmul.f32 %v1360, %v38
    %v1377 = vadd.f32 %v1361, 0.0
    %v1378 = vadd.f32 %v1362, 0.0
    %v1379 = vadd.f32 %v1363, 0.0
    %v1380 = vadd.f32 %v1364, 0.0
    %v1381 = vadd.f32 %v1365, 0.0
    %v1382 = vadd.f32 %v1366, 0.0
    %v1383 = vadd.f32 %v1367, 0.0
    %v1384 = vadd.f32 %v1368, 0.0
    %v1385 = vadd.f32 %v1369, 0.0
    %v1386 = vadd.f32 %v1370, 0.0
    %v1387 = vadd.f32 %v1371, 0.0
    %v1388 = vadd.f32 %v1372, 0.0
    %v1389 = vadd.f32 %v1373, 0.0
    %v1390 = vadd.f32 %v1374, 0.0
    %v1391 = vadd.f32 %v1375, 0.0
    %v1392 = vadd.f32 %v1376, 0.0
    %s1393 = scalar_lea.vmem %s0, 128
    %v1394 = vld [vmem:[%s1393] sm:$0xff]
    %v1395 = vld [vmem:[%s1393 + $0x8] sm:$0xff]
    %v1396 = vld [vmem:[%s1393 + $0x10] sm:$0xff]
    %v1397 = vld [vmem:[%s1393 + $0x18] sm:$0xff]
    %v1398 = vld [vmem:[%s1393 + $0x20] sm:$0xff]
    %v1399 = vld [vmem:[%s1393 + $0x28] sm:$0xff]
    %v1400 = vld [vmem:[%s1393 + $0x30] sm:$0xff]
    %v1401 = vld [vmem:[%s1393 + $0x38] sm:$0xff]
    %v1402 = vld [vmem:[%s1393 + $0x40] sm:$0xff]
    %v1403 = vld [vmem:[%s1393 + $0x48] sm:$0xff]
    %v1404 = vld [vmem:[%s1393 + $0x50] sm:$0xff]
    %v1405 = vld [vmem:[%s1393 + $0x58] sm:$0xff]
    %v1406 = vld [vmem:[%s1393 + $0x60] sm:$0xff]
    %v1407 = vld [vmem:[%s1393 + $0x68] sm:$0xff]
    %v1408 = vld [vmem:[%s1393 + $0x70] sm:$0xff]
    %v1409 = vld [vmem:[%s1393 + $0x78] sm:$0xff]
    %v1411 = vsel %vm45, %v1394, 0
    %v1414 = vsel %vm45, %v1395, 0
    %v1417 = vsel %vm45, %v1396, 0
    %v1420 = vsel %vm45, %v1397, 0
    %v1423 = vsel %vm45, %v1398, 0
    %v1426 = vsel %vm45, %v1399, 0
    %v1429 = vsel %vm45, %v1400, 0
    %v1432 = vsel %vm45, %v1401, 0
    %v1435 = vsel %vm45, %v1402, 0
    %v1438 = vsel %vm45, %v1403, 0
    %v1441 = vsel %vm45, %v1404, 0
    %v1444 = vsel %vm45, %v1405, 0
    %v1447 = vsel %vm45, %v1406, 0
    %v1450 = vsel %vm45, %v1407, 0
    %v1453 = vsel %vm45, %v1408, 0
    %v1456 = vsel %vm45, %v1409, 0
    %1458 = vmatprep.subr.mxu0 0.0
    %v1459 = vand.u32 %v21, 4294901760
    %1460 = vmatpush1.msra.mxu0 %v1459
    %1461 = vmatprep.subr.mxu0 0.0
    %1462 = vmatpush1.msra.mxu0 0.0
    %1463 = vmatprep.subr.mxu0 0.0
    %1464 = vmatpush1.msra.mxu0 0.0
    %1465 = vmatprep.subr.mxu0 0.0
    %1466 = vmatpush1.msra.mxu0 0.0
    %1467 = vmatprep.subr.mxu0 0.0
    %1468 = vmatpush1.msra.mxu0 0.0
    %1469 = vmatprep.subr.mxu0 0.0
    %1470 = vmatpush1.msra.mxu0 0.0
    %1471 = vmatprep.subr.mxu0 0.0
    %1472 = vmatpush1.msra.mxu0 0.0
    %1473 = vmatprep.subr.mxu0 0.0
    %1474 = vmatpush1.msra.mxu0 0.0
    %1475 = vmatprep.subr.mxu0 0.0
    %1476 = vmatpush1.msra.mxu0 0.0
    %1477 = vmatprep.subr.mxu0 0.0
    %1478 = vmatpush1.msra.mxu0 0.0
    %1479 = vmatprep.subr.mxu0 0.0
    %1480 = vmatpush1.msra.mxu0 0.0
    %1481 = vmatprep.subr.mxu0 0.0
    %1482 = vmatpush1.msra.mxu0 0.0
    %1483 = vmatprep.subr.mxu0 0.0
    %1484 = vmatpush1.msra.mxu0 0.0
    %1485 = vmatprep.subr.mxu0 0.0
    %1486 = vmatpush1.msra.mxu0 0.0
    %1487 = vmatprep.subr.mxu0 0.0
    %1488 = vmatpush1.msra.mxu0 0.0
    %1489 = vmatprep.subr.mxu0 0.0
    %1490 = vmatpush1.msra.mxu0 0.0
    %1491 = vmatprep.subr.mxu0 0.0
    %1492 = vmatpush1.msra.mxu0 0.0
    %1493 = vmatprep.subr.mxu0 0.0
    %1494 = vmatpush1.msra.mxu0 0.0
    %1495 = vmatprep.subr.mxu0 0.0
    %1496 = vmatpush1.msra.mxu0 0.0
    %1497 = vmatprep.subr.mxu0 0.0
    %1498 = vmatpush1.msra.mxu0 0.0
    %1499 = vmatprep.subr.mxu0 0.0
    %1500 = vmatpush1.msra.mxu0 0.0
    %1501 = vmatprep.subr.mxu0 0.0
    %1502 = vmatpush1.msra.mxu0 0.0
    %1503 = vmatprep.subr.mxu0 0.0
    %1504 = vmatpush1.msra.mxu0 0.0
    %1505 = vmatprep.subr.mxu0 0.0
    %1506 = vmatpush1.msra.mxu0 0.0
    %1507 = vmatprep.subr.mxu0 0.0
    %1508 = vmatpush1.msra.mxu0 0.0
    %1509 = vmatprep.subr.mxu0 0.0
    %1510 = vmatpush1.msra.mxu0 0.0
    %1511 = vmatprep.subr.mxu0 0.0
    %1512 = vmatpush1.msra.mxu0 0.0
    %1513 = vmatprep.subr.mxu0 0.0
    %1514 = vmatpush1.msra.mxu0 0.0
    %1515 = vmatprep.subr.mxu0 0.0
    %1516 = vmatpush1.msra.mxu0 0.0
    %1517 = vmatprep.subr.mxu0 0.0
    %1518 = vmatpush1.msra.mxu0 0.0
    %1519 = vmatprep.subr.mxu0 0.0
    %1520 = vmatpush1.msra.mxu0 0.0
    %1521 = vmatprep.subr.mxu0 0.0
    %1522 = vmatpush1.msra.mxu0 0.0
    %1523 = vmatprep.mubr.f32.mxu0 0.0
    %v1524 = vand.u32 %v1411, 4294901760
    %v1525 = vsub.f32 %v1411, %v1524
    %v1526 = vand.u32 %v1525, 4294901760
    %v1527 = vsub.f32 %v1525, %v1526
    %v1528 = vand.u32 %v1527, 4294901760
    %1529 = vmatmul.mubr.f32.gmra.mrb[0].mxu0 %v1528
    %v1530 = vpop.f32.mrb[0].mxu0
    %v1531 = vadd.f32 %v43, %v1530
    %v1532 = vpop.f32.mrb[0].mxu0
    %1533 = vmatprep.mubr.f32.mxu0 0.0
    %v1534 = vand.u32 %v1414, 4294901760
    %v1535 = vsub.f32 %v1414, %v1534
    %v1536 = vand.u32 %v1535, 4294901760
    %v1537 = vsub.f32 %v1535, %v1536
    %v1538 = vand.u32 %v1537, 4294901760
    %1539 = vmatmul.mubr.f32.gmra.mrb[0].mxu0 %v1538
    %v1540 = vpop.f32.mrb[0].mxu0
    %v1541 = vadd.f32 %v43, %v1540
    %v1542 = vpop.f32.mrb[0].mxu0
    %1543 = vmatprep.mubr.f32.mxu0 0.0
    %v1544 = vand.u32 %v1417, 4294901760
    %v1545 = vsub.f32 %v1417, %v1544
    %v1546 = vand.u32 %v1545, 4294901760
    %v1547 = vsub.f32 %v1545, %v1546
    %v1548 = vand.u32 %v1547, 4294901760
    %1549 = vmatmul.mubr.f32.gmra.mrb[0].mxu0 %v1548
    %v1550 = vpop.f32.mrb[0].mxu0
    %v1551 = vadd.f32 %v43, %v1550
    %v1552 = vpop.f32.mrb[0].mxu0
    %1553 = vmatprep.mubr.f32.mxu0 0.0
    %v1554 = vand.u32 %v1420, 4294901760
    %v1555 = vsub.f32 %v1420, %v1554
    %v1556 = vand.u32 %v1555, 4294901760
    %v1557 = vsub.f32 %v1555, %v1556
    %v1558 = vand.u32 %v1557, 4294901760
    %1559 = vmatmul.mubr.f32.gmra.mrb[0].mxu0 %v1558
    %v1560 = vpop.f32.mrb[0].mxu0
    %v1561 = vadd.f32 %v43, %v1560
    %v1562 = vpop.f32.mrb[0].mxu0
    %1563 = vmatprep.mubr.f32.mxu0 0.0
    %v1564 = vand.u32 %v1423, 4294901760
    %v1565 = vsub.f32 %v1423, %v1564
    %v1566 = vand.u32 %v1565, 4294901760
    %v1567 = vsub.f32 %v1565, %v1566
    %v1568 = vand.u32 %v1567, 4294901760
    %1569 = vmatmul.mubr.f32.gmra.mrb[0].mxu0 %v1568
    %v1570 = vpop.f32.mrb[0].mxu0
    %v1571 = vadd.f32 %v43, %v1570
    %v1572 = vpop.f32.mrb[0].mxu0
    %1573 = vmatprep.mubr.f32.mxu0 0.0
    %v1574 = vand.u32 %v1426, 4294901760
    %v1575 = vsub.f32 %v1426, %v1574
    %v1576 = vand.u32 %v1575, 4294901760
    %v1577 = vsub.f32 %v1575, %v1576
    %v1578 = vand.u32 %v1577, 4294901760
    %1579 = vmatmul.mubr.f32.gmra.mrb[0].mxu0 %v1578
    %v1580 = vpop.f32.mrb[0].mxu0
    %v1581 = vadd.f32 %v43, %v1580
    %v1582 = vpop.f32.mrb[0].mxu0
    %1583 = vmatprep.mubr.f32.mxu0 0.0
    %v1584 = vand.u32 %v1429, 4294901760
    %v1585 = vsub.f32 %v1429, %v1584
    %v1586 = vand.u32 %v1585, 4294901760
    %v1587 = vsub.f32 %v1585, %v1586
    %v1588 = vand.u32 %v1587, 4294901760
    %1589 = vmatmul.mubr.f32.gmra.mrb[0].mxu0 %v1588
    %v1590 = vpop.f32.mrb[0].mxu0
    %v1591 = vadd.f32 %v43, %v1590
    %v1592 = vpop.f32.mrb[0].mxu0
    %1593 = vmatprep.mubr.f32.mxu0 0.0
    %v1594 = vand.u32 %v1432, 4294901760
    %v1595 = vsub.f32 %v1432, %v1594
    %v1596 = vand.u32 %v1595, 4294901760
    %v1597 = vsub.f32 %v1595, %v1596
    %v1598 = vand.u32 %v1597, 4294901760
    %1599 = vmatmul.mubr.f32.gmra.mrb[0].mxu0 %v1598
    %v1600 = vpop.f32.mrb[0].mxu0
    %v1601 = vadd.f32 %v43, %v1600
    %v1602 = vpop.f32.mrb[0].mxu0
    %1603 = vmatprep.mubr.f32.mxu0 0.0
    %v1604 = vand.u32 %v1435, 4294901760
    %v1605 = vsub.f32 %v1435, %v1604
    %v1606 = vand.u32 %v1605, 4294901760
    %v1607 = vsub.f32 %v1605, %v1606
    %v1608 = vand.u32 %v1607, 4294901760
    %1609 = vmatmul.mubr.f32.gmra.mrb[0].mxu0 %v1608
    %v1610 = vpop.f32.mrb[0].mxu0
    %v1611 = vadd.f32 %v43, %v1610
    %v1612 = vpop.f32.mrb[0].mxu0
    %1613 = vmatprep.mubr.f32.mxu0 0.0
    %v1614 = vand.u32 %v1438, 4294901760
    %v1615 = vsub.f32 %v1438, %v1614
    %v1616 = vand.u32 %v1615, 4294901760
    %v1617 = vsub.f32 %v1615, %v1616
    %v1618 = vand.u32 %v1617, 4294901760
    %1619 = vmatmul.mubr.f32.gmra.mrb[0].mxu0 %v1618
    %v1620 = vpop.f32.mrb[0].mxu0
    %v1621 = vadd.f32 %v43, %v1620
    %v1622 = vpop.f32.mrb[0].mxu0
    %1623 = vmatprep.mubr.f32.mxu0 0.0
    %v1624 = vand.u32 %v1441, 4294901760
    %v1625 = vsub.f32 %v1441, %v1624
    %v1626 = vand.u32 %v1625, 4294901760
    %v1627 = vsub.f32 %v1625, %v1626
    %v1628 = vand.u32 %v1627, 4294901760
    %1629 = vmatmul.mubr.f32.gmra.mrb[0].mxu0 %v1628
    %v1630 = vpop.f32.mrb[0].mxu0
    %v1631 = vadd.f32 %v43, %v1630
    %v1632 = vpop.f32.mrb[0].mxu0
    %1633 = vmatprep.mubr.f32.mxu0 0.0
    %v1634 = vand.u32 %v1444, 4294901760
    %v1635 = vsub.f32 %v1444, %v1634
    %v1636 = vand.u32 %v1635, 4294901760
    %v1637 = vsub.f32 %v1635, %v1636
    %v1638 = vand.u32 %v1637, 4294901760
    %1639 = vmatmul.mubr.f32.gmra.mrb[0].mxu0 %v1638
    %v1640 = vpop.f32.mrb[0].mxu0
    %v1641 = vadd.f32 %v43, %v1640
    %v1642 = vpop.f32.mrb[0].mxu0
    %1643 = vmatprep.mubr.f32.mxu0 0.0
    %v1644 = vand.u32 %v1447, 4294901760
    %v1645 = vsub.f32 %v1447, %v1644
    %v1646 = vand.u32 %v1645, 4294901760
    %v1647 = vsub.f32 %v1645, %v1646
    %v1648 = vand.u32 %v1647, 4294901760
    %1649 = vmatmul.mubr.f32.gmra.mrb[0].mxu0 %v1648
    %v1650 = vpop.f32.mrb[0].mxu0
    %v1651 = vadd.f32 %v43, %v1650
    %v1652 = vpop.f32.mrb[0].mxu0
    %1653 = vmatprep.mubr.f32.mxu0 0.0
    %v1654 = vand.u32 %v1450, 4294901760
    %v1655 = vsub.f32 %v1450, %v1654
    %v1656 = vand.u32 %v1655, 4294901760
    %v1657 = vsub.f32 %v1655, %v1656
    %v1658 = vand.u32 %v1657, 4294901760
    %1659 = vmatmul.mubr.f32.gmra.mrb[0].mxu0 %v1658
    %v1660 = vpop.f32.mrb[0].mxu0
    %v1661 = vadd.f32 %v43, %v1660
    %v1662 = vpop.f32.mrb[0].mxu0
    %1663 = vmatprep.mubr.f32.mxu0 0.0
    %v1664 = vand.u32 %v1453, 4294901760
    %v1665 = vsub.f32 %v1453, %v1664
    %v1666 = vand.u32 %v1665, 4294901760
    %v1667 = vsub.f32 %v1665, %v1666
    %v1668 = vand.u32 %v1667, 4294901760
    %1669 = vmatmul.mubr.f32.gmra.mrb[0].mxu0 %v1668
    %v1670 = vpop.f32.mrb[0].mxu0
    %v1671 = vadd.f32 %v43, %v1670
    %v1672 = vpop.f32.mrb[0].mxu0
    %1673 = vmatprep.mubr.f32.mxu0 0.0
    %v1674 = vand.u32 %v1456, 4294901760
    %v1675 = vsub.f32 %v1456, %v1674
    %v1676 = vand.u32 %v1675, 4294901760
    %v1677 = vsub.f32 %v1675, %v1676
    %v1678 = vand.u32 %v1677, 4294901760
    %1679 = vmatmul.mubr.f32.gmra.mrb[0].mxu0 %v1678
    %v1680 = vpop.f32.mrb[0].mxu0
    %v1681 = vadd.f32 %v43, %v1680
    %v1682 = vpop.f32.mrb[0].mxu0
    %1683 = vdwg.mxu0
    %1684 = vmatprep.subr.mxu0 0.0
    %v1685 = vand.u32 %v21, 4294901760
    %v1686 = vsub.f32 %v21, %v1685
    %v1687 = vand.u32 %v1686, 4294901760
    %v1688 = vsub.f32 %v1686, %v1687
    %v1689 = vand.u32 %v1688, 4294901760
    %1690 = vmatpush1.msra.mxu0 %v1689
    %1691 = vmatprep.subr.mxu0 0.0
    %1692 = vmatpush1.msra.mxu0 0.0
    %1693 = vmatprep.subr.mxu0 0.0
    %1694 = vmatpush1.msra.mxu0 0.0
    %1695 = vmatprep.subr.mxu0 0.0
    %1696 = vmatpush1.msra.mxu0 0.0
    %1697 = vmatprep.subr.mxu0 0.0
    %1698 = vmatpush1.msra.mxu0 0.0
    %1699 = vmatprep.subr.mxu0 0.0
    %1700 = vmatpush1.msra.mxu0 0.0
    %1701 = vmatprep.subr.mxu0 0.0
    %1702 = vmatpush1.msra.mxu0 0.0
    %1703 = vmatprep.subr.mxu0 0.0
    %1704 = vmatpush1.msra.mxu0 0.0
    %1705 = vmatprep.subr.mxu0 0.0
    %1706 = vmatpush1.msra.mxu0 0.0
    %1707 = vmatprep.subr.mxu0 0.0
    %1708 = vmatpush1.msra.mxu0 0.0
    %1709 = vmatprep.subr.mxu0 0.0
    %1710 = vmatpush1.msra.mxu0 0.0
    %1711 = vmatprep.subr.mxu0 0.0
    %1712 = vmatpush1.msra.mxu0 0.0
    %1713 = vmatprep.subr.mxu0 0.0
    %1714 = vmatpush1.msra.mxu0 0.0
    %1715 = vmatprep.subr.mxu0 0.0
    %1716 = vmatpush1.msra.mxu0 0.0
    %1717 = vmatprep.subr.mxu0 0.0
    %1718 = vmatpush1.msra.mxu0 0.0
    %1719 = vmatprep.subr.mxu0 0.0
    %1720 = vmatpush1.msra.mxu0 0.0
    %1721 = vmatprep.subr.mxu0 0.0
    %1722 = vmatpush1.msra.mxu0 0.0
    %1723 = vmatprep.subr.mxu0 0.0
    %1724 = vmatpush1.msra.mxu0 0.0
    %1725 = vmatprep.subr.mxu0 0.0
    %1726 = vmatpush1.msra.mxu0 0.0
    %1727 = vmatprep.subr.mxu0 0.0
    %1728 = vmatpush1.msra.mxu0 0.0
    %1729 = vmatprep.subr.mxu0 0.0
    %1730 = vmatpush1.msra.mxu0 0.0
    %1731 = vmatprep.subr.mxu0 0.0
    %1732 = vmatpush1.msra.mxu0 0.0
    %1733 = vmatprep.subr.mxu0 0.0
    %1734 = vmatpush1.msra.mxu0 0.0
    %1735 = vmatprep.subr.mxu0 0.0
    %1736 = vmatpush1.msra.mxu0 0.0
    %1737 = vmatprep.subr.mxu0 0.0
    %1738 = vmatpush1.msra.mxu0 0.0
    %1739 = vmatprep.subr.mxu0 0.0
    %1740 = vmatpush1.msra.mxu0 0.0
    %1741 = vmatprep.subr.mxu0 0.0
    %1742 = vmatpush1.msra.mxu0 0.0
    %1743 = vmatprep.subr.mxu0 0.0
    %1744 = vmatpush1.msra.mxu0 0.0
    %1745 = vmatprep.subr.mxu0 0.0
    %1746 = vmatpush1.msra.mxu0 0.0
    %1747 = vmatprep.subr.mxu0 0.0
    %1748 = vmatpush1.msra.mxu0 0.0
    %1749 = vmatprep.subr.mxu0 0.0
    %1750 = vmatpush1.msra.mxu0 0.0
    %1751 = vmatprep.subr.mxu0 0.0
    %1752 = vmatpush1.msra.mxu0 0.0
    %1753 = vmatprep.mubr.f32.mxu0 0.0
    %v1754 = vand.u32 %v1411, 4294901760
    %1755 = vmatmul.mubr.f32.gmra.mrb[0].mxu0 %v1754
    %v1756 = vpop.f32.mrb[0].mxu0
    %v1757 = vadd.f32 %v1531, %v1756
    %v1758 = vpop.f32.mrb[0].mxu0
    %1759 = vmatprep.mubr.f32.mxu0 0.0
    %v1760 = vand.u32 %v1414, 4294901760
    %1761 = vmatmul.mubr.f32.gmra.mrb[0].mxu0 %v1760
    %v1762 = vpop.f32.mrb[0].mxu0
    %v1763 = vadd.f32 %v1541, %v1762
    %v1764 = vpop.f32.mrb[0].mxu0
    %1765 = vmatprep.mubr.f32.mxu0 0.0
    %v1766 = vand.u32 %v1417, 4294901760
    %1767 = vmatmul.mubr.f32.gmra.mrb[0].mxu0 %v1766
    %v1768 = vpop.f32.mrb[0].mxu0
    %v1769 = vadd.f32 %v1551, %v1768
    %v1770 = vpop.f32.mrb[0].mxu0
    %1771 = vmatprep.mubr.f32.mxu0 0.0
    %v1772 = vand.u32 %v1420, 4294901760
    %1773 = vmatmul.mubr.f32.gmra.mrb[0].mxu0 %v1772
    %v1774 = vpop.f32.mrb[0].mxu0
    %v1775 = vadd.f32 %v1561, %v1774
    %v1776 = vpop.f32.mrb[0].mxu0
    %1777 = vmatprep.mubr.f32.mxu0 0.0
    %v1778 = vand.u32 %v1423, 4294901760
    %1779 = vmatmul.mubr.f32.gmra.mrb[0].mxu0 %v1778
    %v1780 = vpop.f32.mrb[0].mxu0
    %v1781 = vadd.f32 %v1571, %v1780
    %v1782 = vpop.f32.mrb[0].mxu0
    %1783 = vmatprep.mubr.f32.mxu0 0.0
    %v1784 = vand.u32 %v1426, 4294901760
    %1785 = vmatmul.mubr.f32.gmra.mrb[0].mxu0 %v1784
    %v1786 = vpop.f32.mrb[0].mxu0
    %v1787 = vadd.f32 %v1581, %v1786
    %v1788 = vpop.f32.mrb[0].mxu0
    %1789 = vmatprep.mubr.f32.mxu0 0.0
    %v1790 = vand.u32 %v1429, 4294901760
    %1791 = vmatmul.mubr.f32.gmra.mrb[0].mxu0 %v1790
    %v1792 = vpop.f32.mrb[0].mxu0
    %v1793 = vadd.f32 %v1591, %v1792
    %v1794 = vpop.f32.mrb[0].mxu0
    %1795 = vmatprep.mubr.f32.mxu0 0.0
    %v1796 = vand.u32 %v1432, 4294901760
    %1797 = vmatmul.mubr.f32.gmra.mrb[0].mxu0 %v1796
    %v1798 = vpop.f32.mrb[0].mxu0
    %v1799 = vadd.f32 %v1601, %v1798
    %v1800 = vpop.f32.mrb[0].mxu0
    %1801 = vmatprep.mubr.f32.mxu0 0.0
    %v1802 = vand.u32 %v1435, 4294901760
    %1803 = vmatmul.mubr.f32.gmra.mrb[0].mxu0 %v1802
    %v1804 = vpop.f32.mrb[0].mxu0
    %v1805 = vadd.f32 %v1611, %v1804
    %v1806 = vpop.f32.mrb[0].mxu0
    %1807 = vmatprep.mubr.f32.mxu0 0.0
    %v1808 = vand.u32 %v1438, 4294901760
    %1809 = vmatmul.mubr.f32.gmra.mrb[0].mxu0 %v1808
    %v1810 = vpop.f32.mrb[0].mxu0
    %v1811 = vadd.f32 %v1621, %v1810
    %v1812 = vpop.f32.mrb[0].mxu0
    %1813 = vmatprep.mubr.f32.mxu0 0.0
    %v1814 = vand.u32 %v1441, 4294901760
    %1815 = vmatmul.mubr.f32.gmra.mrb[0].mxu0 %v1814
    %v1816 = vpop.f32.mrb[0].mxu0
    %v1817 = vadd.f32 %v1631, %v1816
    %v1818 = vpop.f32.mrb[0].mxu0
    %1819 = vmatprep.mubr.f32.mxu0 0.0
    %v1820 = vand.u32 %v1444, 4294901760
    %1821 = vmatmul.mubr.f32.gmra.mrb[0].mxu0 %v1820
    %v1822 = vpop.f32.mrb[0].mxu0
    %v1823 = vadd.f32 %v1641, %v1822
    %v1824 = vpop.f32.mrb[0].mxu0
    %1825 = vmatprep.mubr.f32.mxu0 0.0
    %v1826 = vand.u32 %v1447, 4294901760
    %1827 = vmatmul.mubr.f32.gmra.mrb[0].mxu0 %v1826
    %v1828 = vpop.f32.mrb[0].mxu0
    %v1829 = vadd.f32 %v1651, %v1828
    %v1830 = vpop.f32.mrb[0].mxu0
    %1831 = vmatprep.mubr.f32.mxu0 0.0
    %v1832 = vand.u32 %v1450, 4294901760
    %1833 = vmatmul.mubr.f32.gmra.mrb[0].mxu0 %v1832
    %v1834 = vpop.f32.mrb[0].mxu0
    %v1835 = vadd.f32 %v1661, %v1834
    %v1836 = vpop.f32.mrb[0].mxu0
    %1837 = vmatprep.mubr.f32.mxu0 0.0
    %v1838 = vand.u32 %v1453, 4294901760
    %1839 = vmatmul.mubr.f32.gmra.mrb[0].mxu0 %v1838
    %v1840 = vpop.f32.mrb[0].mxu0
    %v1841 = vadd.f32 %v1671, %v1840
    %v1842 = vpop.f32.mrb[0].mxu0
    %1843 = vmatprep.mubr.f32.mxu0 0.0
    %v1844 = vand.u32 %v1456, 4294901760
    %1845 = vmatmul.mubr.f32.gmra.mrb[0].mxu0 %v1844
    %v1846 = vpop.f32.mrb[0].mxu0
    %v1847 = vadd.f32 %v1681, %v1846
    %v1848 = vpop.f32.mrb[0].mxu0
    %1849 = vdwg.mxu0
    %1850 = vmatprep.subr.mxu0 0.0
    %v1851 = vand.u32 %v21, 4294901760
    %v1852 = vsub.f32 %v21, %v1851
    %1853 = vmatpush1.msra.mxu0 %v1852
    %1854 = vmatprep.subr.mxu0 0.0
    %1855 = vmatpush1.msra.mxu0 0.0
    %1856 = vmatprep.subr.mxu0 0.0
    %1857 = vmatpush1.msra.mxu0 0.0
    %1858 = vmatprep.subr.mxu0 0.0
    %1859 = vmatpush1.msra.mxu0 0.0
    %1860 = vmatprep.subr.mxu0 0.0
    %1861 = vmatpush1.msra.mxu0 0.0
    %1862 = vmatprep.subr.mxu0 0.0
    %1863 = vmatpush1.msra.mxu0 0.0
    %1864 = vmatprep.subr.mxu0 0.0
    %1865 = vmatpush1.msra.mxu0 0.0
    %1866 = vmatprep.subr.mxu0 0.0
    %1867 = vmatpush1.msra.mxu0 0.0
    %1868 = vmatprep.subr.mxu0 0.0
    %1869 = vmatpush1.msra.mxu0 0.0
    %1870 = vmatprep.subr.mxu0 0.0
    %1871 = vmatpush1.msra.mxu0 0.0
    %1872 = vmatprep.subr.mxu0 0.0
    %1873 = vmatpush1.msra.mxu0 0.0
    %1874 = vmatprep.subr.mxu0 0.0
    %1875 = vmatpush1.msra.mxu0 0.0
    %1876 = vmatprep.subr.mxu0 0.0
    %1877 = vmatpush1.msra.mxu0 0.0
    %1878 = vmatprep.subr.mxu0 0.0
    %1879 = vmatpush1.msra.mxu0 0.0
    %1880 = vmatprep.subr.mxu0 0.0
    %1881 = vmatpush1.msra.mxu0 0.0
    %1882 = vmatprep.subr.mxu0 0.0
    %1883 = vmatpush1.msra.mxu0 0.0
    %1884 = vmatprep.subr.mxu0 0.0
    %1885 = vmatpush1.msra.mxu0 0.0
    %1886 = vmatprep.subr.mxu0 0.0
    %1887 = vmatpush1.msra.mxu0 0.0
    %1888 = vmatprep.subr.mxu0 0.0
    %1889 = vmatpush1.msra.mxu0 0.0
    %1890 = vmatprep.subr.mxu0 0.0
    %1891 = vmatpush1.msra.mxu0 0.0
    %1892 = vmatprep.subr.mxu0 0.0
    %1893 = vmatpush1.msra.mxu0 0.0
    %1894 = vmatprep.subr.mxu0 0.0
    %1895 = vmatpush1.msra.mxu0 0.0
    %1896 = vmatprep.subr.mxu0 0.0
    %1897 = vmatpush1.msra.mxu0 0.0
    %1898 = vmatprep.subr.mxu0 0.0
    %1899 = vmatpush1.msra.mxu0 0.0
    %1900 = vmatprep.subr.mxu0 0.0
    %1901 = vmatpush1.msra.mxu0 0.0
    %1902 = vmatprep.subr.mxu0 0.0
    %1903 = vmatpush1.msra.mxu0 0.0
    %1904 = vmatprep.subr.mxu0 0.0
    %1905 = vmatpush1.msra.mxu0 0.0
    %1906 = vmatprep.subr.mxu0 0.0
    %1907 = vmatpush1.msra.mxu0 0.0
    %1908 = vmatprep.subr.mxu0 0.0
    %1909 = vmatpush1.msra.mxu0 0.0
    %1910 = vmatprep.subr.mxu0 0.0
    %1911 = vmatpush1.msra.mxu0 0.0
    %1912 = vmatprep.subr.mxu0 0.0
    %1913 = vmatpush1.msra.mxu0 0.0
    %1914 = vmatprep.subr.mxu0 0.0
    %1915 = vmatpush1.msra.mxu0 0.0
    %1916 = vmatprep.mubr.f32.mxu0 0.0
    %v1917 = vand.u32 %v1411, 4294901760
    %v1918 = vsub.f32 %v1411, %v1917
    %1919 = vmatmul.mubr.f32.gmra.mrb[0].mxu0 %v1918
    %v1920 = vpop.f32.mrb[0].mxu0
    %v1921 = vadd.f32 %v1757, %v1920
    %v1922 = vpop.f32.mrb[0].mxu0
    %1923 = vmatprep.mubr.f32.mxu0 0.0
    %v1924 = vand.u32 %v1414, 4294901760
    %v1925 = vsub.f32 %v1414, %v1924
    %1926 = vmatmul.mubr.f32.gmra.mrb[0].mxu0 %v1925
    %v1927 = vpop.f32.mrb[0].mxu0
    %v1928 = vadd.f32 %v1763, %v1927
    %v1929 = vpop.f32.mrb[0].mxu0
    %1930 = vmatprep.mubr.f32.mxu0 0.0
    %v1931 = vand.u32 %v1417, 4294901760
    %v1932 = vsub.f32 %v1417, %v1931
    %1933 = vmatmul.mubr.f32.gmra.mrb[0].mxu0 %v1932
    %v1934 = vpop.f32.mrb[0].mxu0
    %v1935 = vadd.f32 %v1769, %v1934
    %v1936 = vpop.f32.mrb[0].mxu0
    %1937 = vmatprep.mubr.f32.mxu0 0.0
    %v1938 = vand.u32 %v1420, 4294901760
    %v1939 = vsub.f32 %v1420, %v1938
    %1940 = vmatmul.mubr.f32.gmra.mrb[0].mxu0 %v1939
    %v1941 = vpop.f32.mrb[0].mxu0
    %v1942 = vadd.f32 %v1775, %v1941
    %v1943 = vpop.f32.mrb[0].mxu0
    %1944 = vmatprep.mubr.f32.mxu0 0.0
    %v1945 = vand.u32 %v1423, 4294901760
    %v1946 = vsub.f32 %v1423, %v1945
    %1947 = vmatmul.mubr.f32.gmra.mrb[0].mxu0 %v1946
    %v1948 = vpop.f32.mrb[0].mxu0
    %v1949 = vadd.f32 %v1781, %v1948
    %v1950 = vpop.f32.mrb[0].mxu0
    %1951 = vmatprep.mubr.f32.mxu0 0.0
    %v1952 = vand.u32 %v1426, 4294901760
    %v1953 = vsub.f32 %v1426, %v1952
    %1954 = vmatmul.mubr.f32.gmra.mrb[0].mxu0 %v1953
    %v1955 = vpop.f32.mrb[0].mxu0
    %v1956 = vadd.f32 %v1787, %v1955
    %v1957 = vpop.f32.mrb[0].mxu0
    %1958 = vmatprep.mubr.f32.mxu0 0.0
    %v1959 = vand.u32 %v1429, 4294901760
    %v1960 = vsub.f32 %v1429, %v1959
    %1961 = vmatmul.mubr.f32.gmra.mrb[0].mxu0 %v1960
    %v1962 = vpop.f32.mrb[0].mxu0
    %v1963 = vadd.f32 %v1793, %v1962
    %v1964 = vpop.f32.mrb[0].mxu0
    %1965 = vmatprep.mubr.f32.mxu0 0.0
    %v1966 = vand.u32 %v1432, 4294901760
    %v1967 = vsub.f32 %v1432, %v1966
    %1968 = vmatmul.mubr.f32.gmra.mrb[0].mxu0 %v1967
    %v1969 = vpop.f32.mrb[0].mxu0
    %v1970 = vadd.f32 %v1799, %v1969
    %v1971 = vpop.f32.mrb[0].mxu0
    %1972 = vmatprep.mubr.f32.mxu0 0.0
    %v1973 = vand.u32 %v1435, 4294901760
    %v1974 = vsub.f32 %v1435, %v1973
    %1975 = vmatmul.mubr.f32.gmra.mrb[0].mxu0 %v1974
    %v1976 = vpop.f32.mrb[0].mxu0
    %v1977 = vadd.f32 %v1805, %v1976
    %v1978 = vpop.f32.mrb[0].mxu0
    %1979 = vmatprep.mubr.f32.mxu0 0.0
    %v1980 = vand.u32 %v1438, 4294901760
    %v1981 = vsub.f32 %v1438, %v1980
    %1982 = vmatmul.mubr.f32.gmra.mrb[0].mxu0 %v1981
    %v1983 = vpop.f32.mrb[0].mxu0
    %v1984 = vadd.f32 %v1811, %v1983
    %v1985 = vpop.f32.mrb[0].mxu0
    %1986 = vmatprep.mubr.f32.mxu0 0.0
    %v1987 = vand.u32 %v1441, 4294901760
    %v1988 = vsub.f32 %v1441, %v1987
    %1989 = vmatmul.mubr.f32.gmra.mrb[0].mxu0 %v1988
    %v1990 = vpop.f32.mrb[0].mxu0
    %v1991 = vadd.f32 %v1817, %v1990
    %v1992 = vpop.f32.mrb[0].mxu0
    %1993 = vmatprep.mubr.f32.mxu0 0.0
    %v1994 = vand.u32 %v1444, 4294901760
    %v1995 = vsub.f32 %v1444, %v1994
    %1996 = vmatmul.mubr.f32.gmra.mrb[0].mxu0 %v1995
    %v1997 = vpop.f32.mrb[0].mxu0
    %v1998 = vadd.f32 %v1823, %v1997
    %v1999 = vpop.f32.mrb[0].mxu0
    %2000 = vmatprep.mubr.f32.mxu0 0.0
    %v2001 = vand.u32 %v1447, 4294901760
    %v2002 = vsub.f32 %v1447, %v2001
    %2003 = vmatmul.mubr.f32.gmra.mrb[0].mxu0 %v2002
    %v2004 = vpop.f32.mrb[0].mxu0
    %v2005 = vadd.f32 %v1829, %v2004
    %v2006 = vpop.f32.mrb[0].mxu0
    %2007 = vmatprep.mubr.f32.mxu0 0.0
    %v2008 = vand.u32 %v1450, 4294901760
    %v2009 = vsub.f32 %v1450, %v2008
    %2010 = vmatmul.mubr.f32.gmra.mrb[0].mxu0 %v2009
    %v2011 = vpop.f32.mrb[0].mxu0
    %v2012 = vadd.f32 %v1835, %v2011
    %v2013 = vpop.f32.mrb[0].mxu0
    %2014 = vmatprep.mubr.f32.mxu0 0.0
    %v2015 = vand.u32 %v1453, 4294901760
    %v2016 = vsub.f32 %v1453, %v2015
    %2017 = vmatmul.mubr.f32.gmra.mrb[0].mxu0 %v2016
    %v2018 = vpop.f32.mrb[0].mxu0
    %v2019 = vadd.f32 %v1841, %v2018
    %v2020 = vpop.f32.mrb[0].mxu0
    %2021 = vmatprep.mubr.f32.mxu0 0.0
    %v2022 = vand.u32 %v1456, 4294901760
    %v2023 = vsub.f32 %v1456, %v2022
    %2024 = vmatmul.mubr.f32.gmra.mrb[0].mxu0 %v2023
    %v2025 = vpop.f32.mrb[0].mxu0
    %v2026 = vadd.f32 %v1847, %v2025
    %v2027 = vpop.f32.mrb[0].mxu0
    %2028 = vdwg.mxu0
    %2029 = vmatprep.subr.mxu0 0.0
    %v2030 = vand.u32 %v21, 4294901760
    %2031 = vmatpush1.msra.mxu0 %v2030
    %2032 = vmatprep.subr.mxu0 0.0
    %2033 = vmatpush1.msra.mxu0 0.0
    %2034 = vmatprep.subr.mxu0 0.0
    %2035 = vmatpush1.msra.mxu0 0.0
    %2036 = vmatprep.subr.mxu0 0.0
    %2037 = vmatpush1.msra.mxu0 0.0
    %2038 = vmatprep.subr.mxu0 0.0
    %2039 = vmatpush1.msra.mxu0 0.0
    %2040 = vmatprep.subr.mxu0 0.0
    %2041 = vmatpush1.msra.mxu0 0.0
    %2042 = vmatprep.subr.mxu0 0.0
    %2043 = vmatpush1.msra.mxu0 0.0
    %2044 = vmatprep.subr.mxu0 0.0
    %2045 = vmatpush1.msra.mxu0 0.0
    %2046 = vmatprep.subr.mxu0 0.0
    %2047 = vmatpush1.msra.mxu0 0.0
    %2048 = vmatprep.subr.mxu0 0.0
    %2049 = vmatpush1.msra.mxu0 0.0
    %2050 = vmatprep.subr.mxu0 0.0
    %2051 = vmatpush1.msra.mxu0 0.0
    %2052 = vmatprep.subr.mxu0 0.0
    %2053 = vmatpush1.msra.mxu0 0.0
    %2054 = vmatprep.subr.mxu0 0.0
    %2055 = vmatpush1.msra.mxu0 0.0
    %2056 = vmatprep.subr.mxu0 0.0
    %2057 = vmatpush1.msra.mxu0 0.0
    %2058 = vmatprep.subr.mxu0 0.0
    %2059 = vmatpush1.msra.mxu0 0.0
    %2060 = vmatprep.subr.mxu0 0.0
    %2061 = vmatpush1.msra.mxu0 0.0
    %2062 = vmatprep.subr.mxu0 0.0
    %2063 = vmatpush1.msra.mxu0 0.0
    %2064 = vmatprep.subr.mxu0 0.0
    %2065 = vmatpush1.msra.mxu0 0.0
    %2066 = vmatprep.subr.mxu0 0.0
    %2067 = vmatpush1.msra.mxu0 0.0
    %2068 = vmatprep.subr.mxu0 0.0
    %2069 = vmatpush1.msra.mxu0 0.0
    %2070 = vmatprep.subr.mxu0 0.0
    %2071 = vmatpush1.msra.mxu0 0.0
    %2072 = vmatprep.subr.mxu0 0.0
    %2073 = vmatpush1.msra.mxu0 0.0
    %2074 = vmatprep.subr.mxu0 0.0
    %2075 = vmatpush1.msra.mxu0 0.0
    %2076 = vmatprep.subr.mxu0 0.0
    %2077 = vmatpush1.msra.mxu0 0.0
    %2078 = vmatprep.subr.mxu0 0.0
    %2079 = vmatpush1.msra.mxu0 0.0
    %2080 = vmatprep.subr.mxu0 0.0
    %2081 = vmatpush1.msra.mxu0 0.0
    %2082 = vmatprep.subr.mxu0 0.0
    %2083 = vmatpush1.msra.mxu0 0.0
    %2084 = vmatprep.subr.mxu0 0.0
    %2085 = vmatpush1.msra.mxu0 0.0
    %2086 = vmatprep.subr.mxu0 0.0
    %2087 = vmatpush1.msra.mxu0 0.0
    %2088 = vmatprep.subr.mxu0 0.0
    %2089 = vmatpush1.msra.mxu0 0.0
    %2090 = vmatprep.subr.mxu0 0.0
    %2091 = vmatpush1.msra.mxu0 0.0
    %2092 = vmatprep.subr.mxu0 0.0
    %2093 = vmatpush1.msra.mxu0 0.0
    %2094 = vmatprep.mubr.f32.mxu0 0.0
    %v2095 = vand.u32 %v1411, 4294901760
    %v2096 = vsub.f32 %v1411, %v2095
    %v2097 = vand.u32 %v2096, 4294901760
    %2098 = vmatmul.mubr.f32.gmra.mrb[0].mxu0 %v2097
    %v2099 = vpop.f32.mrb[0].mxu0
    %v2100 = vadd.f32 %v1921, %v2099
    %v2101 = vpop.f32.mrb[0].mxu0
    %2102 = vmatprep.mubr.f32.mxu0 0.0
    %v2103 = vand.u32 %v1414, 4294901760
    %v2104 = vsub.f32 %v1414, %v2103
    %v2105 = vand.u32 %v2104, 4294901760
    %2106 = vmatmul.mubr.f32.gmra.mrb[0].mxu0 %v2105
    %v2107 = vpop.f32.mrb[0].mxu0
    %v2108 = vadd.f32 %v1928, %v2107
    %v2109 = vpop.f32.mrb[0].mxu0
    %2110 = vmatprep.mubr.f32.mxu0 0.0
    %v2111 = vand.u32 %v1417, 4294901760
    %v2112 = vsub.f32 %v1417, %v2111
    %v2113 = vand.u32 %v2112, 4294901760
    %2114 = vmatmul.mubr.f32.gmra.mrb[0].mxu0 %v2113
    %v2115 = vpop.f32.mrb[0].mxu0
    %v2116 = vadd.f32 %v1935, %v2115
    %v2117 = vpop.f32.mrb[0].mxu0
    %2118 = vmatprep.mubr.f32.mxu0 0.0
    %v2119 = vand.u32 %v1420, 4294901760
    %v2120 = vsub.f32 %v1420, %v2119
    %v2121 = vand.u32 %v2120, 4294901760
    %2122 = vmatmul.mubr.f32.gmra.mrb[0].mxu0 %v2121
    %v2123 = vpop.f32.mrb[0].mxu0
    %v2124 = vadd.f32 %v1942, %v2123
    %v2125 = vpop.f32.mrb[0].mxu0
    %2126 = vmatprep.mubr.f32.mxu0 0.0
    %v2127 = vand.u32 %v1423, 4294901760
    %v2128 = vsub.f32 %v1423, %v2127
    %v2129 = vand.u32 %v2128, 4294901760
    %2130 = vmatmul.mubr.f32.gmra.mrb[0].mxu0 %v2129
    %v2131 = vpop.f32.mrb[0].mxu0
    %v2132 = vadd.f32 %v1949, %v2131
    %v2133 = vpop.f32.mrb[0].mxu0
    %2134 = vmatprep.mubr.f32.mxu0 0.0
    %v2135 = vand.u32 %v1426, 4294901760
    %v2136 = vsub.f32 %v1426, %v2135
    %v2137 = vand.u32 %v2136, 4294901760
    %2138 = vmatmul.mubr.f32.gmra.mrb[0].mxu0 %v2137
    %v2139 = vpop.f32.mrb[0].mxu0
    %v2140 = vadd.f32 %v1956, %v2139
    %v2141 = vpop.f32.mrb[0].mxu0
    %2142 = vmatprep.mubr.f32.mxu0 0.0
    %v2143 = vand.u32 %v1429, 4294901760
    %v2144 = vsub.f32 %v1429, %v2143
    %v2145 = vand.u32 %v2144, 4294901760
    %2146 = vmatmul.mubr.f32.gmra.mrb[0].mxu0 %v2145
    %v2147 = vpop.f32.mrb[0].mxu0
    %v2148 = vadd.f32 %v1963, %v2147
    %v2149 = vpop.f32.mrb[0].mxu0
    %2150 = vmatprep.mubr.f32.mxu0 0.0
    %v2151 = vand.u32 %v1432, 4294901760
    %v2152 = vsub.f32 %v1432, %v2151
    %v2153 = vand.u32 %v2152, 4294901760
    %2154 = vmatmul.mubr.f32.gmra.mrb[0].mxu0 %v2153
    %v2155 = vpop.f32.mrb[0].mxu0
    %v2156 = vadd.f32 %v1970, %v2155
    %v2157 = vpop.f32.mrb[0].mxu0
    %2158 = vmatprep.mubr.f32.mxu0 0.0
    %v2159 = vand.u32 %v1435, 4294901760
    %v2160 = vsub.f32 %v1435, %v2159
    %v2161 = vand.u32 %v2160, 4294901760
    %2162 = vmatmul.mubr.f32.gmra.mrb[0].mxu0 %v2161
    %v2163 = vpop.f32.mrb[0].mxu0
    %v2164 = vadd.f32 %v1977, %v2163
    %v2165 = vpop.f32.mrb[0].mxu0
    %2166 = vmatprep.mubr.f32.mxu0 0.0
    %v2167 = vand.u32 %v1438, 4294901760
    %v2168 = vsub.f32 %v1438, %v2167
    %v2169 = vand.u32 %v2168, 4294901760
    %2170 = vmatmul.mubr.f32.gmra.mrb[0].mxu0 %v2169
    %v2171 = vpop.f32.mrb[0].mxu0
    %v2172 = vadd.f32 %v1984, %v2171
    %v2173 = vpop.f32.mrb[0].mxu0
    %2174 = vmatprep.mubr.f32.mxu0 0.0
    %v2175 = vand.u32 %v1441, 4294901760
    %v2176 = vsub.f32 %v1441, %v2175
    %v2177 = vand.u32 %v2176, 4294901760
    %2178 = vmatmul.mubr.f32.gmra.mrb[0].mxu0 %v2177
    %v2179 = vpop.f32.mrb[0].mxu0
    %v2180 = vadd.f32 %v1991, %v2179
    %v2181 = vpop.f32.mrb[0].mxu0
    %2182 = vmatprep.mubr.f32.mxu0 0.0
    %v2183 = vand.u32 %v1444, 4294901760
    %v2184 = vsub.f32 %v1444, %v2183
    %v2185 = vand.u32 %v2184, 4294901760
    %2186 = vmatmul.mubr.f32.gmra.mrb[0].mxu0 %v2185
    %v2187 = vpop.f32.mrb[0].mxu0
    %v2188 = vadd.f32 %v1998, %v2187
    %v2189 = vpop.f32.mrb[0].mxu0
    %2190 = vmatprep.mubr.f32.mxu0 0.0
    %v2191 = vand.u32 %v1447, 4294901760
    %v2192 = vsub.f32 %v1447, %v2191
    %v2193 = vand.u32 %v2192, 4294901760
    %2194 = vmatmul.mubr.f32.gmra.mrb[0].mxu0 %v2193
    %v2195 = vpop.f32.mrb[0].mxu0
    %v2196 = vadd.f32 %v2005, %v2195
    %v2197 = vpop.f32.mrb[0].mxu0
    %2198 = vmatprep.mubr.f32.mxu0 0.0
    %v2199 = vand.u32 %v1450, 4294901760
    %v2200 = vsub.f32 %v1450, %v2199
    %v2201 = vand.u32 %v2200, 4294901760
    %2202 = vmatmul.mubr.f32.gmra.mrb[0].mxu0 %v2201
    %v2203 = vpop.f32.mrb[0].mxu0
    %v2204 = vadd.f32 %v2012, %v2203
    %v2205 = vpop.f32.mrb[0].mxu0
    %2206 = vmatprep.mubr.f32.mxu0 0.0
    %v2207 = vand.u32 %v1453, 4294901760
    %v2208 = vsub.f32 %v1453, %v2207
    %v2209 = vand.u32 %v2208, 4294901760
    %2210 = vmatmul.mubr.f32.gmra.mrb[0].mxu0 %v2209
    %v2211 = vpop.f32.mrb[0].mxu0
    %v2212 = vadd.f32 %v2019, %v2211
    %v2213 = vpop.f32.mrb[0].mxu0
    %2214 = vmatprep.mubr.f32.mxu0 0.0
    %v2215 = vand.u32 %v1456, 4294901760
    %v2216 = vsub.f32 %v1456, %v2215
    %v2217 = vand.u32 %v2216, 4294901760
    %2218 = vmatmul.mubr.f32.gmra.mrb[0].mxu0 %v2217
    %v2219 = vpop.f32.mrb[0].mxu0
    %v2220 = vadd.f32 %v2026, %v2219
    %v2221 = vpop.f32.mrb[0].mxu0
    %2222 = vdwg.mxu0
    %2223 = vmatprep.subr.mxu0 0.0
    %v2224 = vand.u32 %v21, 4294901760
    %v2225 = vsub.f32 %v21, %v2224
    %v2226 = vand.u32 %v2225, 4294901760
    %2227 = vmatpush1.msra.mxu0 %v2226
    %2228 = vmatprep.subr.mxu0 0.0
    %2229 = vmatpush1.msra.mxu0 0.0
    %2230 = vmatprep.subr.mxu0 0.0
    %2231 = vmatpush1.msra.mxu0 0.0
    %2232 = vmatprep.subr.mxu0 0.0
    %2233 = vmatpush1.msra.mxu0 0.0
    %2234 = vmatprep.subr.mxu0 0.0
    %2235 = vmatpush1.msra.mxu0 0.0
    %2236 = vmatprep.subr.mxu0 0.0
    %2237 = vmatpush1.msra.mxu0 0.0
    %2238 = vmatprep.subr.mxu0 0.0
    %2239 = vmatpush1.msra.mxu0 0.0
    %2240 = vmatprep.subr.mxu0 0.0
    %2241 = vmatpush1.msra.mxu0 0.0
    %2242 = vmatprep.subr.mxu0 0.0
    %2243 = vmatpush1.msra.mxu0 0.0
    %2244 = vmatprep.subr.mxu0 0.0
    %2245 = vmatpush1.msra.mxu0 0.0
    %2246 = vmatprep.subr.mxu0 0.0
    %2247 = vmatpush1.msra.mxu0 0.0
    %2248 = vmatprep.subr.mxu0 0.0
    %2249 = vmatpush1.msra.mxu0 0.0
    %2250 = vmatprep.subr.mxu0 0.0
    %2251 = vmatpush1.msra.mxu0 0.0
    %2252 = vmatprep.subr.mxu0 0.0
    %2253 = vmatpush1.msra.mxu0 0.0
    %2254 = vmatprep.subr.mxu0 0.0
    %2255 = vmatpush1.msra.mxu0 0.0
    %2256 = vmatprep.subr.mxu0 0.0
    %2257 = vmatpush1.msra.mxu0 0.0
    %2258 = vmatprep.subr.mxu0 0.0
    %2259 = vmatpush1.msra.mxu0 0.0
    %2260 = vmatprep.subr.mxu0 0.0
    %2261 = vmatpush1.msra.mxu0 0.0
    %2262 = vmatprep.subr.mxu0 0.0
    %2263 = vmatpush1.msra.mxu0 0.0
    %2264 = vmatprep.subr.mxu0 0.0
    %2265 = vmatpush1.msra.mxu0 0.0
    %2266 = vmatprep.subr.mxu0 0.0
    %2267 = vmatpush1.msra.mxu0 0.0
    %2268 = vmatprep.subr.mxu0 0.0
    %2269 = vmatpush1.msra.mxu0 0.0
    %2270 = vmatprep.subr.mxu0 0.0
    %2271 = vmatpush1.msra.mxu0 0.0
    %2272 = vmatprep.subr.mxu0 0.0
    %2273 = vmatpush1.msra.mxu0 0.0
    %2274 = vmatprep.subr.mxu0 0.0
    %2275 = vmatpush1.msra.mxu0 0.0
    %2276 = vmatprep.subr.mxu0 0.0
    %2277 = vmatpush1.msra.mxu0 0.0
    %2278 = vmatprep.subr.mxu0 0.0
    %2279 = vmatpush1.msra.mxu0 0.0
    %2280 = vmatprep.subr.mxu0 0.0
    %2281 = vmatpush1.msra.mxu0 0.0
    %2282 = vmatprep.subr.mxu0 0.0
    %2283 = vmatpush1.msra.mxu0 0.0
    %2284 = vmatprep.subr.mxu0 0.0
    %2285 = vmatpush1.msra.mxu0 0.0
    %2286 = vmatprep.subr.mxu0 0.0
    %2287 = vmatpush1.msra.mxu0 0.0
    %2288 = vmatprep.subr.mxu0 0.0
    %2289 = vmatpush1.msra.mxu0 0.0
    %2290 = vmatprep.mubr.f32.mxu0 0.0
    %v2291 = vand.u32 %v1411, 4294901760
    %2292 = vmatmul.mubr.f32.gmra.mrb[0].mxu0 %v2291
    %v2293 = vpop.f32.mrb[0].mxu0
    %v2294 = vadd.f32 %v2100, %v2293
    %v2295 = vpop.f32.mrb[0].mxu0
    %2296 = vmatprep.mubr.f32.mxu0 0.0
    %v2297 = vand.u32 %v1414, 4294901760
    %2298 = vmatmul.mubr.f32.gmra.mrb[0].mxu0 %v2297
    %v2299 = vpop.f32.mrb[0].mxu0
    %v2300 = vadd.f32 %v2108, %v2299
    %v2301 = vpop.f32.mrb[0].mxu0
    %2302 = vmatprep.mubr.f32.mxu0 0.0
    %v2303 = vand.u32 %v1417, 4294901760
    %2304 = vmatmul.mubr.f32.gmra.mrb[0].mxu0 %v2303
    %v2305 = vpop.f32.mrb[0].mxu0
    %v2306 = vadd.f32 %v2116, %v2305
    %v2307 = vpop.f32.mrb[0].mxu0
    %2308 = vmatprep.mubr.f32.mxu0 0.0
    %v2309 = vand.u32 %v1420, 4294901760
    %2310 = vmatmul.mubr.f32.gmra.mrb[0].mxu0 %v2309
    %v2311 = vpop.f32.mrb[0].mxu0
    %v2312 = vadd.f32 %v2124, %v2311
    %v2313 = vpop.f32.mrb[0].mxu0
    %2314 = vmatprep.mubr.f32.mxu0 0.0
    %v2315 = vand.u32 %v1423, 4294901760
    %2316 = vmatmul.mubr.f32.gmra.mrb[0].mxu0 %v2315
    %v2317 = vpop.f32.mrb[0].mxu0
    %v2318 = vadd.f32 %v2132, %v2317
    %v2319 = vpop.f32.mrb[0].mxu0
    %2320 = vmatprep.mubr.f32.mxu0 0.0
    %v2321 = vand.u32 %v1426, 4294901760
    %2322 = vmatmul.mubr.f32.gmra.mrb[0].mxu0 %v2321
    %v2323 = vpop.f32.mrb[0].mxu0
    %v2324 = vadd.f32 %v2140, %v2323
    %v2325 = vpop.f32.mrb[0].mxu0
    %2326 = vmatprep.mubr.f32.mxu0 0.0
    %v2327 = vand.u32 %v1429, 4294901760
    %2328 = vmatmul.mubr.f32.gmra.mrb[0].mxu0 %v2327
    %v2329 = vpop.f32.mrb[0].mxu0
    %v2330 = vadd.f32 %v2148, %v2329
    %v2331 = vpop.f32.mrb[0].mxu0
    %2332 = vmatprep.mubr.f32.mxu0 0.0
    %v2333 = vand.u32 %v1432, 4294901760
    %2334 = vmatmul.mubr.f32.gmra.mrb[0].mxu0 %v2333
    %v2335 = vpop.f32.mrb[0].mxu0
    %v2336 = vadd.f32 %v2156, %v2335
    %v2337 = vpop.f32.mrb[0].mxu0
    %2338 = vmatprep.mubr.f32.mxu0 0.0
    %v2339 = vand.u32 %v1435, 4294901760
    %2340 = vmatmul.mubr.f32.gmra.mrb[0].mxu0 %v2339
    %v2341 = vpop.f32.mrb[0].mxu0
    %v2342 = vadd.f32 %v2164, %v2341
    %v2343 = vpop.f32.mrb[0].mxu0
    %2344 = vmatprep.mubr.f32.mxu0 0.0
    %v2345 = vand.u32 %v1438, 4294901760
    %2346 = vmatmul.mubr.f32.gmra.mrb[0].mxu0 %v2345
    %v2347 = vpop.f32.mrb[0].mxu0
    %v2348 = vadd.f32 %v2172, %v2347
    %v2349 = vpop.f32.mrb[0].mxu0
    %2350 = vmatprep.mubr.f32.mxu0 0.0
    %v2351 = vand.u32 %v1441, 4294901760
    %2352 = vmatmul.mubr.f32.gmra.mrb[0].mxu0 %v2351
    %v2353 = vpop.f32.mrb[0].mxu0
    %v2354 = vadd.f32 %v2180, %v2353
    %v2355 = vpop.f32.mrb[0].mxu0
    %2356 = vmatprep.mubr.f32.mxu0 0.0
    %v2357 = vand.u32 %v1444, 4294901760
    %2358 = vmatmul.mubr.f32.gmra.mrb[0].mxu0 %v2357
    %v2359 = vpop.f32.mrb[0].mxu0
    %v2360 = vadd.f32 %v2188, %v2359
    %v2361 = vpop.f32.mrb[0].mxu0
    %2362 = vmatprep.mubr.f32.mxu0 0.0
    %v2363 = vand.u32 %v1447, 4294901760
    %2364 = vmatmul.mubr.f32.gmra.mrb[0].mxu0 %v2363
    %v2365 = vpop.f32.mrb[0].mxu0
    %v2366 = vadd.f32 %v2196, %v2365
    %v2367 = vpop.f32.mrb[0].mxu0
    %2368 = vmatprep.mubr.f32.mxu0 0.0
    %v2369 = vand.u32 %v1450, 4294901760
    %2370 = vmatmul.mubr.f32.gmra.mrb[0].mxu0 %v2369
    %v2371 = vpop.f32.mrb[0].mxu0
    %v2372 = vadd.f32 %v2204, %v2371
    %v2373 = vpop.f32.mrb[0].mxu0
    %2374 = vmatprep.mubr.f32.mxu0 0.0
    %v2375 = vand.u32 %v1453, 4294901760
    %2376 = vmatmul.mubr.f32.gmra.mrb[0].mxu0 %v2375
    %v2377 = vpop.f32.mrb[0].mxu0
    %v2378 = vadd.f32 %v2212, %v2377
    %v2379 = vpop.f32.mrb[0].mxu0
    %2380 = vmatprep.mubr.f32.mxu0 0.0
    %v2381 = vand.u32 %v1456, 4294901760
    %2382 = vmatmul.mubr.f32.gmra.mrb[0].mxu0 %v2381
    %v2383 = vpop.f32.mrb[0].mxu0
    %v2384 = vadd.f32 %v2220, %v2383
    %v2385 = vpop.f32.mrb[0].mxu0
    %2386 = vdwg.mxu0
    %2387 = vmatprep.subr.mxu0 0.0
    %v2388 = vand.u32 %v21, 4294901760
    %2389 = vmatpush1.msra.mxu0 %v2388
    %2390 = vmatprep.subr.mxu0 0.0
    %2391 = vmatpush1.msra.mxu0 0.0
    %2392 = vmatprep.subr.mxu0 0.0
    %2393 = vmatpush1.msra.mxu0 0.0
    %2394 = vmatprep.subr.mxu0 0.0
    %2395 = vmatpush1.msra.mxu0 0.0
    %2396 = vmatprep.subr.mxu0 0.0
    %2397 = vmatpush1.msra.mxu0 0.0
    %2398 = vmatprep.subr.mxu0 0.0
    %2399 = vmatpush1.msra.mxu0 0.0
    %2400 = vmatprep.subr.mxu0 0.0
    %2401 = vmatpush1.msra.mxu0 0.0
    %2402 = vmatprep.subr.mxu0 0.0
    %2403 = vmatpush1.msra.mxu0 0.0
    %2404 = vmatprep.subr.mxu0 0.0
    %2405 = vmatpush1.msra.mxu0 0.0
    %2406 = vmatprep.subr.mxu0 0.0
    %2407 = vmatpush1.msra.mxu0 0.0
    %2408 = vmatprep.subr.mxu0 0.0
    %2409 = vmatpush1.msra.mxu0 0.0
    %2410 = vmatprep.subr.mxu0 0.0
    %2411 = vmatpush1.msra.mxu0 0.0
    %2412 = vmatprep.subr.mxu0 0.0
    %2413 = vmatpush1.msra.mxu0 0.0
    %2414 = vmatprep.subr.mxu0 0.0
    %2415 = vmatpush1.msra.mxu0 0.0
    %2416 = vmatprep.subr.mxu0 0.0
    %2417 = vmatpush1.msra.mxu0 0.0
    %2418 = vmatprep.subr.mxu0 0.0
    %2419 = vmatpush1.msra.mxu0 0.0
    %2420 = vmatprep.subr.mxu0 0.0
    %2421 = vmatpush1.msra.mxu0 0.0
    %2422 = vmatprep.subr.mxu0 0.0
    %2423 = vmatpush1.msra.mxu0 0.0
    %2424 = vmatprep.subr.mxu0 0.0
    %2425 = vmatpush1.msra.mxu0 0.0
    %2426 = vmatprep.subr.mxu0 0.0
    %2427 = vmatpush1.msra.mxu0 0.0
    %2428 = vmatprep.subr.mxu0 0.0
    %2429 = vmatpush1.msra.mxu0 0.0
    %2430 = vmatprep.subr.mxu0 0.0
    %2431 = vmatpush1.msra.mxu0 0.0
    %2432 = vmatprep.subr.mxu0 0.0
    %2433 = vmatpush1.msra.mxu0 0.0
    %2434 = vmatprep.subr.mxu0 0.0
    %2435 = vmatpush1.msra.mxu0 0.0
    %2436 = vmatprep.subr.mxu0 0.0
    %2437 = vmatpush1.msra.mxu0 0.0
    %2438 = vmatprep.subr.mxu0 0.0
    %2439 = vmatpush1.msra.mxu0 0.0
    %2440 = vmatprep.subr.mxu0 0.0
    %2441 = vmatpush1.msra.mxu0 0.0
    %2442 = vmatprep.subr.mxu0 0.0
    %2443 = vmatpush1.msra.mxu0 0.0
    %2444 = vmatprep.subr.mxu0 0.0
    %2445 = vmatpush1.msra.mxu0 0.0
    %2446 = vmatprep.subr.mxu0 0.0
    %2447 = vmatpush1.msra.mxu0 0.0
    %2448 = vmatprep.subr.mxu0 0.0
    %2449 = vmatpush1.msra.mxu0 0.0
    %2450 = vmatprep.subr.mxu0 0.0
    %2451 = vmatpush1.msra.mxu0 0.0
    %2452 = vmatprep.mubr.f32.mxu0 0.0
    %v2453 = vand.u32 %v1411, 4294901760
    %2454 = vmatmul.mubr.f32.gmra.mrb[0].mxu0 %v2453
    %v2455 = vpop.f32.mrb[0].mxu0
    %v2456 = vadd.f32 %v2294, %v2455
    %v2457 = vpop.f32.mrb[0].mxu0
    %2458 = vmatprep.mubr.f32.mxu0 0.0
    %v2459 = vand.u32 %v1414, 4294901760
    %2460 = vmatmul.mubr.f32.gmra.mrb[0].mxu0 %v2459
    %v2461 = vpop.f32.mrb[0].mxu0
    %v2462 = vadd.f32 %v2300, %v2461
    %v2463 = vpop.f32.mrb[0].mxu0
    %2464 = vmatprep.mubr.f32.mxu0 0.0
    %v2465 = vand.u32 %v1417, 4294901760
    %2466 = vmatmul.mubr.f32.gmra.mrb[0].mxu0 %v2465
    %v2467 = vpop.f32.mrb[0].mxu0
    %v2468 = vadd.f32 %v2306, %v2467
    %v2469 = vpop.f32.mrb[0].mxu0
    %2470 = vmatprep.mubr.f32.mxu0 0.0
    %v2471 = vand.u32 %v1420, 4294901760
    %2472 = vmatmul.mubr.f32.gmra.mrb[0].mxu0 %v2471
    %v2473 = vpop.f32.mrb[0].mxu0
    %v2474 = vadd.f32 %v2312, %v2473
    %v2475 = vpop.f32.mrb[0].mxu0
    %2476 = vmatprep.mubr.f32.mxu0 0.0
    %v2477 = vand.u32 %v1423, 4294901760
    %2478 = vmatmul.mubr.f32.gmra.mrb[0].mxu0 %v2477
    %v2479 = vpop.f32.mrb[0].mxu0
    %v2480 = vadd.f32 %v2318, %v2479
    %v2481 = vpop.f32.mrb[0].mxu0
    %2482 = vmatprep.mubr.f32.mxu0 0.0
    %v2483 = vand.u32 %v1426, 4294901760
    %2484 = vmatmul.mubr.f32.gmra.mrb[0].mxu0 %v2483
    %v2485 = vpop.f32.mrb[0].mxu0
    %v2486 = vadd.f32 %v2324, %v2485
    %v2487 = vpop.f32.mrb[0].mxu0
    %2488 = vmatprep.mubr.f32.mxu0 0.0
    %v2489 = vand.u32 %v1429, 4294901760
    %2490 = vmatmul.mubr.f32.gmra.mrb[0].mxu0 %v2489
    %v2491 = vpop.f32.mrb[0].mxu0
    %v2492 = vadd.f32 %v2330, %v2491
    %v2493 = vpop.f32.mrb[0].mxu0
    %2494 = vmatprep.mubr.f32.mxu0 0.0
    %v2495 = vand.u32 %v1432, 4294901760
    %2496 = vmatmul.mubr.f32.gmra.mrb[0].mxu0 %v2495
    %v2497 = vpop.f32.mrb[0].mxu0
    %v2498 = vadd.f32 %v2336, %v2497
    %v2499 = vpop.f32.mrb[0].mxu0
    %2500 = vmatprep.mubr.f32.mxu0 0.0
    %v2501 = vand.u32 %v1435, 4294901760
    %2502 = vmatmul.mubr.f32.gmra.mrb[0].mxu0 %v2501
    %v2503 = vpop.f32.mrb[0].mxu0
    %v2504 = vadd.f32 %v2342, %v2503
    %v2505 = vpop.f32.mrb[0].mxu0
    %2506 = vmatprep.mubr.f32.mxu0 0.0
    %v2507 = vand.u32 %v1438, 4294901760
    %2508 = vmatmul.mubr.f32.gmra.mrb[0].mxu0 %v2507
    %v2509 = vpop.f32.mrb[0].mxu0
    %v2510 = vadd.f32 %v2348, %v2509
    %v2511 = vpop.f32.mrb[0].mxu0
    %2512 = vmatprep.mubr.f32.mxu0 0.0
    %v2513 = vand.u32 %v1441, 4294901760
    %2514 = vmatmul.mubr.f32.gmra.mrb[0].mxu0 %v2513
    %v2515 = vpop.f32.mrb[0].mxu0
    %v2516 = vadd.f32 %v2354, %v2515
    %v2517 = vpop.f32.mrb[0].mxu0
    %2518 = vmatprep.mubr.f32.mxu0 0.0
    %v2519 = vand.u32 %v1444, 4294901760
    %2520 = vmatmul.mubr.f32.gmra.mrb[0].mxu0 %v2519
    %v2521 = vpop.f32.mrb[0].mxu0
    %v2522 = vadd.f32 %v2360, %v2521
    %v2523 = vpop.f32.mrb[0].mxu0
    %2524 = vmatprep.mubr.f32.mxu0 0.0
    %v2525 = vand.u32 %v1447, 4294901760
    %2526 = vmatmul.mubr.f32.gmra.mrb[0].mxu0 %v2525
    %v2527 = vpop.f32.mrb[0].mxu0
    %v2528 = vadd.f32 %v2366, %v2527
    %v2529 = vpop.f32.mrb[0].mxu0
    %2530 = vmatprep.mubr.f32.mxu0 0.0
    %v2531 = vand.u32 %v1450, 4294901760
    %2532 = vmatmul.mubr.f32.gmra.mrb[0].mxu0 %v2531
    %v2533 = vpop.f32.mrb[0].mxu0
    %v2534 = vadd.f32 %v2372, %v2533
    %v2535 = vpop.f32.mrb[0].mxu0
    %2536 = vmatprep.mubr.f32.mxu0 0.0
    %v2537 = vand.u32 %v1453, 4294901760
    %2538 = vmatmul.mubr.f32.gmra.mrb[0].mxu0 %v2537
    %v2539 = vpop.f32.mrb[0].mxu0
    %v2540 = vadd.f32 %v2378, %v2539
    %v2541 = vpop.f32.mrb[0].mxu0
    %2542 = vmatprep.mubr.f32.mxu0 0.0
    %v2543 = vand.u32 %v1456, 4294901760
    %2544 = vmatmul.mubr.f32.gmra.mrb[0].mxu0 %v2543
    %v2545 = vpop.f32.mrb[0].mxu0
    %v2546 = vadd.f32 %v2384, %v2545
    %v2547 = vpop.f32.mrb[0].mxu0
    %2548 = vdwg.mxu0
    %v2549 = vsel %vm45, %v2456, -inf
    %2550 = vmax.xlane.f32.xlu0 %v2549
    %v2551 = vpop.xlane.xlu0 %2550
    %v2552 = vsel %vm45, %v2462, -inf
    %2553 = vmax.xlane.f32.xlu0 %v2552
    %v2554 = vpop.xlane.xlu0 %2553
    %v2555 = vsel %vm45, %v2468, -inf
    %2556 = vmax.xlane.f32.xlu0 %v2555
    %v2557 = vpop.xlane.xlu0 %2556
    %v2558 = vsel %vm45, %v2474, -inf
    %2559 = vmax.xlane.f32.xlu0 %v2558
    %v2560 = vpop.xlane.xlu0 %2559
    %v2561 = vsel %vm45, %v2480, -inf
    %2562 = vmax.xlane.f32.xlu0 %v2561
    %v2563 = vpop.xlane.xlu0 %2562
    %v2564 = vsel %vm45, %v2486, -inf
    %2565 = vmax.xlane.f32.xlu0 %v2564
    %v2566 = vpop.xlane.xlu0 %2565
    %v2567 = vsel %vm45, %v2492, -inf
    %2568 = vmax.xlane.f32.xlu0 %v2567
    %v2569 = vpop.xlane.xlu0 %2568
    %v2570 = vsel %vm45, %v2498, -inf
    %2571 = vmax.xlane.f32.xlu0 %v2570
    %v2572 = vpop.xlane.xlu0 %2571
    %v2573 = vsel %vm45, %v2504, -inf
    %2574 = vmax.xlane.f32.xlu0 %v2573
    %v2575 = vpop.xlane.xlu0 %2574
    %v2576 = vsel %vm45, %v2510, -inf
    %2577 = vmax.xlane.f32.xlu0 %v2576
    %v2578 = vpop.xlane.xlu0 %2577
    %v2579 = vsel %vm45, %v2516, -inf
    %2580 = vmax.xlane.f32.xlu0 %v2579
    %v2581 = vpop.xlane.xlu0 %2580
    %v2582 = vsel %vm45, %v2522, -inf
    %2583 = vmax.xlane.f32.xlu0 %v2582
    %v2584 = vpop.xlane.xlu0 %2583
    %v2585 = vsel %vm45, %v2528, -inf
    %2586 = vmax.xlane.f32.xlu0 %v2585
    %v2587 = vpop.xlane.xlu0 %2586
    %v2588 = vsel %vm45, %v2534, -inf
    %2589 = vmax.xlane.f32.xlu0 %v2588
    %v2590 = vpop.xlane.xlu0 %2589
    %v2591 = vsel %vm45, %v2540, -inf
    %2592 = vmax.xlane.f32.xlu0 %v2591
    %v2593 = vpop.xlane.xlu0 %2592
    %v2594 = vsel %vm45, %v2546, -inf
    %2595 = vmax.xlane.f32.xlu0 %v2594
    %v2596 = vpop.xlane.xlu0 %2595
    %v2597 = vsub.f32 %v2456, %v2551
    %v2598 = vsub.f32 %v2462, %v2554
    %v2599 = vsub.f32 %v2468, %v2557
    %v2600 = vsub.f32 %v2474, %v2560
    %v2601 = vsub.f32 %v2480, %v2563
    %v2602 = vsub.f32 %v2486, %v2566
    %v2603 = vsub.f32 %v2492, %v2569
    %v2604 = vsub.f32 %v2498, %v2572
    %v2605 = vsub.f32 %v2504, %v2575
    %v2606 = vsub.f32 %v2510, %v2578
    %v2607 = vsub.f32 %v2516, %v2581
    %v2608 = vsub.f32 %v2522, %v2584
    %v2609 = vsub.f32 %v2528, %v2587
    %v2610 = vsub.f32 %v2534, %v2590
    %v2611 = vsub.f32 %v2540, %v2593
    %v2612 = vsub.f32 %v2546, %v2596
    %v2613 = vmul.f32 %v2597, 1.442695
    %v2614 = vpow.pop %v2613
    %v2615 = vmul.f32 %v2598, 1.442695
    %v2616 = vpow.pop %v2615
    %v2617 = vmul.f32 %v2599, 1.442695
    %v2618 = vpow.pop %v2617
    %v2619 = vmul.f32 %v2600, 1.442695
    %v2620 = vpow.pop %v2619
    %v2621 = vmul.f32 %v2601, 1.442695
    %v2622 = vpow.pop %v2621
    %v2623 = vmul.f32 %v2602, 1.442695
    %v2624 = vpow.pop %v2623
    %v2625 = vmul.f32 %v2603, 1.442695
    %v2626 = vpow.pop %v2625
    %v2627 = vmul.f32 %v2604, 1.442695
    %v2628 = vpow.pop %v2627
    %v2629 = vmul.f32 %v2605, 1.442695
    %v2630 = vpow.pop %v2629
    %v2631 = vmul.f32 %v2606, 1.442695
    %v2632 = vpow.pop %v2631
    %v2633 = vmul.f32 %v2607, 1.442695
    %v2634 = vpow.pop %v2633
    %v2635 = vmul.f32 %v2608, 1.442695
    %v2636 = vpow.pop %v2635
    %v2637 = vmul.f32 %v2609, 1.442695
    %v2638 = vpow.pop %v2637
    %v2639 = vmul.f32 %v2610, 1.442695
    %v2640 = vpow.pop %v2639
    %v2641 = vmul.f32 %v2611, 1.442695
    %v2642 = vpow.pop %v2641
    %v2643 = vmul.f32 %v2612, 1.442695
    %v2644 = vpow.pop %v2643
    %v2645 = vsel %vm45, %v2614, 0.0
    %2646 = vadd.xlane.f32.xlu0 %v2645
    %v2647 = vpop.xlane.xlu0 %2646
    %v2648 = vsel %vm45, %v2616, 0.0
    %2649 = vadd.xlane.f32.xlu0 %v2648
    %v2650 = vpop.xlane.xlu0 %2649
    %v2651 = vsel %vm45, %v2618, 0.0
    %2652 = vadd.xlane.f32.xlu0 %v2651
    %v2653 = vpop.xlane.xlu0 %2652
    %v2654 = vsel %vm45, %v2620, 0.0
    %2655 = vadd.xlane.f32.xlu0 %v2654
    %v2656 = vpop.xlane.xlu0 %2655
    %v2657 = vsel %vm45, %v2622, 0.0
    %2658 = vadd.xlane.f32.xlu0 %v2657
    %v2659 = vpop.xlane.xlu0 %2658
    %v2660 = vsel %vm45, %v2624, 0.0
    %2661 = vadd.xlane.f32.xlu0 %v2660
    %v2662 = vpop.xlane.xlu0 %2661
    %v2663 = vsel %vm45, %v2626, 0.0
    %2664 = vadd.xlane.f32.xlu0 %v2663
    %v2665 = vpop.xlane.xlu0 %2664
    %v2666 = vsel %vm45, %v2628, 0.0
    %2667 = vadd.xlane.f32.xlu0 %v2666
    %v2668 = vpop.xlane.xlu0 %2667
    %v2669 = vsel %vm45, %v2630, 0.0
    %2670 = vadd.xlane.f32.xlu0 %v2669
    %v2671 = vpop.xlane.xlu0 %2670
    %v2672 = vsel %vm45, %v2632, 0.0
    %2673 = vadd.xlane.f32.xlu0 %v2672
    %v2674 = vpop.xlane.xlu0 %2673
    %v2675 = vsel %vm45, %v2634, 0.0
    %2676 = vadd.xlane.f32.xlu0 %v2675
    %v2677 = vpop.xlane.xlu0 %2676
    %v2678 = vsel %vm45, %v2636, 0.0
    %2679 = vadd.xlane.f32.xlu0 %v2678
    %v2680 = vpop.xlane.xlu0 %2679
    %v2681 = vsel %vm45, %v2638, 0.0
    %2682 = vadd.xlane.f32.xlu0 %v2681
    %v2683 = vpop.xlane.xlu0 %2682
    %v2684 = vsel %vm45, %v2640, 0.0
    %2685 = vadd.xlane.f32.xlu0 %v2684
    %v2686 = vpop.xlane.xlu0 %2685
    %v2687 = vsel %vm45, %v2642, 0.0
    %2688 = vadd.xlane.f32.xlu0 %v2687
    %v2689 = vpop.xlane.xlu0 %2688
    %v2690 = vsel %vm45, %v2644, 0.0
    %2691 = vadd.xlane.f32.xlu0 %v2690
    %v2692 = vpop.xlane.xlu0 %2691
    %v2693 = vrcp.pop %v2647
    %v2694 = vmul.f32 %v2614, %v2693
    %v2695 = vrcp.pop %v2650
    %v2696 = vmul.f32 %v2616, %v2695
    %v2697 = vrcp.pop %v2653
    %v2698 = vmul.f32 %v2618, %v2697
    %v2699 = vrcp.pop %v2656
    %v2700 = vmul.f32 %v2620, %v2699
    %v2701 = vrcp.pop %v2659
    %v2702 = vmul.f32 %v2622, %v2701
    %v2703 = vrcp.pop %v2662
    %v2704 = vmul.f32 %v2624, %v2703
    %v2705 = vrcp.pop %v2665
    %v2706 = vmul.f32 %v2626, %v2705
    %v2707 = vrcp.pop %v2668
    %v2708 = vmul.f32 %v2628, %v2707
    %v2709 = vrcp.pop %v2671
    %v2710 = vmul.f32 %v2630, %v2709
    %v2711 = vrcp.pop %v2674
    %v2712 = vmul.f32 %v2632, %v2711
    %v2713 = vrcp.pop %v2677
    %v2714 = vmul.f32 %v2634, %v2713
    %v2715 = vrcp.pop %v2680
    %v2716 = vmul.f32 %v2636, %v2715
    %v2717 = vrcp.pop %v2683
    %v2718 = vmul.f32 %v2638, %v2717
    %v2719 = vrcp.pop %v2686
    %v2720 = vmul.f32 %v2640, %v2719
    %v2721 = vrcp.pop %v2689
    %v2722 = vmul.f32 %v2642, %v2721
    %v2723 = vrcp.pop %v2692
    %v2724 = vmul.f32 %v2644, %v2723
    %v2725 = vmul.f32 %v2694, %v1394
    %v2726 = vmul.f32 %v2696, %v1395
    %v2727 = vmul.f32 %v2698, %v1396
    %v2728 = vmul.f32 %v2700, %v1397
    %v2729 = vmul.f32 %v2702, %v1398
    %v2730 = vmul.f32 %v2704, %v1399
    %v2731 = vmul.f32 %v2706, %v1400
    %v2732 = vmul.f32 %v2708, %v1401
    %v2733 = vmul.f32 %v2710, %v1402
    %v2734 = vmul.f32 %v2712, %v1403
    %v2735 = vmul.f32 %v2714, %v1404
    %v2736 = vmul.f32 %v2716, %v1405
    %v2737 = vmul.f32 %v2718, %v1406
    %v2738 = vmul.f32 %v2720, %v1407
    %v2739 = vmul.f32 %v2722, %v1408
    %v2740 = vmul.f32 %v2724, %v1409
    %v2741 = vadd.f32 %v1377, %v2725
    %v2742 = vadd.f32 %v1378, %v2726
    %v2743 = vadd.f32 %v1379, %v2727
    %v2744 = vadd.f32 %v1380, %v2728
    %v2745 = vadd.f32 %v1381, %v2729
    %v2746 = vadd.f32 %v1382, %v2730
    %v2747 = vadd.f32 %v1383, %v2731
    %v2748 = vadd.f32 %v1384, %v2732
    %v2749 = vadd.f32 %v1385, %v2733
    %v2750 = vadd.f32 %v1386, %v2734
    %v2751 = vadd.f32 %v1387, %v2735
    %v2752 = vadd.f32 %v1388, %v2736
    %v2753 = vadd.f32 %v1389, %v2737
    %v2754 = vadd.f32 %v1390, %v2738
    %v2755 = vadd.f32 %v1391, %v2739
    %v2756 = vadd.f32 %v1392, %v2740
    %s2757 = scalar_lea.vmem %s0, 256
    %v2758 = vld [vmem:[%s2757] sm:$0xff]
    %v2759 = vld [vmem:[%s2757 + $0x8] sm:$0xff]
    %v2760 = vld [vmem:[%s2757 + $0x10] sm:$0xff]
    %v2761 = vld [vmem:[%s2757 + $0x18] sm:$0xff]
    %v2762 = vld [vmem:[%s2757 + $0x20] sm:$0xff]
    %v2763 = vld [vmem:[%s2757 + $0x28] sm:$0xff]
    %v2764 = vld [vmem:[%s2757 + $0x30] sm:$0xff]
    %v2765 = vld [vmem:[%s2757 + $0x38] sm:$0xff]
    %v2766 = vld [vmem:[%s2757 + $0x40] sm:$0xff]
    %v2767 = vld [vmem:[%s2757 + $0x48] sm:$0xff]
    %v2768 = vld [vmem:[%s2757 + $0x50] sm:$0xff]
    %v2769 = vld [vmem:[%s2757 + $0x58] sm:$0xff]
    %v2770 = vld [vmem:[%s2757 + $0x60] sm:$0xff]
    %v2771 = vld [vmem:[%s2757 + $0x68] sm:$0xff]
    %v2772 = vld [vmem:[%s2757 + $0x70] sm:$0xff]
    %v2773 = vld [vmem:[%s2757 + $0x78] sm:$0xff]
    %v2775 = vsel %vm45, %v2758, 0
    %v2778 = vsel %vm45, %v2759, 0
    %v2781 = vsel %vm45, %v2760, 0
    %v2784 = vsel %vm45, %v2761, 0
    %v2787 = vsel %vm45, %v2762, 0
    %v2790 = vsel %vm45, %v2763, 0
    %v2793 = vsel %vm45, %v2764, 0
    %v2796 = vsel %vm45, %v2765, 0
    %v2799 = vsel %vm45, %v2766, 0
    %v2802 = vsel %vm45, %v2767, 0
    %v2805 = vsel %vm45, %v2768, 0
    %v2808 = vsel %vm45, %v2769, 0
    %v2811 = vsel %vm45, %v2770, 0
    %v2814 = vsel %vm45, %v2771, 0
    %v2817 = vsel %vm45, %v2772, 0
    %v2820 = vsel %vm45, %v2773, 0
    %2822 = vmatprep.subr.mxu0 0.0
    %v2823 = vand.u32 %v21, 4294901760
    %2824 = vmatpush1.msra.mxu0 %v2823
    %2825 = vmatprep.subr.mxu0 0.0
    %2826 = vmatpush1.msra.mxu0 0.0
    %2827 = vmatprep.subr.mxu0 0.0
    %2828 = vmatpush1.msra.mxu0 0.0
    %2829 = vmatprep.subr.mxu0 0.0
    %2830 = vmatpush1.msra.mxu0 0.0
    %2831 = vmatprep.subr.mxu0 0.0
    %2832 = vmatpush1.msra.mxu0 0.0
    %2833 = vmatprep.subr.mxu0 0.0
    %2834 = vmatpush1.msra.mxu0 0.0
    %2835 = vmatprep.subr.mxu0 0.0
    %2836 = vmatpush1.msra.mxu0 0.0
    %2837 = vmatprep.subr.mxu0 0.0
    %2838 = vmatpush1.msra.mxu0 0.0
    %2839 = vmatprep.subr.mxu0 0.0
    %2840 = vmatpush1.msra.mxu0 0.0
    %2841 = vmatprep.subr.mxu0 0.0
    %2842 = vmatpush1.msra.mxu0 0.0
    %2843 = vmatprep.subr.mxu0 0.0
    %2844 = vmatpush1.msra.mxu0 0.0
    %2845 = vmatprep.subr.mxu0 0.0
    %2846 = vmatpush1.msra.mxu0 0.0
    %2847 = vmatprep.subr.mxu0 0.0
    %2848 = vmatpush1.msra.mxu0 0.0
    %2849 = vmatprep.subr.mxu0 0.0
    %2850 = vmatpush1.msra.mxu0 0.0
    %2851 = vmatprep.subr.mxu0 0.0
    %2852 = vmatpush1.msra.mxu0 0.0
    %2853 = vmatprep.subr.mxu0 0.0
    %2854 = vmatpush1.msra.mxu0 0.0
    %2855 = vmatprep.subr.mxu0 0.0
    %2856 = vmatpush1.msra.mxu0 0.0
    %2857 = vmatprep.subr.mxu0 0.0
    %2858 = vmatpush1.msra.mxu0 0.0
    %2859 = vmatprep.subr.mxu0 0.0
    %2860 = vmatpush1.msra.mxu0 0.0
    %2861 = vmatprep.subr.mxu0 0.0
    %2862 = vmatpush1.msra.mxu0 0.0
    %2863 = vmatprep.subr.mxu0 0.0
    %2864 = vmatpush1.msra.mxu0 0.0
    %2865 = vmatprep.subr.mxu0 0.0
    %2866 = vmatpush1.msra.mxu0 0.0
    %2867 = vmatprep.subr.mxu0 0.0
    %2868 = vmatpush1.msra.mxu0 0.0
    %2869 = vmatprep.subr.mxu0 0.0
    %2870 = vmatpush1.msra.mxu0 0.0
    %2871 = vmatprep.subr.mxu0 0.0
    %2872 = vmatpush1.msra.mxu0 0.0
    %2873 = vmatprep.subr.mxu0 0.0
    %2874 = vmatpush1.msra.mxu0 0.0
    %2875 = vmatprep.subr.mxu0 0.0
    %2876 = vmatpush1.msra.mxu0 0.0
    %2877 = vmatprep.subr.mxu0 0.0
    %2878 = vmatpush1.msra.mxu0 0.0
    %2879 = vmatprep.subr.mxu0 0.0
    %2880 = vmatpush1.msra.mxu0 0.0
    %2881 = vmatprep.subr.mxu0 0.0
    %2882 = vmatpush1.msra.mxu0 0.0
    %2883 = vmatprep.subr.mxu0 0.0
    %2884 = vmatpush1.msra.mxu0 0.0
    %2885 = vmatprep.subr.mxu0 0.0
    %2886 = vmatpush1.msra.mxu0 0.0
    %2887 = vmatprep.mubr.f32.mxu0 0.0
    %v2888 = vand.u32 %v2775, 4294901760
    %v2889 = vsub.f32 %v2775, %v2888
    %v2890 = vand.u32 %v2889, 4294901760
    %v2891 = vsub.f32 %v2889, %v2890
    %v2892 = vand.u32 %v2891, 4294901760
    %2893 = vmatmul.mubr.f32.gmra.mrb[0].mxu0 %v2892
    %v2894 = vpop.f32.mrb[0].mxu0
    %v2895 = vadd.f32 %v43, %v2894
    %v2896 = vpop.f32.mrb[0].mxu0
    %2897 = vmatprep.mubr.f32.mxu0 0.0
    %v2898 = vand.u32 %v2778, 4294901760
    %v2899 = vsub.f32 %v2778, %v2898
    %v2900 = vand.u32 %v2899, 4294901760
    %v2901 = vsub.f32 %v2899, %v2900
    %v2902 = vand.u32 %v2901, 4294901760
    %2903 = vmatmul.mubr.f32.gmra.mrb[0].mxu0 %v2902
    %v2904 = vpop.f32.mrb[0].mxu0
    %v2905 = vadd.f32 %v43, %v2904
    %v2906 = vpop.f32.mrb[0].mxu0
    %2907 = vmatprep.mubr.f32.mxu0 0.0
    %v2908 = vand.u32 %v2781, 4294901760
    %v2909 = vsub.f32 %v2781, %v2908
    %v2910 = vand.u32 %v2909, 4294901760
    %v2911 = vsub.f32 %v2909, %v2910
    %v2912 = vand.u32 %v2911, 4294901760
    %2913 = vmatmul.mubr.f32.gmra.mrb[0].mxu0 %v2912
    %v2914 = vpop.f32.mrb[0].mxu0
    %v2915 = vadd.f32 %v43, %v2914
    %v2916 = vpop.f32.mrb[0].mxu0
    %2917 = vmatprep.mubr.f32.mxu0 0.0
    %v2918 = vand.u32 %v2784, 4294901760
    %v2919 = vsub.f32 %v2784, %v2918
    %v2920 = vand.u32 %v2919, 4294901760
    %v2921 = vsub.f32 %v2919, %v2920
    %v2922 = vand.u32 %v2921, 4294901760
    %2923 = vmatmul.mubr.f32.gmra.mrb[0].mxu0 %v2922
    %v2924 = vpop.f32.mrb[0].mxu0
    %v2925 = vadd.f32 %v43, %v2924
    %v2926 = vpop.f32.mrb[0].mxu0
    %2927 = vmatprep.mubr.f32.mxu0 0.0
    %v2928 = vand.u32 %v2787, 4294901760
    %v2929 = vsub.f32 %v2787, %v2928
    %v2930 = vand.u32 %v2929, 4294901760
    %v2931 = vsub.f32 %v2929, %v2930
    %v2932 = vand.u32 %v2931, 4294901760
    %2933 = vmatmul.mubr.f32.gmra.mrb[0].mxu0 %v2932
    %v2934 = vpop.f32.mrb[0].mxu0
    %v2935 = vadd.f32 %v43, %v2934
    %v2936 = vpop.f32.mrb[0].mxu0
    %2937 = vmatprep.mubr.f32.mxu0 0.0
    %v2938 = vand.u32 %v2790, 4294901760
    %v2939 = vsub.f32 %v2790, %v2938
    %v2940 = vand.u32 %v2939, 4294901760
    %v2941 = vsub.f32 %v2939, %v2940
    %v2942 = vand.u32 %v2941, 4294901760
    %2943 = vmatmul.mubr.f32.gmra.mrb[0].mxu0 %v2942
    %v2944 = vpop.f32.mrb[0].mxu0
    %v2945 = vadd.f32 %v43, %v2944
    %v2946 = vpop.f32.mrb[0].mxu0
    %2947 = vmatprep.mubr.f32.mxu0 0.0
    %v2948 = vand.u32 %v2793, 4294901760
    %v2949 = vsub.f32 %v2793, %v2948
    %v2950 = vand.u32 %v2949, 4294901760
    %v2951 = vsub.f32 %v2949, %v2950
    %v2952 = vand.u32 %v2951, 4294901760
    %2953 = vmatmul.mubr.f32.gmra.mrb[0].mxu0 %v2952
    %v2954 = vpop.f32.mrb[0].mxu0
    %v2955 = vadd.f32 %v43, %v2954
    %v2956 = vpop.f32.mrb[0].mxu0
    %2957 = vmatprep.mubr.f32.mxu0 0.0
    %v2958 = vand.u32 %v2796, 4294901760
    %v2959 = vsub.f32 %v2796, %v2958
    %v2960 = vand.u32 %v2959, 4294901760
    %v2961 = vsub.f32 %v2959, %v2960
    %v2962 = vand.u32 %v2961, 4294901760
    %2963 = vmatmul.mubr.f32.gmra.mrb[0].mxu0 %v2962
    %v2964 = vpop.f32.mrb[0].mxu0
    %v2965 = vadd.f32 %v43, %v2964
    %v2966 = vpop.f32.mrb[0].mxu0
    %2967 = vmatprep.mubr.f32.mxu0 0.0
    %v2968 = vand.u32 %v2799, 4294901760
    %v2969 = vsub.f32 %v2799, %v2968
    %v2970 = vand.u32 %v2969, 4294901760
    %v2971 = vsub.f32 %v2969, %v2970
    %v2972 = vand.u32 %v2971, 4294901760
    %2973 = vmatmul.mubr.f32.gmra.mrb[0].mxu0 %v2972
    %v2974 = vpop.f32.mrb[0].mxu0
    %v2975 = vadd.f32 %v43, %v2974
    %v2976 = vpop.f32.mrb[0].mxu0
    %2977 = vmatprep.mubr.f32.mxu0 0.0
    %v2978 = vand.u32 %v2802, 4294901760
    %v2979 = vsub.f32 %v2802, %v2978
    %v2980 = vand.u32 %v2979, 4294901760
    %v2981 = vsub.f32 %v2979, %v2980
    %v2982 = vand.u32 %v2981, 4294901760
    %2983 = vmatmul.mubr.f32.gmra.mrb[0].mxu0 %v2982
    %v2984 = vpop.f32.mrb[0].mxu0
    %v2985 = vadd.f32 %v43, %v2984
    %v2986 = vpop.f32.mrb[0].mxu0
    %2987 = vmatprep.mubr.f32.mxu0 0.0
    %v2988 = vand.u32 %v2805, 4294901760
    %v2989 = vsub.f32 %v2805, %v2988
    %v2990 = vand.u32 %v2989, 4294901760
    %v2991 = vsub.f32 %v2989, %v2990
    %v2992 = vand.u32 %v2991, 4294901760
    %2993 = vmatmul.mubr.f32.gmra.mrb[0].mxu0 %v2992
    %v2994 = vpop.f32.mrb[0].mxu0
    %v2995 = vadd.f32 %v43, %v2994
    %v2996 = vpop.f32.mrb[0].mxu0
    %2997 = vmatprep.mubr.f32.mxu0 0.0
    %v2998 = vand.u32 %v2808, 4294901760
    %v2999 = vsub.f32 %v2808, %v2998
    %v3000 = vand.u32 %v2999, 4294901760
    %v3001 = vsub.f32 %v2999, %v3000
    %v3002 = vand.u32 %v3001, 4294901760
    %3003 = vmatmul.mubr.f32.gmra.mrb[0].mxu0 %v3002
    %v3004 = vpop.f32.mrb[0].mxu0
    %v3005 = vadd.f32 %v43, %v3004
    %v3006 = vpop.f32.mrb[0].mxu0
    %3007 = vmatprep.mubr.f32.mxu0 0.0
    %v3008 = vand.u32 %v2811, 4294901760
    %v3009 = vsub.f32 %v2811, %v3008
    %v3010 = vand.u32 %v3009, 4294901760
    %v3011 = vsub.f32 %v3009, %v3010
    %v3012 = vand.u32 %v3011, 4294901760
    %3013 = vmatmul.mubr.f32.gmra.mrb[0].mxu0 %v3012
    %v3014 = vpop.f32.mrb[0].mxu0
    %v3015 = vadd.f32 %v43, %v3014
    %v3016 = vpop.f32.mrb[0].mxu0
    %3017 = vmatprep.mubr.f32.mxu0 0.0
    %v3018 = vand.u32 %v2814, 4294901760
    %v3019 = vsub.f32 %v2814, %v3018
    %v3020 = vand.u32 %v3019, 4294901760
    %v3021 = vsub.f32 %v3019, %v3020
    %v3022 = vand.u32 %v3021, 4294901760
    %3023 = vmatmul.mubr.f32.gmra.mrb[0].mxu0 %v3022
    %v3024 = vpop.f32.mrb[0].mxu0
    %v3025 = vadd.f32 %v43, %v3024
    %v3026 = vpop.f32.mrb[0].mxu0
    %3027 = vmatprep.mubr.f32.mxu0 0.0
    %v3028 = vand.u32 %v2817, 4294901760
    %v3029 = vsub.f32 %v2817, %v3028
    %v3030 = vand.u32 %v3029, 4294901760
    %v3031 = vsub.f32 %v3029, %v3030
    %v3032 = vand.u32 %v3031, 4294901760
    %3033 = vmatmul.mubr.f32.gmra.mrb[0].mxu0 %v3032
    %v3034 = vpop.f32.mrb[0].mxu0
    %v3035 = vadd.f32 %v43, %v3034
    %v3036 = vpop.f32.mrb[0].mxu0
    %3037 = vmatprep.mubr.f32.mxu0 0.0
    %v3038 = vand.u32 %v2820, 4294901760
    %v3039 = vsub.f32 %v2820, %v3038
    %v3040 = vand.u32 %v3039, 4294901760
    %v3041 = vsub.f32 %v3039, %v3040
    %v3042 = vand.u32 %v3041, 4294901760
    %3043 = vmatmul.mubr.f32.gmra.mrb[0].mxu0 %v3042
    %v3044 = vpop.f32.mrb[0].mxu0
    %v3045 = vadd.f32 %v43, %v3044
    %v3046 = vpop.f32.mrb[0].mxu0
    %3047 = vdwg.mxu0
    %3048 = vmatprep.subr.mxu0 0.0
    %v3049 = vand.u32 %v21, 4294901760
    %v3050 = vsub.f32 %v21, %v3049
    %v3051 = vand.u32 %v3050, 4294901760
    %v3052 = vsub.f32 %v3050, %v3051
    %v3053 = vand.u32 %v3052, 4294901760
    %3054 = vmatpush1.msra.mxu0 %v3053
    %3055 = vmatprep.subr.mxu0 0.0
    %3056 = vmatpush1.msra.mxu0 0.0
    %3057 = vmatprep.subr.mxu0 0.0
    %3058 = vmatpush1.msra.mxu0 0.0
    %3059 = vmatprep.subr.mxu0 0.0
    %3060 = vmatpush1.msra.mxu0 0.0
    %3061 = vmatprep.subr.mxu0 0.0
    %3062 = vmatpush1.msra.mxu0 0.0
    %3063 = vmatprep.subr.mxu0 0.0
    %3064 = vmatpush1.msra.mxu0 0.0
    %3065 = vmatprep.subr.mxu0 0.0
    %3066 = vmatpush1.msra.mxu0 0.0
    %3067 = vmatprep.subr.mxu0 0.0
    %3068 = vmatpush1.msra.mxu0 0.0
    %3069 = vmatprep.subr.mxu0 0.0
    %3070 = vmatpush1.msra.mxu0 0.0
    %3071 = vmatprep.subr.mxu0 0.0
    %3072 = vmatpush1.msra.mxu0 0.0
    %3073 = vmatprep.subr.mxu0 0.0
    %3074 = vmatpush1.msra.mxu0 0.0
    %3075 = vmatprep.subr.mxu0 0.0
    %3076 = vmatpush1.msra.mxu0 0.0
    %3077 = vmatprep.subr.mxu0 0.0
    %3078 = vmatpush1.msra.mxu0 0.0
    %3079 = vmatprep.subr.mxu0 0.0
    %3080 = vmatpush1.msra.mxu0 0.0
    %3081 = vmatprep.subr.mxu0 0.0
    %3082 = vmatpush1.msra.mxu0 0.0
    %3083 = vmatprep.subr.mxu0 0.0
    %3084 = vmatpush1.msra.mxu0 0.0
    %3085 = vmatprep.subr.mxu0 0.0
    %3086 = vmatpush1.msra.mxu0 0.0
    %3087 = vmatprep.subr.mxu0 0.0
    %3088 = vmatpush1.msra.mxu0 0.0
    %3089 = vmatprep.subr.mxu0 0.0
    %3090 = vmatpush1.msra.mxu0 0.0
    %3091 = vmatprep.subr.mxu0 0.0
    %3092 = vmatpush1.msra.mxu0 0.0
    %3093 = vmatprep.subr.mxu0 0.0
    %3094 = vmatpush1.msra.mxu0 0.0
    %3095 = vmatprep.subr.mxu0 0.0
    %3096 = vmatpush1.msra.mxu0 0.0
    %3097 = vmatprep.subr.mxu0 0.0
    %3098 = vmatpush1.msra.mxu0 0.0
    %3099 = vmatprep.subr.mxu0 0.0
    %3100 = vmatpush1.msra.mxu0 0.0
    %3101 = vmatprep.subr.mxu0 0.0
    %3102 = vmatpush1.msra.mxu0 0.0
    %3103 = vmatprep.subr.mxu0 0.0
    %3104 = vmatpush1.msra.mxu0 0.0
    %3105 = vmatprep.subr.mxu0 0.0
    %3106 = vmatpush1.msra.mxu0 0.0
    %3107 = vmatprep.subr.mxu0 0.0
    %3108 = vmatpush1.msra.mxu0 0.0
    %3109 = vmatprep.subr.mxu0 0.0
    %3110 = vmatpush1.msra.mxu0 0.0
    %3111 = vmatprep.subr.mxu0 0.0
    %3112 = vmatpush1.msra.mxu0 0.0
    %3113 = vmatprep.subr.mxu0 0.0
    %3114 = vmatpush1.msra.mxu0 0.0
    %3115 = vmatprep.subr.mxu0 0.0
    %3116 = vmatpush1.msra.mxu0 0.0
    %3117 = vmatprep.mubr.f32.mxu0 0.0
    %v3118 = vand.u32 %v2775, 4294901760
    %3119 = vmatmul.mubr.f32.gmra.mrb[0].mxu0 %v3118
    %v3120 = vpop.f32.mrb[0].mxu0
    %v3121 = vadd.f32 %v2895, %v3120
    %v3122 = vpop.f32.mrb[0].mxu0
    %3123 = vmatprep.mubr.f32.mxu0 0.0
    %v3124 = vand.u32 %v2778, 4294901760
    %3125 = vmatmul.mubr.f32.gmra.mrb[0].mxu0 %v3124
    %v3126 = vpop.f32.mrb[0].mxu0
    %v3127 = vadd.f32 %v2905, %v3126
    %v3128 = vpop.f32.mrb[0].mxu0
    %3129 = vmatprep.mubr.f32.mxu0 0.0
    %v3130 = vand.u32 %v2781, 4294901760
    %3131 = vmatmul.mubr.f32.gmra.mrb[0].mxu0 %v3130
    %v3132 = vpop.f32.mrb[0].mxu0
    %v3133 = vadd.f32 %v2915, %v3132
    %v3134 = vpop.f32.mrb[0].mxu0
    %3135 = vmatprep.mubr.f32.mxu0 0.0
    %v3136 = vand.u32 %v2784, 4294901760
    %3137 = vmatmul.mubr.f32.gmra.mrb[0].mxu0 %v3136
    %v3138 = vpop.f32.mrb[0].mxu0
    %v3139 = vadd.f32 %v2925, %v3138
    %v3140 = vpop.f32.mrb[0].mxu0
    %3141 = vmatprep.mubr.f32.mxu0 0.0
    %v3142 = vand.u32 %v2787, 4294901760
    %3143 = vmatmul.mubr.f32.gmra.mrb[0].mxu0 %v3142
    %v3144 = vpop.f32.mrb[0].mxu0
    %v3145 = vadd.f32 %v2935, %v3144
    %v3146 = vpop.f32.mrb[0].mxu0
    %3147 = vmatprep.mubr.f32.mxu0 0.0
    %v3148 = vand.u32 %v2790, 4294901760
    %3149 = vmatmul.mubr.f32.gmra.mrb[0].mxu0 %v3148
    %v3150 = vpop.f32.mrb[0].mxu0
    %v3151 = vadd.f32 %v2945, %v3150
    %v3152 = vpop.f32.mrb[0].mxu0
    %3153 = vmatprep.mubr.f32.mxu0 0.0
    %v3154 = vand.u32 %v2793, 4294901760
    %3155 = vmatmul.mubr.f32.gmra.mrb[0].mxu0 %v3154
    %v3156 = vpop.f32.mrb[0].mxu0
    %v3157 = vadd.f32 %v2955, %v3156
    %v3158 = vpop.f32.mrb[0].mxu0
    %3159 = vmatprep.mubr.f32.mxu0 0.0
    %v3160 = vand.u32 %v2796, 4294901760
    %3161 = vmatmul.mubr.f32.gmra.mrb[0].mxu0 %v3160
    %v3162 = vpop.f32.mrb[0].mxu0
    %v3163 = vadd.f32 %v2965, %v3162
    %v3164 = vpop.f32.mrb[0].mxu0
    %3165 = vmatprep.mubr.f32.mxu0 0.0
    %v3166 = vand.u32 %v2799, 4294901760
    %3167 = vmatmul.mubr.f32.gmra.mrb[0].mxu0 %v3166
    %v3168 = vpop.f32.mrb[0].mxu0
    %v3169 = vadd.f32 %v2975, %v3168
    %v3170 = vpop.f32.mrb[0].mxu0
    %3171 = vmatprep.mubr.f32.mxu0 0.0
    %v3172 = vand.u32 %v2802, 4294901760
    %3173 = vmatmul.mubr.f32.gmra.mrb[0].mxu0 %v3172
    %v3174 = vpop.f32.mrb[0].mxu0
    %v3175 = vadd.f32 %v2985, %v3174
    %v3176 = vpop.f32.mrb[0].mxu0
    %3177 = vmatprep.mubr.f32.mxu0 0.0
    %v3178 = vand.u32 %v2805, 4294901760
    %3179 = vmatmul.mubr.f32.gmra.mrb[0].mxu0 %v3178
    %v3180 = vpop.f32.mrb[0].mxu0
    %v3181 = vadd.f32 %v2995, %v3180
    %v3182 = vpop.f32.mrb[0].mxu0
    %3183 = vmatprep.mubr.f32.mxu0 0.0
    %v3184 = vand.u32 %v2808, 4294901760
    %3185 = vmatmul.mubr.f32.gmra.mrb[0].mxu0 %v3184
    %v3186 = vpop.f32.mrb[0].mxu0
    %v3187 = vadd.f32 %v3005, %v3186
    %v3188 = vpop.f32.mrb[0].mxu0
    %3189 = vmatprep.mubr.f32.mxu0 0.0
    %v3190 = vand.u32 %v2811, 4294901760
    %3191 = vmatmul.mubr.f32.gmra.mrb[0].mxu0 %v3190
    %v3192 = vpop.f32.mrb[0].mxu0
    %v3193 = vadd.f32 %v3015, %v3192
    %v3194 = vpop.f32.mrb[0].mxu0
    %3195 = vmatprep.mubr.f32.mxu0 0.0
    %v3196 = vand.u32 %v2814, 4294901760
    %3197 = vmatmul.mubr.f32.gmra.mrb[0].mxu0 %v3196
    %v3198 = vpop.f32.mrb[0].mxu0
    %v3199 = vadd.f32 %v3025, %v3198
    %v3200 = vpop.f32.mrb[0].mxu0
    %3201 = vmatprep.mubr.f32.mxu0 0.0
    %v3202 = vand.u32 %v2817, 4294901760
    %3203 = vmatmul.mubr.f32.gmra.mrb[0].mxu0 %v3202
    %v3204 = vpop.f32.mrb[0].mxu0
    %v3205 = vadd.f32 %v3035, %v3204
    %v3206 = vpop.f32.mrb[0].mxu0
    %3207 = vmatprep.mubr.f32.mxu0 0.0
    %v3208 = vand.u32 %v2820, 4294901760
    %3209 = vmatmul.mubr.f32.gmra.mrb[0].mxu0 %v3208
    %v3210 = vpop.f32.mrb[0].mxu0
    %v3211 = vadd.f32 %v3045, %v3210
    %v3212 = vpop.f32.mrb[0].mxu0
    %3213 = vdwg.mxu0
    %3214 = vmatprep.subr.mxu0 0.0
    %v3215 = vand.u32 %v21, 4294901760
    %v3216 = vsub.f32 %v21, %v3215
    %3217 = vmatpush1.msra.mxu0 %v3216
    %3218 = vmatprep.subr.mxu0 0.0
    %3219 = vmatpush1.msra.mxu0 0.0
    %3220 = vmatprep.subr.mxu0 0.0
    %3221 = vmatpush1.msra.mxu0 0.0
    %3222 = vmatprep.subr.mxu0 0.0
    %3223 = vmatpush1.msra.mxu0 0.0
    %3224 = vmatprep.subr.mxu0 0.0
    %3225 = vmatpush1.msra.mxu0 0.0
    %3226 = vmatprep.subr.mxu0 0.0
    %3227 = vmatpush1.msra.mxu0 0.0
    %3228 = vmatprep.subr.mxu0 0.0
    %3229 = vmatpush1.msra.mxu0 0.0
    %3230 = vmatprep.subr.mxu0 0.0
    %3231 = vmatpush1.msra.mxu0 0.0
    %3232 = vmatprep.subr.mxu0 0.0
    %3233 = vmatpush1.msra.mxu0 0.0
    %3234 = vmatprep.subr.mxu0 0.0
    %3235 = vmatpush1.msra.mxu0 0.0
    %3236 = vmatprep.subr.mxu0 0.0
    %3237 = vmatpush1.msra.mxu0 0.0
    %3238 = vmatprep.subr.mxu0 0.0
    %3239 = vmatpush1.msra.mxu0 0.0
    %3240 = vmatprep.subr.mxu0 0.0
    %3241 = vmatpush1.msra.mxu0 0.0
    %3242 = vmatprep.subr.mxu0 0.0
    %3243 = vmatpush1.msra.mxu0 0.0
    %3244 = vmatprep.subr.mxu0 0.0
    %3245 = vmatpush1.msra.mxu0 0.0
    %3246 = vmatprep.subr.mxu0 0.0
    %3247 = vmatpush1.msra.mxu0 0.0
    %3248 = vmatprep.subr.mxu0 0.0
    %3249 = vmatpush1.msra.mxu0 0.0
    %3250 = vmatprep.subr.mxu0 0.0
    %3251 = vmatpush1.msra.mxu0 0.0
    %3252 = vmatprep.subr.mxu0 0.0
    %3253 = vmatpush1.msra.mxu0 0.0
    %3254 = vmatprep.subr.mxu0 0.0
    %3255 = vmatpush1.msra.mxu0 0.0
    %3256 = vmatprep.subr.mxu0 0.0
    %3257 = vmatpush1.msra.mxu0 0.0
    %3258 = vmatprep.subr.mxu0 0.0
    %3259 = vmatpush1.msra.mxu0 0.0
    %3260 = vmatprep.subr.mxu0 0.0
    %3261 = vmatpush1.msra.mxu0 0.0
    %3262 = vmatprep.subr.mxu0 0.0
    %3263 = vmatpush1.msra.mxu0 0.0
    %3264 = vmatprep.subr.mxu0 0.0
    %3265 = vmatpush1.msra.mxu0 0.0
    %3266 = vmatprep.subr.mxu0 0.0
    %3267 = vmatpush1.msra.mxu0 0.0
    %3268 = vmatprep.subr.mxu0 0.0
    %3269 = vmatpush1.msra.mxu0 0.0
    %3270 = vmatprep.subr.mxu0 0.0
    %3271 = vmatpush1.msra.mxu0 0.0
    %3272 = vmatprep.subr.mxu0 0.0
    %3273 = vmatpush1.msra.mxu0 0.0
    %3274 = vmatprep.subr.mxu0 0.0
    %3275 = vmatpush1.msra.mxu0 0.0
    %3276 = vmatprep.subr.mxu0 0.0
    %3277 = vmatpush1.msra.mxu0 0.0
    %3278 = vmatprep.subr.mxu0 0.0
    %3279 = vmatpush1.msra.mxu0 0.0
    %3280 = vmatprep.mubr.f32.mxu0 0.0
    %v3281 = vand.u32 %v2775, 4294901760
    %v3282 = vsub.f32 %v2775, %v3281
    %3283 = vmatmul.mubr.f32.gmra.mrb[0].mxu0 %v3282
    %v3284 = vpop.f32.mrb[0].mxu0
    %v3285 = vadd.f32 %v3121, %v3284
    %v3286 = vpop.f32.mrb[0].mxu0
    %3287 = vmatprep.mubr.f32.mxu0 0.0
    %v3288 = vand.u32 %v2778, 4294901760
    %v3289 = vsub.f32 %v2778, %v3288
    %3290 = vmatmul.mubr.f32.gmra.mrb[0].mxu0 %v3289
    %v3291 = vpop.f32.mrb[0].mxu0
    %v3292 = vadd.f32 %v3127, %v3291
    %v3293 = vpop.f32.mrb[0].mxu0
    %3294 = vmatprep.mubr.f32.mxu0 0.0
    %v3295 = vand.u32 %v2781, 4294901760
    %v3296 = vsub.f32 %v2781, %v3295
    %3297 = vmatmul.mubr.f32.gmra.mrb[0].mxu0 %v3296
    %v3298 = vpop.f32.mrb[0].mxu0
    %v3299 = vadd.f32 %v3133, %v3298
    %v3300 = vpop.f32.mrb[0].mxu0
    %3301 = vmatprep.mubr.f32.mxu0 0.0
    %v3302 = vand.u32 %v2784, 4294901760
    %v3303 = vsub.f32 %v2784, %v3302
    %3304 = vmatmul.mubr.f32.gmra.mrb[0].mxu0 %v3303
    %v3305 = vpop.f32.mrb[0].mxu0
    %v3306 = vadd.f32 %v3139, %v3305
    %v3307 = vpop.f32.mrb[0].mxu0
    %3308 = vmatprep.mubr.f32.mxu0 0.0
    %v3309 = vand.u32 %v2787, 4294901760
    %v3310 = vsub.f32 %v2787, %v3309
    %3311 = vmatmul.mubr.f32.gmra.mrb[0].mxu0 %v3310
    %v3312 = vpop.f32.mrb[0].mxu0
    %v3313 = vadd.f32 %v3145, %v3312
    %v3314 = vpop.f32.mrb[0].mxu0
    %3315 = vmatprep.mubr.f32.mxu0 0.0
    %v3316 = vand.u32 %v2790, 4294901760
    %v3317 = vsub.f32 %v2790, %v3316
    %3318 = vmatmul.mubr.f32.gmra.mrb[0].mxu0 %v3317
    %v3319 = vpop.f32.mrb[0].mxu0
    %v3320 = vadd.f32 %v3151, %v3319
    %v3321 = vpop.f32.mrb[0].mxu0
    %3322 = vmatprep.mubr.f32.mxu0 0.0
    %v3323 = vand.u32 %v2793, 4294901760
    %v3324 = vsub.f32 %v2793, %v3323
    %3325 = vmatmul.mubr.f32.gmra.mrb[0].mxu0 %v3324
    %v3326 = vpop.f32.mrb[0].mxu0
    %v3327 = vadd.f32 %v3157, %v3326
    %v3328 = vpop.f32.mrb[0].mxu0
    %3329 = vmatprep.mubr.f32.mxu0 0.0
    %v3330 = vand.u32 %v2796, 4294901760
    %v3331 = vsub.f32 %v2796, %v3330
    %3332 = vmatmul.mubr.f32.gmra.mrb[0].mxu0 %v3331
    %v3333 = vpop.f32.mrb[0].mxu0
    %v3334 = vadd.f32 %v3163, %v3333
    %v3335 = vpop.f32.mrb[0].mxu0
    %3336 = vmatprep.mubr.f32.mxu0 0.0
    %v3337 = vand.u32 %v2799, 4294901760
    %v3338 = vsub.f32 %v2799, %v3337
    %3339 = vmatmul.mubr.f32.gmra.mrb[0].mxu0 %v3338
    %v3340 = vpop.f32.mrb[0].mxu0
    %v3341 = vadd.f32 %v3169, %v3340
    %v3342 = vpop.f32.mrb[0].mxu0
    %3343 = vmatprep.mubr.f32.mxu0 0.0
    %v3344 = vand.u32 %v2802, 4294901760
    %v3345 = vsub.f32 %v2802, %v3344
    %3346 = vmatmul.mubr.f32.gmra.mrb[0].mxu0 %v3345
    %v3347 = vpop.f32.mrb[0].mxu0
    %v3348 = vadd.f32 %v3175, %v3347
    %v3349 = vpop.f32.mrb[0].mxu0
    %3350 = vmatprep.mubr.f32.mxu0 0.0
    %v3351 = vand.u32 %v2805, 4294901760
    %v3352 = vsub.f32 %v2805, %v3351
    %3353 = vmatmul.mubr.f32.gmra.mrb[0].mxu0 %v3352
    %v3354 = vpop.f32.mrb[0].mxu0
    %v3355 = vadd.f32 %v3181, %v3354
    %v3356 = vpop.f32.mrb[0].mxu0
    %3357 = vmatprep.mubr.f32.mxu0 0.0
    %v3358 = vand.u32 %v2808, 4294901760
    %v3359 = vsub.f32 %v2808, %v3358
    %3360 = vmatmul.mubr.f32.gmra.mrb[0].mxu0 %v3359
    %v3361 = vpop.f32.mrb[0].mxu0
    %v3362 = vadd.f32 %v3187, %v3361
    %v3363 = vpop.f32.mrb[0].mxu0
    %3364 = vmatprep.mubr.f32.mxu0 0.0
    %v3365 = vand.u32 %v2811, 4294901760
    %v3366 = vsub.f32 %v2811, %v3365
    %3367 = vmatmul.mubr.f32.gmra.mrb[0].mxu0 %v3366
    %v3368 = vpop.f32.mrb[0].mxu0
    %v3369 = vadd.f32 %v3193, %v3368
    %v3370 = vpop.f32.mrb[0].mxu0
    %3371 = vmatprep.mubr.f32.mxu0 0.0
    %v3372 = vand.u32 %v2814, 4294901760
    %v3373 = vsub.f32 %v2814, %v3372
    %3374 = vmatmul.mubr.f32.gmra.mrb[0].mxu0 %v3373
    %v3375 = vpop.f32.mrb[0].mxu0
    %v3376 = vadd.f32 %v3199, %v3375
    %v3377 = vpop.f32.mrb[0].mxu0
    %3378 = vmatprep.mubr.f32.mxu0 0.0
    %v3379 = vand.u32 %v2817, 4294901760
    %v3380 = vsub.f32 %v2817, %v3379
    %3381 = vmatmul.mubr.f32.gmra.mrb[0].mxu0 %v3380
    %v3382 = vpop.f32.mrb[0].mxu0
    %v3383 = vadd.f32 %v3205, %v3382
    %v3384 = vpop.f32.mrb[0].mxu0
    %3385 = vmatprep.mubr.f32.mxu0 0.0
    %v3386 = vand.u32 %v2820, 4294901760
    %v3387 = vsub.f32 %v2820, %v3386
    %3388 = vmatmul.mubr.f32.gmra.mrb[0].mxu0 %v3387
    %v3389 = vpop.f32.mrb[0].mxu0
    %v3390 = vadd.f32 %v3211, %v3389
    %v3391 = vpop.f32.mrb[0].mxu0
    %3392 = vdwg.mxu0
    %3393 = vmatprep.subr.mxu0 0.0
    %v3394 = vand.u32 %v21, 4294901760
    %3395 = vmatpush1.msra.mxu0 %v3394
    %3396 = vmatprep.subr.mxu0 0.0
    %3397 = vmatpush1.msra.mxu0 0.0
    %3398 = vmatprep.subr.mxu0 0.0
    %3399 = vmatpush1.msra.mxu0 0.0
    %3400 = vmatprep.subr.mxu0 0.0
    %3401 = vmatpush1.msra.mxu0 0.0
    %3402 = vmatprep.subr.mxu0 0.0
    %3403 = vmatpush1.msra.mxu0 0.0
    %3404 = vmatprep.subr.mxu0 0.0
    %3405 = vmatpush1.msra.mxu0 0.0
    %3406 = vmatprep.subr.mxu0 0.0
    %3407 = vmatpush1.msra.mxu0 0.0
    %3408 = vmatprep.subr.mxu0 0.0
    %3409 = vmatpush1.msra.mxu0 0.0
    %3410 = vmatprep.subr.mxu0 0.0
    %3411 = vmatpush1.msra.mxu0 0.0
    %3412 = vmatprep.subr.mxu0 0.0
    %3413 = vmatpush1.msra.mxu0 0.0
    %3414 = vmatprep.subr.mxu0 0.0
    %3415 = vmatpush1.msra.mxu0 0.0
    %3416 = vmatprep.subr.mxu0 0.0
    %3417 = vmatpush1.msra.mxu0 0.0
    %3418 = vmatprep.subr.mxu0 0.0
    %3419 = vmatpush1.msra.mxu0 0.0
    %3420 = vmatprep.subr.mxu0 0.0
    %3421 = vmatpush1.msra.mxu0 0.0
    %3422 = vmatprep.subr.mxu0 0.0
    %3423 = vmatpush1.msra.mxu0 0.0
    %3424 = vmatprep.subr.mxu0 0.0
    %3425 = vmatpush1.msra.mxu0 0.0
    %3426 = vmatprep.subr.mxu0 0.0
    %3427 = vmatpush1.msra.mxu0 0.0
    %3428 = vmatprep.subr.mxu0 0.0
    %3429 = vmatpush1.msra.mxu0 0.0
    %3430 = vmatprep.subr.mxu0 0.0
    %3431 = vmatpush1.msra.mxu0 0.0
    %3432 = vmatprep.subr.mxu0 0.0
    %3433 = vmatpush1.msra.mxu0 0.0
    %3434 = vmatprep.subr.mxu0 0.0
    %3435 = vmatpush1.msra.mxu0 0.0
    %3436 = vmatprep.subr.mxu0 0.0
    %3437 = vmatpush1.msra.mxu0 0.0
    %3438 = vmatprep.subr.mxu0 0.0
    %3439 = vmatpush1.msra.mxu0 0.0
    %3440 = vmatprep.subr.mxu0 0.0
    %3441 = vmatpush1.msra.mxu0 0.0
    %3442 = vmatprep.subr.mxu0 0.0
    %3443 = vmatpush1.msra.mxu0 0.0
    %3444 = vmatprep.subr.mxu0 0.0
    %3445 = vmatpush1.msra.mxu0 0.0
    %3446 = vmatprep.subr.mxu0 0.0
    %3447 = vmatpush1.msra.mxu0 0.0
    %3448 = vmatprep.subr.mxu0 0.0
    %3449 = vmatpush1.msra.mxu0 0.0
    %3450 = vmatprep.subr.mxu0 0.0
    %3451 = vmatpush1.msra.mxu0 0.0
    %3452 = vmatprep.subr.mxu0 0.0
    %3453 = vmatpush1.msra.mxu0 0.0
    %3454 = vmatprep.subr.mxu0 0.0
    %3455 = vmatpush1.msra.mxu0 0.0
    %3456 = vmatprep.subr.mxu0 0.0
    %3457 = vmatpush1.msra.mxu0 0.0
    %3458 = vmatprep.mubr.f32.mxu0 0.0
    %v3459 = vand.u32 %v2775, 4294901760
    %v3460 = vsub.f32 %v2775, %v3459
    %v3461 = vand.u32 %v3460, 4294901760
    %3462 = vmatmul.mubr.f32.gmra.mrb[0].mxu0 %v3461
    %v3463 = vpop.f32.mrb[0].mxu0
    %v3464 = vadd.f32 %v3285, %v3463
    %v3465 = vpop.f32.mrb[0].mxu0
    %3466 = vmatprep.mubr.f32.mxu0 0.0
    %v3467 = vand.u32 %v2778, 4294901760
    %v3468 = vsub.f32 %v2778, %v3467
    %v3469 = vand.u32 %v3468, 4294901760
    %3470 = vmatmul.mubr.f32.gmra.mrb[0].mxu0 %v3469
    %v3471 = vpop.f32.mrb[0].mxu0
    %v3472 = vadd.f32 %v3292, %v3471
    %v3473 = vpop.f32.mrb[0].mxu0
    %3474 = vmatprep.mubr.f32.mxu0 0.0
    %v3475 = vand.u32 %v2781, 4294901760
    %v3476 = vsub.f32 %v2781, %v3475
    %v3477 = vand.u32 %v3476, 4294901760
    %3478 = vmatmul.mubr.f32.gmra.mrb[0].mxu0 %v3477
    %v3479 = vpop.f32.mrb[0].mxu0
    %v3480 = vadd.f32 %v3299, %v3479
    %v3481 = vpop.f32.mrb[0].mxu0
    %3482 = vmatprep.mubr.f32.mxu0 0.0
    %v3483 = vand.u32 %v2784, 4294901760
    %v3484 = vsub.f32 %v2784, %v3483
    %v3485 = vand.u32 %v3484, 4294901760
    %3486 = vmatmul.mubr.f32.gmra.mrb[0].mxu0 %v3485
    %v3487 = vpop.f32.mrb[0].mxu0
    %v3488 = vadd.f32 %v3306, %v3487
    %v3489 = vpop.f32.mrb[0].mxu0
    %3490 = vmatprep.mubr.f32.mxu0 0.0
    %v3491 = vand.u32 %v2787, 4294901760
    %v3492 = vsub.f32 %v2787, %v3491
    %v3493 = vand.u32 %v3492, 4294901760
    %3494 = vmatmul.mubr.f32.gmra.mrb[0].mxu0 %v3493
    %v3495 = vpop.f32.mrb[0].mxu0
    %v3496 = vadd.f32 %v3313, %v3495
    %v3497 = vpop.f32.mrb[0].mxu0
    %3498 = vmatprep.mubr.f32.mxu0 0.0
    %v3499 = vand.u32 %v2790, 4294901760
    %v3500 = vsub.f32 %v2790, %v3499
    %v3501 = vand.u32 %v3500, 4294901760
    %3502 = vmatmul.mubr.f32.gmra.mrb[0].mxu0 %v3501
    %v3503 = vpop.f32.mrb[0].mxu0
    %v3504 = vadd.f32 %v3320, %v3503
    %v3505 = vpop.f32.mrb[0].mxu0
    %3506 = vmatprep.mubr.f32.mxu0 0.0
    %v3507 = vand.u32 %v2793, 4294901760
    %v3508 = vsub.f32 %v2793, %v3507
    %v3509 = vand.u32 %v3508, 4294901760
    %3510 = vmatmul.mubr.f32.gmra.mrb[0].mxu0 %v3509
    %v3511 = vpop.f32.mrb[0].mxu0
    %v3512 = vadd.f32 %v3327, %v3511
    %v3513 = vpop.f32.mrb[0].mxu0
    %3514 = vmatprep.mubr.f32.mxu0 0.0
    %v3515 = vand.u32 %v2796, 4294901760
    %v3516 = vsub.f32 %v2796, %v3515
    %v3517 = vand.u32 %v3516, 4294901760
    %3518 = vmatmul.mubr.f32.gmra.mrb[0].mxu0 %v3517
    %v3519 = vpop.f32.mrb[0].mxu0
    %v3520 = vadd.f32 %v3334, %v3519
    %v3521 = vpop.f32.mrb[0].mxu0
    %3522 = vmatprep.mubr.f32.mxu0 0.0
    %v3523 = vand.u32 %v2799, 4294901760
    %v3524 = vsub.f32 %v2799, %v3523
    %v3525 = vand.u32 %v3524, 4294901760
    %3526 = vmatmul.mubr.f32.gmra.mrb[0].mxu0 %v3525
    %v3527 = vpop.f32.mrb[0].mxu0
    %v3528 = vadd.f32 %v3341, %v3527
    %v3529 = vpop.f32.mrb[0].mxu0
    %3530 = vmatprep.mubr.f32.mxu0 0.0
    %v3531 = vand.u32 %v2802, 4294901760
    %v3532 = vsub.f32 %v2802, %v3531
    %v3533 = vand.u32 %v3532, 4294901760
    %3534 = vmatmul.mubr.f32.gmra.mrb[0].mxu0 %v3533
    %v3535 = vpop.f32.mrb[0].mxu0
    %v3536 = vadd.f32 %v3348, %v3535
    %v3537 = vpop.f32.mrb[0].mxu0
    %3538 = vmatprep.mubr.f32.mxu0 0.0
    %v3539 = vand.u32 %v2805, 4294901760
    %v3540 = vsub.f32 %v2805, %v3539
    %v3541 = vand.u32 %v3540, 4294901760
    %3542 = vmatmul.mubr.f32.gmra.mrb[0].mxu0 %v3541
    %v3543 = vpop.f32.mrb[0].mxu0
    %v3544 = vadd.f32 %v3355, %v3543
    %v3545 = vpop.f32.mrb[0].mxu0
    %3546 = vmatprep.mubr.f32.mxu0 0.0
    %v3547 = vand.u32 %v2808, 4294901760
    %v3548 = vsub.f32 %v2808, %v3547
    %v3549 = vand.u32 %v3548, 4294901760
    %3550 = vmatmul.mubr.f32.gmra.mrb[0].mxu0 %v3549
    %v3551 = vpop.f32.mrb[0].mxu0
    %v3552 = vadd.f32 %v3362, %v3551
    %v3553 = vpop.f32.mrb[0].mxu0
    %3554 = vmatprep.mubr.f32.mxu0 0.0
    %v3555 = vand.u32 %v2811, 4294901760
    %v3556 = vsub.f32 %v2811, %v3555
    %v3557 = vand.u32 %v3556, 4294901760
    %3558 = vmatmul.mubr.f32.gmra.mrb[0].mxu0 %v3557
    %v3559 = vpop.f32.mrb[0].mxu0
    %v3560 = vadd.f32 %v3369, %v3559
    %v3561 = vpop.f32.mrb[0].mxu0
    %3562 = vmatprep.mubr.f32.mxu0 0.0
    %v3563 = vand.u32 %v2814, 4294901760
    %v3564 = vsub.f32 %v2814, %v3563
    %v3565 = vand.u32 %v3564, 4294901760
    %3566 = vmatmul.mubr.f32.gmra.mrb[0].mxu0 %v3565
    %v3567 = vpop.f32.mrb[0].mxu0
    %v3568 = vadd.f32 %v3376, %v3567
    %v3569 = vpop.f32.mrb[0].mxu0
    %3570 = vmatprep.mubr.f32.mxu0 0.0
    %v3571 = vand.u32 %v2817, 4294901760
    %v3572 = vsub.f32 %v2817, %v3571
    %v3573 = vand.u32 %v3572, 4294901760
    %3574 = vmatmul.mubr.f32.gmra.mrb[0].mxu0 %v3573
    %v3575 = vpop.f32.mrb[0].mxu0
    %v3576 = vadd.f32 %v3383, %v3575
    %v3577 = vpop.f32.mrb[0].mxu0
    %3578 = vmatprep.mubr.f32.mxu0 0.0
    %v3579 = vand.u32 %v2820, 4294901760
    %v3580 = vsub.f32 %v2820, %v3579
    %v3581 = vand.u32 %v3580, 4294901760
    %3582 = vmatmul.mubr.f32.gmra.mrb[0].mxu0 %v3581
    %v3583 = vpop.f32.mrb[0].mxu0
    %v3584 = vadd.f32 %v3390, %v3583
    %v3585 = vpop.f32.mrb[0].mxu0
    %3586 = vdwg.mxu0
    %3587 = vmatprep.subr.mxu0 0.0
    %v3588 = vand.u32 %v21, 4294901760
    %v3589 = vsub.f32 %v21, %v3588
    %v3590 = vand.u32 %v3589, 4294901760
    %3591 = vmatpush1.msra.mxu0 %v3590
    %3592 = vmatprep.subr.mxu0 0.0
    %3593 = vmatpush1.msra.mxu0 0.0
    %3594 = vmatprep.subr.mxu0 0.0
    %3595 = vmatpush1.msra.mxu0 0.0
    %3596 = vmatprep.subr.mxu0 0.0
    %3597 = vmatpush1.msra.mxu0 0.0
    %3598 = vmatprep.subr.mxu0 0.0
    %3599 = vmatpush1.msra.mxu0 0.0
    %3600 = vmatprep.subr.mxu0 0.0
    %3601 = vmatpush1.msra.mxu0 0.0
    %3602 = vmatprep.subr.mxu0 0.0
    %3603 = vmatpush1.msra.mxu0 0.0
    %3604 = vmatprep.subr.mxu0 0.0
    %3605 = vmatpush1.msra.mxu0 0.0
    %3606 = vmatprep.subr.mxu0 0.0
    %3607 = vmatpush1.msra.mxu0 0.0
    %3608 = vmatprep.subr.mxu0 0.0
    %3609 = vmatpush1.msra.mxu0 0.0
    %3610 = vmatprep.subr.mxu0 0.0
    %3611 = vmatpush1.msra.mxu0 0.0
    %3612 = vmatprep.subr.mxu0 0.0
    %3613 = vmatpush1.msra.mxu0 0.0
    %3614 = vmatprep.subr.mxu0 0.0
    %3615 = vmatpush1.msra.mxu0 0.0
    %3616 = vmatprep.subr.mxu0 0.0
    %3617 = vmatpush1.msra.mxu0 0.0
    %3618 = vmatprep.subr.mxu0 0.0
    %3619 = vmatpush1.msra.mxu0 0.0
    %3620 = vmatprep.subr.mxu0 0.0
    %3621 = vmatpush1.msra.mxu0 0.0
    %3622 = vmatprep.subr.mxu0 0.0
    %3623 = vmatpush1.msra.mxu0 0.0
    %3624 = vmatprep.subr.mxu0 0.0
    %3625 = vmatpush1.msra.mxu0 0.0
    %3626 = vmatprep.subr.mxu0 0.0
    %3627 = vmatpush1.msra.mxu0 0.0
    %3628 = vmatprep.subr.mxu0 0.0
    %3629 = vmatpush1.msra.mxu0 0.0
    %3630 = vmatprep.subr.mxu0 0.0
    %3631 = vmatpush1.msra.mxu0 0.0
    %3632 = vmatprep.subr.mxu0 0.0
    %3633 = vmatpush1.msra.mxu0 0.0
    %3634 = vmatprep.subr.mxu0 0.0
    %3635 = vmatpush1.msra.mxu0 0.0
    %3636 = vmatprep.subr.mxu0 0.0
    %3637 = vmatpush1.msra.mxu0 0.0
    %3638 = vmatprep.subr.mxu0 0.0
    %3639 = vmatpush1.msra.mxu0 0.0
    %3640 = vmatprep.subr.mxu0 0.0
    %3641 = vmatpush1.msra.mxu0 0.0
    %3642 = vmatprep.subr.mxu0 0.0
    %3643 = vmatpush1.msra.mxu0 0.0
    %3644 = vmatprep.subr.mxu0 0.0
    %3645 = vmatpush1.msra.mxu0 0.0
    %3646 = vmatprep.subr.mxu0 0.0
    %3647 = vmatpush1.msra.mxu0 0.0
    %3648 = vmatprep.subr.mxu0 0.0
    %3649 = vmatpush1.msra.mxu0 0.0
    %3650 = vmatprep.subr.mxu0 0.0
    %3651 = vmatpush1.msra.mxu0 0.0
    %3652 = vmatprep.subr.mxu0 0.0
    %3653 = vmatpush1.msra.mxu0 0.0
    %3654 = vmatprep.mubr.f32.mxu0 0.0
    %v3655 = vand.u32 %v2775, 4294901760
    %3656 = vmatmul.mubr.f32.gmra.mrb[0].mxu0 %v3655
    %v3657 = vpop.f32.mrb[0].mxu0
    %v3658 = vadd.f32 %v3464, %v3657
    %v3659 = vpop.f32.mrb[0].mxu0
    %3660 = vmatprep.mubr.f32.mxu0 0.0
    %v3661 = vand.u32 %v2778, 4294901760
    %3662 = vmatmul.mubr.f32.gmra.mrb[0].mxu0 %v3661
    %v3663 = vpop.f32.mrb[0].mxu0
    %v3664 = vadd.f32 %v3472, %v3663
    %v3665 = vpop.f32.mrb[0].mxu0
    %3666 = vmatprep.mubr.f32.mxu0 0.0
    %v3667 = vand.u32 %v2781, 4294901760
    %3668 = vmatmul.mubr.f32.gmra.mrb[0].mxu0 %v3667
    %v3669 = vpop.f32.mrb[0].mxu0
    %v3670 = vadd.f32 %v3480, %v3669
    %v3671 = vpop.f32.mrb[0].mxu0
    %3672 = vmatprep.mubr.f32.mxu0 0.0
    %v3673 = vand.u32 %v2784, 4294901760
    %3674 = vmatmul.mubr.f32.gmra.mrb[0].mxu0 %v3673
    %v3675 = vpop.f32.mrb[0].mxu0
    %v3676 = vadd.f32 %v3488, %v3675
    %v3677 = vpop.f32.mrb[0].mxu0
    %3678 = vmatprep.mubr.f32.mxu0 0.0
    %v3679 = vand.u32 %v2787, 4294901760
    %3680 = vmatmul.mubr.f32.gmra.mrb[0].mxu0 %v3679
    %v3681 = vpop.f32.mrb[0].mxu0
    %v3682 = vadd.f32 %v3496, %v3681
    %v3683 = vpop.f32.mrb[0].mxu0
    %3684 = vmatprep.mubr.f32.mxu0 0.0
    %v3685 = vand.u32 %v2790, 4294901760
    %3686 = vmatmul.mubr.f32.gmra.mrb[0].mxu0 %v3685
    %v3687 = vpop.f32.mrb[0].mxu0
    %v3688 = vadd.f32 %v3504, %v3687
    %v3689 = vpop.f32.mrb[0].mxu0
    %3690 = vmatprep.mubr.f32.mxu0 0.0
    %v3691 = vand.u32 %v2793, 4294901760
    %3692 = vmatmul.mubr.f32.gmra.mrb[0].mxu0 %v3691
    %v3693 = vpop.f32.mrb[0].mxu0
    %v3694 = vadd.f32 %v3512, %v3693
    %v3695 = vpop.f32.mrb[0].mxu0
    %3696 = vmatprep.mubr.f32.mxu0 0.0
    %v3697 = vand.u32 %v2796, 4294901760
    %3698 = vmatmul.mubr.f32.gmra.mrb[0].mxu0 %v3697
    %v3699 = vpop.f32.mrb[0].mxu0
    %v3700 = vadd.f32 %v3520, %v3699
    %v3701 = vpop.f32.mrb[0].mxu0
    %3702 = vmatprep.mubr.f32.mxu0 0.0
    %v3703 = vand.u32 %v2799, 4294901760
    %3704 = vmatmul.mubr.f32.gmra.mrb[0].mxu0 %v3703
    %v3705 = vpop.f32.mrb[0].mxu0
    %v3706 = vadd.f32 %v3528, %v3705
    %v3707 = vpop.f32.mrb[0].mxu0
    %3708 = vmatprep.mubr.f32.mxu0 0.0
    %v3709 = vand.u32 %v2802, 4294901760
    %3710 = vmatmul.mubr.f32.gmra.mrb[0].mxu0 %v3709
    %v3711 = vpop.f32.mrb[0].mxu0
    %v3712 = vadd.f32 %v3536, %v3711
    %v3713 = vpop.f32.mrb[0].mxu0
    %3714 = vmatprep.mubr.f32.mxu0 0.0
    %v3715 = vand.u32 %v2805, 4294901760
    %3716 = vmatmul.mubr.f32.gmra.mrb[0].mxu0 %v3715
    %v3717 = vpop.f32.mrb[0].mxu0
    %v3718 = vadd.f32 %v3544, %v3717
    %v3719 = vpop.f32.mrb[0].mxu0
    %3720 = vmatprep.mubr.f32.mxu0 0.0
    %v3721 = vand.u32 %v2808, 4294901760
    %3722 = vmatmul.mubr.f32.gmra.mrb[0].mxu0 %v3721
    %v3723 = vpop.f32.mrb[0].mxu0
    %v3724 = vadd.f32 %v3552, %v3723
    %v3725 = vpop.f32.mrb[0].mxu0
    %3726 = vmatprep.mubr.f32.mxu0 0.0
    %v3727 = vand.u32 %v2811, 4294901760
    %3728 = vmatmul.mubr.f32.gmra.mrb[0].mxu0 %v3727
    %v3729 = vpop.f32.mrb[0].mxu0
    %v3730 = vadd.f32 %v3560, %v3729
    %v3731 = vpop.f32.mrb[0].mxu0
    %3732 = vmatprep.mubr.f32.mxu0 0.0
    %v3733 = vand.u32 %v2814, 4294901760
    %3734 = vmatmul.mubr.f32.gmra.mrb[0].mxu0 %v3733
    %v3735 = vpop.f32.mrb[0].mxu0
    %v3736 = vadd.f32 %v3568, %v3735
    %v3737 = vpop.f32.mrb[0].mxu0
    %3738 = vmatprep.mubr.f32.mxu0 0.0
    %v3739 = vand.u32 %v2817, 4294901760
    %3740 = vmatmul.mubr.f32.gmra.mrb[0].mxu0 %v3739
    %v3741 = vpop.f32.mrb[0].mxu0
    %v3742 = vadd.f32 %v3576, %v3741
    %v3743 = vpop.f32.mrb[0].mxu0
    %3744 = vmatprep.mubr.f32.mxu0 0.0
    %v3745 = vand.u32 %v2820, 4294901760
    %3746 = vmatmul.mubr.f32.gmra.mrb[0].mxu0 %v3745
    %v3747 = vpop.f32.mrb[0].mxu0
    %v3748 = vadd.f32 %v3584, %v3747
    %v3749 = vpop.f32.mrb[0].mxu0
    %3750 = vdwg.mxu0
    %3751 = vmatprep.subr.mxu0 0.0
    %v3752 = vand.u32 %v21, 4294901760
    %3753 = vmatpush1.msra.mxu0 %v3752
    %3754 = vmatprep.subr.mxu0 0.0
    %3755 = vmatpush1.msra.mxu0 0.0
    %3756 = vmatprep.subr.mxu0 0.0
    %3757 = vmatpush1.msra.mxu0 0.0
    %3758 = vmatprep.subr.mxu0 0.0
    %3759 = vmatpush1.msra.mxu0 0.0
    %3760 = vmatprep.subr.mxu0 0.0
    %3761 = vmatpush1.msra.mxu0 0.0
    %3762 = vmatprep.subr.mxu0 0.0
    %3763 = vmatpush1.msra.mxu0 0.0
    %3764 = vmatprep.subr.mxu0 0.0
    %3765 = vmatpush1.msra.mxu0 0.0
    %3766 = vmatprep.subr.mxu0 0.0
    %3767 = vmatpush1.msra.mxu0 0.0
    %3768 = vmatprep.subr.mxu0 0.0
    %3769 = vmatpush1.msra.mxu0 0.0
    %3770 = vmatprep.subr.mxu0 0.0
    %3771 = vmatpush1.msra.mxu0 0.0
    %3772 = vmatprep.subr.mxu0 0.0
    %3773 = vmatpush1.msra.mxu0 0.0
    %3774 = vmatprep.subr.mxu0 0.0
    %3775 = vmatpush1.msra.mxu0 0.0
    %3776 = vmatprep.subr.mxu0 0.0
    %3777 = vmatpush1.msra.mxu0 0.0
    %3778 = vmatprep.subr.mxu0 0.0
    %3779 = vmatpush1.msra.mxu0 0.0
    %3780 = vmatprep.subr.mxu0 0.0
    %3781 = vmatpush1.msra.mxu0 0.0
    %3782 = vmatprep.subr.mxu0 0.0
    %3783 = vmatpush1.msra.mxu0 0.0
    %3784 = vmatprep.subr.mxu0 0.0
    %3785 = vmatpush1.msra.mxu0 0.0
    %3786 = vmatprep.subr.mxu0 0.0
    %3787 = vmatpush1.msra.mxu0 0.0
    %3788 = vmatprep.subr.mxu0 0.0
    %3789 = vmatpush1.msra.mxu0 0.0
    %3790 = vmatprep.subr.mxu0 0.0
    %3791 = vmatpush1.msra.mxu0 0.0
    %3792 = vmatprep.subr.mxu0 0.0
    %3793 = vmatpush1.msra.mxu0 0.0
    %3794 = vmatprep.subr.mxu0 0.0
    %3795 = vmatpush1.msra.mxu0 0.0
    %3796 = vmatprep.subr.mxu0 0.0
    %3797 = vmatpush1.msra.mxu0 0.0
    %3798 = vmatprep.subr.mxu0 0.0
    %3799 = vmatpush1.msra.mxu0 0.0
    %3800 = vmatprep.subr.mxu0 0.0
    %3801 = vmatpush1.msra.mxu0 0.0
    %3802 = vmatprep.subr.mxu0 0.0
    %3803 = vmatpush1.msra.mxu0 0.0
    %3804 = vmatprep.subr.mxu0 0.0
    %3805 = vmatpush1.msra.mxu0 0.0
    %3806 = vmatprep.subr.mxu0 0.0
    %3807 = vmatpush1.msra.mxu0 0.0
    %3808 = vmatprep.subr.mxu0 0.0
    %3809 = vmatpush1.msra.mxu0 0.0
    %3810 = vmatprep.subr.mxu0 0.0
    %3811 = vmatpush1.msra.mxu0 0.0
    %3812 = vmatprep.subr.mxu0 0.0
    %3813 = vmatpush1.msra.mxu0 0.0
    %3814 = vmatprep.subr.mxu0 0.0
    %3815 = vmatpush1.msra.mxu0 0.0
    %3816 = vmatprep.mubr.f32.mxu0 0.0
    %v3817 = vand.u32 %v2775, 4294901760
    %3818 = vmatmul.mubr.f32.gmra.mrb[0].mxu0 %v3817
    %v3819 = vpop.f32.mrb[0].mxu0
    %v3820 = vadd.f32 %v3658, %v3819
    %v3821 = vpop.f32.mrb[0].mxu0
    %3822 = vmatprep.mubr.f32.mxu0 0.0
    %v3823 = vand.u32 %v2778, 4294901760
    %3824 = vmatmul.mubr.f32.gmra.mrb[0].mxu0 %v3823
    %v3825 = vpop.f32.mrb[0].mxu0
    %v3826 = vadd.f32 %v3664, %v3825
    %v3827 = vpop.f32.mrb[0].mxu0
    %3828 = vmatprep.mubr.f32.mxu0 0.0
    %v3829 = vand.u32 %v2781, 4294901760
    %3830 = vmatmul.mubr.f32.gmra.mrb[0].mxu0 %v3829
    %v3831 = vpop.f32.mrb[0].mxu0
    %v3832 = vadd.f32 %v3670, %v3831
    %v3833 = vpop.f32.mrb[0].mxu0
    %3834 = vmatprep.mubr.f32.mxu0 0.0
    %v3835 = vand.u32 %v2784, 4294901760
    %3836 = vmatmul.mubr.f32.gmra.mrb[0].mxu0 %v3835
    %v3837 = vpop.f32.mrb[0].mxu0
    %v3838 = vadd.f32 %v3676, %v3837
    %v3839 = vpop.f32.mrb[0].mxu0
    %3840 = vmatprep.mubr.f32.mxu0 0.0
    %v3841 = vand.u32 %v2787, 4294901760
    %3842 = vmatmul.mubr.f32.gmra.mrb[0].mxu0 %v3841
    %v3843 = vpop.f32.mrb[0].mxu0
    %v3844 = vadd.f32 %v3682, %v3843
    %v3845 = vpop.f32.mrb[0].mxu0
    %3846 = vmatprep.mubr.f32.mxu0 0.0
    %v3847 = vand.u32 %v2790, 4294901760
    %3848 = vmatmul.mubr.f32.gmra.mrb[0].mxu0 %v3847
    %v3849 = vpop.f32.mrb[0].mxu0
    %v3850 = vadd.f32 %v3688, %v3849
    %v3851 = vpop.f32.mrb[0].mxu0
    %3852 = vmatprep.mubr.f32.mxu0 0.0
    %v3853 = vand.u32 %v2793, 4294901760
    %3854 = vmatmul.mubr.f32.gmra.mrb[0].mxu0 %v3853
    %v3855 = vpop.f32.mrb[0].mxu0
    %v3856 = vadd.f32 %v3694, %v3855
    %v3857 = vpop.f32.mrb[0].mxu0
    %3858 = vmatprep.mubr.f32.mxu0 0.0
    %v3859 = vand.u32 %v2796, 4294901760
    %3860 = vmatmul.mubr.f32.gmra.mrb[0].mxu0 %v3859
    %v3861 = vpop.f32.mrb[0].mxu0
    %v3862 = vadd.f32 %v3700, %v3861
    %v3863 = vpop.f32.mrb[0].mxu0
    %3864 = vmatprep.mubr.f32.mxu0 0.0
    %v3865 = vand.u32 %v2799, 4294901760
    %3866 = vmatmul.mubr.f32.gmra.mrb[0].mxu0 %v3865
    %v3867 = vpop.f32.mrb[0].mxu0
    %v3868 = vadd.f32 %v3706, %v3867
    %v3869 = vpop.f32.mrb[0].mxu0
    %3870 = vmatprep.mubr.f32.mxu0 0.0
    %v3871 = vand.u32 %v2802, 4294901760
    %3872 = vmatmul.mubr.f32.gmra.mrb[0].mxu0 %v3871
    %v3873 = vpop.f32.mrb[0].mxu0
    %v3874 = vadd.f32 %v3712, %v3873
    %v3875 = vpop.f32.mrb[0].mxu0
    %3876 = vmatprep.mubr.f32.mxu0 0.0
    %v3877 = vand.u32 %v2805, 4294901760
    %3878 = vmatmul.mubr.f32.gmra.mrb[0].mxu0 %v3877
    %v3879 = vpop.f32.mrb[0].mxu0
    %v3880 = vadd.f32 %v3718, %v3879
    %v3881 = vpop.f32.mrb[0].mxu0
    %3882 = vmatprep.mubr.f32.mxu0 0.0
    %v3883 = vand.u32 %v2808, 4294901760
    %3884 = vmatmul.mubr.f32.gmra.mrb[0].mxu0 %v3883
    %v3885 = vpop.f32.mrb[0].mxu0
    %v3886 = vadd.f32 %v3724, %v3885
    %v3887 = vpop.f32.mrb[0].mxu0
    %3888 = vmatprep.mubr.f32.mxu0 0.0
    %v3889 = vand.u32 %v2811, 4294901760
    %3890 = vmatmul.mubr.f32.gmra.mrb[0].mxu0 %v3889
    %v3891 = vpop.f32.mrb[0].mxu0
    %v3892 = vadd.f32 %v3730, %v3891
    %v3893 = vpop.f32.mrb[0].mxu0
    %3894 = vmatprep.mubr.f32.mxu0 0.0
    %v3895 = vand.u32 %v2814, 4294901760
    %3896 = vmatmul.mubr.f32.gmra.mrb[0].mxu0 %v3895
    %v3897 = vpop.f32.mrb[0].mxu0
    %v3898 = vadd.f32 %v3736, %v3897
    %v3899 = vpop.f32.mrb[0].mxu0
    %3900 = vmatprep.mubr.f32.mxu0 0.0
    %v3901 = vand.u32 %v2817, 4294901760
    %3902 = vmatmul.mubr.f32.gmra.mrb[0].mxu0 %v3901
    %v3903 = vpop.f32.mrb[0].mxu0
    %v3904 = vadd.f32 %v3742, %v3903
    %v3905 = vpop.f32.mrb[0].mxu0
    %3906 = vmatprep.mubr.f32.mxu0 0.0
    %v3907 = vand.u32 %v2820, 4294901760
    %3908 = vmatmul.mubr.f32.gmra.mrb[0].mxu0 %v3907
    %v3909 = vpop.f32.mrb[0].mxu0
    %v3910 = vadd.f32 %v3748, %v3909
    %v3911 = vpop.f32.mrb[0].mxu0
    %3912 = vdwg.mxu0
    %v3913 = vsel %vm45, %v3820, -inf
    %3914 = vmax.xlane.f32.xlu0 %v3913
    %v3915 = vpop.xlane.xlu0 %3914
    %v3916 = vsel %vm45, %v3826, -inf
    %3917 = vmax.xlane.f32.xlu0 %v3916
    %v3918 = vpop.xlane.xlu0 %3917
    %v3919 = vsel %vm45, %v3832, -inf
    %3920 = vmax.xlane.f32.xlu0 %v3919
    %v3921 = vpop.xlane.xlu0 %3920
    %v3922 = vsel %vm45, %v3838, -inf
    %3923 = vmax.xlane.f32.xlu0 %v3922
    %v3924 = vpop.xlane.xlu0 %3923
    %v3925 = vsel %vm45, %v3844, -inf
    %3926 = vmax.xlane.f32.xlu0 %v3925
    %v3927 = vpop.xlane.xlu0 %3926
    %v3928 = vsel %vm45, %v3850, -inf
    %3929 = vmax.xlane.f32.xlu0 %v3928
    %v3930 = vpop.xlane.xlu0 %3929
    %v3931 = vsel %vm45, %v3856, -inf
    %3932 = vmax.xlane.f32.xlu0 %v3931
    %v3933 = vpop.xlane.xlu0 %3932
    %v3934 = vsel %vm45, %v3862, -inf
    %3935 = vmax.xlane.f32.xlu0 %v3934
    %v3936 = vpop.xlane.xlu0 %3935
    %v3937 = vsel %vm45, %v3868, -inf
    %3938 = vmax.xlane.f32.xlu0 %v3937
    %v3939 = vpop.xlane.xlu0 %3938
    %v3940 = vsel %vm45, %v3874, -inf
    %3941 = vmax.xlane.f32.xlu0 %v3940
    %v3942 = vpop.xlane.xlu0 %3941
    %v3943 = vsel %vm45, %v3880, -inf
    %3944 = vmax.xlane.f32.xlu0 %v3943
    %v3945 = vpop.xlane.xlu0 %3944
    %v3946 = vsel %vm45, %v3886, -inf
    %3947 = vmax.xlane.f32.xlu0 %v3946
    %v3948 = vpop.xlane.xlu0 %3947
    %v3949 = vsel %vm45, %v3892, -inf
    %3950 = vmax.xlane.f32.xlu0 %v3949
    %v3951 = vpop.xlane.xlu0 %3950
    %v3952 = vsel %vm45, %v3898, -inf
    %3953 = vmax.xlane.f32.xlu0 %v3952
    %v3954 = vpop.xlane.xlu0 %3953
    %v3955 = vsel %vm45, %v3904, -inf
    %3956 = vmax.xlane.f32.xlu0 %v3955
    %v3957 = vpop.xlane.xlu0 %3956
    %v3958 = vsel %vm45, %v3910, -inf
    %3959 = vmax.xlane.f32.xlu0 %v3958
    %v3960 = vpop.xlane.xlu0 %3959
    %v3961 = vsub.f32 %v3820, %v3915
    %v3962 = vsub.f32 %v3826, %v3918
    %v3963 = vsub.f32 %v3832, %v3921
    %v3964 = vsub.f32 %v3838, %v3924
    %v3965 = vsub.f32 %v3844, %v3927
    %v3966 = vsub.f32 %v3850, %v3930
    %v3967 = vsub.f32 %v3856, %v3933
    %v3968 = vsub.f32 %v3862, %v3936
    %v3969 = vsub.f32 %v3868, %v3939
    %v3970 = vsub.f32 %v3874, %v3942
    %v3971 = vsub.f32 %v3880, %v3945
    %v3972 = vsub.f32 %v3886, %v3948
    %v3973 = vsub.f32 %v3892, %v3951
    %v3974 = vsub.f32 %v3898, %v3954
    %v3975 = vsub.f32 %v3904, %v3957
    %v3976 = vsub.f32 %v3910, %v3960
    %v3977 = vmul.f32 %v3961, 1.442695
    %v3978 = vpow.pop %v3977
    %v3979 = vmul.f32 %v3962, 1.442695
    %v3980 = vpow.pop %v3979
    %v3981 = vmul.f32 %v3963, 1.442695
    %v3982 = vpow.pop %v3981
    %v3983 = vmul.f32 %v3964, 1.442695
    %v3984 = vpow.pop %v3983
    %v3985 = vmul.f32 %v3965, 1.442695
    %v3986 = vpow.pop %v3985
    %v3987 = vmul.f32 %v3966, 1.442695
    %v3988 = vpow.pop %v3987
    %v3989 = vmul.f32 %v3967, 1.442695
    %v3990 = vpow.pop %v3989
    %v3991 = vmul.f32 %v3968, 1.442695
    %v3992 = vpow.pop %v3991
    %v3993 = vmul.f32 %v3969, 1.442695
    %v3994 = vpow.pop %v3993
    %v3995 = vmul.f32 %v3970, 1.442695
    %v3996 = vpow.pop %v3995
    %v3997 = vmul.f32 %v3971, 1.442695
    %v3998 = vpow.pop %v3997
    %v3999 = vmul.f32 %v3972, 1.442695
    %v4000 = vpow.pop %v3999
    %v4001 = vmul.f32 %v3973, 1.442695
    %v4002 = vpow.pop %v4001
    %v4003 = vmul.f32 %v3974, 1.442695
    %v4004 = vpow.pop %v4003
    %v4005 = vmul.f32 %v3975, 1.442695
    %v4006 = vpow.pop %v4005
    %v4007 = vmul.f32 %v3976, 1.442695
    %v4008 = vpow.pop %v4007
    %v4009 = vsel %vm45, %v3978, 0.0
    %4010 = vadd.xlane.f32.xlu0 %v4009
    %v4011 = vpop.xlane.xlu0 %4010
    %v4012 = vsel %vm45, %v3980, 0.0
    %4013 = vadd.xlane.f32.xlu0 %v4012
    %v4014 = vpop.xlane.xlu0 %4013
    %v4015 = vsel %vm45, %v3982, 0.0
    %4016 = vadd.xlane.f32.xlu0 %v4015
    %v4017 = vpop.xlane.xlu0 %4016
    %v4018 = vsel %vm45, %v3984, 0.0
    %4019 = vadd.xlane.f32.xlu0 %v4018
    %v4020 = vpop.xlane.xlu0 %4019
    %v4021 = vsel %vm45, %v3986, 0.0
    %4022 = vadd.xlane.f32.xlu0 %v4021
    %v4023 = vpop.xlane.xlu0 %4022
    %v4024 = vsel %vm45, %v3988, 0.0
    %4025 = vadd.xlane.f32.xlu0 %v4024
    %v4026 = vpop.xlane.xlu0 %4025
    %v4027 = vsel %vm45, %v3990, 0.0
    %4028 = vadd.xlane.f32.xlu0 %v4027
    %v4029 = vpop.xlane.xlu0 %4028
    %v4030 = vsel %vm45, %v3992, 0.0
    %4031 = vadd.xlane.f32.xlu0 %v4030
    %v4032 = vpop.xlane.xlu0 %4031
    %v4033 = vsel %vm45, %v3994, 0.0
    %4034 = vadd.xlane.f32.xlu0 %v4033
    %v4035 = vpop.xlane.xlu0 %4034
    %v4036 = vsel %vm45, %v3996, 0.0
    %4037 = vadd.xlane.f32.xlu0 %v4036
    %v4038 = vpop.xlane.xlu0 %4037
    %v4039 = vsel %vm45, %v3998, 0.0
    %4040 = vadd.xlane.f32.xlu0 %v4039
    %v4041 = vpop.xlane.xlu0 %4040
    %v4042 = vsel %vm45, %v4000, 0.0
    %4043 = vadd.xlane.f32.xlu0 %v4042
    %v4044 = vpop.xlane.xlu0 %4043
    %v4045 = vsel %vm45, %v4002, 0.0
    %4046 = vadd.xlane.f32.xlu0 %v4045
    %v4047 = vpop.xlane.xlu0 %4046
    %v4048 = vsel %vm45, %v4004, 0.0
    %4049 = vadd.xlane.f32.xlu0 %v4048
    %v4050 = vpop.xlane.xlu0 %4049
    %v4051 = vsel %vm45, %v4006, 0.0
    %4052 = vadd.xlane.f32.xlu0 %v4051
    %v4053 = vpop.xlane.xlu0 %4052
    %v4054 = vsel %vm45, %v4008, 0.0
    %4055 = vadd.xlane.f32.xlu0 %v4054
    %v4056 = vpop.xlane.xlu0 %4055
    %v4057 = vrcp.pop %v4011
    %v4058 = vmul.f32 %v3978, %v4057
    %v4059 = vrcp.pop %v4014
    %v4060 = vmul.f32 %v3980, %v4059
    %v4061 = vrcp.pop %v4017
    %v4062 = vmul.f32 %v3982, %v4061
    %v4063 = vrcp.pop %v4020
    %v4064 = vmul.f32 %v3984, %v4063
    %v4065 = vrcp.pop %v4023
    %v4066 = vmul.f32 %v3986, %v4065
    %v4067 = vrcp.pop %v4026
    %v4068 = vmul.f32 %v3988, %v4067
    %v4069 = vrcp.pop %v4029
    %v4070 = vmul.f32 %v3990, %v4069
    %v4071 = vrcp.pop %v4032
    %v4072 = vmul.f32 %v3992, %v4071
    %v4073 = vrcp.pop %v4035
    %v4074 = vmul.f32 %v3994, %v4073
    %v4075 = vrcp.pop %v4038
    %v4076 = vmul.f32 %v3996, %v4075
    %v4077 = vrcp.pop %v4041
    %v4078 = vmul.f32 %v3998, %v4077
    %v4079 = vrcp.pop %v4044
    %v4080 = vmul.f32 %v4000, %v4079
    %v4081 = vrcp.pop %v4047
    %v4082 = vmul.f32 %v4002, %v4081
    %v4083 = vrcp.pop %v4050
    %v4084 = vmul.f32 %v4004, %v4083
    %v4085 = vrcp.pop %v4053
    %v4086 = vmul.f32 %v4006, %v4085
    %v4087 = vrcp.pop %v4056
    %v4088 = vmul.f32 %v4008, %v4087
    %v4089 = vmul.f32 %v4058, %v2758
    %v4090 = vmul.f32 %v4060, %v2759
    %v4091 = vmul.f32 %v4062, %v2760
    %v4092 = vmul.f32 %v4064, %v2761
    %v4093 = vmul.f32 %v4066, %v2762
    %v4094 = vmul.f32 %v4068, %v2763
    %v4095 = vmul.f32 %v4070, %v2764
    %v4096 = vmul.f32 %v4072, %v2765
    %v4097 = vmul.f32 %v4074, %v2766
    %v4098 = vmul.f32 %v4076, %v2767
    %v4099 = vmul.f32 %v4078, %v2768
    %v4100 = vmul.f32 %v4080, %v2769
    %v4101 = vmul.f32 %v4082, %v2770
    %v4102 = vmul.f32 %v4084, %v2771
    %v4103 = vmul.f32 %v4086, %v2772
    %v4104 = vmul.f32 %v4088, %v2773
    %v4105 = vadd.f32 %v2741, %v4089
    %v4106 = vadd.f32 %v2742, %v4090
    %v4107 = vadd.f32 %v2743, %v4091
    %v4108 = vadd.f32 %v2744, %v4092
    %v4109 = vadd.f32 %v2745, %v4093
    %v4110 = vadd.f32 %v2746, %v4094
    %v4111 = vadd.f32 %v2747, %v4095
    %v4112 = vadd.f32 %v2748, %v4096
    %v4113 = vadd.f32 %v2749, %v4097
    %v4114 = vadd.f32 %v2750, %v4098
    %v4115 = vadd.f32 %v2751, %v4099
    %v4116 = vadd.f32 %v2752, %v4100
    %v4117 = vadd.f32 %v2753, %v4101
    %v4118 = vadd.f32 %v2754, %v4102
    %v4119 = vadd.f32 %v2755, %v4103
    %v4120 = vadd.f32 %v2756, %v4104
    %s4121 = scalar_lea.vmem %s0, 384
    %v4122 = vld [vmem:[%s4121] sm:$0xff]
    %v4123 = vld [vmem:[%s4121 + $0x8] sm:$0xff]
    %v4124 = vld [vmem:[%s4121 + $0x10] sm:$0xff]
    %v4125 = vld [vmem:[%s4121 + $0x18] sm:$0xff]
    %v4126 = vld [vmem:[%s4121 + $0x20] sm:$0xff]
    %v4127 = vld [vmem:[%s4121 + $0x28] sm:$0xff]
    %v4128 = vld [vmem:[%s4121 + $0x30] sm:$0xff]
    %v4129 = vld [vmem:[%s4121 + $0x38] sm:$0xff]
    %v4130 = vld [vmem:[%s4121 + $0x40] sm:$0xff]
    %v4131 = vld [vmem:[%s4121 + $0x48] sm:$0xff]
    %v4132 = vld [vmem:[%s4121 + $0x50] sm:$0xff]
    %v4133 = vld [vmem:[%s4121 + $0x58] sm:$0xff]
    %v4134 = vld [vmem:[%s4121 + $0x60] sm:$0xff]
    %v4135 = vld [vmem:[%s4121 + $0x68] sm:$0xff]
    %v4136 = vld [vmem:[%s4121 + $0x70] sm:$0xff]
    %v4137 = vld [vmem:[%s4121 + $0x78] sm:$0xff]
    %v4139 = vsel %vm45, %v4122, 0
    %v4142 = vsel %vm45, %v4123, 0
    %v4145 = vsel %vm45, %v4124, 0
    %v4148 = vsel %vm45, %v4125, 0
    %v4151 = vsel %vm45, %v4126, 0
    %v4154 = vsel %vm45, %v4127, 0
    %v4157 = vsel %vm45, %v4128, 0
    %v4160 = vsel %vm45, %v4129, 0
    %v4163 = vsel %vm45, %v4130, 0
    %v4166 = vsel %vm45, %v4131, 0
    %v4169 = vsel %vm45, %v4132, 0
    %v4172 = vsel %vm45, %v4133, 0
    %v4175 = vsel %vm45, %v4134, 0
    %v4178 = vsel %vm45, %v4135, 0
    %v4181 = vsel %vm45, %v4136, 0
    %v4184 = vsel %vm45, %v4137, 0
    %4186 = vmatprep.subr.mxu0 0.0
    %v4187 = vand.u32 %v21, 4294901760
    %4188 = vmatpush1.msra.mxu0 %v4187
    %4189 = vmatprep.subr.mxu0 0.0
    %4190 = vmatpush1.msra.mxu0 0.0
    %4191 = vmatprep.subr.mxu0 0.0
    %4192 = vmatpush1.msra.mxu0 0.0
    %4193 = vmatprep.subr.mxu0 0.0
    %4194 = vmatpush1.msra.mxu0 0.0
    %4195 = vmatprep.subr.mxu0 0.0
    %4196 = vmatpush1.msra.mxu0 0.0
    %4197 = vmatprep.subr.mxu0 0.0
    %4198 = vmatpush1.msra.mxu0 0.0
    %4199 = vmatprep.subr.mxu0 0.0
    %4200 = vmatpush1.msra.mxu0 0.0
    %4201 = vmatprep.subr.mxu0 0.0
    %4202 = vmatpush1.msra.mxu0 0.0
    %4203 = vmatprep.subr.mxu0 0.0
    %4204 = vmatpush1.msra.mxu0 0.0
    %4205 = vmatprep.subr.mxu0 0.0
    %4206 = vmatpush1.msra.mxu0 0.0
    %4207 = vmatprep.subr.mxu0 0.0
    %4208 = vmatpush1.msra.mxu0 0.0
    %4209 = vmatprep.subr.mxu0 0.0
    %4210 = vmatpush1.msra.mxu0 0.0
    %4211 = vmatprep.subr.mxu0 0.0
    %4212 = vmatpush1.msra.mxu0 0.0
    %4213 = vmatprep.subr.mxu0 0.0
    %4214 = vmatpush1.msra.mxu0 0.0
    %4215 = vmatprep.subr.mxu0 0.0
    %4216 = vmatpush1.msra.mxu0 0.0
    %4217 = vmatprep.subr.mxu0 0.0
    %4218 = vmatpush1.msra.mxu0 0.0
    %4219 = vmatprep.subr.mxu0 0.0
    %4220 = vmatpush1.msra.mxu0 0.0
    %4221 = vmatprep.subr.mxu0 0.0
    %4222 = vmatpush1.msra.mxu0 0.0
    %4223 = vmatprep.subr.mxu0 0.0
    %4224 = vmatpush1.msra.mxu0 0.0
    %4225 = vmatprep.subr.mxu0 0.0
    %4226 = vmatpush1.msra.mxu0 0.0
    %4227 = vmatprep.subr.mxu0 0.0
    %4228 = vmatpush1.msra.mxu0 0.0
    %4229 = vmatprep.subr.mxu0 0.0
    %4230 = vmatpush1.msra.mxu0 0.0
    %4231 = vmatprep.subr.mxu0 0.0
    %4232 = vmatpush1.msra.mxu0 0.0
    %4233 = vmatprep.subr.mxu0 0.0
    %4234 = vmatpush1.msra.mxu0 0.0
    %4235 = vmatprep.subr.mxu0 0.0
    %4236 = vmatpush1.msra.mxu0 0.0
    %4237 = vmatprep.subr.mxu0 0.0
    %4238 = vmatpush1.msra.mxu0 0.0
    %4239 = vmatprep.subr.mxu0 0.0
    %4240 = vmatpush1.msra.mxu0 0.0
    %4241 = vmatprep.subr.mxu0 0.0
    %4242 = vmatpush1.msra.mxu0 0.0
    %4243 = vmatprep.subr.mxu0 0.0
    %4244 = vmatpush1.msra.mxu0 0.0
    %4245 = vmatprep.subr.mxu0 0.0
    %4246 = vmatpush1.msra.mxu0 0.0
    %4247 = vmatprep.subr.mxu0 0.0
    %4248 = vmatpush1.msra.mxu0 0.0
    %4249 = vmatprep.subr.mxu0 0.0
    %4250 = vmatpush1.msra.mxu0 0.0
    %4251 = vmatprep.mubr.f32.mxu0 0.0
    %v4252 = vand.u32 %v4139, 4294901760
    %v4253 = vsub.f32 %v4139, %v4252
    %v4254 = vand.u32 %v4253, 4294901760
    %v4255 = vsub.f32 %v4253, %v4254
    %v4256 = vand.u32 %v4255, 4294901760
    %4257 = vmatmul.mubr.f32.gmra.mrb[0].mxu0 %v4256
    %v4258 = vpop.f32.mrb[0].mxu0
    %v4259 = vadd.f32 %v43, %v4258
    %v4260 = vpop.f32.mrb[0].mxu0
    %4261 = vmatprep.mubr.f32.mxu0 0.0
    %v4262 = vand.u32 %v4142, 4294901760
    %v4263 = vsub.f32 %v4142, %v4262
    %v4264 = vand.u32 %v4263, 4294901760
    %v4265 = vsub.f32 %v4263, %v4264
    %v4266 = vand.u32 %v4265, 4294901760
    %4267 = vmatmul.mubr.f32.gmra.mrb[0].mxu0 %v4266
    %v4268 = vpop.f32.mrb[0].mxu0
    %v4269 = vadd.f32 %v43, %v4268
    %v4270 = vpop.f32.mrb[0].mxu0
    %4271 = vmatprep.mubr.f32.mxu0 0.0
    %v4272 = vand.u32 %v4145, 4294901760
    %v4273 = vsub.f32 %v4145, %v4272
    %v4274 = vand.u32 %v4273, 4294901760
    %v4275 = vsub.f32 %v4273, %v4274
    %v4276 = vand.u32 %v4275, 4294901760
    %4277 = vmatmul.mubr.f32.gmra.mrb[0].mxu0 %v4276
    %v4278 = vpop.f32.mrb[0].mxu0
    %v4279 = vadd.f32 %v43, %v4278
    %v4280 = vpop.f32.mrb[0].mxu0
    %4281 = vmatprep.mubr.f32.mxu0 0.0
    %v4282 = vand.u32 %v4148, 4294901760
    %v4283 = vsub.f32 %v4148, %v4282
    %v4284 = vand.u32 %v4283, 4294901760
    %v4285 = vsub.f32 %v4283, %v4284
    %v4286 = vand.u32 %v4285, 4294901760
    %4287 = vmatmul.mubr.f32.gmra.mrb[0].mxu0 %v4286
    %v4288 = vpop.f32.mrb[0].mxu0
    %v4289 = vadd.f32 %v43, %v4288
    %v4290 = vpop.f32.mrb[0].mxu0
    %4291 = vmatprep.mubr.f32.mxu0 0.0
    %v4292 = vand.u32 %v4151, 4294901760
    %v4293 = vsub.f32 %v4151, %v4292
    %v4294 = vand.u32 %v4293, 4294901760
    %v4295 = vsub.f32 %v4293, %v4294
    %v4296 = vand.u32 %v4295, 4294901760
    %4297 = vmatmul.mubr.f32.gmra.mrb[0].mxu0 %v4296
    %v4298 = vpop.f32.mrb[0].mxu0
    %v4299 = vadd.f32 %v43, %v4298
    %v4300 = vpop.f32.mrb[0].mxu0
    %4301 = vmatprep.mubr.f32.mxu0 0.0
    %v4302 = vand.u32 %v4154, 4294901760
    %v4303 = vsub.f32 %v4154, %v4302
    %v4304 = vand.u32 %v4303, 4294901760
    %v4305 = vsub.f32 %v4303, %v4304
    %v4306 = vand.u32 %v4305, 4294901760
    %4307 = vmatmul.mubr.f32.gmra.mrb[0].mxu0 %v4306
    %v4308 = vpop.f32.mrb[0].mxu0
    %v4309 = vadd.f32 %v43, %v4308
    %v4310 = vpop.f32.mrb[0].mxu0
    %4311 = vmatprep.mubr.f32.mxu0 0.0
    %v4312 = vand.u32 %v4157, 4294901760
    %v4313 = vsub.f32 %v4157, %v4312
    %v4314 = vand.u32 %v4313, 4294901760
    %v4315 = vsub.f32 %v4313, %v4314
    %v4316 = vand.u32 %v4315, 4294901760
    %4317 = vmatmul.mubr.f32.gmra.mrb[0].mxu0 %v4316
    %v4318 = vpop.f32.mrb[0].mxu0
    %v4319 = vadd.f32 %v43, %v4318
    %v4320 = vpop.f32.mrb[0].mxu0
    %4321 = vmatprep.mubr.f32.mxu0 0.0
    %v4322 = vand.u32 %v4160, 4294901760
    %v4323 = vsub.f32 %v4160, %v4322
    %v4324 = vand.u32 %v4323, 4294901760
    %v4325 = vsub.f32 %v4323, %v4324
    %v4326 = vand.u32 %v4325, 4294901760
    %4327 = vmatmul.mubr.f32.gmra.mrb[0].mxu0 %v4326
    %v4328 = vpop.f32.mrb[0].mxu0
    %v4329 = vadd.f32 %v43, %v4328
    %v4330 = vpop.f32.mrb[0].mxu0
    %4331 = vmatprep.mubr.f32.mxu0 0.0
    %v4332 = vand.u32 %v4163, 4294901760
    %v4333 = vsub.f32 %v4163, %v4332
    %v4334 = vand.u32 %v4333, 4294901760
    %v4335 = vsub.f32 %v4333, %v4334
    %v4336 = vand.u32 %v4335, 4294901760
    %4337 = vmatmul.mubr.f32.gmra.mrb[0].mxu0 %v4336
    %v4338 = vpop.f32.mrb[0].mxu0
    %v4339 = vadd.f32 %v43, %v4338
    %v4340 = vpop.f32.mrb[0].mxu0
    %4341 = vmatprep.mubr.f32.mxu0 0.0
    %v4342 = vand.u32 %v4166, 4294901760
    %v4343 = vsub.f32 %v4166, %v4342
    %v4344 = vand.u32 %v4343, 4294901760
    %v4345 = vsub.f32 %v4343, %v4344
    %v4346 = vand.u32 %v4345, 4294901760
    %4347 = vmatmul.mubr.f32.gmra.mrb[0].mxu0 %v4346
    %v4348 = vpop.f32.mrb[0].mxu0
    %v4349 = vadd.f32 %v43, %v4348
    %v4350 = vpop.f32.mrb[0].mxu0
    %4351 = vmatprep.mubr.f32.mxu0 0.0
    %v4352 = vand.u32 %v4169, 4294901760
    %v4353 = vsub.f32 %v4169, %v4352
    %v4354 = vand.u32 %v4353, 4294901760
    %v4355 = vsub.f32 %v4353, %v4354
    %v4356 = vand.u32 %v4355, 4294901760
    %4357 = vmatmul.mubr.f32.gmra.mrb[0].mxu0 %v4356
    %v4358 = vpop.f32.mrb[0].mxu0
    %v4359 = vadd.f32 %v43, %v4358
    %v4360 = vpop.f32.mrb[0].mxu0
    %4361 = vmatprep.mubr.f32.mxu0 0.0
    %v4362 = vand.u32 %v4172, 4294901760
    %v4363 = vsub.f32 %v4172, %v4362
    %v4364 = vand.u32 %v4363, 4294901760
    %v4365 = vsub.f32 %v4363, %v4364
    %v4366 = vand.u32 %v4365, 4294901760
    %4367 = vmatmul.mubr.f32.gmra.mrb[0].mxu0 %v4366
    %v4368 = vpop.f32.mrb[0].mxu0
    %v4369 = vadd.f32 %v43, %v4368
    %v4370 = vpop.f32.mrb[0].mxu0
    %4371 = vmatprep.mubr.f32.mxu0 0.0
    %v4372 = vand.u32 %v4175, 4294901760
    %v4373 = vsub.f32 %v4175, %v4372
    %v4374 = vand.u32 %v4373, 4294901760
    %v4375 = vsub.f32 %v4373, %v4374
    %v4376 = vand.u32 %v4375, 4294901760
    %4377 = vmatmul.mubr.f32.gmra.mrb[0].mxu0 %v4376
    %v4378 = vpop.f32.mrb[0].mxu0
    %v4379 = vadd.f32 %v43, %v4378
    %v4380 = vpop.f32.mrb[0].mxu0
    %4381 = vmatprep.mubr.f32.mxu0 0.0
    %v4382 = vand.u32 %v4178, 4294901760
    %v4383 = vsub.f32 %v4178, %v4382
    %v4384 = vand.u32 %v4383, 4294901760
    %v4385 = vsub.f32 %v4383, %v4384
    %v4386 = vand.u32 %v4385, 4294901760
    %4387 = vmatmul.mubr.f32.gmra.mrb[0].mxu0 %v4386
    %v4388 = vpop.f32.mrb[0].mxu0
    %v4389 = vadd.f32 %v43, %v4388
    %v4390 = vpop.f32.mrb[0].mxu0
    %4391 = vmatprep.mubr.f32.mxu0 0.0
    %v4392 = vand.u32 %v4181, 4294901760
    %v4393 = vsub.f32 %v4181, %v4392
    %v4394 = vand.u32 %v4393, 4294901760
    %v4395 = vsub.f32 %v4393, %v4394
    %v4396 = vand.u32 %v4395, 4294901760
    %4397 = vmatmul.mubr.f32.gmra.mrb[0].mxu0 %v4396
    %v4398 = vpop.f32.mrb[0].mxu0
    %v4399 = vadd.f32 %v43, %v4398
    %v4400 = vpop.f32.mrb[0].mxu0
    %4401 = vmatprep.mubr.f32.mxu0 0.0
    %v4402 = vand.u32 %v4184, 4294901760
    %v4403 = vsub.f32 %v4184, %v4402
    %v4404 = vand.u32 %v4403, 4294901760
    %v4405 = vsub.f32 %v4403, %v4404
    %v4406 = vand.u32 %v4405, 4294901760
    %4407 = vmatmul.mubr.f32.gmra.mrb[0].mxu0 %v4406
    %v4408 = vpop.f32.mrb[0].mxu0
    %v4409 = vadd.f32 %v43, %v4408
    %v4410 = vpop.f32.mrb[0].mxu0
    %4411 = vdwg.mxu0
    %4412 = vmatprep.subr.mxu0 0.0
    %v4413 = vand.u32 %v21, 4294901760
    %v4414 = vsub.f32 %v21, %v4413
    %v4415 = vand.u32 %v4414, 4294901760
    %v4416 = vsub.f32 %v4414, %v4415
    %v4417 = vand.u32 %v4416, 4294901760
    %4418 = vmatpush1.msra.mxu0 %v4417
    %4419 = vmatprep.subr.mxu0 0.0
    %4420 = vmatpush1.msra.mxu0 0.0
    %4421 = vmatprep.subr.mxu0 0.0
    %4422 = vmatpush1.msra.mxu0 0.0
    %4423 = vmatprep.subr.mxu0 0.0
    %4424 = vmatpush1.msra.mxu0 0.0
    %4425 = vmatprep.subr.mxu0 0.0
    %4426 = vmatpush1.msra.mxu0 0.0
    %4427 = vmatprep.subr.mxu0 0.0
    %4428 = vmatpush1.msra.mxu0 0.0
    %4429 = vmatprep.subr.mxu0 0.0
    %4430 = vmatpush1.msra.mxu0 0.0
    %4431 = vmatprep.subr.mxu0 0.0
    %4432 = vmatpush1.msra.mxu0 0.0
    %4433 = vmatprep.subr.mxu0 0.0
    %4434 = vmatpush1.msra.mxu0 0.0
    %4435 = vmatprep.subr.mxu0 0.0
    %4436 = vmatpush1.msra.mxu0 0.0
    %4437 = vmatprep.subr.mxu0 0.0
    %4438 = vmatpush1.msra.mxu0 0.0
    %4439 = vmatprep.subr.mxu0 0.0
    %4440 = vmatpush1.msra.mxu0 0.0
    %4441 = vmatprep.subr.mxu0 0.0
    %4442 = vmatpush1.msra.mxu0 0.0
    %4443 = vmatprep.subr.mxu0 0.0
    %4444 = vmatpush1.msra.mxu0 0.0
    %4445 = vmatprep.subr.mxu0 0.0
    %4446 = vmatpush1.msra.mxu0 0.0
    %4447 = vmatprep.subr.mxu0 0.0
    %4448 = vmatpush1.msra.mxu0 0.0
    %4449 = vmatprep.subr.mxu0 0.0
    %4450 = vmatpush1.msra.mxu0 0.0
    %4451 = vmatprep.subr.mxu0 0.0
    %4452 = vmatpush1.msra.mxu0 0.0
    %4453 = vmatprep.subr.mxu0 0.0
    %4454 = vmatpush1.msra.mxu0 0.0
    %4455 = vmatprep.subr.mxu0 0.0
    %4456 = vmatpush1.msra.mxu0 0.0
    %4457 = vmatprep.subr.mxu0 0.0
    %4458 = vmatpush1.msra.mxu0 0.0
    %4459 = vmatprep.subr.mxu0 0.0
    %4460 = vmatpush1.msra.mxu0 0.0
    %4461 = vmatprep.subr.mxu0 0.0
    %4462 = vmatpush1.msra.mxu0 0.0
    %4463 = vmatprep.subr.mxu0 0.0
    %4464 = vmatpush1.msra.mxu0 0.0
    %4465 = vmatprep.subr.mxu0 0.0
    %4466 = vmatpush1.msra.mxu0 0.0
    %4467 = vmatprep.subr.mxu0 0.0
    %4468 = vmatpush1.msra.mxu0 0.0
    %4469 = vmatprep.subr.mxu0 0.0
    %4470 = vmatpush1.msra.mxu0 0.0
    %4471 = vmatprep.subr.mxu0 0.0
    %4472 = vmatpush1.msra.mxu0 0.0
    %4473 = vmatprep.subr.mxu0 0.0
    %4474 = vmatpush1.msra.mxu0 0.0
    %4475 = vmatprep.subr.mxu0 0.0
    %4476 = vmatpush1.msra.mxu0 0.0
    %4477 = vmatprep.subr.mxu0 0.0
    %4478 = vmatpush1.msra.mxu0 0.0
    %4479 = vmatprep.subr.mxu0 0.0
    %4480 = vmatpush1.msra.mxu0 0.0
    %4481 = vmatprep.mubr.f32.mxu0 0.0
    %v4482 = vand.u32 %v4139, 4294901760
    %4483 = vmatmul.mubr.f32.gmra.mrb[0].mxu0 %v4482
    %v4484 = vpop.f32.mrb[0].mxu0
    %v4485 = vadd.f32 %v4259, %v4484
    %v4486 = vpop.f32.mrb[0].mxu0
    %4487 = vmatprep.mubr.f32.mxu0 0.0
    %v4488 = vand.u32 %v4142, 4294901760
    %4489 = vmatmul.mubr.f32.gmra.mrb[0].mxu0 %v4488
    %v4490 = vpop.f32.mrb[0].mxu0
    %v4491 = vadd.f32 %v4269, %v4490
    %v4492 = vpop.f32.mrb[0].mxu0
    %4493 = vmatprep.mubr.f32.mxu0 0.0
    %v4494 = vand.u32 %v4145, 4294901760
    %4495 = vmatmul.mubr.f32.gmra.mrb[0].mxu0 %v4494
    %v4496 = vpop.f32.mrb[0].mxu0
    %v4497 = vadd.f32 %v4279, %v4496
    %v4498 = vpop.f32.mrb[0].mxu0
    %4499 = vmatprep.mubr.f32.mxu0 0.0
    %v4500 = vand.u32 %v4148, 4294901760
    %4501 = vmatmul.mubr.f32.gmra.mrb[0].mxu0 %v4500
    %v4502 = vpop.f32.mrb[0].mxu0
    %v4503 = vadd.f32 %v4289, %v4502
    %v4504 = vpop.f32.mrb[0].mxu0
    %4505 = vmatprep.mubr.f32.mxu0 0.0
    %v4506 = vand.u32 %v4151, 4294901760
    %4507 = vmatmul.mubr.f32.gmra.mrb[0].mxu0 %v4506
    %v4508 = vpop.f32.mrb[0].mxu0
    %v4509 = vadd.f32 %v4299, %v4508
    %v4510 = vpop.f32.mrb[0].mxu0
    %4511 = vmatprep.mubr.f32.mxu0 0.0
    %v4512 = vand.u32 %v4154, 4294901760
    %4513 = vmatmul.mubr.f32.gmra.mrb[0].mxu0 %v4512
    %v4514 = vpop.f32.mrb[0].mxu0
    %v4515 = vadd.f32 %v4309, %v4514
    %v4516 = vpop.f32.mrb[0].mxu0
    %4517 = vmatprep.mubr.f32.mxu0 0.0
    %v4518 = vand.u32 %v4157, 4294901760
    %4519 = vmatmul.mubr.f32.gmra.mrb[0].mxu0 %v4518
    %v4520 = vpop.f32.mrb[0].mxu0
    %v4521 = vadd.f32 %v4319, %v4520
    %v4522 = vpop.f32.mrb[0].mxu0
    %4523 = vmatprep.mubr.f32.mxu0 0.0
    %v4524 = vand.u32 %v4160, 4294901760
    %4525 = vmatmul.mubr.f32.gmra.mrb[0].mxu0 %v4524
    %v4526 = vpop.f32.mrb[0].mxu0
    %v4527 = vadd.f32 %v4329, %v4526
    %v4528 = vpop.f32.mrb[0].mxu0
    %4529 = vmatprep.mubr.f32.mxu0 0.0
    %v4530 = vand.u32 %v4163, 4294901760
    %4531 = vmatmul.mubr.f32.gmra.mrb[0].mxu0 %v4530
    %v4532 = vpop.f32.mrb[0].mxu0
    %v4533 = vadd.f32 %v4339, %v4532
    %v4534 = vpop.f32.mrb[0].mxu0
    %4535 = vmatprep.mubr.f32.mxu0 0.0
    %v4536 = vand.u32 %v4166, 4294901760
    %4537 = vmatmul.mubr.f32.gmra.mrb[0].mxu0 %v4536
    %v4538 = vpop.f32.mrb[0].mxu0
    %v4539 = vadd.f32 %v4349, %v4538
    %v4540 = vpop.f32.mrb[0].mxu0
    %4541 = vmatprep.mubr.f32.mxu0 0.0
    %v4542 = vand.u32 %v4169, 4294901760
    %4543 = vmatmul.mubr.f32.gmra.mrb[0].mxu0 %v4542
    %v4544 = vpop.f32.mrb[0].mxu0
    %v4545 = vadd.f32 %v4359, %v4544
    %v4546 = vpop.f32.mrb[0].mxu0
    %4547 = vmatprep.mubr.f32.mxu0 0.0
    %v4548 = vand.u32 %v4172, 4294901760
    %4549 = vmatmul.mubr.f32.gmra.mrb[0].mxu0 %v4548
    %v4550 = vpop.f32.mrb[0].mxu0
    %v4551 = vadd.f32 %v4369, %v4550
    %v4552 = vpop.f32.mrb[0].mxu0
    %4553 = vmatprep.mubr.f32.mxu0 0.0
    %v4554 = vand.u32 %v4175, 4294901760
    %4555 = vmatmul.mubr.f32.gmra.mrb[0].mxu0 %v4554
    %v4556 = vpop.f32.mrb[0].mxu0
    %v4557 = vadd.f32 %v4379, %v4556
    %v4558 = vpop.f32.mrb[0].mxu0
    %4559 = vmatprep.mubr.f32.mxu0 0.0
    %v4560 = vand.u32 %v4178, 4294901760
    %4561 = vmatmul.mubr.f32.gmra.mrb[0].mxu0 %v4560
    %v4562 = vpop.f32.mrb[0].mxu0
    %v4563 = vadd.f32 %v4389, %v4562
    %v4564 = vpop.f32.mrb[0].mxu0
    %4565 = vmatprep.mubr.f32.mxu0 0.0
    %v4566 = vand.u32 %v4181, 4294901760
    %4567 = vmatmul.mubr.f32.gmra.mrb[0].mxu0 %v4566
    %v4568 = vpop.f32.mrb[0].mxu0
    %v4569 = vadd.f32 %v4399, %v4568
    %v4570 = vpop.f32.mrb[0].mxu0
    %4571 = vmatprep.mubr.f32.mxu0 0.0
    %v4572 = vand.u32 %v4184, 4294901760
    %4573 = vmatmul.mubr.f32.gmra.mrb[0].mxu0 %v4572
    %v4574 = vpop.f32.mrb[0].mxu0
    %v4575 = vadd.f32 %v4409, %v4574
    %v4576 = vpop.f32.mrb[0].mxu0
    %4577 = vdwg.mxu0
    %4578 = vmatprep.subr.mxu0 0.0
    %v4579 = vand.u32 %v21, 4294901760
    %v4580 = vsub.f32 %v21, %v4579
    %4581 = vmatpush1.msra.mxu0 %v4580
    %4582 = vmatprep.subr.mxu0 0.0
    %4583 = vmatpush1.msra.mxu0 0.0
    %4584 = vmatprep.subr.mxu0 0.0
    %4585 = vmatpush1.msra.mxu0 0.0
    %4586 = vmatprep.subr.mxu0 0.0
    %4587 = vmatpush1.msra.mxu0 0.0
    %4588 = vmatprep.subr.mxu0 0.0
    %4589 = vmatpush1.msra.mxu0 0.0
    %4590 = vmatprep.subr.mxu0 0.0
    %4591 = vmatpush1.msra.mxu0 0.0
    %4592 = vmatprep.subr.mxu0 0.0
    %4593 = vmatpush1.msra.mxu0 0.0
    %4594 = vmatprep.subr.mxu0 0.0
    %4595 = vmatpush1.msra.mxu0 0.0
    %4596 = vmatprep.subr.mxu0 0.0
    %4597 = vmatpush1.msra.mxu0 0.0
    %4598 = vmatprep.subr.mxu0 0.0
    %4599 = vmatpush1.msra.mxu0 0.0
    %4600 = vmatprep.subr.mxu0 0.0
    %4601 = vmatpush1.msra.mxu0 0.0
    %4602 = vmatprep.subr.mxu0 0.0
    %4603 = vmatpush1.msra.mxu0 0.0
    %4604 = vmatprep.subr.mxu0 0.0
    %4605 = vmatpush1.msra.mxu0 0.0
    %4606 = vmatprep.subr.mxu0 0.0
    %4607 = vmatpush1.msra.mxu0 0.0
    %4608 = vmatprep.subr.mxu0 0.0
    %4609 = vmatpush1.msra.mxu0 0.0
    %4610 = vmatprep.subr.mxu0 0.0
    %4611 = vmatpush1.msra.mxu0 0.0
    %4612 = vmatprep.subr.mxu0 0.0
    %4613 = vmatpush1.msra.mxu0 0.0
    %4614 = vmatprep.subr.mxu0 0.0
    %4615 = vmatpush1.msra.mxu0 0.0
    %4616 = vmatprep.subr.mxu0 0.0
    %4617 = vmatpush1.msra.mxu0 0.0
    %4618 = vmatprep.subr.mxu0 0.0
    %4619 = vmatpush1.msra.mxu0 0.0
    %4620 = vmatprep.subr.mxu0 0.0
    %4621 = vmatpush1.msra.mxu0 0.0
    %4622 = vmatprep.subr.mxu0 0.0
    %4623 = vmatpush1.msra.mxu0 0.0
    %4624 = vmatprep.subr.mxu0 0.0
    %4625 = vmatpush1.msra.mxu0 0.0
    %4626 = vmatprep.subr.mxu0 0.0
    %4627 = vmatpush1.msra.mxu0 0.0
    %4628 = vmatprep.subr.mxu0 0.0
    %4629 = vmatpush1.msra.mxu0 0.0
    %4630 = vmatprep.subr.mxu0 0.0
    %4631 = vmatpush1.msra.mxu0 0.0
    %4632 = vmatprep.subr.mxu0 0.0
    %4633 = vmatpush1.msra.mxu0 0.0
    %4634 = vmatprep.subr.mxu0 0.0
    %4635 = vmatpush1.msra.mxu0 0.0
    %4636 = vmatprep.subr.mxu0 0.0
    %4637 = vmatpush1.msra.mxu0 0.0
    %4638 = vmatprep.subr.mxu0 0.0
    %4639 = vmatpush1.msra.mxu0 0.0
    %4640 = vmatprep.subr.mxu0 0.0
    %4641 = vmatpush1.msra.mxu0 0.0
    %4642 = vmatprep.subr.mxu0 0.0
    %4643 = vmatpush1.msra.mxu0 0.0
    %4644 = vmatprep.mubr.f32.mxu0 0.0
    %v4645 = vand.u32 %v4139, 4294901760
    %v4646 = vsub.f32 %v4139, %v4645
    %4647 = vmatmul.mubr.f32.gmra.mrb[0].mxu0 %v4646
    %v4648 = vpop.f32.mrb[0].mxu0
    %v4649 = vadd.f32 %v4485, %v4648
    %v4650 = vpop.f32.mrb[0].mxu0
    %4651 = vmatprep.mubr.f32.mxu0 0.0
    %v4652 = vand.u32 %v4142, 4294901760
    %v4653 = vsub.f32 %v4142, %v4652
    %4654 = vmatmul.mubr.f32.gmra.mrb[0].mxu0 %v4653
    %v4655 = vpop.f32.mrb[0].mxu0
    %v4656 = vadd.f32 %v4491, %v4655
    %v4657 = vpop.f32.mrb[0].mxu0
    %4658 = vmatprep.mubr.f32.mxu0 0.0
    %v4659 = vand.u32 %v4145, 4294901760
    %v4660 = vsub.f32 %v4145, %v4659
    %4661 = vmatmul.mubr.f32.gmra.mrb[0].mxu0 %v4660
    %v4662 = vpop.f32.mrb[0].mxu0
    %v4663 = vadd.f32 %v4497, %v4662
    %v4664 = vpop.f32.mrb[0].mxu0
    %4665 = vmatprep.mubr.f32.mxu0 0.0
    %v4666 = vand.u32 %v4148, 4294901760
    %v4667 = vsub.f32 %v4148, %v4666
    %4668 = vmatmul.mubr.f32.gmra.mrb[0].mxu0 %v4667
    %v4669 = vpop.f32.mrb[0].mxu0
    %v4670 = vadd.f32 %v4503, %v4669
    %v4671 = vpop.f32.mrb[0].mxu0
    %4672 = vmatprep.mubr.f32.mxu0 0.0
    %v4673 = vand.u32 %v4151, 4294901760
    %v4674 = vsub.f32 %v4151, %v4673
    %4675 = vmatmul.mubr.f32.gmra.mrb[0].mxu0 %v4674
    %v4676 = vpop.f32.mrb[0].mxu0
    %v4677 = vadd.f32 %v4509, %v4676
    %v4678 = vpop.f32.mrb[0].mxu0
    %4679 = vmatprep.mubr.f32.mxu0 0.0
    %v4680 = vand.u32 %v4154, 4294901760
    %v4681 = vsub.f32 %v4154, %v4680
    %4682 = vmatmul.mubr.f32.gmra.mrb[0].mxu0 %v4681
    %v4683 = vpop.f32.mrb[0].mxu0
    %v4684 = vadd.f32 %v4515, %v4683
    %v4685 = vpop.f32.mrb[0].mxu0
    %4686 = vmatprep.mubr.f32.mxu0 0.0
    %v4687 = vand.u32 %v4157, 4294901760
    %v4688 = vsub.f32 %v4157, %v4687
    %4689 = vmatmul.mubr.f32.gmra.mrb[0].mxu0 %v4688
    %v4690 = vpop.f32.mrb[0].mxu0
    %v4691 = vadd.f32 %v4521, %v4690
    %v4692 = vpop.f32.mrb[0].mxu0
    %4693 = vmatprep.mubr.f32.mxu0 0.0
    %v4694 = vand.u32 %v4160, 4294901760
    %v4695 = vsub.f32 %v4160, %v4694
    %4696 = vmatmul.mubr.f32.gmra.mrb[0].mxu0 %v4695
    %v4697 = vpop.f32.mrb[0].mxu0
    %v4698 = vadd.f32 %v4527, %v4697
    %v4699 = vpop.f32.mrb[0].mxu0
    %4700 = vmatprep.mubr.f32.mxu0 0.0
    %v4701 = vand.u32 %v4163, 4294901760
    %v4702 = vsub.f32 %v4163, %v4701
    %4703 = vmatmul.mubr.f32.gmra.mrb[0].mxu0 %v4702
    %v4704 = vpop.f32.mrb[0].mxu0
    %v4705 = vadd.f32 %v4533, %v4704
    %v4706 = vpop.f32.mrb[0].mxu0
    %4707 = vmatprep.mubr.f32.mxu0 0.0
    %v4708 = vand.u32 %v4166, 4294901760
    %v4709 = vsub.f32 %v4166, %v4708
    %4710 = vmatmul.mubr.f32.gmra.mrb[0].mxu0 %v4709
    %v4711 = vpop.f32.mrb[0].mxu0
    %v4712 = vadd.f32 %v4539, %v4711
    %v4713 = vpop.f32.mrb[0].mxu0
    %4714 = vmatprep.mubr.f32.mxu0 0.0
    %v4715 = vand.u32 %v4169, 4294901760
    %v4716 = vsub.f32 %v4169, %v4715
    %4717 = vmatmul.mubr.f32.gmra.mrb[0].mxu0 %v4716
    %v4718 = vpop.f32.mrb[0].mxu0
    %v4719 = vadd.f32 %v4545, %v4718
    %v4720 = vpop.f32.mrb[0].mxu0
    %4721 = vmatprep.mubr.f32.mxu0 0.0
    %v4722 = vand.u32 %v4172, 4294901760
    %v4723 = vsub.f32 %v4172, %v4722
    %4724 = vmatmul.mubr.f32.gmra.mrb[0].mxu0 %v4723
    %v4725 = vpop.f32.mrb[0].mxu0
    %v4726 = vadd.f32 %v4551, %v4725
    %v4727 = vpop.f32.mrb[0].mxu0
    %4728 = vmatprep.mubr.f32.mxu0 0.0
    %v4729 = vand.u32 %v4175, 4294901760
    %v4730 = vsub.f32 %v4175, %v4729
    %4731 = vmatmul.mubr.f32.gmra.mrb[0].mxu0 %v4730
    %v4732 = vpop.f32.mrb[0].mxu0
    %v4733 = vadd.f32 %v4557, %v4732
    %v4734 = vpop.f32.mrb[0].mxu0
    %4735 = vmatprep.mubr.f32.mxu0 0.0
    %v4736 = vand.u32 %v4178, 4294901760
    %v4737 = vsub.f32 %v4178, %v4736
    %4738 = vmatmul.mubr.f32.gmra.mrb[0].mxu0 %v4737
    %v4739 = vpop.f32.mrb[0].mxu0
    %v4740 = vadd.f32 %v4563, %v4739
    %v4741 = vpop.f32.mrb[0].mxu0
    %4742 = vmatprep.mubr.f32.mxu0 0.0
    %v4743 = vand.u32 %v4181, 4294901760
    %v4744 = vsub.f32 %v4181, %v4743
    %4745 = vmatmul.mubr.f32.gmra.mrb[0].mxu0 %v4744
    %v4746 = vpop.f32.mrb[0].mxu0
    %v4747 = vadd.f32 %v4569, %v4746
    %v4748 = vpop.f32.mrb[0].mxu0
    %4749 = vmatprep.mubr.f32.mxu0 0.0
    %v4750 = vand.u32 %v4184, 4294901760
    %v4751 = vsub.f32 %v4184, %v4750
    %4752 = vmatmul.mubr.f32.gmra.mrb[0].mxu0 %v4751
    %v4753 = vpop.f32.mrb[0].mxu0
    %v4754 = vadd.f32 %v4575, %v4753
    %v4755 = vpop.f32.mrb[0].mxu0
    %4756 = vdwg.mxu0
    %4757 = vmatprep.subr.mxu0 0.0
    %v4758 = vand.u32 %v21, 4294901760
    %4759 = vmatpush1.msra.mxu0 %v4758
    %4760 = vmatprep.subr.mxu0 0.0
    %4761 = vmatpush1.msra.mxu0 0.0
    %4762 = vmatprep.subr.mxu0 0.0
    %4763 = vmatpush1.msra.mxu0 0.0
    %4764 = vmatprep.subr.mxu0 0.0
    %4765 = vmatpush1.msra.mxu0 0.0
    %4766 = vmatprep.subr.mxu0 0.0
    %4767 = vmatpush1.msra.mxu0 0.0
    %4768 = vmatprep.subr.mxu0 0.0
    %4769 = vmatpush1.msra.mxu0 0.0
    %4770 = vmatprep.subr.mxu0 0.0
    %4771 = vmatpush1.msra.mxu0 0.0
    %4772 = vmatprep.subr.mxu0 0.0
    %4773 = vmatpush1.msra.mxu0 0.0
    %4774 = vmatprep.subr.mxu0 0.0
    %4775 = vmatpush1.msra.mxu0 0.0
    %4776 = vmatprep.subr.mxu0 0.0
    %4777 = vmatpush1.msra.mxu0 0.0
    %4778 = vmatprep.subr.mxu0 0.0
    %4779 = vmatpush1.msra.mxu0 0.0
    %4780 = vmatprep.subr.mxu0 0.0
    %4781 = vmatpush1.msra.mxu0 0.0
    %4782 = vmatprep.subr.mxu0 0.0
    %4783 = vmatpush1.msra.mxu0 0.0
    %4784 = vmatprep.subr.mxu0 0.0
    %4785 = vmatpush1.msra.mxu0 0.0
    %4786 = vmatprep.subr.mxu0 0.0
    %4787 = vmatpush1.msra.mxu0 0.0
    %4788 = vmatprep.subr.mxu0 0.0
    %4789 = vmatpush1.msra.mxu0 0.0
    %4790 = vmatprep.subr.mxu0 0.0
    %4791 = vmatpush1.msra.mxu0 0.0
    %4792 = vmatprep.subr.mxu0 0.0
    %4793 = vmatpush1.msra.mxu0 0.0
    %4794 = vmatprep.subr.mxu0 0.0
    %4795 = vmatpush1.msra.mxu0 0.0
    %4796 = vmatprep.subr.mxu0 0.0
    %4797 = vmatpush1.msra.mxu0 0.0
    %4798 = vmatprep.subr.mxu0 0.0
    %4799 = vmatpush1.msra.mxu0 0.0
    %4800 = vmatprep.subr.mxu0 0.0
    %4801 = vmatpush1.msra.mxu0 0.0
    %4802 = vmatprep.subr.mxu0 0.0
    %4803 = vmatpush1.msra.mxu0 0.0
    %4804 = vmatprep.subr.mxu0 0.0
    %4805 = vmatpush1.msra.mxu0 0.0
    %4806 = vmatprep.subr.mxu0 0.0
    %4807 = vmatpush1.msra.mxu0 0.0
    %4808 = vmatprep.subr.mxu0 0.0
    %4809 = vmatpush1.msra.mxu0 0.0
    %4810 = vmatprep.subr.mxu0 0.0
    %4811 = vmatpush1.msra.mxu0 0.0
    %4812 = vmatprep.subr.mxu0 0.0
    %4813 = vmatpush1.msra.mxu0 0.0
    %4814 = vmatprep.subr.mxu0 0.0
    %4815 = vmatpush1.msra.mxu0 0.0
    %4816 = vmatprep.subr.mxu0 0.0
    %4817 = vmatpush1.msra.mxu0 0.0
    %4818 = vmatprep.subr.mxu0 0.0
    %4819 = vmatpush1.msra.mxu0 0.0
    %4820 = vmatprep.subr.mxu0 0.0
    %4821 = vmatpush1.msra.mxu0 0.0
    %4822 = vmatprep.mubr.f32.mxu0 0.0
    %v4823 = vand.u32 %v4139, 4294901760
    %v4824 = vsub.f32 %v4139, %v4823
    %v4825 = vand.u32 %v4824, 4294901760
    %4826 = vmatmul.mubr.f32.gmra.mrb[0].mxu0 %v4825
    %v4827 = vpop.f32.mrb[0].mxu0
    %v4828 = vadd.f32 %v4649, %v4827
    %v4829 = vpop.f32.mrb[0].mxu0
    %4830 = vmatprep.mubr.f32.mxu0 0.0
    %v4831 = vand.u32 %v4142, 4294901760
    %v4832 = vsub.f32 %v4142, %v4831
    %v4833 = vand.u32 %v4832, 4294901760
    %4834 = vmatmul.mubr.f32.gmra.mrb[0].mxu0 %v4833
    %v4835 = vpop.f32.mrb[0].mxu0
    %v4836 = vadd.f32 %v4656, %v4835
    %v4837 = vpop.f32.mrb[0].mxu0
    %4838 = vmatprep.mubr.f32.mxu0 0.0
    %v4839 = vand.u32 %v4145, 4294901760
    %v4840 = vsub.f32 %v4145, %v4839
    %v4841 = vand.u32 %v4840, 4294901760
    %4842 = vmatmul.mubr.f32.gmra.mrb[0].mxu0 %v4841
    %v4843 = vpop.f32.mrb[0].mxu0
    %v4844 = vadd.f32 %v4663, %v4843
    %v4845 = vpop.f32.mrb[0].mxu0
    %4846 = vmatprep.mubr.f32.mxu0 0.0
    %v4847 = vand.u32 %v4148, 4294901760
    %v4848 = vsub.f32 %v4148, %v4847
    %v4849 = vand.u32 %v4848, 4294901760
    %4850 = vmatmul.mubr.f32.gmra.mrb[0].mxu0 %v4849
    %v4851 = vpop.f32.mrb[0].mxu0
    %v4852 = vadd.f32 %v4670, %v4851
    %v4853 = vpop.f32.mrb[0].mxu0
    %4854 = vmatprep.mubr.f32.mxu0 0.0
    %v4855 = vand.u32 %v4151, 4294901760
    %v4856 = vsub.f32 %v4151, %v4855
    %v4857 = vand.u32 %v4856, 4294901760
    %4858 = vmatmul.mubr.f32.gmra.mrb[0].mxu0 %v4857
    %v4859 = vpop.f32.mrb[0].mxu0
    %v4860 = vadd.f32 %v4677, %v4859
    %v4861 = vpop.f32.mrb[0].mxu0
    %4862 = vmatprep.mubr.f32.mxu0 0.0
    %v4863 = vand.u32 %v4154, 4294901760
    %v4864 = vsub.f32 %v4154, %v4863
    %v4865 = vand.u32 %v4864, 4294901760
    %4866 = vmatmul.mubr.f32.gmra.mrb[0].mxu0 %v4865
    %v4867 = vpop.f32.mrb[0].mxu0
    %v4868 = vadd.f32 %v4684, %v4867
    %v4869 = vpop.f32.mrb[0].mxu0
    %4870 = vmatprep.mubr.f32.mxu0 0.0
    %v4871 = vand.u32 %v4157, 4294901760
    %v4872 = vsub.f32 %v4157, %v4871
    %v4873 = vand.u32 %v4872, 4294901760
    %4874 = vmatmul.mubr.f32.gmra.mrb[0].mxu0 %v4873
    %v4875 = vpop.f32.mrb[0].mxu0
    %v4876 = vadd.f32 %v4691, %v4875
    %v4877 = vpop.f32.mrb[0].mxu0
    %4878 = vmatprep.mubr.f32.mxu0 0.0
    %v4879 = vand.u32 %v4160, 4294901760
    %v4880 = vsub.f32 %v4160, %v4879
    %v4881 = vand.u32 %v4880, 4294901760
    %4882 = vmatmul.mubr.f32.gmra.mrb[0].mxu0 %v4881
    %v4883 = vpop.f32.mrb[0].mxu0
    %v4884 = vadd.f32 %v4698, %v4883
    %v4885 = vpop.f32.mrb[0].mxu0
    %4886 = vmatprep.mubr.f32.mxu0 0.0
    %v4887 = vand.u32 %v4163, 4294901760
    %v4888 = vsub.f32 %v4163, %v4887
    %v4889 = vand.u32 %v4888, 4294901760
    %4890 = vmatmul.mubr.f32.gmra.mrb[0].mxu0 %v4889
    %v4891 = vpop.f32.mrb[0].mxu0
    %v4892 = vadd.f32 %v4705, %v4891
    %v4893 = vpop.f32.mrb[0].mxu0
    %4894 = vmatprep.mubr.f32.mxu0 0.0
    %v4895 = vand.u32 %v4166, 4294901760
    %v4896 = vsub.f32 %v4166, %v4895
    %v4897 = vand.u32 %v4896, 4294901760
    %4898 = vmatmul.mubr.f32.gmra.mrb[0].mxu0 %v4897
    %v4899 = vpop.f32.mrb[0].mxu0
    %v4900 = vadd.f32 %v4712, %v4899
    %v4901 = vpop.f32.mrb[0].mxu0
    %4902 = vmatprep.mubr.f32.mxu0 0.0
    %v4903 = vand.u32 %v4169, 4294901760
    %v4904 = vsub.f32 %v4169, %v4903
    %v4905 = vand.u32 %v4904, 4294901760
    %4906 = vmatmul.mubr.f32.gmra.mrb[0].mxu0 %v4905
    %v4907 = vpop.f32.mrb[0].mxu0
    %v4908 = vadd.f32 %v4719, %v4907
    %v4909 = vpop.f32.mrb[0].mxu0
    %4910 = vmatprep.mubr.f32.mxu0 0.0
    %v4911 = vand.u32 %v4172, 4294901760
    %v4912 = vsub.f32 %v4172, %v4911
    %v4913 = vand.u32 %v4912, 4294901760
    %4914 = vmatmul.mubr.f32.gmra.mrb[0].mxu0 %v4913
    %v4915 = vpop.f32.mrb[0].mxu0
    %v4916 = vadd.f32 %v4726, %v4915
    %v4917 = vpop.f32.mrb[0].mxu0
    %4918 = vmatprep.mubr.f32.mxu0 0.0
    %v4919 = vand.u32 %v4175, 4294901760
    %v4920 = vsub.f32 %v4175, %v4919
    %v4921 = vand.u32 %v4920, 4294901760
    %4922 = vmatmul.mubr.f32.gmra.mrb[0].mxu0 %v4921
    %v4923 = vpop.f32.mrb[0].mxu0
    %v4924 = vadd.f32 %v4733, %v4923
    %v4925 = vpop.f32.mrb[0].mxu0
    %4926 = vmatprep.mubr.f32.mxu0 0.0
    %v4927 = vand.u32 %v4178, 4294901760
    %v4928 = vsub.f32 %v4178, %v4927
    %v4929 = vand.u32 %v4928, 4294901760
    %4930 = vmatmul.mubr.f32.gmra.mrb[0].mxu0 %v4929
    %v4931 = vpop.f32.mrb[0].mxu0
    %v4932 = vadd.f32 %v4740, %v4931
    %v4933 = vpop.f32.mrb[0].mxu0
    %4934 = vmatprep.mubr.f32.mxu0 0.0
    %v4935 = vand.u32 %v4181, 4294901760
    %v4936 = vsub.f32 %v4181, %v4935
    %v4937 = vand.u32 %v4936, 4294901760
    %4938 = vmatmul.mubr.f32.gmra.mrb[0].mxu0 %v4937
    %v4939 = vpop.f32.mrb[0].mxu0
    %v4940 = vadd.f32 %v4747, %v4939
    %v4941 = vpop.f32.mrb[0].mxu0
    %4942 = vmatprep.mubr.f32.mxu0 0.0
    %v4943 = vand.u32 %v4184, 4294901760
    %v4944 = vsub.f32 %v4184, %v4943
    %v4945 = vand.u32 %v4944, 4294901760
    %4946 = vmatmul.mubr.f32.gmra.mrb[0].mxu0 %v4945
    %v4947 = vpop.f32.mrb[0].mxu0
    %v4948 = vadd.f32 %v4754, %v4947
    %v4949 = vpop.f32.mrb[0].mxu0
    %4950 = vdwg.mxu0
    %4951 = vmatprep.subr.mxu0 0.0
    %v4952 = vand.u32 %v21, 4294901760
    %v4953 = vsub.f32 %v21, %v4952
    %v4954 = vand.u32 %v4953, 4294901760
    %4955 = vmatpush1.msra.mxu0 %v4954
    %4956 = vmatprep.subr.mxu0 0.0
    %4957 = vmatpush1.msra.mxu0 0.0
    %4958 = vmatprep.subr.mxu0 0.0
    %4959 = vmatpush1.msra.mxu0 0.0
    %4960 = vmatprep.subr.mxu0 0.0
    %4961 = vmatpush1.msra.mxu0 0.0
    %4962 = vmatprep.subr.mxu0 0.0
    %4963 = vmatpush1.msra.mxu0 0.0
    %4964 = vmatprep.subr.mxu0 0.0
    %4965 = vmatpush1.msra.mxu0 0.0
    %4966 = vmatprep.subr.mxu0 0.0
    %4967 = vmatpush1.msra.mxu0 0.0
    %4968 = vmatprep.subr.mxu0 0.0
    %4969 = vmatpush1.msra.mxu0 0.0
    %4970 = vmatprep.subr.mxu0 0.0
    %4971 = vmatpush1.msra.mxu0 0.0
    %4972 = vmatprep.subr.mxu0 0.0
    %4973 = vmatpush1.msra.mxu0 0.0
    %4974 = vmatprep.subr.mxu0 0.0
    %4975 = vmatpush1.msra.mxu0 0.0
    %4976 = vmatprep.subr.mxu0 0.0
    %4977 = vmatpush1.msra.mxu0 0.0
    %4978 = vmatprep.subr.mxu0 0.0
    %4979 = vmatpush1.msra.mxu0 0.0
    %4980 = vmatprep.subr.mxu0 0.0
    %4981 = vmatpush1.msra.mxu0 0.0
    %4982 = vmatprep.subr.mxu0 0.0
    %4983 = vmatpush1.msra.mxu0 0.0
    %4984 = vmatprep.subr.mxu0 0.0
    %4985 = vmatpush1.msra.mxu0 0.0
    %4986 = vmatprep.subr.mxu0 0.0
    %4987 = vmatpush1.msra.mxu0 0.0
    %4988 = vmatprep.subr.mxu0 0.0
    %4989 = vmatpush1.msra.mxu0 0.0
    %4990 = vmatprep.subr.mxu0 0.0
    %4991 = vmatpush1.msra.mxu0 0.0
    %4992 = vmatprep.subr.mxu0 0.0
    %4993 = vmatpush1.msra.mxu0 0.0
    %4994 = vmatprep.subr.mxu0 0.0
    %4995 = vmatpush1.msra.mxu0 0.0
    %4996 = vmatprep.subr.mxu0 0.0
    %4997 = vmatpush1.msra.mxu0 0.0
    %4998 = vmatprep.subr.mxu0 0.0
    %4999 = vmatpush1.msra.mxu0 0.0
    %5000 = vmatprep.subr.mxu0 0.0
    %5001 = vmatpush1.msra.mxu0 0.0
    %5002 = vmatprep.subr.mxu0 0.0
    %5003 = vmatpush1.msra.mxu0 0.0
    %5004 = vmatprep.subr.mxu0 0.0
    %5005 = vmatpush1.msra.mxu0 0.0
    %5006 = vmatprep.subr.mxu0 0.0
    %5007 = vmatpush1.msra.mxu0 0.0
    %5008 = vmatprep.subr.mxu0 0.0
    %5009 = vmatpush1.msra.mxu0 0.0
    %5010 = vmatprep.subr.mxu0 0.0
    %5011 = vmatpush1.msra.mxu0 0.0
    %5012 = vmatprep.subr.mxu0 0.0
    %5013 = vmatpush1.msra.mxu0 0.0
    %5014 = vmatprep.subr.mxu0 0.0
    %5015 = vmatpush1.msra.mxu0 0.0
    %5016 = vmatprep.subr.mxu0 0.0
    %5017 = vmatpush1.msra.mxu0 0.0
    %5018 = vmatprep.mubr.f32.mxu0 0.0
    %v5019 = vand.u32 %v4139, 4294901760
    %5020 = vmatmul.mubr.f32.gmra.mrb[0].mxu0 %v5019
    %v5021 = vpop.f32.mrb[0].mxu0
    %v5022 = vadd.f32 %v4828, %v5021
    %v5023 = vpop.f32.mrb[0].mxu0
    %5024 = vmatprep.mubr.f32.mxu0 0.0
    %v5025 = vand.u32 %v4142, 4294901760
    %5026 = vmatmul.mubr.f32.gmra.mrb[0].mxu0 %v5025
    %v5027 = vpop.f32.mrb[0].mxu0
    %v5028 = vadd.f32 %v4836, %v5027
    %v5029 = vpop.f32.mrb[0].mxu0
    %5030 = vmatprep.mubr.f32.mxu0 0.0
    %v5031 = vand.u32 %v4145, 4294901760
    %5032 = vmatmul.mubr.f32.gmra.mrb[0].mxu0 %v5031
    %v5033 = vpop.f32.mrb[0].mxu0
    %v5034 = vadd.f32 %v4844, %v5033
    %v5035 = vpop.f32.mrb[0].mxu0
    %5036 = vmatprep.mubr.f32.mxu0 0.0
    %v5037 = vand.u32 %v4148, 4294901760
    %5038 = vmatmul.mubr.f32.gmra.mrb[0].mxu0 %v5037
    %v5039 = vpop.f32.mrb[0].mxu0
    %v5040 = vadd.f32 %v4852, %v5039
    %v5041 = vpop.f32.mrb[0].mxu0
    %5042 = vmatprep.mubr.f32.mxu0 0.0
    %v5043 = vand.u32 %v4151, 4294901760
    %5044 = vmatmul.mubr.f32.gmra.mrb[0].mxu0 %v5043
    %v5045 = vpop.f32.mrb[0].mxu0
    %v5046 = vadd.f32 %v4860, %v5045
    %v5047 = vpop.f32.mrb[0].mxu0
    %5048 = vmatprep.mubr.f32.mxu0 0.0
    %v5049 = vand.u32 %v4154, 4294901760
    %5050 = vmatmul.mubr.f32.gmra.mrb[0].mxu0 %v5049
    %v5051 = vpop.f32.mrb[0].mxu0
    %v5052 = vadd.f32 %v4868, %v5051
    %v5053 = vpop.f32.mrb[0].mxu0
    %5054 = vmatprep.mubr.f32.mxu0 0.0
    %v5055 = vand.u32 %v4157, 4294901760
    %5056 = vmatmul.mubr.f32.gmra.mrb[0].mxu0 %v5055
    %v5057 = vpop.f32.mrb[0].mxu0
    %v5058 = vadd.f32 %v4876, %v5057
    %v5059 = vpop.f32.mrb[0].mxu0
    %5060 = vmatprep.mubr.f32.mxu0 0.0
    %v5061 = vand.u32 %v4160, 4294901760
    %5062 = vmatmul.mubr.f32.gmra.mrb[0].mxu0 %v5061
    %v5063 = vpop.f32.mrb[0].mxu0
    %v5064 = vadd.f32 %v4884, %v5063
    %v5065 = vpop.f32.mrb[0].mxu0
    %5066 = vmatprep.mubr.f32.mxu0 0.0
    %v5067 = vand.u32 %v4163, 4294901760
    %5068 = vmatmul.mubr.f32.gmra.mrb[0].mxu0 %v5067
    %v5069 = vpop.f32.mrb[0].mxu0
    %v5070 = vadd.f32 %v4892, %v5069
    %v5071 = vpop.f32.mrb[0].mxu0
    %5072 = vmatprep.mubr.f32.mxu0 0.0
    %v5073 = vand.u32 %v4166, 4294901760
    %5074 = vmatmul.mubr.f32.gmra.mrb[0].mxu0 %v5073
    %v5075 = vpop.f32.mrb[0].mxu0
    %v5076 = vadd.f32 %v4900, %v5075
    %v5077 = vpop.f32.mrb[0].mxu0
    %5078 = vmatprep.mubr.f32.mxu0 0.0
    %v5079 = vand.u32 %v4169, 4294901760
    %5080 = vmatmul.mubr.f32.gmra.mrb[0].mxu0 %v5079
    %v5081 = vpop.f32.mrb[0].mxu0
    %v5082 = vadd.f32 %v4908, %v5081
    %v5083 = vpop.f32.mrb[0].mxu0
    %5084 = vmatprep.mubr.f32.mxu0 0.0
    %v5085 = vand.u32 %v4172, 4294901760
    %5086 = vmatmul.mubr.f32.gmra.mrb[0].mxu0 %v5085
    %v5087 = vpop.f32.mrb[0].mxu0
    %v5088 = vadd.f32 %v4916, %v5087
    %v5089 = vpop.f32.mrb[0].mxu0
    %5090 = vmatprep.mubr.f32.mxu0 0.0
    %v5091 = vand.u32 %v4175, 4294901760
    %5092 = vmatmul.mubr.f32.gmra.mrb[0].mxu0 %v5091
    %v5093 = vpop.f32.mrb[0].mxu0
    %v5094 = vadd.f32 %v4924, %v5093
    %v5095 = vpop.f32.mrb[0].mxu0
    %5096 = vmatprep.mubr.f32.mxu0 0.0
    %v5097 = vand.u32 %v4178, 4294901760
    %5098 = vmatmul.mubr.f32.gmra.mrb[0].mxu0 %v5097
    %v5099 = vpop.f32.mrb[0].mxu0
    %v5100 = vadd.f32 %v4932, %v5099
    %v5101 = vpop.f32.mrb[0].mxu0
    %5102 = vmatprep.mubr.f32.mxu0 0.0
    %v5103 = vand.u32 %v4181, 4294901760
    %5104 = vmatmul.mubr.f32.gmra.mrb[0].mxu0 %v5103
    %v5105 = vpop.f32.mrb[0].mxu0
    %v5106 = vadd.f32 %v4940, %v5105
    %v5107 = vpop.f32.mrb[0].mxu0
    %5108 = vmatprep.mubr.f32.mxu0 0.0
    %v5109 = vand.u32 %v4184, 4294901760
    %5110 = vmatmul.mubr.f32.gmra.mrb[0].mxu0 %v5109
    %v5111 = vpop.f32.mrb[0].mxu0
    %v5112 = vadd.f32 %v4948, %v5111
    %v5113 = vpop.f32.mrb[0].mxu0
    %5114 = vdwg.mxu0
    %5115 = vmatprep.subr.mxu0 0.0
    %v5116 = vand.u32 %v21, 4294901760
    %5117 = vmatpush1.msra.mxu0 %v5116
    %5118 = vmatprep.subr.mxu0 0.0
    %5119 = vmatpush1.msra.mxu0 0.0
    %5120 = vmatprep.subr.mxu0 0.0
    %5121 = vmatpush1.msra.mxu0 0.0
    %5122 = vmatprep.subr.mxu0 0.0
    %5123 = vmatpush1.msra.mxu0 0.0
    %5124 = vmatprep.subr.mxu0 0.0
    %5125 = vmatpush1.msra.mxu0 0.0
    %5126 = vmatprep.subr.mxu0 0.0
    %5127 = vmatpush1.msra.mxu0 0.0
    %5128 = vmatprep.subr.mxu0 0.0
    %5129 = vmatpush1.msra.mxu0 0.0
    %5130 = vmatprep.subr.mxu0 0.0
    %5131 = vmatpush1.msra.mxu0 0.0
    %5132 = vmatprep.subr.mxu0 0.0
    %5133 = vmatpush1.msra.mxu0 0.0
    %5134 = vmatprep.subr.mxu0 0.0
    %5135 = vmatpush1.msra.mxu0 0.0
    %5136 = vmatprep.subr.mxu0 0.0
    %5137 = vmatpush1.msra.mxu0 0.0
    %5138 = vmatprep.subr.mxu0 0.0
    %5139 = vmatpush1.msra.mxu0 0.0
    %5140 = vmatprep.subr.mxu0 0.0
    %5141 = vmatpush1.msra.mxu0 0.0
    %5142 = vmatprep.subr.mxu0 0.0
    %5143 = vmatpush1.msra.mxu0 0.0
    %5144 = vmatprep.subr.mxu0 0.0
    %5145 = vmatpush1.msra.mxu0 0.0
    %5146 = vmatprep.subr.mxu0 0.0
    %5147 = vmatpush1.msra.mxu0 0.0
    %5148 = vmatprep.subr.mxu0 0.0
    %5149 = vmatpush1.msra.mxu0 0.0
    %5150 = vmatprep.subr.mxu0 0.0
    %5151 = vmatpush1.msra.mxu0 0.0
    %5152 = vmatprep.subr.mxu0 0.0
    %5153 = vmatpush1.msra.mxu0 0.0
    %5154 = vmatprep.subr.mxu0 0.0
    %5155 = vmatpush1.msra.mxu0 0.0
    %5156 = vmatprep.subr.mxu0 0.0
    %5157 = vmatpush1.msra.mxu0 0.0
    %5158 = vmatprep.subr.mxu0 0.0
    %5159 = vmatpush1.msra.mxu0 0.0
    %5160 = vmatprep.subr.mxu0 0.0
    %5161 = vmatpush1.msra.mxu0 0.0
    %5162 = vmatprep.subr.mxu0 0.0
    %5163 = vmatpush1.msra.mxu0 0.0
    %5164 = vmatprep.subr.mxu0 0.0
    %5165 = vmatpush1.msra.mxu0 0.0
    %5166 = vmatprep.subr.mxu0 0.0
    %5167 = vmatpush1.msra.mxu0 0.0
    %5168 = vmatprep.subr.mxu0 0.0
    %5169 = vmatpush1.msra.mxu0 0.0
    %5170 = vmatprep.subr.mxu0 0.0
    %5171 = vmatpush1.msra.mxu0 0.0
    %5172 = vmatprep.subr.mxu0 0.0
    %5173 = vmatpush1.msra.mxu0 0.0
    %5174 = vmatprep.subr.mxu0 0.0
    %5175 = vmatpush1.msra.mxu0 0.0
    %5176 = vmatprep.subr.mxu0 0.0
    %5177 = vmatpush1.msra.mxu0 0.0
    %5178 = vmatprep.subr.mxu0 0.0
    %5179 = vmatpush1.msra.mxu0 0.0
    %5180 = vmatprep.mubr.f32.mxu0 0.0
    %v5181 = vand.u32 %v4139, 4294901760
    %5182 = vmatmul.mubr.f32.gmra.mrb[0].mxu0 %v5181
    %v5183 = vpop.f32.mrb[0].mxu0
    %v5184 = vadd.f32 %v5022, %v5183
    %v5185 = vpop.f32.mrb[0].mxu0
    %5186 = vmatprep.mubr.f32.mxu0 0.0
    %v5187 = vand.u32 %v4142, 4294901760
    %5188 = vmatmul.mubr.f32.gmra.mrb[0].mxu0 %v5187
    %v5189 = vpop.f32.mrb[0].mxu0
    %v5190 = vadd.f32 %v5028, %v5189
    %v5191 = vpop.f32.mrb[0].mxu0
    %5192 = vmatprep.mubr.f32.mxu0 0.0
    %v5193 = vand.u32 %v4145, 4294901760
    %5194 = vmatmul.mubr.f32.gmra.mrb[0].mxu0 %v5193
    %v5195 = vpop.f32.mrb[0].mxu0
    %v5196 = vadd.f32 %v5034, %v5195
    %v5197 = vpop.f32.mrb[0].mxu0
    %5198 = vmatprep.mubr.f32.mxu0 0.0
    %v5199 = vand.u32 %v4148, 4294901760
    %5200 = vmatmul.mubr.f32.gmra.mrb[0].mxu0 %v5199
    %v5201 = vpop.f32.mrb[0].mxu0
    %v5202 = vadd.f32 %v5040, %v5201
    %v5203 = vpop.f32.mrb[0].mxu0
    %5204 = vmatprep.mubr.f32.mxu0 0.0
    %v5205 = vand.u32 %v4151, 4294901760
    %5206 = vmatmul.mubr.f32.gmra.mrb[0].mxu0 %v5205
    %v5207 = vpop.f32.mrb[0].mxu0
    %v5208 = vadd.f32 %v5046, %v5207
    %v5209 = vpop.f32.mrb[0].mxu0
    %5210 = vmatprep.mubr.f32.mxu0 0.0
    %v5211 = vand.u32 %v4154, 4294901760
    %5212 = vmatmul.mubr.f32.gmra.mrb[0].mxu0 %v5211
    %v5213 = vpop.f32.mrb[0].mxu0
    %v5214 = vadd.f32 %v5052, %v5213
    %v5215 = vpop.f32.mrb[0].mxu0
    %5216 = vmatprep.mubr.f32.mxu0 0.0
    %v5217 = vand.u32 %v4157, 4294901760
    %5218 = vmatmul.mubr.f32.gmra.mrb[0].mxu0 %v5217
    %v5219 = vpop.f32.mrb[0].mxu0
    %v5220 = vadd.f32 %v5058, %v5219
    %v5221 = vpop.f32.mrb[0].mxu0
    %5222 = vmatprep.mubr.f32.mxu0 0.0
    %v5223 = vand.u32 %v4160, 4294901760
    %5224 = vmatmul.mubr.f32.gmra.mrb[0].mxu0 %v5223
    %v5225 = vpop.f32.mrb[0].mxu0
    %v5226 = vadd.f32 %v5064, %v5225
    %v5227 = vpop.f32.mrb[0].mxu0
    %5228 = vmatprep.mubr.f32.mxu0 0.0
    %v5229 = vand.u32 %v4163, 4294901760
    %5230 = vmatmul.mubr.f32.gmra.mrb[0].mxu0 %v5229
    %v5231 = vpop.f32.mrb[0].mxu0
    %v5232 = vadd.f32 %v5070, %v5231
    %v5233 = vpop.f32.mrb[0].mxu0
    %5234 = vmatprep.mubr.f32.mxu0 0.0
    %v5235 = vand.u32 %v4166, 4294901760
    %5236 = vmatmul.mubr.f32.gmra.mrb[0].mxu0 %v5235
    %v5237 = vpop.f32.mrb[0].mxu0
    %v5238 = vadd.f32 %v5076, %v5237
    %v5239 = vpop.f32.mrb[0].mxu0
    %5240 = vmatprep.mubr.f32.mxu0 0.0
    %v5241 = vand.u32 %v4169, 4294901760
    %5242 = vmatmul.mubr.f32.gmra.mrb[0].mxu0 %v5241
    %v5243 = vpop.f32.mrb[0].mxu0
    %v5244 = vadd.f32 %v5082, %v5243
    %v5245 = vpop.f32.mrb[0].mxu0
    %5246 = vmatprep.mubr.f32.mxu0 0.0
    %v5247 = vand.u32 %v4172, 4294901760
    %5248 = vmatmul.mubr.f32.gmra.mrb[0].mxu0 %v5247
    %v5249 = vpop.f32.mrb[0].mxu0
    %v5250 = vadd.f32 %v5088, %v5249
    %v5251 = vpop.f32.mrb[0].mxu0
    %5252 = vmatprep.mubr.f32.mxu0 0.0
    %v5253 = vand.u32 %v4175, 4294901760
    %5254 = vmatmul.mubr.f32.gmra.mrb[0].mxu0 %v5253
    %v5255 = vpop.f32.mrb[0].mxu0
    %v5256 = vadd.f32 %v5094, %v5255
    %v5257 = vpop.f32.mrb[0].mxu0
    %5258 = vmatprep.mubr.f32.mxu0 0.0
    %v5259 = vand.u32 %v4178, 4294901760
    %5260 = vmatmul.mubr.f32.gmra.mrb[0].mxu0 %v5259
    %v5261 = vpop.f32.mrb[0].mxu0
    %v5262 = vadd.f32 %v5100, %v5261
    %v5263 = vpop.f32.mrb[0].mxu0
    %5264 = vmatprep.mubr.f32.mxu0 0.0
    %v5265 = vand.u32 %v4181, 4294901760
    %5266 = vmatmul.mubr.f32.gmra.mrb[0].mxu0 %v5265
    %v5267 = vpop.f32.mrb[0].mxu0
    %v5268 = vadd.f32 %v5106, %v5267
    %v5269 = vpop.f32.mrb[0].mxu0
    %5270 = vmatprep.mubr.f32.mxu0 0.0
    %v5271 = vand.u32 %v4184, 4294901760
    %5272 = vmatmul.mubr.f32.gmra.mrb[0].mxu0 %v5271
    %v5273 = vpop.f32.mrb[0].mxu0
    %v5274 = vadd.f32 %v5112, %v5273
    %v5275 = vpop.f32.mrb[0].mxu0
    %5276 = vdwg.mxu0
    %v5277 = vsel %vm45, %v5184, -inf
    %5278 = vmax.xlane.f32.xlu0 %v5277
    %v5279 = vpop.xlane.xlu0 %5278
    %v5280 = vsel %vm45, %v5190, -inf
    %5281 = vmax.xlane.f32.xlu0 %v5280
    %v5282 = vpop.xlane.xlu0 %5281
    %v5283 = vsel %vm45, %v5196, -inf
    %5284 = vmax.xlane.f32.xlu0 %v5283
    %v5285 = vpop.xlane.xlu0 %5284
    %v5286 = vsel %vm45, %v5202, -inf
    %5287 = vmax.xlane.f32.xlu0 %v5286
    %v5288 = vpop.xlane.xlu0 %5287
    %v5289 = vsel %vm45, %v5208, -inf
    %5290 = vmax.xlane.f32.xlu0 %v5289
    %v5291 = vpop.xlane.xlu0 %5290
    %v5292 = vsel %vm45, %v5214, -inf
    %5293 = vmax.xlane.f32.xlu0 %v5292
    %v5294 = vpop.xlane.xlu0 %5293
    %v5295 = vsel %vm45, %v5220, -inf
    %5296 = vmax.xlane.f32.xlu0 %v5295
    %v5297 = vpop.xlane.xlu0 %5296
    %v5298 = vsel %vm45, %v5226, -inf
    %5299 = vmax.xlane.f32.xlu0 %v5298
    %v5300 = vpop.xlane.xlu0 %5299
    %v5301 = vsel %vm45, %v5232, -inf
    %5302 = vmax.xlane.f32.xlu0 %v5301
    %v5303 = vpop.xlane.xlu0 %5302
    %v5304 = vsel %vm45, %v5238, -inf
    %5305 = vmax.xlane.f32.xlu0 %v5304
    %v5306 = vpop.xlane.xlu0 %5305
    %v5307 = vsel %vm45, %v5244, -inf
    %5308 = vmax.xlane.f32.xlu0 %v5307
    %v5309 = vpop.xlane.xlu0 %5308
    %v5310 = vsel %vm45, %v5250, -inf
    %5311 = vmax.xlane.f32.xlu0 %v5310
    %v5312 = vpop.xlane.xlu0 %5311
    %v5313 = vsel %vm45, %v5256, -inf
    %5314 = vmax.xlane.f32.xlu0 %v5313
    %v5315 = vpop.xlane.xlu0 %5314
    %v5316 = vsel %vm45, %v5262, -inf
    %5317 = vmax.xlane.f32.xlu0 %v5316
    %v5318 = vpop.xlane.xlu0 %5317
    %v5319 = vsel %vm45, %v5268, -inf
    %5320 = vmax.xlane.f32.xlu0 %v5319
    %v5321 = vpop.xlane.xlu0 %5320
    %v5322 = vsel %vm45, %v5274, -inf
    %5323 = vmax.xlane.f32.xlu0 %v5322
    %v5324 = vpop.xlane.xlu0 %5323
    %v5325 = vsub.f32 %v5184, %v5279
    %v5326 = vsub.f32 %v5190, %v5282
    %v5327 = vsub.f32 %v5196, %v5285
    %v5328 = vsub.f32 %v5202, %v5288
    %v5329 = vsub.f32 %v5208, %v5291
    %v5330 = vsub.f32 %v5214, %v5294
    %v5331 = vsub.f32 %v5220, %v5297
    %v5332 = vsub.f32 %v5226, %v5300
    %v5333 = vsub.f32 %v5232, %v5303
    %v5334 = vsub.f32 %v5238, %v5306
    %v5335 = vsub.f32 %v5244, %v5309
    %v5336 = vsub.f32 %v5250, %v5312
    %v5337 = vsub.f32 %v5256, %v5315
    %v5338 = vsub.f32 %v5262, %v5318
    %v5339 = vsub.f32 %v5268, %v5321
    %v5340 = vsub.f32 %v5274, %v5324
    %v5341 = vmul.f32 %v5325, 1.442695
    %v5342 = vpow.pop %v5341
    %v5343 = vmul.f32 %v5326, 1.442695
    %v5344 = vpow.pop %v5343
    %v5345 = vmul.f32 %v5327, 1.442695
    %v5346 = vpow.pop %v5345
    %v5347 = vmul.f32 %v5328, 1.442695
    %v5348 = vpow.pop %v5347
    %v5349 = vmul.f32 %v5329, 1.442695
    %v5350 = vpow.pop %v5349
    %v5351 = vmul.f32 %v5330, 1.442695
    %v5352 = vpow.pop %v5351
    %v5353 = vmul.f32 %v5331, 1.442695
    %v5354 = vpow.pop %v5353
    %v5355 = vmul.f32 %v5332, 1.442695
    %v5356 = vpow.pop %v5355
    %v5357 = vmul.f32 %v5333, 1.442695
    %v5358 = vpow.pop %v5357
    %v5359 = vmul.f32 %v5334, 1.442695
    %v5360 = vpow.pop %v5359
    %v5361 = vmul.f32 %v5335, 1.442695
    %v5362 = vpow.pop %v5361
    %v5363 = vmul.f32 %v5336, 1.442695
    %v5364 = vpow.pop %v5363
    %v5365 = vmul.f32 %v5337, 1.442695
    %v5366 = vpow.pop %v5365
    %v5367 = vmul.f32 %v5338, 1.442695
    %v5368 = vpow.pop %v5367
    %v5369 = vmul.f32 %v5339, 1.442695
    %v5370 = vpow.pop %v5369
    %v5371 = vmul.f32 %v5340, 1.442695
    %v5372 = vpow.pop %v5371
    %v5373 = vsel %vm45, %v5342, 0.0
    %5374 = vadd.xlane.f32.xlu0 %v5373
    %v5375 = vpop.xlane.xlu0 %5374
    %v5376 = vsel %vm45, %v5344, 0.0
    %5377 = vadd.xlane.f32.xlu0 %v5376
    %v5378 = vpop.xlane.xlu0 %5377
    %v5379 = vsel %vm45, %v5346, 0.0
    %5380 = vadd.xlane.f32.xlu0 %v5379
    %v5381 = vpop.xlane.xlu0 %5380
    %v5382 = vsel %vm45, %v5348, 0.0
    %5383 = vadd.xlane.f32.xlu0 %v5382
    %v5384 = vpop.xlane.xlu0 %5383
    %v5385 = vsel %vm45, %v5350, 0.0
    %5386 = vadd.xlane.f32.xlu0 %v5385
    %v5387 = vpop.xlane.xlu0 %5386
    %v5388 = vsel %vm45, %v5352, 0.0
    %5389 = vadd.xlane.f32.xlu0 %v5388
    %v5390 = vpop.xlane.xlu0 %5389
    %v5391 = vsel %vm45, %v5354, 0.0
    %5392 = vadd.xlane.f32.xlu0 %v5391
    %v5393 = vpop.xlane.xlu0 %5392
    %v5394 = vsel %vm45, %v5356, 0.0
    %5395 = vadd.xlane.f32.xlu0 %v5394
    %v5396 = vpop.xlane.xlu0 %5395
    %v5397 = vsel %vm45, %v5358, 0.0
    %5398 = vadd.xlane.f32.xlu0 %v5397
    %v5399 = vpop.xlane.xlu0 %5398
    %v5400 = vsel %vm45, %v5360, 0.0
    %5401 = vadd.xlane.f32.xlu0 %v5400
    %v5402 = vpop.xlane.xlu0 %5401
    %v5403 = vsel %vm45, %v5362, 0.0
    %5404 = vadd.xlane.f32.xlu0 %v5403
    %v5405 = vpop.xlane.xlu0 %5404
    %v5406 = vsel %vm45, %v5364, 0.0
    %5407 = vadd.xlane.f32.xlu0 %v5406
    %v5408 = vpop.xlane.xlu0 %5407
    %v5409 = vsel %vm45, %v5366, 0.0
    %5410 = vadd.xlane.f32.xlu0 %v5409
    %v5411 = vpop.xlane.xlu0 %5410
    %v5412 = vsel %vm45, %v5368, 0.0
    %5413 = vadd.xlane.f32.xlu0 %v5412
    %v5414 = vpop.xlane.xlu0 %5413
    %v5415 = vsel %vm45, %v5370, 0.0
    %5416 = vadd.xlane.f32.xlu0 %v5415
    %v5417 = vpop.xlane.xlu0 %5416
    %v5418 = vsel %vm45, %v5372, 0.0
    %5419 = vadd.xlane.f32.xlu0 %v5418
    %v5420 = vpop.xlane.xlu0 %5419
    %v5421 = vrcp.pop %v5375
    %v5422 = vmul.f32 %v5342, %v5421
    %v5423 = vrcp.pop %v5378
    %v5424 = vmul.f32 %v5344, %v5423
    %v5425 = vrcp.pop %v5381
    %v5426 = vmul.f32 %v5346, %v5425
    %v5427 = vrcp.pop %v5384
    %v5428 = vmul.f32 %v5348, %v5427
    %v5429 = vrcp.pop %v5387
    %v5430 = vmul.f32 %v5350, %v5429
    %v5431 = vrcp.pop %v5390
    %v5432 = vmul.f32 %v5352, %v5431
    %v5433 = vrcp.pop %v5393
    %v5434 = vmul.f32 %v5354, %v5433
    %v5435 = vrcp.pop %v5396
    %v5436 = vmul.f32 %v5356, %v5435
    %v5437 = vrcp.pop %v5399
    %v5438 = vmul.f32 %v5358, %v5437
    %v5439 = vrcp.pop %v5402
    %v5440 = vmul.f32 %v5360, %v5439
    %v5441 = vrcp.pop %v5405
    %v5442 = vmul.f32 %v5362, %v5441
    %v5443 = vrcp.pop %v5408
    %v5444 = vmul.f32 %v5364, %v5443
    %v5445 = vrcp.pop %v5411
    %v5446 = vmul.f32 %v5366, %v5445
    %v5447 = vrcp.pop %v5414
    %v5448 = vmul.f32 %v5368, %v5447
    %v5449 = vrcp.pop %v5417
    %v5450 = vmul.f32 %v5370, %v5449
    %v5451 = vrcp.pop %v5420
    %v5452 = vmul.f32 %v5372, %v5451
    %v5453 = vmul.f32 %v5422, %v4122
    %v5454 = vmul.f32 %v5424, %v4123
    %v5455 = vmul.f32 %v5426, %v4124
    %v5456 = vmul.f32 %v5428, %v4125
    %v5457 = vmul.f32 %v5430, %v4126
    %v5458 = vmul.f32 %v5432, %v4127
    %v5459 = vmul.f32 %v5434, %v4128
    %v5460 = vmul.f32 %v5436, %v4129
    %v5461 = vmul.f32 %v5438, %v4130
    %v5462 = vmul.f32 %v5440, %v4131
    %v5463 = vmul.f32 %v5442, %v4132
    %v5464 = vmul.f32 %v5444, %v4133
    %v5465 = vmul.f32 %v5446, %v4134
    %v5466 = vmul.f32 %v5448, %v4135
    %v5467 = vmul.f32 %v5450, %v4136
    %v5468 = vmul.f32 %v5452, %v4137
    %v5469 = vadd.f32 %v4105, %v5453
    %v5470 = vadd.f32 %v4106, %v5454
    %v5471 = vadd.f32 %v4107, %v5455
    %v5472 = vadd.f32 %v4108, %v5456
    %v5473 = vadd.f32 %v4109, %v5457
    %v5474 = vadd.f32 %v4110, %v5458
    %v5475 = vadd.f32 %v4111, %v5459
    %v5476 = vadd.f32 %v4112, %v5460
    %v5477 = vadd.f32 %v4113, %v5461
    %v5478 = vadd.f32 %v4114, %v5462
    %v5479 = vadd.f32 %v4115, %v5463
    %v5480 = vadd.f32 %v4116, %v5464
    %v5481 = vadd.f32 %v4117, %v5465
    %v5482 = vadd.f32 %v4118, %v5466
    %v5483 = vadd.f32 %v4119, %v5467
    %v5484 = vadd.f32 %v4120, %v5468
    %s5485 = scalar_lea.vmem %s0, 512
    %v5486 = vld [vmem:[%s5485] sm:$0xff]
    %v5487 = vld [vmem:[%s5485 + $0x8] sm:$0xff]
    %v5488 = vld [vmem:[%s5485 + $0x10] sm:$0xff]
    %v5489 = vld [vmem:[%s5485 + $0x18] sm:$0xff]
    %v5490 = vld [vmem:[%s5485 + $0x20] sm:$0xff]
    %v5491 = vld [vmem:[%s5485 + $0x28] sm:$0xff]
    %v5492 = vld [vmem:[%s5485 + $0x30] sm:$0xff]
    %v5493 = vld [vmem:[%s5485 + $0x38] sm:$0xff]
    %v5494 = vld [vmem:[%s5485 + $0x40] sm:$0xff]
    %v5495 = vld [vmem:[%s5485 + $0x48] sm:$0xff]
    %v5496 = vld [vmem:[%s5485 + $0x50] sm:$0xff]
    %v5497 = vld [vmem:[%s5485 + $0x58] sm:$0xff]
    %v5498 = vld [vmem:[%s5485 + $0x60] sm:$0xff]
    %v5499 = vld [vmem:[%s5485 + $0x68] sm:$0xff]
    %v5500 = vld [vmem:[%s5485 + $0x70] sm:$0xff]
    %v5501 = vld [vmem:[%s5485 + $0x78] sm:$0xff]
    %v5503 = vsel %vm45, %v5486, 0
    %v5506 = vsel %vm45, %v5487, 0
    %v5509 = vsel %vm45, %v5488, 0
    %v5512 = vsel %vm45, %v5489, 0
    %v5515 = vsel %vm45, %v5490, 0
    %v5518 = vsel %vm45, %v5491, 0
    %v5521 = vsel %vm45, %v5492, 0
    %v5524 = vsel %vm45, %v5493, 0
    %v5527 = vsel %vm45, %v5494, 0
    %v5530 = vsel %vm45, %v5495, 0
    %v5533 = vsel %vm45, %v5496, 0
    %v5536 = vsel %vm45, %v5497, 0
    %v5539 = vsel %vm45, %v5498, 0
    %v5542 = vsel %vm45, %v5499, 0
    %v5545 = vsel %vm45, %v5500, 0
    %v5548 = vsel %vm45, %v5501, 0
    %5550 = vmatprep.subr.mxu0 0.0
    %v5551 = vand.u32 %v21, 4294901760
    %5552 = vmatpush1.msra.mxu0 %v5551
    %5553 = vmatprep.subr.mxu0 0.0
    %5554 = vmatpush1.msra.mxu0 0.0
    %5555 = vmatprep.subr.mxu0 0.0
    %5556 = vmatpush1.msra.mxu0 0.0
    %5557 = vmatprep.subr.mxu0 0.0
    %5558 = vmatpush1.msra.mxu0 0.0
    %5559 = vmatprep.subr.mxu0 0.0
    %5560 = vmatpush1.msra.mxu0 0.0
    %5561 = vmatprep.subr.mxu0 0.0
    %5562 = vmatpush1.msra.mxu0 0.0
    %5563 = vmatprep.subr.mxu0 0.0
    %5564 = vmatpush1.msra.mxu0 0.0
    %5565 = vmatprep.subr.mxu0 0.0
    %5566 = vmatpush1.msra.mxu0 0.0
    %5567 = vmatprep.subr.mxu0 0.0
    %5568 = vmatpush1.msra.mxu0 0.0
    %5569 = vmatprep.subr.mxu0 0.0
    %5570 = vmatpush1.msra.mxu0 0.0
    %5571 = vmatprep.subr.mxu0 0.0
    %5572 = vmatpush1.msra.mxu0 0.0
    %5573 = vmatprep.subr.mxu0 0.0
    %5574 = vmatpush1.msra.mxu0 0.0
    %5575 = vmatprep.subr.mxu0 0.0
    %5576 = vmatpush1.msra.mxu0 0.0
    %5577 = vmatprep.subr.mxu0 0.0
    %5578 = vmatpush1.msra.mxu0 0.0
    %5579 = vmatprep.subr.mxu0 0.0
    %5580 = vmatpush1.msra.mxu0 0.0
    %5581 = vmatprep.subr.mxu0 0.0
    %5582 = vmatpush1.msra.mxu0 0.0
    %5583 = vmatprep.subr.mxu0 0.0
    %5584 = vmatpush1.msra.mxu0 0.0
    %5585 = vmatprep.subr.mxu0 0.0
    %5586 = vmatpush1.msra.mxu0 0.0
    %5587 = vmatprep.subr.mxu0 0.0
    %5588 = vmatpush1.msra.mxu0 0.0
    %5589 = vmatprep.subr.mxu0 0.0
    %5590 = vmatpush1.msra.mxu0 0.0
    %5591 = vmatprep.subr.mxu0 0.0
    %5592 = vmatpush1.msra.mxu0 0.0
    %5593 = vmatprep.subr.mxu0 0.0
    %5594 = vmatpush1.msra.mxu0 0.0
    %5595 = vmatprep.subr.mxu0 0.0
    %5596 = vmatpush1.msra.mxu0 0.0
    %5597 = vmatprep.subr.mxu0 0.0
    %5598 = vmatpush1.msra.mxu0 0.0
    %5599 = vmatprep.subr.mxu0 0.0
    %5600 = vmatpush1.msra.mxu0 0.0
    %5601 = vmatprep.subr.mxu0 0.0
    %5602 = vmatpush1.msra.mxu0 0.0
    %5603 = vmatprep.subr.mxu0 0.0
    %5604 = vmatpush1.msra.mxu0 0.0
    %5605 = vmatprep.subr.mxu0 0.0
    %5606 = vmatpush1.msra.mxu0 0.0
    %5607 = vmatprep.subr.mxu0 0.0
    %5608 = vmatpush1.msra.mxu0 0.0
    %5609 = vmatprep.subr.mxu0 0.0
    %5610 = vmatpush1.msra.mxu0 0.0
    %5611 = vmatprep.subr.mxu0 0.0
    %5612 = vmatpush1.msra.mxu0 0.0
    %5613 = vmatprep.subr.mxu0 0.0
    %5614 = vmatpush1.msra.mxu0 0.0
    %5615 = vmatprep.mubr.f32.mxu0 0.0
    %v5616 = vand.u32 %v5503, 4294901760
    %v5617 = vsub.f32 %v5503, %v5616
    %v5618 = vand.u32 %v5617, 4294901760
    %v5619 = vsub.f32 %v5617, %v5618
    %v5620 = vand.u32 %v5619, 4294901760
    %5621 = vmatmul.mubr.f32.gmra.mrb[0].mxu0 %v5620
    %v5622 = vpop.f32.mrb[0].mxu0
    %v5623 = vadd.f32 %v43, %v5622
    %v5624 = vpop.f32.mrb[0].mxu0
    %5625 = vmatprep.mubr.f32.mxu0 0.0
    %v5626 = vand.u32 %v5506, 4294901760
    %v5627 = vsub.f32 %v5506, %v5626
    %v5628 = vand.u32 %v5627, 4294901760
    %v5629 = vsub.f32 %v5627, %v5628
    %v5630 = vand.u32 %v5629, 4294901760
    %5631 = vmatmul.mubr.f32.gmra.mrb[0].mxu0 %v5630
    %v5632 = vpop.f32.mrb[0].mxu0
    %v5633 = vadd.f32 %v43, %v5632
    %v5634 = vpop.f32.mrb[0].mxu0
    %5635 = vmatprep.mubr.f32.mxu0 0.0
    %v5636 = vand.u32 %v5509, 4294901760
    %v5637 = vsub.f32 %v5509, %v5636
    %v5638 = vand.u32 %v5637, 4294901760
    %v5639 = vsub.f32 %v5637, %v5638
    %v5640 = vand.u32 %v5639, 4294901760
    %5641 = vmatmul.mubr.f32.gmra.mrb[0].mxu0 %v5640
    %v5642 = vpop.f32.mrb[0].mxu0
    %v5643 = vadd.f32 %v43, %v5642
    %v5644 = vpop.f32.mrb[0].mxu0
    %5645 = vmatprep.mubr.f32.mxu0 0.0
    %v5646 = vand.u32 %v5512, 4294901760
    %v5647 = vsub.f32 %v5512, %v5646
    %v5648 = vand.u32 %v5647, 4294901760
    %v5649 = vsub.f32 %v5647, %v5648
    %v5650 = vand.u32 %v5649, 4294901760
    %5651 = vmatmul.mubr.f32.gmra.mrb[0].mxu0 %v5650
    %v5652 = vpop.f32.mrb[0].mxu0
    %v5653 = vadd.f32 %v43, %v5652
    %v5654 = vpop.f32.mrb[0].mxu0
    %5655 = vmatprep.mubr.f32.mxu0 0.0
    %v5656 = vand.u32 %v5515, 4294901760
    %v5657 = vsub.f32 %v5515, %v5656
    %v5658 = vand.u32 %v5657, 4294901760
    %v5659 = vsub.f32 %v5657, %v5658
    %v5660 = vand.u32 %v5659, 4294901760
    %5661 = vmatmul.mubr.f32.gmra.mrb[0].mxu0 %v5660
    %v5662 = vpop.f32.mrb[0].mxu0
    %v5663 = vadd.f32 %v43, %v5662
    %v5664 = vpop.f32.mrb[0].mxu0
    %5665 = vmatprep.mubr.f32.mxu0 0.0
    %v5666 = vand.u32 %v5518, 4294901760
    %v5667 = vsub.f32 %v5518, %v5666
    %v5668 = vand.u32 %v5667, 4294901760
    %v5669 = vsub.f32 %v5667, %v5668
    %v5670 = vand.u32 %v5669, 4294901760
    %5671 = vmatmul.mubr.f32.gmra.mrb[0].mxu0 %v5670
    %v5672 = vpop.f32.mrb[0].mxu0
    %v5673 = vadd.f32 %v43, %v5672
    %v5674 = vpop.f32.mrb[0].mxu0
    %5675 = vmatprep.mubr.f32.mxu0 0.0
    %v5676 = vand.u32 %v5521, 4294901760
    %v5677 = vsub.f32 %v5521, %v5676
    %v5678 = vand.u32 %v5677, 4294901760
    %v5679 = vsub.f32 %v5677, %v5678
    %v5680 = vand.u32 %v5679, 4294901760
    %5681 = vmatmul.mubr.f32.gmra.mrb[0].mxu0 %v5680
    %v5682 = vpop.f32.mrb[0].mxu0
    %v5683 = vadd.f32 %v43, %v5682
    %v5684 = vpop.f32.mrb[0].mxu0
    %5685 = vmatprep.mubr.f32.mxu0 0.0
    %v5686 = vand.u32 %v5524, 4294901760
    %v5687 = vsub.f32 %v5524, %v5686
    %v5688 = vand.u32 %v5687, 4294901760
    %v5689 = vsub.f32 %v5687, %v5688
    %v5690 = vand.u32 %v5689, 4294901760
    %5691 = vmatmul.mubr.f32.gmra.mrb[0].mxu0 %v5690
    %v5692 = vpop.f32.mrb[0].mxu0
    %v5693 = vadd.f32 %v43, %v5692
    %v5694 = vpop.f32.mrb[0].mxu0
    %5695 = vmatprep.mubr.f32.mxu0 0.0
    %v5696 = vand.u32 %v5527, 4294901760
    %v5697 = vsub.f32 %v5527, %v5696
    %v5698 = vand.u32 %v5697, 4294901760
    %v5699 = vsub.f32 %v5697, %v5698
    %v5700 = vand.u32 %v5699, 4294901760
    %5701 = vmatmul.mubr.f32.gmra.mrb[0].mxu0 %v5700
    %v5702 = vpop.f32.mrb[0].mxu0
    %v5703 = vadd.f32 %v43, %v5702
    %v5704 = vpop.f32.mrb[0].mxu0
    %5705 = vmatprep.mubr.f32.mxu0 0.0
    %v5706 = vand.u32 %v5530, 4294901760
    %v5707 = vsub.f32 %v5530, %v5706
    %v5708 = vand.u32 %v5707, 4294901760
    %v5709 = vsub.f32 %v5707, %v5708
    %v5710 = vand.u32 %v5709, 4294901760
    %5711 = vmatmul.mubr.f32.gmra.mrb[0].mxu0 %v5710
    %v5712 = vpop.f32.mrb[0].mxu0
    %v5713 = vadd.f32 %v43, %v5712
    %v5714 = vpop.f32.mrb[0].mxu0
    %5715 = vmatprep.mubr.f32.mxu0 0.0
    %v5716 = vand.u32 %v5533, 4294901760
    %v5717 = vsub.f32 %v5533, %v5716
    %v5718 = vand.u32 %v5717, 4294901760
    %v5719 = vsub.f32 %v5717, %v5718
    %v5720 = vand.u32 %v5719, 4294901760
    %5721 = vmatmul.mubr.f32.gmra.mrb[0].mxu0 %v5720
    %v5722 = vpop.f32.mrb[0].mxu0
    %v5723 = vadd.f32 %v43, %v5722
    %v5724 = vpop.f32.mrb[0].mxu0
    %5725 = vmatprep.mubr.f32.mxu0 0.0
    %v5726 = vand.u32 %v5536, 4294901760
    %v5727 = vsub.f32 %v5536, %v5726
    %v5728 = vand.u32 %v5727, 4294901760
    %v5729 = vsub.f32 %v5727, %v5728
    %v5730 = vand.u32 %v5729, 4294901760
    %5731 = vmatmul.mubr.f32.gmra.mrb[0].mxu0 %v5730
    %v5732 = vpop.f32.mrb[0].mxu0
    %v5733 = vadd.f32 %v43, %v5732
    %v5734 = vpop.f32.mrb[0].mxu0
    %5735 = vmatprep.mubr.f32.mxu0 0.0
    %v5736 = vand.u32 %v5539, 4294901760
    %v5737 = vsub.f32 %v5539, %v5736
    %v5738 = vand.u32 %v5737, 4294901760
    %v5739 = vsub.f32 %v5737, %v5738
    %v5740 = vand.u32 %v5739, 4294901760
    %5741 = vmatmul.mubr.f32.gmra.mrb[0].mxu0 %v5740
    %v5742 = vpop.f32.mrb[0].mxu0
    %v5743 = vadd.f32 %v43, %v5742
    %v5744 = vpop.f32.mrb[0].mxu0
    %5745 = vmatprep.mubr.f32.mxu0 0.0
    %v5746 = vand.u32 %v5542, 4294901760
    %v5747 = vsub.f32 %v5542, %v5746
    %v5748 = vand.u32 %v5747, 4294901760
    %v5749 = vsub.f32 %v5747, %v5748
    %v5750 = vand.u32 %v5749, 4294901760
    %5751 = vmatmul.mubr.f32.gmra.mrb[0].mxu0 %v5750
    %v5752 = vpop.f32.mrb[0].mxu0
    %v5753 = vadd.f32 %v43, %v5752
    %v5754 = vpop.f32.mrb[0].mxu0
    %5755 = vmatprep.mubr.f32.mxu0 0.0
    %v5756 = vand.u32 %v5545, 4294901760
    %v5757 = vsub.f32 %v5545, %v5756
    %v5758 = vand.u32 %v5757, 4294901760
    %v5759 = vsub.f32 %v5757, %v5758
    %v5760 = vand.u32 %v5759, 4294901760
    %5761 = vmatmul.mubr.f32.gmra.mrb[0].mxu0 %v5760
    %v5762 = vpop.f32.mrb[0].mxu0
    %v5763 = vadd.f32 %v43, %v5762
    %v5764 = vpop.f32.mrb[0].mxu0
    %5765 = vmatprep.mubr.f32.mxu0 0.0
    %v5766 = vand.u32 %v5548, 4294901760
    %v5767 = vsub.f32 %v5548, %v5766
    %v5768 = vand.u32 %v5767, 4294901760
    %v5769 = vsub.f32 %v5767, %v5768
    %v5770 = vand.u32 %v5769, 4294901760
    %5771 = vmatmul.mubr.f32.gmra.mrb[0].mxu0 %v5770
    %v5772 = vpop.f32.mrb[0].mxu0
    %v5773 = vadd.f32 %v43, %v5772
    %v5774 = vpop.f32.mrb[0].mxu0
    %5775 = vdwg.mxu0
    %5776 = vmatprep.subr.mxu0 0.0
    %v5777 = vand.u32 %v21, 4294901760
    %v5778 = vsub.f32 %v21, %v5777
    %v5779 = vand.u32 %v5778, 4294901760
    %v5780 = vsub.f32 %v5778, %v5779
    %v5781 = vand.u32 %v5780, 4294901760
    %5782 = vmatpush1.msra.mxu0 %v5781
    %5783 = vmatprep.subr.mxu0 0.0
    %5784 = vmatpush1.msra.mxu0 0.0
    %5785 = vmatprep.subr.mxu0 0.0
    %5786 = vmatpush1.msra.mxu0 0.0
    %5787 = vmatprep.subr.mxu0 0.0
    %5788 = vmatpush1.msra.mxu0 0.0
    %5789 = vmatprep.subr.mxu0 0.0
    %5790 = vmatpush1.msra.mxu0 0.0
    %5791 = vmatprep.subr.mxu0 0.0
    %5792 = vmatpush1.msra.mxu0 0.0
    %5793 = vmatprep.subr.mxu0 0.0
    %5794 = vmatpush1.msra.mxu0 0.0
    %5795 = vmatprep.subr.mxu0 0.0
    %5796 = vmatpush1.msra.mxu0 0.0
    %5797 = vmatprep.subr.mxu0 0.0
    %5798 = vmatpush1.msra.mxu0 0.0
    %5799 = vmatprep.subr.mxu0 0.0
    %5800 = vmatpush1.msra.mxu0 0.0
    %5801 = vmatprep.subr.mxu0 0.0
    %5802 = vmatpush1.msra.mxu0 0.0
    %5803 = vmatprep.subr.mxu0 0.0
    %5804 = vmatpush1.msra.mxu0 0.0
    %5805 = vmatprep.subr.mxu0 0.0
    %5806 = vmatpush1.msra.mxu0 0.0
    %5807 = vmatprep.subr.mxu0 0.0
    %5808 = vmatpush1.msra.mxu0 0.0
    %5809 = vmatprep.subr.mxu0 0.0
    %5810 = vmatpush1.msra.mxu0 0.0
    %5811 = vmatprep.subr.mxu0 0.0
    %5812 = vmatpush1.msra.mxu0 0.0
    %5813 = vmatprep.subr.mxu0 0.0
    %5814 = vmatpush1.msra.mxu0 0.0
    %5815 = vmatprep.subr.mxu0 0.0
    %5816 = vmatpush1.msra.mxu0 0.0
    %5817 = vmatprep.subr.mxu0 0.0
    %5818 = vmatpush1.msra.mxu0 0.0
    %5819 = vmatprep.subr.mxu0 0.0
    %5820 = vmatpush1.msra.mxu0 0.0
    %5821 = vmatprep.subr.mxu0 0.0
    %5822 = vmatpush1.msra.mxu0 0.0
    %5823 = vmatprep.subr.mxu0 0.0
    %5824 = vmatpush1.msra.mxu0 0.0
    %5825 = vmatprep.subr.mxu0 0.0
    %5826 = vmatpush1.msra.mxu0 0.0
    %5827 = vmatprep.subr.mxu0 0.0
    %5828 = vmatpush1.msra.mxu0 0.0
    %5829 = vmatprep.subr.mxu0 0.0
    %5830 = vmatpush1.msra.mxu0 0.0
    %5831 = vmatprep.subr.mxu0 0.0
    %5832 = vmatpush1.msra.mxu0 0.0
    %5833 = vmatprep.subr.mxu0 0.0
    %5834 = vmatpush1.msra.mxu0 0.0
    %5835 = vmatprep.subr.mxu0 0.0
    %5836 = vmatpush1.msra.mxu0 0.0
    %5837 = vmatprep.subr.mxu0 0.0
    %5838 = vmatpush1.msra.mxu0 0.0
    %5839 = vmatprep.subr.mxu0 0.0
    %5840 = vmatpush1.msra.mxu0 0.0
    %5841 = vmatprep.subr.mxu0 0.0
    %5842 = vmatpush1.msra.mxu0 0.0
    %5843 = vmatprep.subr.mxu0 0.0
    %5844 = vmatpush1.msra.mxu0 0.0
    %5845 = vmatprep.mubr.f32.mxu0 0.0
    %v5846 = vand.u32 %v5503, 4294901760
    %5847 = vmatmul.mubr.f32.gmra.mrb[0].mxu0 %v5846
    %v5848 = vpop.f32.mrb[0].mxu0
    %v5849 = vadd.f32 %v5623, %v5848
    %v5850 = vpop.f32.mrb[0].mxu0
    %5851 = vmatprep.mubr.f32.mxu0 0.0
    %v5852 = vand.u32 %v5506, 4294901760
    %5853 = vmatmul.mubr.f32.gmra.mrb[0].mxu0 %v5852
    %v5854 = vpop.f32.mrb[0].mxu0
    %v5855 = vadd.f32 %v5633, %v5854
    %v5856 = vpop.f32.mrb[0].mxu0
    %5857 = vmatprep.mubr.f32.mxu0 0.0
    %v5858 = vand.u32 %v5509, 4294901760
    %5859 = vmatmul.mubr.f32.gmra.mrb[0].mxu0 %v5858
    %v5860 = vpop.f32.mrb[0].mxu0
    %v5861 = vadd.f32 %v5643, %v5860
    %v5862 = vpop.f32.mrb[0].mxu0
    %5863 = vmatprep.mubr.f32.mxu0 0.0
    %v5864 = vand.u32 %v5512, 4294901760
    %5865 = vmatmul.mubr.f32.gmra.mrb[0].mxu0 %v5864
    %v5866 = vpop.f32.mrb[0].mxu0
    %v5867 = vadd.f32 %v5653, %v5866
    %v5868 = vpop.f32.mrb[0].mxu0
    %5869 = vmatprep.mubr.f32.mxu0 0.0
    %v5870 = vand.u32 %v5515, 4294901760
    %5871 = vmatmul.mubr.f32.gmra.mrb[0].mxu0 %v5870
    %v5872 = vpop.f32.mrb[0].mxu0
    %v5873 = vadd.f32 %v5663, %v5872
    %v5874 = vpop.f32.mrb[0].mxu0
    %5875 = vmatprep.mubr.f32.mxu0 0.0
    %v5876 = vand.u32 %v5518, 4294901760
    %5877 = vmatmul.mubr.f32.gmra.mrb[0].mxu0 %v5876
    %v5878 = vpop.f32.mrb[0].mxu0
    %v5879 = vadd.f32 %v5673, %v5878
    %v5880 = vpop.f32.mrb[0].mxu0
    %5881 = vmatprep.mubr.f32.mxu0 0.0
    %v5882 = vand.u32 %v5521, 4294901760
    %5883 = vmatmul.mubr.f32.gmra.mrb[0].mxu0 %v5882
    %v5884 = vpop.f32.mrb[0].mxu0
    %v5885 = vadd.f32 %v5683, %v5884
    %v5886 = vpop.f32.mrb[0].mxu0
    %5887 = vmatprep.mubr.f32.mxu0 0.0
    %v5888 = vand.u32 %v5524, 4294901760
    %5889 = vmatmul.mubr.f32.gmra.mrb[0].mxu0 %v5888
    %v5890 = vpop.f32.mrb[0].mxu0
    %v5891 = vadd.f32 %v5693, %v5890
    %v5892 = vpop.f32.mrb[0].mxu0
    %5893 = vmatprep.mubr.f32.mxu0 0.0
    %v5894 = vand.u32 %v5527, 4294901760
    %5895 = vmatmul.mubr.f32.gmra.mrb[0].mxu0 %v5894
    %v5896 = vpop.f32.mrb[0].mxu0
    %v5897 = vadd.f32 %v5703, %v5896
    %v5898 = vpop.f32.mrb[0].mxu0
    %5899 = vmatprep.mubr.f32.mxu0 0.0
    %v5900 = vand.u32 %v5530, 4294901760
    %5901 = vmatmul.mubr.f32.gmra.mrb[0].mxu0 %v5900
    %v5902 = vpop.f32.mrb[0].mxu0
    %v5903 = vadd.f32 %v5713, %v5902
    %v5904 = vpop.f32.mrb[0].mxu0
    %5905 = vmatprep.mubr.f32.mxu0 0.0
    %v5906 = vand.u32 %v5533, 4294901760
    %5907 = vmatmul.mubr.f32.gmra.mrb[0].mxu0 %v5906
    %v5908 = vpop.f32.mrb[0].mxu0
    %v5909 = vadd.f32 %v5723, %v5908
    %v5910 = vpop.f32.mrb[0].mxu0
    %5911 = vmatprep.mubr.f32.mxu0 0.0
    %v5912 = vand.u32 %v5536, 4294901760
    %5913 = vmatmul.mubr.f32.gmra.mrb[0].mxu0 %v5912
    %v5914 = vpop.f32.mrb[0].mxu0
    %v5915 = vadd.f32 %v5733, %v5914
    %v5916 = vpop.f32.mrb[0].mxu0
    %5917 = vmatprep.mubr.f32.mxu0 0.0
    %v5918 = vand.u32 %v5539, 4294901760
    %5919 = vmatmul.mubr.f32.gmra.mrb[0].mxu0 %v5918
    %v5920 = vpop.f32.mrb[0].mxu0
    %v5921 = vadd.f32 %v5743, %v5920
    %v5922 = vpop.f32.mrb[0].mxu0
    %5923 = vmatprep.mubr.f32.mxu0 0.0
    %v5924 = vand.u32 %v5542, 4294901760
    %5925 = vmatmul.mubr.f32.gmra.mrb[0].mxu0 %v5924
    %v5926 = vpop.f32.mrb[0].mxu0
    %v5927 = vadd.f32 %v5753, %v5926
    %v5928 = vpop.f32.mrb[0].mxu0
    %5929 = vmatprep.mubr.f32.mxu0 0.0
    %v5930 = vand.u32 %v5545, 4294901760
    %5931 = vmatmul.mubr.f32.gmra.mrb[0].mxu0 %v5930
    %v5932 = vpop.f32.mrb[0].mxu0
    %v5933 = vadd.f32 %v5763, %v5932
    %v5934 = vpop.f32.mrb[0].mxu0
    %5935 = vmatprep.mubr.f32.mxu0 0.0
    %v5936 = vand.u32 %v5548, 4294901760
    %5937 = vmatmul.mubr.f32.gmra.mrb[0].mxu0 %v5936
    %v5938 = vpop.f32.mrb[0].mxu0
    %v5939 = vadd.f32 %v5773, %v5938
    %v5940 = vpop.f32.mrb[0].mxu0
    %5941 = vdwg.mxu0
    %5942 = vmatprep.subr.mxu0 0.0
    %v5943 = vand.u32 %v21, 4294901760
    %v5944 = vsub.f32 %v21, %v5943
    %5945 = vmatpush1.msra.mxu0 %v5944
    %5946 = vmatprep.subr.mxu0 0.0
    %5947 = vmatpush1.msra.mxu0 0.0
    %5948 = vmatprep.subr.mxu0 0.0
    %5949 = vmatpush1.msra.mxu0 0.0
    %5950 = vmatprep.subr.mxu0 0.0
    %5951 = vmatpush1.msra.mxu0 0.0
    %5952 = vmatprep.subr.mxu0 0.0
    %5953 = vmatpush1.msra.mxu0 0.0
    %5954 = vmatprep.subr.mxu0 0.0
    %5955 = vmatpush1.msra.mxu0 0.0
    %5956 = vmatprep.subr.mxu0 0.0
    %5957 = vmatpush1.msra.mxu0 0.0
    %5958 = vmatprep.subr.mxu0 0.0
    %5959 = vmatpush1.msra.mxu0 0.0
    %5960 = vmatprep.subr.mxu0 0.0
    %5961 = vmatpush1.msra.mxu0 0.0
    %5962 = vmatprep.subr.mxu0 0.0
    %5963 = vmatpush1.msra.mxu0 0.0
    %5964 = vmatprep.subr.mxu0 0.0
    %5965 = vmatpush1.msra.mxu0 0.0
    %5966 = vmatprep.subr.mxu0 0.0
    %5967 = vmatpush1.msra.mxu0 0.0
    %5968 = vmatprep.subr.mxu0 0.0
    %5969 = vmatpush1.msra.mxu0 0.0
    %5970 = vmatprep.subr.mxu0 0.0
    %5971 = vmatpush1.msra.mxu0 0.0
    %5972 = vmatprep.subr.mxu0 0.0
    %5973 = vmatpush1.msra.mxu0 0.0
    %5974 = vmatprep.subr.mxu0 0.0
    %5975 = vmatpush1.msra.mxu0 0.0
    %5976 = vmatprep.subr.mxu0 0.0
    %5977 = vmatpush1.msra.mxu0 0.0
    %5978 = vmatprep.subr.mxu0 0.0
    %5979 = vmatpush1.msra.mxu0 0.0
    %5980 = vmatprep.subr.mxu0 0.0
    %5981 = vmatpush1.msra.mxu0 0.0
    %5982 = vmatprep.subr.mxu0 0.0
    %5983 = vmatpush1.msra.mxu0 0.0
    %5984 = vmatprep.subr.mxu0 0.0
    %5985 = vmatpush1.msra.mxu0 0.0
    %5986 = vmatprep.subr.mxu0 0.0
    %5987 = vmatpush1.msra.mxu0 0.0
    %5988 = vmatprep.subr.mxu0 0.0
    %5989 = vmatpush1.msra.mxu0 0.0
    %5990 = vmatprep.subr.mxu0 0.0
    %5991 = vmatpush1.msra.mxu0 0.0
    %5992 = vmatprep.subr.mxu0 0.0
    %5993 = vmatpush1.msra.mxu0 0.0
    %5994 = vmatprep.subr.mxu0 0.0
    %5995 = vmatpush1.msra.mxu0 0.0
    %5996 = vmatprep.subr.mxu0 0.0
    %5997 = vmatpush1.msra.mxu0 0.0
    %5998 = vmatprep.subr.mxu0 0.0
    %5999 = vmatpush1.msra.mxu0 0.0
    %6000 = vmatprep.subr.mxu0 0.0
    %6001 = vmatpush1.msra.mxu0 0.0
    %6002 = vmatprep.subr.mxu0 0.0
    %6003 = vmatpush1.msra.mxu0 0.0
    %6004 = vmatprep.subr.mxu0 0.0
    %6005 = vmatpush1.msra.mxu0 0.0
    %6006 = vmatprep.subr.mxu0 0.0
    %6007 = vmatpush1.msra.mxu0 0.0
    %6008 = vmatprep.mubr.f32.mxu0 0.0
    %v6009 = vand.u32 %v5503, 4294901760
    %v6010 = vsub.f32 %v5503, %v6009
    %6011 = vmatmul.mubr.f32.gmra.mrb[0].mxu0 %v6010
    %v6012 = vpop.f32.mrb[0].mxu0
    %v6013 = vadd.f32 %v5849, %v6012
    %v6014 = vpop.f32.mrb[0].mxu0
    %6015 = vmatprep.mubr.f32.mxu0 0.0
    %v6016 = vand.u32 %v5506, 4294901760
    %v6017 = vsub.f32 %v5506, %v6016
    %6018 = vmatmul.mubr.f32.gmra.mrb[0].mxu0 %v6017
    %v6019 = vpop.f32.mrb[0].mxu0
    %v6020 = vadd.f32 %v5855, %v6019
    %v6021 = vpop.f32.mrb[0].mxu0
    %6022 = vmatprep.mubr.f32.mxu0 0.0
    %v6023 = vand.u32 %v5509, 4294901760
    %v6024 = vsub.f32 %v5509, %v6023
    %6025 = vmatmul.mubr.f32.gmra.mrb[0].mxu0 %v6024
    %v6026 = vpop.f32.mrb[0].mxu0
    %v6027 = vadd.f32 %v5861, %v6026
    %v6028 = vpop.f32.mrb[0].mxu0
    %6029 = vmatprep.mubr.f32.mxu0 0.0
    %v6030 = vand.u32 %v5512, 4294901760
    %v6031 = vsub.f32 %v5512, %v6030
    %6032 = vmatmul.mubr.f32.gmra.mrb[0].mxu0 %v6031
    %v6033 = vpop.f32.mrb[0].mxu0
    %v6034 = vadd.f32 %v5867, %v6033
    %v6035 = vpop.f32.mrb[0].mxu0
    %6036 = vmatprep.mubr.f32.mxu0 0.0
    %v6037 = vand.u32 %v5515, 4294901760
    %v6038 = vsub.f32 %v5515, %v6037
    %6039 = vmatmul.mubr.f32.gmra.mrb[0].mxu0 %v6038
    %v6040 = vpop.f32.mrb[0].mxu0
    %v6041 = vadd.f32 %v5873, %v6040
    %v6042 = vpop.f32.mrb[0].mxu0
    %6043 = vmatprep.mubr.f32.mxu0 0.0
    %v6044 = vand.u32 %v5518, 4294901760
    %v6045 = vsub.f32 %v5518, %v6044
    %6046 = vmatmul.mubr.f32.gmra.mrb[0].mxu0 %v6045
    %v6047 = vpop.f32.mrb[0].mxu0
    %v6048 = vadd.f32 %v5879, %v6047
    %v6049 = vpop.f32.mrb[0].mxu0
    %6050 = vmatprep.mubr.f32.mxu0 0.0
    %v6051 = vand.u32 %v5521, 4294901760
    %v6052 = vsub.f32 %v5521, %v6051
    %6053 = vmatmul.mubr.f32.gmra.mrb[0].mxu0 %v6052
    %v6054 = vpop.f32.mrb[0].mxu0
    %v6055 = vadd.f32 %v5885, %v6054
    %v6056 = vpop.f32.mrb[0].mxu0
    %6057 = vmatprep.mubr.f32.mxu0 0.0
    %v6058 = vand.u32 %v5524, 4294901760
    %v6059 = vsub.f32 %v5524, %v6058
    %6060 = vmatmul.mubr.f32.gmra.mrb[0].mxu0 %v6059
    %v6061 = vpop.f32.mrb[0].mxu0
    %v6062 = vadd.f32 %v5891, %v6061
    %v6063 = vpop.f32.mrb[0].mxu0
    %6064 = vmatprep.mubr.f32.mxu0 0.0
    %v6065 = vand.u32 %v5527, 4294901760
    %v6066 = vsub.f32 %v5527, %v6065
    %6067 = vmatmul.mubr.f32.gmra.mrb[0].mxu0 %v6066
    %v6068 = vpop.f32.mrb[0].mxu0
    %v6069 = vadd.f32 %v5897, %v6068
    %v6070 = vpop.f32.mrb[0].mxu0
    %6071 = vmatprep.mubr.f32.mxu0 0.0
    %v6072 = vand.u32 %v5530, 4294901760
    %v6073 = vsub.f32 %v5530, %v6072
    %6074 = vmatmul.mubr.f32.gmra.mrb[0].mxu0 %v6073
    %v6075 = vpop.f32.mrb[0].mxu0
    %v6076 = vadd.f32 %v5903, %v6075
    %v6077 = vpop.f32.mrb[0].mxu0
    %6078 = vmatprep.mubr.f32.mxu0 0.0
    %v6079 = vand.u32 %v5533, 4294901760
    %v6080 = vsub.f32 %v5533, %v6079
    %6081 = vmatmul.mubr.f32.gmra.mrb[0].mxu0 %v6080
    %v6082 = vpop.f32.mrb[0].mxu0
    %v6083 = vadd.f32 %v5909, %v6082
    %v6084 = vpop.f32.mrb[0].mxu0
    %6085 = vmatprep.mubr.f32.mxu0 0.0
    %v6086 = vand.u32 %v5536, 4294901760
    %v6087 = vsub.f32 %v5536, %v6086
    %6088 = vmatmul.mubr.f32.gmra.mrb[0].mxu0 %v6087
    %v6089 = vpop.f32.mrb[0].mxu0
    %v6090 = vadd.f32 %v5915, %v6089
    %v6091 = vpop.f32.mrb[0].mxu0
    %6092 = vmatprep.mubr.f32.mxu0 0.0
    %v6093 = vand.u32 %v5539, 4294901760
    %v6094 = vsub.f32 %v5539, %v6093
    %6095 = vmatmul.mubr.f32.gmra.mrb[0].mxu0 %v6094
    %v6096 = vpop.f32.mrb[0].mxu0
    %v6097 = vadd.f32 %v5921, %v6096
    %v6098 = vpop.f32.mrb[0].mxu0
    %6099 = vmatprep.mubr.f32.mxu0 0.0
    %v6100 = vand.u32 %v5542, 4294901760
    %v6101 = vsub.f32 %v5542, %v6100
    %6102 = vmatmul.mubr.f32.gmra.mrb[0].mxu0 %v6101
    %v6103 = vpop.f32.mrb[0].mxu0
    %v6104 = vadd.f32 %v5927, %v6103
    %v6105 = vpop.f32.mrb[0].mxu0
    %6106 = vmatprep.mubr.f32.mxu0 0.0
    %v6107 = vand.u32 %v5545, 4294901760
    %v6108 = vsub.f32 %v5545, %v6107
    %6109 = vmatmul.mubr.f32.gmra.mrb[0].mxu0 %v6108
    %v6110 = vpop.f32.mrb[0].mxu0
    %v6111 = vadd.f32 %v5933, %v6110
    %v6112 = vpop.f32.mrb[0].mxu0
    %6113 = vmatprep.mubr.f32.mxu0 0.0
    %v6114 = vand.u32 %v5548, 4294901760
    %v6115 = vsub.f32 %v5548, %v6114
    %6116 = vmatmul.mubr.f32.gmra.mrb[0].mxu0 %v6115
    %v6117 = vpop.f32.mrb[0].mxu0
    %v6118 = vadd.f32 %v5939, %v6117
    %v6119 = vpop.f32.mrb[0].mxu0
    %6120 = vdwg.mxu0
    %6121 = vmatprep.subr.mxu0 0.0
    %v6122 = vand.u32 %v21, 4294901760
    %6123 = vmatpush1.msra.mxu0 %v6122
    %6124 = vmatprep.subr.mxu0 0.0
    %6125 = vmatpush1.msra.mxu0 0.0
    %6126 = vmatprep.subr.mxu0 0.0
    %6127 = vmatpush1.msra.mxu0 0.0
    %6128 = vmatprep.subr.mxu0 0.0
    %6129 = vmatpush1.msra.mxu0 0.0
    %6130 = vmatprep.subr.mxu0 0.0
    %6131 = vmatpush1.msra.mxu0 0.0
    %6132 = vmatprep.subr.mxu0 0.0
    %6133 = vmatpush1.msra.mxu0 0.0
    %6134 = vmatprep.subr.mxu0 0.0
    %6135 = vmatpush1.msra.mxu0 0.0
    %6136 = vmatprep.subr.mxu0 0.0
    %6137 = vmatpush1.msra.mxu0 0.0
    %6138 = vmatprep.subr.mxu0 0.0
    %6139 = vmatpush1.msra.mxu0 0.0
    %6140 = vmatprep.subr.mxu0 0.0
    %6141 = vmatpush1.msra.mxu0 0.0
    %6142 = vmatprep.subr.mxu0 0.0
    %6143 = vmatpush1.msra.mxu0 0.0
    %6144 = vmatprep.subr.mxu0 0.0
    %6145 = vmatpush1.msra.mxu0 0.0
    %6146 = vmatprep.subr.mxu0 0.0
    %6147 = vmatpush1.msra.mxu0 0.0
    %6148 = vmatprep.subr.mxu0 0.0
    %6149 = vmatpush1.msra.mxu0 0.0
    %6150 = vmatprep.subr.mxu0 0.0
    %6151 = vmatpush1.msra.mxu0 0.0
    %6152 = vmatprep.subr.mxu0 0.0
    %6153 = vmatpush1.msra.mxu0 0.0
    %6154 = vmatprep.subr.mxu0 0.0
    %6155 = vmatpush1.msra.mxu0 0.0
    %6156 = vmatprep.subr.mxu0 0.0
    %6157 = vmatpush1.msra.mxu0 0.0
    %6158 = vmatprep.subr.mxu0 0.0
    %6159 = vmatpush1.msra.mxu0 0.0
    %6160 = vmatprep.subr.mxu0 0.0
    %6161 = vmatpush1.msra.mxu0 0.0
    %6162 = vmatprep.subr.mxu0 0.0
    %6163 = vmatpush1.msra.mxu0 0.0
    %6164 = vmatprep.subr.mxu0 0.0
    %6165 = vmatpush1.msra.mxu0 0.0
    %6166 = vmatprep.subr.mxu0 0.0
    %6167 = vmatpush1.msra.mxu0 0.0
    %6168 = vmatprep.subr.mxu0 0.0
    %6169 = vmatpush1.msra.mxu0 0.0
    %6170 = vmatprep.subr.mxu0 0.0
    %6171 = vmatpush1.msra.mxu0 0.0
    %6172 = vmatprep.subr.mxu0 0.0
    %6173 = vmatpush1.msra.mxu0 0.0
    %6174 = vmatprep.subr.mxu0 0.0
    %6175 = vmatpush1.msra.mxu0 0.0
    %6176 = vmatprep.subr.mxu0 0.0
    %6177 = vmatpush1.msra.mxu0 0.0
    %6178 = vmatprep.subr.mxu0 0.0
    %6179 = vmatpush1.msra.mxu0 0.0
    %6180 = vmatprep.subr.mxu0 0.0
    %6181 = vmatpush1.msra.mxu0 0.0
    %6182 = vmatprep.subr.mxu0 0.0
    %6183 = vmatpush1.msra.mxu0 0.0
    %6184 = vmatprep.subr.mxu0 0.0
    %6185 = vmatpush1.msra.mxu0 0.0
    %6186 = vmatprep.mubr.f32.mxu0 0.0
    %v6187 = vand.u32 %v5503, 4294901760
    %v6188 = vsub.f32 %v5503, %v6187
    %v6189 = vand.u32 %v6188, 4294901760
    %6190 = vmatmul.mubr.f32.gmra.mrb[0].mxu0 %v6189
    %v6191 = vpop.f32.mrb[0].mxu0
    %v6192 = vadd.f32 %v6013, %v6191
    %v6193 = vpop.f32.mrb[0].mxu0
    %6194 = vmatprep.mubr.f32.mxu0 0.0
    %v6195 = vand.u32 %v5506, 4294901760
    %v6196 = vsub.f32 %v5506, %v6195
    %v6197 = vand.u32 %v6196, 4294901760
    %6198 = vmatmul.mubr.f32.gmra.mrb[0].mxu0 %v6197
    %v6199 = vpop.f32.mrb[0].mxu0
    %v6200 = vadd.f32 %v6020, %v6199
    %v6201 = vpop.f32.mrb[0].mxu0
    %6202 = vmatprep.mubr.f32.mxu0 0.0
    %v6203 = vand.u32 %v5509, 4294901760
    %v6204 = vsub.f32 %v5509, %v6203
    %v6205 = vand.u32 %v6204, 4294901760
    %6206 = vmatmul.mubr.f32.gmra.mrb[0].mxu0 %v6205
    %v6207 = vpop.f32.mrb[0].mxu0
    %v6208 = vadd.f32 %v6027, %v6207
    %v6209 = vpop.f32.mrb[0].mxu0
    %6210 = vmatprep.mubr.f32.mxu0 0.0
    %v6211 = vand.u32 %v5512, 4294901760
    %v6212 = vsub.f32 %v5512, %v6211
    %v6213 = vand.u32 %v6212, 4294901760
    %6214 = vmatmul.mubr.f32.gmra.mrb[0].mxu0 %v6213
    %v6215 = vpop.f32.mrb[0].mxu0
    %v6216 = vadd.f32 %v6034, %v6215
    %v6217 = vpop.f32.mrb[0].mxu0
    %6218 = vmatprep.mubr.f32.mxu0 0.0
    %v6219 = vand.u32 %v5515, 4294901760
    %v6220 = vsub.f32 %v5515, %v6219
    %v6221 = vand.u32 %v6220, 4294901760
    %6222 = vmatmul.mubr.f32.gmra.mrb[0].mxu0 %v6221
    %v6223 = vpop.f32.mrb[0].mxu0
    %v6224 = vadd.f32 %v6041, %v6223
    %v6225 = vpop.f32.mrb[0].mxu0
    %6226 = vmatprep.mubr.f32.mxu0 0.0
    %v6227 = vand.u32 %v5518, 4294901760
    %v6228 = vsub.f32 %v5518, %v6227
    %v6229 = vand.u32 %v6228, 4294901760
    %6230 = vmatmul.mubr.f32.gmra.mrb[0].mxu0 %v6229
    %v6231 = vpop.f32.mrb[0].mxu0
    %v6232 = vadd.f32 %v6048, %v6231
    %v6233 = vpop.f32.mrb[0].mxu0
    %6234 = vmatprep.mubr.f32.mxu0 0.0
    %v6235 = vand.u32 %v5521, 4294901760
    %v6236 = vsub.f32 %v5521, %v6235
    %v6237 = vand.u32 %v6236, 4294901760
    %6238 = vmatmul.mubr.f32.gmra.mrb[0].mxu0 %v6237
    %v6239 = vpop.f32.mrb[0].mxu0
    %v6240 = vadd.f32 %v6055, %v6239
    %v6241 = vpop.f32.mrb[0].mxu0
    %6242 = vmatprep.mubr.f32.mxu0 0.0
    %v6243 = vand.u32 %v5524, 4294901760
    %v6244 = vsub.f32 %v5524, %v6243
    %v6245 = vand.u32 %v6244, 4294901760
    %6246 = vmatmul.mubr.f32.gmra.mrb[0].mxu0 %v6245
    %v6247 = vpop.f32.mrb[0].mxu0
    %v6248 = vadd.f32 %v6062, %v6247
    %v6249 = vpop.f32.mrb[0].mxu0
    %6250 = vmatprep.mubr.f32.mxu0 0.0
    %v6251 = vand.u32 %v5527, 4294901760
    %v6252 = vsub.f32 %v5527, %v6251
    %v6253 = vand.u32 %v6252, 4294901760
    %6254 = vmatmul.mubr.f32.gmra.mrb[0].mxu0 %v6253
    %v6255 = vpop.f32.mrb[0].mxu0
    %v6256 = vadd.f32 %v6069, %v6255
    %v6257 = vpop.f32.mrb[0].mxu0
    %6258 = vmatprep.mubr.f32.mxu0 0.0
    %v6259 = vand.u32 %v5530, 4294901760
    %v6260 = vsub.f32 %v5530, %v6259
    %v6261 = vand.u32 %v6260, 4294901760
    %6262 = vmatmul.mubr.f32.gmra.mrb[0].mxu0 %v6261
    %v6263 = vpop.f32.mrb[0].mxu0
    %v6264 = vadd.f32 %v6076, %v6263
    %v6265 = vpop.f32.mrb[0].mxu0
    %6266 = vmatprep.mubr.f32.mxu0 0.0
    %v6267 = vand.u32 %v5533, 4294901760
    %v6268 = vsub.f32 %v5533, %v6267
    %v6269 = vand.u32 %v6268, 4294901760
    %6270 = vmatmul.mubr.f32.gmra.mrb[0].mxu0 %v6269
    %v6271 = vpop.f32.mrb[0].mxu0
    %v6272 = vadd.f32 %v6083, %v6271
    %v6273 = vpop.f32.mrb[0].mxu0
    %6274 = vmatprep.mubr.f32.mxu0 0.0
    %v6275 = vand.u32 %v5536, 4294901760
    %v6276 = vsub.f32 %v5536, %v6275
    %v6277 = vand.u32 %v6276, 4294901760
    %6278 = vmatmul.mubr.f32.gmra.mrb[0].mxu0 %v6277
    %v6279 = vpop.f32.mrb[0].mxu0
    %v6280 = vadd.f32 %v6090, %v6279
    %v6281 = vpop.f32.mrb[0].mxu0
    %6282 = vmatprep.mubr.f32.mxu0 0.0
    %v6283 = vand.u32 %v5539, 4294901760
    %v6284 = vsub.f32 %v5539, %v6283
    %v6285 = vand.u32 %v6284, 4294901760
    %6286 = vmatmul.mubr.f32.gmra.mrb[0].mxu0 %v6285
    %v6287 = vpop.f32.mrb[0].mxu0
    %v6288 = vadd.f32 %v6097, %v6287
    %v6289 = vpop.f32.mrb[0].mxu0
    %6290 = vmatprep.mubr.f32.mxu0 0.0
    %v6291 = vand.u32 %v5542, 4294901760
    %v6292 = vsub.f32 %v5542, %v6291
    %v6293 = vand.u32 %v6292, 4294901760
    %6294 = vmatmul.mubr.f32.gmra.mrb[0].mxu0 %v6293
    %v6295 = vpop.f32.mrb[0].mxu0
    %v6296 = vadd.f32 %v6104, %v6295
    %v6297 = vpop.f32.mrb[0].mxu0
    %6298 = vmatprep.mubr.f32.mxu0 0.0
    %v6299 = vand.u32 %v5545, 4294901760
    %v6300 = vsub.f32 %v5545, %v6299
    %v6301 = vand.u32 %v6300, 4294901760
    %6302 = vmatmul.mubr.f32.gmra.mrb[0].mxu0 %v6301
    %v6303 = vpop.f32.mrb[0].mxu0
    %v6304 = vadd.f32 %v6111, %v6303
    %v6305 = vpop.f32.mrb[0].mxu0
    %6306 = vmatprep.mubr.f32.mxu0 0.0
    %v6307 = vand.u32 %v5548, 4294901760
    %v6308 = vsub.f32 %v5548, %v6307
    %v6309 = vand.u32 %v6308, 4294901760
    %6310 = vmatmul.mubr.f32.gmra.mrb[0].mxu0 %v6309
    %v6311 = vpop.f32.mrb[0].mxu0
    %v6312 = vadd.f32 %v6118, %v6311
    %v6313 = vpop.f32.mrb[0].mxu0
    %6314 = vdwg.mxu0
    %6315 = vmatprep.subr.mxu0 0.0
    %v6316 = vand.u32 %v21, 4294901760
    %v6317 = vsub.f32 %v21, %v6316
    %v6318 = vand.u32 %v6317, 4294901760
    %6319 = vmatpush1.msra.mxu0 %v6318
    %6320 = vmatprep.subr.mxu0 0.0
    %6321 = vmatpush1.msra.mxu0 0.0
    %6322 = vmatprep.subr.mxu0 0.0
    %6323 = vmatpush1.msra.mxu0 0.0
    %6324 = vmatprep.subr.mxu0 0.0
    %6325 = vmatpush1.msra.mxu0 0.0
    %6326 = vmatprep.subr.mxu0 0.0
    %6327 = vmatpush1.msra.mxu0 0.0
    %6328 = vmatprep.subr.mxu0 0.0
    %6329 = vmatpush1.msra.mxu0 0.0
    %6330 = vmatprep.subr.mxu0 0.0
    %6331 = vmatpush1.msra.mxu0 0.0
    %6332 = vmatprep.subr.mxu0 0.0
    %6333 = vmatpush1.msra.mxu0 0.0
    %6334 = vmatprep.subr.mxu0 0.0
    %6335 = vmatpush1.msra.mxu0 0.0
    %6336 = vmatprep.subr.mxu0 0.0
    %6337 = vmatpush1.msra.mxu0 0.0
    %6338 = vmatprep.subr.mxu0 0.0
    %6339 = vmatpush1.msra.mxu0 0.0
    %6340 = vmatprep.subr.mxu0 0.0
    %6341 = vmatpush1.msra.mxu0 0.0
    %6342 = vmatprep.subr.mxu0 0.0
    %6343 = vmatpush1.msra.mxu0 0.0
    %6344 = vmatprep.subr.mxu0 0.0
    %6345 = vmatpush1.msra.mxu0 0.0
    %6346 = vmatprep.subr.mxu0 0.0
    %6347 = vmatpush1.msra.mxu0 0.0
    %6348 = vmatprep.subr.mxu0 0.0
    %6349 = vmatpush1.msra.mxu0 0.0
    %6350 = vmatprep.subr.mxu0 0.0
    %6351 = vmatpush1.msra.mxu0 0.0
    %6352 = vmatprep.subr.mxu0 0.0
    %6353 = vmatpush1.msra.mxu0 0.0
    %6354 = vmatprep.subr.mxu0 0.0
    %6355 = vmatpush1.msra.mxu0 0.0
    %6356 = vmatprep.subr.mxu0 0.0
    %6357 = vmatpush1.msra.mxu0 0.0
    %6358 = vmatprep.subr.mxu0 0.0
    %6359 = vmatpush1.msra.mxu0 0.0
    %6360 = vmatprep.subr.mxu0 0.0
    %6361 = vmatpush1.msra.mxu0 0.0
    %6362 = vmatprep.subr.mxu0 0.0
    %6363 = vmatpush1.msra.mxu0 0.0
    %6364 = vmatprep.subr.mxu0 0.0
    %6365 = vmatpush1.msra.mxu0 0.0
    %6366 = vmatprep.subr.mxu0 0.0
    %6367 = vmatpush1.msra.mxu0 0.0
    %6368 = vmatprep.subr.mxu0 0.0
    %6369 = vmatpush1.msra.mxu0 0.0
    %6370 = vmatprep.subr.mxu0 0.0
    %6371 = vmatpush1.msra.mxu0 0.0
    %6372 = vmatprep.subr.mxu0 0.0
    %6373 = vmatpush1.msra.mxu0 0.0
    %6374 = vmatprep.subr.mxu0 0.0
    %6375 = vmatpush1.msra.mxu0 0.0
    %6376 = vmatprep.subr.mxu0 0.0
    %6377 = vmatpush1.msra.mxu0 0.0
    %6378 = vmatprep.subr.mxu0 0.0
    %6379 = vmatpush1.msra.mxu0 0.0
    %6380 = vmatprep.subr.mxu0 0.0
    %6381 = vmatpush1.msra.mxu0 0.0
    %6382 = vmatprep.mubr.f32.mxu0 0.0
    %v6383 = vand.u32 %v5503, 4294901760
    %6384 = vmatmul.mubr.f32.gmra.mrb[0].mxu0 %v6383
    %v6385 = vpop.f32.mrb[0].mxu0
    %v6386 = vadd.f32 %v6192, %v6385
    %v6387 = vpop.f32.mrb[0].mxu0
    %6388 = vmatprep.mubr.f32.mxu0 0.0
    %v6389 = vand.u32 %v5506, 4294901760
    %6390 = vmatmul.mubr.f32.gmra.mrb[0].mxu0 %v6389
    %v6391 = vpop.f32.mrb[0].mxu0
    %v6392 = vadd.f32 %v6200, %v6391
    %v6393 = vpop.f32.mrb[0].mxu0
    %6394 = vmatprep.mubr.f32.mxu0 0.0
    %v6395 = vand.u32 %v5509, 4294901760
    %6396 = vmatmul.mubr.f32.gmra.mrb[0].mxu0 %v6395
    %v6397 = vpop.f32.mrb[0].mxu0
    %v6398 = vadd.f32 %v6208, %v6397
    %v6399 = vpop.f32.mrb[0].mxu0
    %6400 = vmatprep.mubr.f32.mxu0 0.0
    %v6401 = vand.u32 %v5512, 4294901760
    %6402 = vmatmul.mubr.f32.gmra.mrb[0].mxu0 %v6401
    %v6403 = vpop.f32.mrb[0].mxu0
    %v6404 = vadd.f32 %v6216, %v6403
    %v6405 = vpop.f32.mrb[0].mxu0
    %6406 = vmatprep.mubr.f32.mxu0 0.0
    %v6407 = vand.u32 %v5515, 4294901760
    %6408 = vmatmul.mubr.f32.gmra.mrb[0].mxu0 %v6407
    %v6409 = vpop.f32.mrb[0].mxu0
    %v6410 = vadd.f32 %v6224, %v6409
    %v6411 = vpop.f32.mrb[0].mxu0
    %6412 = vmatprep.mubr.f32.mxu0 0.0
    %v6413 = vand.u32 %v5518, 4294901760
    %6414 = vmatmul.mubr.f32.gmra.mrb[0].mxu0 %v6413
    %v6415 = vpop.f32.mrb[0].mxu0
    %v6416 = vadd.f32 %v6232, %v6415
    %v6417 = vpop.f32.mrb[0].mxu0
    %6418 = vmatprep.mubr.f32.mxu0 0.0
    %v6419 = vand.u32 %v5521, 4294901760
    %6420 = vmatmul.mubr.f32.gmra.mrb[0].mxu0 %v6419
    %v6421 = vpop.f32.mrb[0].mxu0
    %v6422 = vadd.f32 %v6240, %v6421
    %v6423 = vpop.f32.mrb[0].mxu0
    %6424 = vmatprep.mubr.f32.mxu0 0.0
    %v6425 = vand.u32 %v5524, 4294901760
    %6426 = vmatmul.mubr.f32.gmra.mrb[0].mxu0 %v6425
    %v6427 = vpop.f32.mrb[0].mxu0
    %v6428 = vadd.f32 %v6248, %v6427
    %v6429 = vpop.f32.mrb[0].mxu0
    %6430 = vmatprep.mubr.f32.mxu0 0.0
    %v6431 = vand.u32 %v5527, 4294901760
    %6432 = vmatmul.mubr.f32.gmra.mrb[0].mxu0 %v6431
    %v6433 = vpop.f32.mrb[0].mxu0
    %v6434 = vadd.f32 %v6256, %v6433
    %v6435 = vpop.f32.mrb[0].mxu0
    %6436 = vmatprep.mubr.f32.mxu0 0.0
    %v6437 = vand.u32 %v5530, 4294901760
    %6438 = vmatmul.mubr.f32.gmra.mrb[0].mxu0 %v6437
    %v6439 = vpop.f32.mrb[0].mxu0
    %v6440 = vadd.f32 %v6264, %v6439
    %v6441 = vpop.f32.mrb[0].mxu0
    %6442 = vmatprep.mubr.f32.mxu0 0.0
    %v6443 = vand.u32 %v5533, 4294901760
    %6444 = vmatmul.mubr.f32.gmra.mrb[0].mxu0 %v6443
    %v6445 = vpop.f32.mrb[0].mxu0
    %v6446 = vadd.f32 %v6272, %v6445
    %v6447 = vpop.f32.mrb[0].mxu0
    %6448 = vmatprep.mubr.f32.mxu0 0.0
    %v6449 = vand.u32 %v5536, 4294901760
    %6450 = vmatmul.mubr.f32.gmra.mrb[0].mxu0 %v6449
    %v6451 = vpop.f32.mrb[0].mxu0
    %v6452 = vadd.f32 %v6280, %v6451
    %v6453 = vpop.f32.mrb[0].mxu0
    %6454 = vmatprep.mubr.f32.mxu0 0.0
    %v6455 = vand.u32 %v5539, 4294901760
    %6456 = vmatmul.mubr.f32.gmra.mrb[0].mxu0 %v6455
    %v6457 = vpop.f32.mrb[0].mxu0
    %v6458 = vadd.f32 %v6288, %v6457
    %v6459 = vpop.f32.mrb[0].mxu0
    %6460 = vmatprep.mubr.f32.mxu0 0.0
    %v6461 = vand.u32 %v5542, 4294901760
    %6462 = vmatmul.mubr.f32.gmra.mrb[0].mxu0 %v6461
    %v6463 = vpop.f32.mrb[0].mxu0
    %v6464 = vadd.f32 %v6296, %v6463
    %v6465 = vpop.f32.mrb[0].mxu0
    %6466 = vmatprep.mubr.f32.mxu0 0.0
    %v6467 = vand.u32 %v5545, 4294901760
    %6468 = vmatmul.mubr.f32.gmra.mrb[0].mxu0 %v6467
    %v6469 = vpop.f32.mrb[0].mxu0
    %v6470 = vadd.f32 %v6304, %v6469
    %v6471 = vpop.f32.mrb[0].mxu0
    %6472 = vmatprep.mubr.f32.mxu0 0.0
    %v6473 = vand.u32 %v5548, 4294901760
    %6474 = vmatmul.mubr.f32.gmra.mrb[0].mxu0 %v6473
    %v6475 = vpop.f32.mrb[0].mxu0
    %v6476 = vadd.f32 %v6312, %v6475
    %v6477 = vpop.f32.mrb[0].mxu0
    %6478 = vdwg.mxu0
    %6479 = vmatprep.subr.mxu0 0.0
    %v6480 = vand.u32 %v21, 4294901760
    %6481 = vmatpush1.msra.mxu0 %v6480
    %6482 = vmatprep.subr.mxu0 0.0
    %6483 = vmatpush1.msra.mxu0 0.0
    %6484 = vmatprep.subr.mxu0 0.0
    %6485 = vmatpush1.msra.mxu0 0.0
    %6486 = vmatprep.subr.mxu0 0.0
    %6487 = vmatpush1.msra.mxu0 0.0
    %6488 = vmatprep.subr.mxu0 0.0
    %6489 = vmatpush1.msra.mxu0 0.0
    %6490 = vmatprep.subr.mxu0 0.0
    %6491 = vmatpush1.msra.mxu0 0.0
    %6492 = vmatprep.subr.mxu0 0.0
    %6493 = vmatpush1.msra.mxu0 0.0
    %6494 = vmatprep.subr.mxu0 0.0
    %6495 = vmatpush1.msra.mxu0 0.0
    %6496 = vmatprep.subr.mxu0 0.0
    %6497 = vmatpush1.msra.mxu0 0.0
    %6498 = vmatprep.subr.mxu0 0.0
    %6499 = vmatpush1.msra.mxu0 0.0
    %6500 = vmatprep.subr.mxu0 0.0
    %6501 = vmatpush1.msra.mxu0 0.0
    %6502 = vmatprep.subr.mxu0 0.0
    %6503 = vmatpush1.msra.mxu0 0.0
    %6504 = vmatprep.subr.mxu0 0.0
    %6505 = vmatpush1.msra.mxu0 0.0
    %6506 = vmatprep.subr.mxu0 0.0
    %6507 = vmatpush1.msra.mxu0 0.0
    %6508 = vmatprep.subr.mxu0 0.0
    %6509 = vmatpush1.msra.mxu0 0.0
    %6510 = vmatprep.subr.mxu0 0.0
    %6511 = vmatpush1.msra.mxu0 0.0
    %6512 = vmatprep.subr.mxu0 0.0
    %6513 = vmatpush1.msra.mxu0 0.0
    %6514 = vmatprep.subr.mxu0 0.0
    %6515 = vmatpush1.msra.mxu0 0.0
    %6516 = vmatprep.subr.mxu0 0.0
    %6517 = vmatpush1.msra.mxu0 0.0
    %6518 = vmatprep.subr.mxu0 0.0
    %6519 = vmatpush1.msra.mxu0 0.0
    %6520 = vmatprep.subr.mxu0 0.0
    %6521 = vmatpush1.msra.mxu0 0.0
    %6522 = vmatprep.subr.mxu0 0.0
    %6523 = vmatpush1.msra.mxu0 0.0
    %6524 = vmatprep.subr.mxu0 0.0
    %6525 = vmatpush1.msra.mxu0 0.0
    %6526 = vmatprep.subr.mxu0 0.0
    %6527 = vmatpush1.msra.mxu0 0.0
    %6528 = vmatprep.subr.mxu0 0.0
    %6529 = vmatpush1.msra.mxu0 0.0
    %6530 = vmatprep.subr.mxu0 0.0
    %6531 = vmatpush1.msra.mxu0 0.0
    %6532 = vmatprep.subr.mxu0 0.0
    %6533 = vmatpush1.msra.mxu0 0.0
    %6534 = vmatprep.subr.mxu0 0.0
    %6535 = vmatpush1.msra.mxu0 0.0
    %6536 = vmatprep.subr.mxu0 0.0
    %6537 = vmatpush1.msra.mxu0 0.0
    %6538 = vmatprep.subr.mxu0 0.0
    %6539 = vmatpush1.msra.mxu0 0.0
    %6540 = vmatprep.subr.mxu0 0.0
    %6541 = vmatpush1.msra.mxu0 0.0
    %6542 = vmatprep.subr.mxu0 0.0
    %6543 = vmatpush1.msra.mxu0 0.0
    %6544 = vmatprep.mubr.f32.mxu0 0.0
    %v6545 = vand.u32 %v5503, 4294901760
    %6546 = vmatmul.mubr.f32.gmra.mrb[0].mxu0 %v6545
    %v6547 = vpop.f32.mrb[0].mxu0
    %v6548 = vadd.f32 %v6386, %v6547
    %v6549 = vpop.f32.mrb[0].mxu0
    %6550 = vmatprep.mubr.f32.mxu0 0.0
    %v6551 = vand.u32 %v5506, 4294901760
    %6552 = vmatmul.mubr.f32.gmra.mrb[0].mxu0 %v6551
    %v6553 = vpop.f32.mrb[0].mxu0
    %v6554 = vadd.f32 %v6392, %v6553
    %v6555 = vpop.f32.mrb[0].mxu0
    %6556 = vmatprep.mubr.f32.mxu0 0.0
    %v6557 = vand.u32 %v5509, 4294901760
    %6558 = vmatmul.mubr.f32.gmra.mrb[0].mxu0 %v6557
    %v6559 = vpop.f32.mrb[0].mxu0
    %v6560 = vadd.f32 %v6398, %v6559
    %v6561 = vpop.f32.mrb[0].mxu0
    %6562 = vmatprep.mubr.f32.mxu0 0.0
    %v6563 = vand.u32 %v5512, 4294901760
    %6564 = vmatmul.mubr.f32.gmra.mrb[0].mxu0 %v6563
    %v6565 = vpop.f32.mrb[0].mxu0
    %v6566 = vadd.f32 %v6404, %v6565
    %v6567 = vpop.f32.mrb[0].mxu0
    %6568 = vmatprep.mubr.f32.mxu0 0.0
    %v6569 = vand.u32 %v5515, 4294901760
    %6570 = vmatmul.mubr.f32.gmra.mrb[0].mxu0 %v6569
    %v6571 = vpop.f32.mrb[0].mxu0
    %v6572 = vadd.f32 %v6410, %v6571
    %v6573 = vpop.f32.mrb[0].mxu0
    %6574 = vmatprep.mubr.f32.mxu0 0.0
    %v6575 = vand.u32 %v5518, 4294901760
    %6576 = vmatmul.mubr.f32.gmra.mrb[0].mxu0 %v6575
    %v6577 = vpop.f32.mrb[0].mxu0
    %v6578 = vadd.f32 %v6416, %v6577
    %v6579 = vpop.f32.mrb[0].mxu0
    %6580 = vmatprep.mubr.f32.mxu0 0.0
    %v6581 = vand.u32 %v5521, 4294901760
    %6582 = vmatmul.mubr.f32.gmra.mrb[0].mxu0 %v6581
    %v6583 = vpop.f32.mrb[0].mxu0
    %v6584 = vadd.f32 %v6422, %v6583
    %v6585 = vpop.f32.mrb[0].mxu0
    %6586 = vmatprep.mubr.f32.mxu0 0.0
    %v6587 = vand.u32 %v5524, 4294901760
    %6588 = vmatmul.mubr.f32.gmra.mrb[0].mxu0 %v6587
    %v6589 = vpop.f32.mrb[0].mxu0
    %v6590 = vadd.f32 %v6428, %v6589
    %v6591 = vpop.f32.mrb[0].mxu0
    %6592 = vmatprep.mubr.f32.mxu0 0.0
    %v6593 = vand.u32 %v5527, 4294901760
    %6594 = vmatmul.mubr.f32.gmra.mrb[0].mxu0 %v6593
    %v6595 = vpop.f32.mrb[0].mxu0
    %v6596 = vadd.f32 %v6434, %v6595
    %v6597 = vpop.f32.mrb[0].mxu0
    %6598 = vmatprep.mubr.f32.mxu0 0.0
    %v6599 = vand.u32 %v5530, 4294901760
    %6600 = vmatmul.mubr.f32.gmra.mrb[0].mxu0 %v6599
    %v6601 = vpop.f32.mrb[0].mxu0
    %v6602 = vadd.f32 %v6440, %v6601
    %v6603 = vpop.f32.mrb[0].mxu0
    %6604 = vmatprep.mubr.f32.mxu0 0.0
    %v6605 = vand.u32 %v5533, 4294901760
    %6606 = vmatmul.mubr.f32.gmra.mrb[0].mxu0 %v6605
    %v6607 = vpop.f32.mrb[0].mxu0
    %v6608 = vadd.f32 %v6446, %v6607
    %v6609 = vpop.f32.mrb[0].mxu0
    %6610 = vmatprep.mubr.f32.mxu0 0.0
    %v6611 = vand.u32 %v5536, 4294901760
    %6612 = vmatmul.mubr.f32.gmra.mrb[0].mxu0 %v6611
    %v6613 = vpop.f32.mrb[0].mxu0
    %v6614 = vadd.f32 %v6452, %v6613
    %v6615 = vpop.f32.mrb[0].mxu0
    %6616 = vmatprep.mubr.f32.mxu0 0.0
    %v6617 = vand.u32 %v5539, 4294901760
    %6618 = vmatmul.mubr.f32.gmra.mrb[0].mxu0 %v6617
    %v6619 = vpop.f32.mrb[0].mxu0
    %v6620 = vadd.f32 %v6458, %v6619
    %v6621 = vpop.f32.mrb[0].mxu0
    %6622 = vmatprep.mubr.f32.mxu0 0.0
    %v6623 = vand.u32 %v5542, 4294901760
    %6624 = vmatmul.mubr.f32.gmra.mrb[0].mxu0 %v6623
    %v6625 = vpop.f32.mrb[0].mxu0
    %v6626 = vadd.f32 %v6464, %v6625
    %v6627 = vpop.f32.mrb[0].mxu0
    %6628 = vmatprep.mubr.f32.mxu0 0.0
    %v6629 = vand.u32 %v5545, 4294901760
    %6630 = vmatmul.mubr.f32.gmra.mrb[0].mxu0 %v6629
    %v6631 = vpop.f32.mrb[0].mxu0
    %v6632 = vadd.f32 %v6470, %v6631
    %v6633 = vpop.f32.mrb[0].mxu0
    %6634 = vmatprep.mubr.f32.mxu0 0.0
    %v6635 = vand.u32 %v5548, 4294901760
    %6636 = vmatmul.mubr.f32.gmra.mrb[0].mxu0 %v6635
    %v6637 = vpop.f32.mrb[0].mxu0
    %v6638 = vadd.f32 %v6476, %v6637
    %v6639 = vpop.f32.mrb[0].mxu0
    %6640 = vdwg.mxu0
    %v6641 = vsel %vm45, %v6548, -inf
    %6642 = vmax.xlane.f32.xlu0 %v6641
    %v6643 = vpop.xlane.xlu0 %6642
    %v6644 = vsel %vm45, %v6554, -inf
    %6645 = vmax.xlane.f32.xlu0 %v6644
    %v6646 = vpop.xlane.xlu0 %6645
    %v6647 = vsel %vm45, %v6560, -inf
    %6648 = vmax.xlane.f32.xlu0 %v6647
    %v6649 = vpop.xlane.xlu0 %6648
    %v6650 = vsel %vm45, %v6566, -inf
    %6651 = vmax.xlane.f32.xlu0 %v6650
    %v6652 = vpop.xlane.xlu0 %6651
    %v6653 = vsel %vm45, %v6572, -inf
    %6654 = vmax.xlane.f32.xlu0 %v6653
    %v6655 = vpop.xlane.xlu0 %6654
    %v6656 = vsel %vm45, %v6578, -inf
    %6657 = vmax.xlane.f32.xlu0 %v6656
    %v6658 = vpop.xlane.xlu0 %6657
    %v6659 = vsel %vm45, %v6584, -inf
    %6660 = vmax.xlane.f32.xlu0 %v6659
    %v6661 = vpop.xlane.xlu0 %6660
    %v6662 = vsel %vm45, %v6590, -inf
    %6663 = vmax.xlane.f32.xlu0 %v6662
    %v6664 = vpop.xlane.xlu0 %6663
    %v6665 = vsel %vm45, %v6596, -inf
    %6666 = vmax.xlane.f32.xlu0 %v6665
    %v6667 = vpop.xlane.xlu0 %6666
    %v6668 = vsel %vm45, %v6602, -inf
    %6669 = vmax.xlane.f32.xlu0 %v6668
    %v6670 = vpop.xlane.xlu0 %6669
    %v6671 = vsel %vm45, %v6608, -inf
    %6672 = vmax.xlane.f32.xlu0 %v6671
    %v6673 = vpop.xlane.xlu0 %6672
    %v6674 = vsel %vm45, %v6614, -inf
    %6675 = vmax.xlane.f32.xlu0 %v6674
    %v6676 = vpop.xlane.xlu0 %6675
    %v6677 = vsel %vm45, %v6620, -inf
    %6678 = vmax.xlane.f32.xlu0 %v6677
    %v6679 = vpop.xlane.xlu0 %6678
    %v6680 = vsel %vm45, %v6626, -inf
    %6681 = vmax.xlane.f32.xlu0 %v6680
    %v6682 = vpop.xlane.xlu0 %6681
    %v6683 = vsel %vm45, %v6632, -inf
    %6684 = vmax.xlane.f32.xlu0 %v6683
    %v6685 = vpop.xlane.xlu0 %6684
    %v6686 = vsel %vm45, %v6638, -inf
    %6687 = vmax.xlane.f32.xlu0 %v6686
    %v6688 = vpop.xlane.xlu0 %6687
    %v6689 = vsub.f32 %v6548, %v6643
    %v6690 = vsub.f32 %v6554, %v6646
    %v6691 = vsub.f32 %v6560, %v6649
    %v6692 = vsub.f32 %v6566, %v6652
    %v6693 = vsub.f32 %v6572, %v6655
    %v6694 = vsub.f32 %v6578, %v6658
    %v6695 = vsub.f32 %v6584, %v6661
    %v6696 = vsub.f32 %v6590, %v6664
    %v6697 = vsub.f32 %v6596, %v6667
    %v6698 = vsub.f32 %v6602, %v6670
    %v6699 = vsub.f32 %v6608, %v6673
    %v6700 = vsub.f32 %v6614, %v6676
    %v6701 = vsub.f32 %v6620, %v6679
    %v6702 = vsub.f32 %v6626, %v6682
    %v6703 = vsub.f32 %v6632, %v6685
    %v6704 = vsub.f32 %v6638, %v6688
    %v6705 = vmul.f32 %v6689, 1.442695
    %v6706 = vpow.pop %v6705
    %v6707 = vmul.f32 %v6690, 1.442695
    %v6708 = vpow.pop %v6707
    %v6709 = vmul.f32 %v6691, 1.442695
    %v6710 = vpow.pop %v6709
    %v6711 = vmul.f32 %v6692, 1.442695
    %v6712 = vpow.pop %v6711
    %v6713 = vmul.f32 %v6693, 1.442695
    %v6714 = vpow.pop %v6713
    %v6715 = vmul.f32 %v6694, 1.442695
    %v6716 = vpow.pop %v6715
    %v6717 = vmul.f32 %v6695, 1.442695
    %v6718 = vpow.pop %v6717
    %v6719 = vmul.f32 %v6696, 1.442695
    %v6720 = vpow.pop %v6719
    %v6721 = vmul.f32 %v6697, 1.442695
    %v6722 = vpow.pop %v6721
    %v6723 = vmul.f32 %v6698, 1.442695
    %v6724 = vpow.pop %v6723
    %v6725 = vmul.f32 %v6699, 1.442695
    %v6726 = vpow.pop %v6725
    %v6727 = vmul.f32 %v6700, 1.442695
    %v6728 = vpow.pop %v6727
    %v6729 = vmul.f32 %v6701, 1.442695
    %v6730 = vpow.pop %v6729
    %v6731 = vmul.f32 %v6702, 1.442695
    %v6732 = vpow.pop %v6731
    %v6733 = vmul.f32 %v6703, 1.442695
    %v6734 = vpow.pop %v6733
    %v6735 = vmul.f32 %v6704, 1.442695
    %v6736 = vpow.pop %v6735
    %v6737 = vsel %vm45, %v6706, 0.0
    %6738 = vadd.xlane.f32.xlu0 %v6737
    %v6739 = vpop.xlane.xlu0 %6738
    %v6740 = vsel %vm45, %v6708, 0.0
    %6741 = vadd.xlane.f32.xlu0 %v6740
    %v6742 = vpop.xlane.xlu0 %6741
    %v6743 = vsel %vm45, %v6710, 0.0
    %6744 = vadd.xlane.f32.xlu0 %v6743
    %v6745 = vpop.xlane.xlu0 %6744
    %v6746 = vsel %vm45, %v6712, 0.0
    %6747 = vadd.xlane.f32.xlu0 %v6746
    %v6748 = vpop.xlane.xlu0 %6747
    %v6749 = vsel %vm45, %v6714, 0.0
    %6750 = vadd.xlane.f32.xlu0 %v6749
    %v6751 = vpop.xlane.xlu0 %6750
    %v6752 = vsel %vm45, %v6716, 0.0
    %6753 = vadd.xlane.f32.xlu0 %v6752
    %v6754 = vpop.xlane.xlu0 %6753
    %v6755 = vsel %vm45, %v6718, 0.0
    %6756 = vadd.xlane.f32.xlu0 %v6755
    %v6757 = vpop.xlane.xlu0 %6756
    %v6758 = vsel %vm45, %v6720, 0.0
    %6759 = vadd.xlane.f32.xlu0 %v6758
    %v6760 = vpop.xlane.xlu0 %6759
    %v6761 = vsel %vm45, %v6722, 0.0
    %6762 = vadd.xlane.f32.xlu0 %v6761
    %v6763 = vpop.xlane.xlu0 %6762
    %v6764 = vsel %vm45, %v6724, 0.0
    %6765 = vadd.xlane.f32.xlu0 %v6764
    %v6766 = vpop.xlane.xlu0 %6765
    %v6767 = vsel %vm45, %v6726, 0.0
    %6768 = vadd.xlane.f32.xlu0 %v6767
    %v6769 = vpop.xlane.xlu0 %6768
    %v6770 = vsel %vm45, %v6728, 0.0
    %6771 = vadd.xlane.f32.xlu0 %v6770
    %v6772 = vpop.xlane.xlu0 %6771
    %v6773 = vsel %vm45, %v6730, 0.0
    %6774 = vadd.xlane.f32.xlu0 %v6773
    %v6775 = vpop.xlane.xlu0 %6774
    %v6776 = vsel %vm45, %v6732, 0.0
    %6777 = vadd.xlane.f32.xlu0 %v6776
    %v6778 = vpop.xlane.xlu0 %6777
    %v6779 = vsel %vm45, %v6734, 0.0
    %6780 = vadd.xlane.f32.xlu0 %v6779
    %v6781 = vpop.xlane.xlu0 %6780
    %v6782 = vsel %vm45, %v6736, 0.0
    %6783 = vadd.xlane.f32.xlu0 %v6782
    %v6784 = vpop.xlane.xlu0 %6783
    %v6785 = vrcp.pop %v6739
    %v6786 = vmul.f32 %v6706, %v6785
    %v6787 = vrcp.pop %v6742
    %v6788 = vmul.f32 %v6708, %v6787
    %v6789 = vrcp.pop %v6745
    %v6790 = vmul.f32 %v6710, %v6789
    %v6791 = vrcp.pop %v6748
    %v6792 = vmul.f32 %v6712, %v6791
    %v6793 = vrcp.pop %v6751
    %v6794 = vmul.f32 %v6714, %v6793
    %v6795 = vrcp.pop %v6754
    %v6796 = vmul.f32 %v6716, %v6795
    %v6797 = vrcp.pop %v6757
    %v6798 = vmul.f32 %v6718, %v6797
    %v6799 = vrcp.pop %v6760
    %v6800 = vmul.f32 %v6720, %v6799
    %v6801 = vrcp.pop %v6763
    %v6802 = vmul.f32 %v6722, %v6801
    %v6803 = vrcp.pop %v6766
    %v6804 = vmul.f32 %v6724, %v6803
    %v6805 = vrcp.pop %v6769
    %v6806 = vmul.f32 %v6726, %v6805
    %v6807 = vrcp.pop %v6772
    %v6808 = vmul.f32 %v6728, %v6807
    %v6809 = vrcp.pop %v6775
    %v6810 = vmul.f32 %v6730, %v6809
    %v6811 = vrcp.pop %v6778
    %v6812 = vmul.f32 %v6732, %v6811
    %v6813 = vrcp.pop %v6781
    %v6814 = vmul.f32 %v6734, %v6813
    %v6815 = vrcp.pop %v6784
    %v6816 = vmul.f32 %v6736, %v6815
    %v6817 = vmul.f32 %v6786, %v5486
    %v6818 = vmul.f32 %v6788, %v5487
    %v6819 = vmul.f32 %v6790, %v5488
    %v6820 = vmul.f32 %v6792, %v5489
    %v6821 = vmul.f32 %v6794, %v5490
    %v6822 = vmul.f32 %v6796, %v5491
    %v6823 = vmul.f32 %v6798, %v5492
    %v6824 = vmul.f32 %v6800, %v5493
    %v6825 = vmul.f32 %v6802, %v5494
    %v6826 = vmul.f32 %v6804, %v5495
    %v6827 = vmul.f32 %v6806, %v5496
    %v6828 = vmul.f32 %v6808, %v5497
    %v6829 = vmul.f32 %v6810, %v5498
    %v6830 = vmul.f32 %v6812, %v5499
    %v6831 = vmul.f32 %v6814, %v5500
    %v6832 = vmul.f32 %v6816, %v5501
    %v6833 = vadd.f32 %v5469, %v6817
    %v6834 = vadd.f32 %v5470, %v6818
    %v6835 = vadd.f32 %v5471, %v6819
    %v6836 = vadd.f32 %v5472, %v6820
    %v6837 = vadd.f32 %v5473, %v6821
    %v6838 = vadd.f32 %v5474, %v6822
    %v6839 = vadd.f32 %v5475, %v6823
    %v6840 = vadd.f32 %v5476, %v6824
    %v6841 = vadd.f32 %v5477, %v6825
    %v6842 = vadd.f32 %v5478, %v6826
    %v6843 = vadd.f32 %v5479, %v6827
    %v6844 = vadd.f32 %v5480, %v6828
    %v6845 = vadd.f32 %v5481, %v6829
    %v6846 = vadd.f32 %v5482, %v6830
    %v6847 = vadd.f32 %v5483, %v6831
    %v6848 = vadd.f32 %v5484, %v6832
    %s6849 = scalar_lea.vmem %s0, 640
    %v6850 = vld [vmem:[%s6849] sm:$0xff]
    %v6851 = vld [vmem:[%s6849 + $0x8] sm:$0xff]
    %v6852 = vld [vmem:[%s6849 + $0x10] sm:$0xff]
    %v6853 = vld [vmem:[%s6849 + $0x18] sm:$0xff]
    %v6854 = vld [vmem:[%s6849 + $0x20] sm:$0xff]
    %v6855 = vld [vmem:[%s6849 + $0x28] sm:$0xff]
    %v6856 = vld [vmem:[%s6849 + $0x30] sm:$0xff]
    %v6857 = vld [vmem:[%s6849 + $0x38] sm:$0xff]
    %v6858 = vld [vmem:[%s6849 + $0x40] sm:$0xff]
    %v6859 = vld [vmem:[%s6849 + $0x48] sm:$0xff]
    %v6860 = vld [vmem:[%s6849 + $0x50] sm:$0xff]
    %v6861 = vld [vmem:[%s6849 + $0x58] sm:$0xff]
    %v6862 = vld [vmem:[%s6849 + $0x60] sm:$0xff]
    %v6863 = vld [vmem:[%s6849 + $0x68] sm:$0xff]
    %v6864 = vld [vmem:[%s6849 + $0x70] sm:$0xff]
    %v6865 = vld [vmem:[%s6849 + $0x78] sm:$0xff]
    %v6867 = vsel %vm45, %v6850, 0
    %v6870 = vsel %vm45, %v6851, 0
    %v6873 = vsel %vm45, %v6852, 0
    %v6876 = vsel %vm45, %v6853, 0
    %v6879 = vsel %vm45, %v6854, 0
    %v6882 = vsel %vm45, %v6855, 0
    %v6885 = vsel %vm45, %v6856, 0
    %v6888 = vsel %vm45, %v6857, 0
    %v6891 = vsel %vm45, %v6858, 0
    %v6894 = vsel %vm45, %v6859, 0
    %v6897 = vsel %vm45, %v6860, 0
    %v6900 = vsel %vm45, %v6861, 0
    %v6903 = vsel %vm45, %v6862, 0
    %v6906 = vsel %vm45, %v6863, 0
    %v6909 = vsel %vm45, %v6864, 0
    %v6912 = vsel %vm45, %v6865, 0
    %6914 = vmatprep.subr.mxu0 0.0
    %v6915 = vand.u32 %v21, 4294901760
    %6916 = vmatpush1.msra.mxu0 %v6915
    %6917 = vmatprep.subr.mxu0 0.0
    %6918 = vmatpush1.msra.mxu0 0.0
    %6919 = vmatprep.subr.mxu0 0.0
    %6920 = vmatpush1.msra.mxu0 0.0
    %6921 = vmatprep.subr.mxu0 0.0
    %6922 = vmatpush1.msra.mxu0 0.0
    %6923 = vmatprep.subr.mxu0 0.0
    %6924 = vmatpush1.msra.mxu0 0.0
    %6925 = vmatprep.subr.mxu0 0.0
    %6926 = vmatpush1.msra.mxu0 0.0
    %6927 = vmatprep.subr.mxu0 0.0
    %6928 = vmatpush1.msra.mxu0 0.0
    %6929 = vmatprep.subr.mxu0 0.0
    %6930 = vmatpush1.msra.mxu0 0.0
    %6931 = vmatprep.subr.mxu0 0.0
    %6932 = vmatpush1.msra.mxu0 0.0
    %6933 = vmatprep.subr.mxu0 0.0
    %6934 = vmatpush1.msra.mxu0 0.0
    %6935 = vmatprep.subr.mxu0 0.0
    %6936 = vmatpush1.msra.mxu0 0.0
    %6937 = vmatprep.subr.mxu0 0.0
    %6938 = vmatpush1.msra.mxu0 0.0
    %6939 = vmatprep.subr.mxu0 0.0
    %6940 = vmatpush1.msra.mxu0 0.0
    %6941 = vmatprep.subr.mxu0 0.0
    %6942 = vmatpush1.msra.mxu0 0.0
    %6943 = vmatprep.subr.mxu0 0.0
    %6944 = vmatpush1.msra.mxu0 0.0
    %6945 = vmatprep.subr.mxu0 0.0
    %6946 = vmatpush1.msra.mxu0 0.0
    %6947 = vmatprep.subr.mxu0 0.0
    %6948 = vmatpush1.msra.mxu0 0.0
    %6949 = vmatprep.subr.mxu0 0.0
    %6950 = vmatpush1.msra.mxu0 0.0
    %6951 = vmatprep.subr.mxu0 0.0
    %6952 = vmatpush1.msra.mxu0 0.0
    %6953 = vmatprep.subr.mxu0 0.0
    %6954 = vmatpush1.msra.mxu0 0.0
    %6955 = vmatprep.subr.mxu0 0.0
    %6956 = vmatpush1.msra.mxu0 0.0
    %6957 = vmatprep.subr.mxu0 0.0
    %6958 = vmatpush1.msra.mxu0 0.0
    %6959 = vmatprep.subr.mxu0 0.0
    %6960 = vmatpush1.msra.mxu0 0.0
    %6961 = vmatprep.subr.mxu0 0.0
    %6962 = vmatpush1.msra.mxu0 0.0
    %6963 = vmatprep.subr.mxu0 0.0
    %6964 = vmatpush1.msra.mxu0 0.0
    %6965 = vmatprep.subr.mxu0 0.0
    %6966 = vmatpush1.msra.mxu0 0.0
    %6967 = vmatprep.subr.mxu0 0.0
    %6968 = vmatpush1.msra.mxu0 0.0
    %6969 = vmatprep.subr.mxu0 0.0
    %6970 = vmatpush1.msra.mxu0 0.0
    %6971 = vmatprep.subr.mxu0 0.0
    %6972 = vmatpush1.msra.mxu0 0.0
    %6973 = vmatprep.subr.mxu0 0.0
    %6974 = vmatpush1.msra.mxu0 0.0
    %6975 = vmatprep.subr.mxu0 0.0
    %6976 = vmatpush1.msra.mxu0 0.0
    %6977 = vmatprep.subr.mxu0 0.0
    %6978 = vmatpush1.msra.mxu0 0.0
    %6979 = vmatprep.mubr.f32.mxu0 0.0
    %v6980 = vand.u32 %v6867, 4294901760
    %v6981 = vsub.f32 %v6867, %v6980
    %v6982 = vand.u32 %v6981, 4294901760
    %v6983 = vsub.f32 %v6981, %v6982
    %v6984 = vand.u32 %v6983, 4294901760
    %6985 = vmatmul.mubr.f32.gmra.mrb[0].mxu0 %v6984
    %v6986 = vpop.f32.mrb[0].mxu0
    %v6987 = vadd.f32 %v43, %v6986
    %v6988 = vpop.f32.mrb[0].mxu0
    %6989 = vmatprep.mubr.f32.mxu0 0.0
    %v6990 = vand.u32 %v6870, 4294901760
    %v6991 = vsub.f32 %v6870, %v6990
    %v6992 = vand.u32 %v6991, 4294901760
    %v6993 = vsub.f32 %v6991, %v6992
    %v6994 = vand.u32 %v6993, 4294901760
    %6995 = vmatmul.mubr.f32.gmra.mrb[0].mxu0 %v6994
    %v6996 = vpop.f32.mrb[0].mxu0
    %v6997 = vadd.f32 %v43, %v6996
    %v6998 = vpop.f32.mrb[0].mxu0
    %6999 = vmatprep.mubr.f32.mxu0 0.0
    %v7000 = vand.u32 %v6873, 4294901760
    %v7001 = vsub.f32 %v6873, %v7000
    %v7002 = vand.u32 %v7001, 4294901760
    %v7003 = vsub.f32 %v7001, %v7002
    %v7004 = vand.u32 %v7003, 4294901760
    %7005 = vmatmul.mubr.f32.gmra.mrb[0].mxu0 %v7004
    %v7006 = vpop.f32.mrb[0].mxu0
    %v7007 = vadd.f32 %v43, %v7006
    %v7008 = vpop.f32.mrb[0].mxu0
    %7009 = vmatprep.mubr.f32.mxu0 0.0
    %v7010 = vand.u32 %v6876, 4294901760
    %v7011 = vsub.f32 %v6876, %v7010
    %v7012 = vand.u32 %v7011, 4294901760
    %v7013 = vsub.f32 %v7011, %v7012
    %v7014 = vand.u32 %v7013, 4294901760
    %7015 = vmatmul.mubr.f32.gmra.mrb[0].mxu0 %v7014
    %v7016 = vpop.f32.mrb[0].mxu0
    %v7017 = vadd.f32 %v43, %v7016
    %v7018 = vpop.f32.mrb[0].mxu0
    %7019 = vmatprep.mubr.f32.mxu0 0.0
    %v7020 = vand.u32 %v6879, 4294901760
    %v7021 = vsub.f32 %v6879, %v7020
    %v7022 = vand.u32 %v7021, 4294901760
    %v7023 = vsub.f32 %v7021, %v7022
    %v7024 = vand.u32 %v7023, 4294901760
    %7025 = vmatmul.mubr.f32.gmra.mrb[0].mxu0 %v7024
    %v7026 = vpop.f32.mrb[0].mxu0
    %v7027 = vadd.f32 %v43, %v7026
    %v7028 = vpop.f32.mrb[0].mxu0
    %7029 = vmatprep.mubr.f32.mxu0 0.0
    %v7030 = vand.u32 %v6882, 4294901760
    %v7031 = vsub.f32 %v6882, %v7030
    %v7032 = vand.u32 %v7031, 4294901760
    %v7033 = vsub.f32 %v7031, %v7032
    %v7034 = vand.u32 %v7033, 4294901760
    %7035 = vmatmul.mubr.f32.gmra.mrb[0].mxu0 %v7034
    %v7036 = vpop.f32.mrb[0].mxu0
    %v7037 = vadd.f32 %v43, %v7036
    %v7038 = vpop.f32.mrb[0].mxu0
    %7039 = vmatprep.mubr.f32.mxu0 0.0
    %v7040 = vand.u32 %v6885, 4294901760
    %v7041 = vsub.f32 %v6885, %v7040
    %v7042 = vand.u32 %v7041, 4294901760
    %v7043 = vsub.f32 %v7041, %v7042
    %v7044 = vand.u32 %v7043, 4294901760
    %7045 = vmatmul.mubr.f32.gmra.mrb[0].mxu0 %v7044
    %v7046 = vpop.f32.mrb[0].mxu0
    %v7047 = vadd.f32 %v43, %v7046
    %v7048 = vpop.f32.mrb[0].mxu0
    %7049 = vmatprep.mubr.f32.mxu0 0.0
    %v7050 = vand.u32 %v6888, 4294901760
    %v7051 = vsub.f32 %v6888, %v7050
    %v7052 = vand.u32 %v7051, 4294901760
    %v7053 = vsub.f32 %v7051, %v7052
    %v7054 = vand.u32 %v7053, 4294901760
    %7055 = vmatmul.mubr.f32.gmra.mrb[0].mxu0 %v7054
    %v7056 = vpop.f32.mrb[0].mxu0
    %v7057 = vadd.f32 %v43, %v7056
    %v7058 = vpop.f32.mrb[0].mxu0
    %7059 = vmatprep.mubr.f32.mxu0 0.0
    %v7060 = vand.u32 %v6891, 4294901760
    %v7061 = vsub.f32 %v6891, %v7060
    %v7062 = vand.u32 %v7061, 4294901760
    %v7063 = vsub.f32 %v7061, %v7062
    %v7064 = vand.u32 %v7063, 4294901760
    %7065 = vmatmul.mubr.f32.gmra.mrb[0].mxu0 %v7064
    %v7066 = vpop.f32.mrb[0].mxu0
    %v7067 = vadd.f32 %v43, %v7066
    %v7068 = vpop.f32.mrb[0].mxu0
    %7069 = vmatprep.mubr.f32.mxu0 0.0
    %v7070 = vand.u32 %v6894, 4294901760
    %v7071 = vsub.f32 %v6894, %v7070
    %v7072 = vand.u32 %v7071, 4294901760
    %v7073 = vsub.f32 %v7071, %v7072
    %v7074 = vand.u32 %v7073, 4294901760
    %7075 = vmatmul.mubr.f32.gmra.mrb[0].mxu0 %v7074
    %v7076 = vpop.f32.mrb[0].mxu0
    %v7077 = vadd.f32 %v43, %v7076
    %v7078 = vpop.f32.mrb[0].mxu0
    %7079 = vmatprep.mubr.f32.mxu0 0.0
    %v7080 = vand.u32 %v6897, 4294901760
    %v7081 = vsub.f32 %v6897, %v7080
    %v7082 = vand.u32 %v7081, 4294901760
    %v7083 = vsub.f32 %v7081, %v7082
    %v7084 = vand.u32 %v7083, 4294901760
    %7085 = vmatmul.mubr.f32.gmra.mrb[0].mxu0 %v7084
    %v7086 = vpop.f32.mrb[0].mxu0
    %v7087 = vadd.f32 %v43, %v7086
    %v7088 = vpop.f32.mrb[0].mxu0
    %7089 = vmatprep.mubr.f32.mxu0 0.0
    %v7090 = vand.u32 %v6900, 4294901760
    %v7091 = vsub.f32 %v6900, %v7090
    %v7092 = vand.u32 %v7091, 4294901760
    %v7093 = vsub.f32 %v7091, %v7092
    %v7094 = vand.u32 %v7093, 4294901760
    %7095 = vmatmul.mubr.f32.gmra.mrb[0].mxu0 %v7094
    %v7096 = vpop.f32.mrb[0].mxu0
    %v7097 = vadd.f32 %v43, %v7096
    %v7098 = vpop.f32.mrb[0].mxu0
    %7099 = vmatprep.mubr.f32.mxu0 0.0
    %v7100 = vand.u32 %v6903, 4294901760
    %v7101 = vsub.f32 %v6903, %v7100
    %v7102 = vand.u32 %v7101, 4294901760
    %v7103 = vsub.f32 %v7101, %v7102
    %v7104 = vand.u32 %v7103, 4294901760
    %7105 = vmatmul.mubr.f32.gmra.mrb[0].mxu0 %v7104
    %v7106 = vpop.f32.mrb[0].mxu0
    %v7107 = vadd.f32 %v43, %v7106
    %v7108 = vpop.f32.mrb[0].mxu0
    %7109 = vmatprep.mubr.f32.mxu0 0.0
    %v7110 = vand.u32 %v6906, 4294901760
    %v7111 = vsub.f32 %v6906, %v7110
    %v7112 = vand.u32 %v7111, 4294901760
    %v7113 = vsub.f32 %v7111, %v7112
    %v7114 = vand.u32 %v7113, 4294901760
    %7115 = vmatmul.mubr.f32.gmra.mrb[0].mxu0 %v7114
    %v7116 = vpop.f32.mrb[0].mxu0
    %v7117 = vadd.f32 %v43, %v7116
    %v7118 = vpop.f32.mrb[0].mxu0
    %7119 = vmatprep.mubr.f32.mxu0 0.0
    %v7120 = vand.u32 %v6909, 4294901760
    %v7121 = vsub.f32 %v6909, %v7120
    %v7122 = vand.u32 %v7121, 4294901760
    %v7123 = vsub.f32 %v7121, %v7122
    %v7124 = vand.u32 %v7123, 4294901760
    %7125 = vmatmul.mubr.f32.gmra.mrb[0].mxu0 %v7124
    %v7126 = vpop.f32.mrb[0].mxu0
    %v7127 = vadd.f32 %v43, %v7126
    %v7128 = vpop.f32.mrb[0].mxu0
    %7129 = vmatprep.mubr.f32.mxu0 0.0
    %v7130 = vand.u32 %v6912, 4294901760
    %v7131 = vsub.f32 %v6912, %v7130
    %v7132 = vand.u32 %v7131, 4294901760
    %v7133 = vsub.f32 %v7131, %v7132
    %v7134 = vand.u32 %v7133, 4294901760
    %7135 = vmatmul.mubr.f32.gmra.mrb[0].mxu0 %v7134
    %v7136 = vpop.f32.mrb[0].mxu0
    %v7137 = vadd.f32 %v43, %v7136
    %v7138 = vpop.f32.mrb[0].mxu0
    %7139 = vdwg.mxu0
    %7140 = vmatprep.subr.mxu0 0.0
    %v7141 = vand.u32 %v21, 4294901760
    %v7142 = vsub.f32 %v21, %v7141
    %v7143 = vand.u32 %v7142, 4294901760
    %v7144 = vsub.f32 %v7142, %v7143
    %v7145 = vand.u32 %v7144, 4294901760
    %7146 = vmatpush1.msra.mxu0 %v7145
    %7147 = vmatprep.subr.mxu0 0.0
    %7148 = vmatpush1.msra.mxu0 0.0
    %7149 = vmatprep.subr.mxu0 0.0
    %7150 = vmatpush1.msra.mxu0 0.0
    %7151 = vmatprep.subr.mxu0 0.0
    %7152 = vmatpush1.msra.mxu0 0.0
    %7153 = vmatprep.subr.mxu0 0.0
    %7154 = vmatpush1.msra.mxu0 0.0
    %7155 = vmatprep.subr.mxu0 0.0
    %7156 = vmatpush1.msra.mxu0 0.0
    %7157 = vmatprep.subr.mxu0 0.0
    %7158 = vmatpush1.msra.mxu0 0.0
    %7159 = vmatprep.subr.mxu0 0.0
    %7160 = vmatpush1.msra.mxu0 0.0
    %7161 = vmatprep.subr.mxu0 0.0
    %7162 = vmatpush1.msra.mxu0 0.0
    %7163 = vmatprep.subr.mxu0 0.0
    %7164 = vmatpush1.msra.mxu0 0.0
    %7165 = vmatprep.subr.mxu0 0.0
    %7166 = vmatpush1.msra.mxu0 0.0
    %7167 = vmatprep.subr.mxu0 0.0
    %7168 = vmatpush1.msra.mxu0 0.0
    %7169 = vmatprep.subr.mxu0 0.0
    %7170 = vmatpush1.msra.mxu0 0.0
    %7171 = vmatprep.subr.mxu0 0.0
    %7172 = vmatpush1.msra.mxu0 0.0
    %7173 = vmatprep.subr.mxu0 0.0
    %7174 = vmatpush1.msra.mxu0 0.0
    %7175 = vmatprep.subr.mxu0 0.0
    %7176 = vmatpush1.msra.mxu0 0.0
    %7177 = vmatprep.subr.mxu0 0.0
    %7178 = vmatpush1.msra.mxu0 0.0
    %7179 = vmatprep.subr.mxu0 0.0
    %7180 = vmatpush1.msra.mxu0 0.0
    %7181 = vmatprep.subr.mxu0 0.0
    %7182 = vmatpush1.msra.mxu0 0.0
    %7183 = vmatprep.subr.mxu0 0.0
    %7184 = vmatpush1.msra.mxu0 0.0
    %7185 = vmatprep.subr.mxu0 0.0
    %7186 = vmatpush1.msra.mxu0 0.0
    %7187 = vmatprep.subr.mxu0 0.0
    %7188 = vmatpush1.msra.mxu0 0.0
    %7189 = vmatprep.subr.mxu0 0.0
    %7190 = vmatpush1.msra.mxu0 0.0
    %7191 = vmatprep.subr.mxu0 0.0
    %7192 = vmatpush1.msra.mxu0 0.0
    %7193 = vmatprep.subr.mxu0 0.0
    %7194 = vmatpush1.msra.mxu0 0.0
    %7195 = vmatprep.subr.mxu0 0.0
    %7196 = vmatpush1.msra.mxu0 0.0
    %7197 = vmatprep.subr.mxu0 0.0
    %7198 = vmatpush1.msra.mxu0 0.0
    %7199 = vmatprep.subr.mxu0 0.0
    %7200 = vmatpush1.msra.mxu0 0.0
    %7201 = vmatprep.subr.mxu0 0.0
    %7202 = vmatpush1.msra.mxu0 0.0
    %7203 = vmatprep.subr.mxu0 0.0
    %7204 = vmatpush1.msra.mxu0 0.0
    %7205 = vmatprep.subr.mxu0 0.0
    %7206 = vmatpush1.msra.mxu0 0.0
    %7207 = vmatprep.subr.mxu0 0.0
    %7208 = vmatpush1.msra.mxu0 0.0
    %7209 = vmatprep.mubr.f32.mxu0 0.0
    %v7210 = vand.u32 %v6867, 4294901760
    %7211 = vmatmul.mubr.f32.gmra.mrb[0].mxu0 %v7210
    %v7212 = vpop.f32.mrb[0].mxu0
    %v7213 = vadd.f32 %v6987, %v7212
    %v7214 = vpop.f32.mrb[0].mxu0
    %7215 = vmatprep.mubr.f32.mxu0 0.0
    %v7216 = vand.u32 %v6870, 4294901760
    %7217 = vmatmul.mubr.f32.gmra.mrb[0].mxu0 %v7216
    %v7218 = vpop.f32.mrb[0].mxu0
    %v7219 = vadd.f32 %v6997, %v7218
    %v7220 = vpop.f32.mrb[0].mxu0
    %7221 = vmatprep.mubr.f32.mxu0 0.0
    %v7222 = vand.u32 %v6873, 4294901760
    %7223 = vmatmul.mubr.f32.gmra.mrb[0].mxu0 %v7222
    %v7224 = vpop.f32.mrb[0].mxu0
    %v7225 = vadd.f32 %v7007, %v7224
    %v7226 = vpop.f32.mrb[0].mxu0
    %7227 = vmatprep.mubr.f32.mxu0 0.0
    %v7228 = vand.u32 %v6876, 4294901760
    %7229 = vmatmul.mubr.f32.gmra.mrb[0].mxu0 %v7228
    %v7230 = vpop.f32.mrb[0].mxu0
    %v7231 = vadd.f32 %v7017, %v7230
    %v7232 = vpop.f32.mrb[0].mxu0
    %7233 = vmatprep.mubr.f32.mxu0 0.0
    %v7234 = vand.u32 %v6879, 4294901760
    %7235 = vmatmul.mubr.f32.gmra.mrb[0].mxu0 %v7234
    %v7236 = vpop.f32.mrb[0].mxu0
    %v7237 = vadd.f32 %v7027, %v7236
    %v7238 = vpop.f32.mrb[0].mxu0
    %7239 = vmatprep.mubr.f32.mxu0 0.0
    %v7240 = vand.u32 %v6882, 4294901760
    %7241 = vmatmul.mubr.f32.gmra.mrb[0].mxu0 %v7240
    %v7242 = vpop.f32.mrb[0].mxu0
    %v7243 = vadd.f32 %v7037, %v7242
    %v7244 = vpop.f32.mrb[0].mxu0
    %7245 = vmatprep.mubr.f32.mxu0 0.0
    %v7246 = vand.u32 %v6885, 4294901760
    %7247 = vmatmul.mubr.f32.gmra.mrb[0].mxu0 %v7246
    %v7248 = vpop.f32.mrb[0].mxu0
    %v7249 = vadd.f32 %v7047, %v7248
    %v7250 = vpop.f32.mrb[0].mxu0
    %7251 = vmatprep.mubr.f32.mxu0 0.0
    %v7252 = vand.u32 %v6888, 4294901760
    %7253 = vmatmul.mubr.f32.gmra.mrb[0].mxu0 %v7252
    %v7254 = vpop.f32.mrb[0].mxu0
    %v7255 = vadd.f32 %v7057, %v7254
    %v7256 = vpop.f32.mrb[0].mxu0
    %7257 = vmatprep.mubr.f32.mxu0 0.0
    %v7258 = vand.u32 %v6891, 4294901760
    %7259 = vmatmul.mubr.f32.gmra.mrb[0].mxu0 %v7258
    %v7260 = vpop.f32.mrb[0].mxu0
    %v7261 = vadd.f32 %v7067, %v7260
    %v7262 = vpop.f32.mrb[0].mxu0
    %7263 = vmatprep.mubr.f32.mxu0 0.0
    %v7264 = vand.u32 %v6894, 4294901760
    %7265 = vmatmul.mubr.f32.gmra.mrb[0].mxu0 %v7264
    %v7266 = vpop.f32.mrb[0].mxu0
    %v7267 = vadd.f32 %v7077, %v7266
    %v7268 = vpop.f32.mrb[0].mxu0
    %7269 = vmatprep.mubr.f32.mxu0 0.0
    %v7270 = vand.u32 %v6897, 4294901760
    %7271 = vmatmul.mubr.f32.gmra.mrb[0].mxu0 %v7270
    %v7272 = vpop.f32.mrb[0].mxu0
    %v7273 = vadd.f32 %v7087, %v7272
    %v7274 = vpop.f32.mrb[0].mxu0
    %7275 = vmatprep.mubr.f32.mxu0 0.0
    %v7276 = vand.u32 %v6900, 4294901760
    %7277 = vmatmul.mubr.f32.gmra.mrb[0].mxu0 %v7276
    %v7278 = vpop.f32.mrb[0].mxu0
    %v7279 = vadd.f32 %v7097, %v7278
    %v7280 = vpop.f32.mrb[0].mxu0
    %7281 = vmatprep.mubr.f32.mxu0 0.0
    %v7282 = vand.u32 %v6903, 4294901760
    %7283 = vmatmul.mubr.f32.gmra.mrb[0].mxu0 %v7282
    %v7284 = vpop.f32.mrb[0].mxu0
    %v7285 = vadd.f32 %v7107, %v7284
    %v7286 = vpop.f32.mrb[0].mxu0
    %7287 = vmatprep.mubr.f32.mxu0 0.0
    %v7288 = vand.u32 %v6906, 4294901760
    %7289 = vmatmul.mubr.f32.gmra.mrb[0].mxu0 %v7288
    %v7290 = vpop.f32.mrb[0].mxu0
    %v7291 = vadd.f32 %v7117, %v7290
    %v7292 = vpop.f32.mrb[0].mxu0
    %7293 = vmatprep.mubr.f32.mxu0 0.0
    %v7294 = vand.u32 %v6909, 4294901760
    %7295 = vmatmul.mubr.f32.gmra.mrb[0].mxu0 %v7294
    %v7296 = vpop.f32.mrb[0].mxu0
    %v7297 = vadd.f32 %v7127, %v7296
    %v7298 = vpop.f32.mrb[0].mxu0
    %7299 = vmatprep.mubr.f32.mxu0 0.0
    %v7300 = vand.u32 %v6912, 4294901760
    %7301 = vmatmul.mubr.f32.gmra.mrb[0].mxu0 %v7300
    %v7302 = vpop.f32.mrb[0].mxu0
    %v7303 = vadd.f32 %v7137, %v7302
    %v7304 = vpop.f32.mrb[0].mxu0
    %7305 = vdwg.mxu0
    %7306 = vmatprep.subr.mxu0 0.0
    %v7307 = vand.u32 %v21, 4294901760
    %v7308 = vsub.f32 %v21, %v7307
    %7309 = vmatpush1.msra.mxu0 %v7308
    %7310 = vmatprep.subr.mxu0 0.0
    %7311 = vmatpush1.msra.mxu0 0.0
    %7312 = vmatprep.subr.mxu0 0.0
    %7313 = vmatpush1.msra.mxu0 0.0
    %7314 = vmatprep.subr.mxu0 0.0
    %7315 = vmatpush1.msra.mxu0 0.0
    %7316 = vmatprep.subr.mxu0 0.0
    %7317 = vmatpush1.msra.mxu0 0.0
    %7318 = vmatprep.subr.mxu0 0.0
    %7319 = vmatpush1.msra.mxu0 0.0
    %7320 = vmatprep.subr.mxu0 0.0
    %7321 = vmatpush1.msra.mxu0 0.0
    %7322 = vmatprep.subr.mxu0 0.0
    %7323 = vmatpush1.msra.mxu0 0.0
    %7324 = vmatprep.subr.mxu0 0.0
    %7325 = vmatpush1.msra.mxu0 0.0
    %7326 = vmatprep.subr.mxu0 0.0
    %7327 = vmatpush1.msra.mxu0 0.0
    %7328 = vmatprep.subr.mxu0 0.0
    %7329 = vmatpush1.msra.mxu0 0.0
    %7330 = vmatprep.subr.mxu0 0.0
    %7331 = vmatpush1.msra.mxu0 0.0
    %7332 = vmatprep.subr.mxu0 0.0
    %7333 = vmatpush1.msra.mxu0 0.0
    %7334 = vmatprep.subr.mxu0 0.0
    %7335 = vmatpush1.msra.mxu0 0.0
    %7336 = vmatprep.subr.mxu0 0.0
    %7337 = vmatpush1.msra.mxu0 0.0
    %7338 = vmatprep.subr.mxu0 0.0
    %7339 = vmatpush1.msra.mxu0 0.0
    %7340 = vmatprep.subr.mxu0 0.0
    %7341 = vmatpush1.msra.mxu0 0.0
    %7342 = vmatprep.subr.mxu0 0.0
    %7343 = vmatpush1.msra.mxu0 0.0
    %7344 = vmatprep.subr.mxu0 0.0
    %7345 = vmatpush1.msra.mxu0 0.0
    %7346 = vmatprep.subr.mxu0 0.0
    %7347 = vmatpush1.msra.mxu0 0.0
    %7348 = vmatprep.subr.mxu0 0.0
    %7349 = vmatpush1.msra.mxu0 0.0
    %7350 = vmatprep.subr.mxu0 0.0
    %7351 = vmatpush1.msra.mxu0 0.0
    %7352 = vmatprep.subr.mxu0 0.0
    %7353 = vmatpush1.msra.mxu0 0.0
    %7354 = vmatprep.subr.mxu0 0.0
    %7355 = vmatpush1.msra.mxu0 0.0
    %7356 = vmatprep.subr.mxu0 0.0
    %7357 = vmatpush1.msra.mxu0 0.0
    %7358 = vmatprep.subr.mxu0 0.0
    %7359 = vmatpush1.msra.mxu0 0.0
    %7360 = vmatprep.subr.mxu0 0.0
    %7361 = vmatpush1.msra.mxu0 0.0
    %7362 = vmatprep.subr.mxu0 0.0
    %7363 = vmatpush1.msra.mxu0 0.0
    %7364 = vmatprep.subr.mxu0 0.0
    %7365 = vmatpush1.msra.mxu0 0.0
    %7366 = vmatprep.subr.mxu0 0.0
    %7367 = vmatpush1.msra.mxu0 0.0
    %7368 = vmatprep.subr.mxu0 0.0
    %7369 = vmatpush1.msra.mxu0 0.0
    %7370 = vmatprep.subr.mxu0 0.0
    %7371 = vmatpush1.msra.mxu0 0.0
    %7372 = vmatprep.mubr.f32.mxu0 0.0
    %v7373 = vand.u32 %v6867, 4294901760
    %v7374 = vsub.f32 %v6867, %v7373
    %7375 = vmatmul.mubr.f32.gmra.mrb[0].mxu0 %v7374
    %v7376 = vpop.f32.mrb[0].mxu0
    %v7377 = vadd.f32 %v7213, %v7376
    %v7378 = vpop.f32.mrb[0].mxu0
    %7379 = vmatprep.mubr.f32.mxu0 0.0
    %v7380 = vand.u32 %v6870, 4294901760
    %v7381 = vsub.f32 %v6870, %v7380
    %7382 = vmatmul.mubr.f32.gmra.mrb[0].mxu0 %v7381
    %v7383 = vpop.f32.mrb[0].mxu0
    %v7384 = vadd.f32 %v7219, %v7383
    %v7385 = vpop.f32.mrb[0].mxu0
    %7386 = vmatprep.mubr.f32.mxu0 0.0
    %v7387 = vand.u32 %v6873, 4294901760
    %v7388 = vsub.f32 %v6873, %v7387
    %7389 = vmatmul.mubr.f32.gmra.mrb[0].mxu0 %v7388
    %v7390 = vpop.f32.mrb[0].mxu0
    %v7391 = vadd.f32 %v7225, %v7390
    %v7392 = vpop.f32.mrb[0].mxu0
    %7393 = vmatprep.mubr.f32.mxu0 0.0
    %v7394 = vand.u32 %v6876, 4294901760
    %v7395 = vsub.f32 %v6876, %v7394
    %7396 = vmatmul.mubr.f32.gmra.mrb[0].mxu0 %v7395
    %v7397 = vpop.f32.mrb[0].mxu0
    %v7398 = vadd.f32 %v7231, %v7397
    %v7399 = vpop.f32.mrb[0].mxu0
    %7400 = vmatprep.mubr.f32.mxu0 0.0
    %v7401 = vand.u32 %v6879, 4294901760
    %v7402 = vsub.f32 %v6879, %v7401
    %7403 = vmatmul.mubr.f32.gmra.mrb[0].mxu0 %v7402
    %v7404 = vpop.f32.mrb[0].mxu0
    %v7405 = vadd.f32 %v7237, %v7404
    %v7406 = vpop.f32.mrb[0].mxu0
    %7407 = vmatprep.mubr.f32.mxu0 0.0
    %v7408 = vand.u32 %v6882, 4294901760
    %v7409 = vsub.f32 %v6882, %v7408
    %7410 = vmatmul.mubr.f32.gmra.mrb[0].mxu0 %v7409
    %v7411 = vpop.f32.mrb[0].mxu0
    %v7412 = vadd.f32 %v7243, %v7411
    %v7413 = vpop.f32.mrb[0].mxu0
    %7414 = vmatprep.mubr.f32.mxu0 0.0
    %v7415 = vand.u32 %v6885, 4294901760
    %v7416 = vsub.f32 %v6885, %v7415
    %7417 = vmatmul.mubr.f32.gmra.mrb[0].mxu0 %v7416
    %v7418 = vpop.f32.mrb[0].mxu0
    %v7419 = vadd.f32 %v7249, %v7418
    %v7420 = vpop.f32.mrb[0].mxu0
    %7421 = vmatprep.mubr.f32.mxu0 0.0
    %v7422 = vand.u32 %v6888, 4294901760
    %v7423 = vsub.f32 %v6888, %v7422
    %7424 = vmatmul.mubr.f32.gmra.mrb[0].mxu0 %v7423
    %v7425 = vpop.f32.mrb[0].mxu0
    %v7426 = vadd.f32 %v7255, %v7425
    %v7427 = vpop.f32.mrb[0].mxu0
    %7428 = vmatprep.mubr.f32.mxu0 0.0
    %v7429 = vand.u32 %v6891, 4294901760
    %v7430 = vsub.f32 %v6891, %v7429
    %7431 = vmatmul.mubr.f32.gmra.mrb[0].mxu0 %v7430
    %v7432 = vpop.f32.mrb[0].mxu0
    %v7433 = vadd.f32 %v7261, %v7432
    %v7434 = vpop.f32.mrb[0].mxu0
    %7435 = vmatprep.mubr.f32.mxu0 0.0
    %v7436 = vand.u32 %v6894, 4294901760
    %v7437 = vsub.f32 %v6894, %v7436
    %7438 = vmatmul.mubr.f32.gmra.mrb[0].mxu0 %v7437
    %v7439 = vpop.f32.mrb[0].mxu0
    %v7440 = vadd.f32 %v7267, %v7439
    %v7441 = vpop.f32.mrb[0].mxu0
    %7442 = vmatprep.mubr.f32.mxu0 0.0
    %v7443 = vand.u32 %v6897, 4294901760
    %v7444 = vsub.f32 %v6897, %v7443
    %7445 = vmatmul.mubr.f32.gmra.mrb[0].mxu0 %v7444
    %v7446 = vpop.f32.mrb[0].mxu0
    %v7447 = vadd.f32 %v7273, %v7446
    %v7448 = vpop.f32.mrb[0].mxu0
    %7449 = vmatprep.mubr.f32.mxu0 0.0
    %v7450 = vand.u32 %v6900, 4294901760
    %v7451 = vsub.f32 %v6900, %v7450
    %7452 = vmatmul.mubr.f32.gmra.mrb[0].mxu0 %v7451
    %v7453 = vpop.f32.mrb[0].mxu0
    %v7454 = vadd.f32 %v7279, %v7453
    %v7455 = vpop.f32.mrb[0].mxu0
    %7456 = vmatprep.mubr.f32.mxu0 0.0
    %v7457 = vand.u32 %v6903, 4294901760
    %v7458 = vsub.f32 %v6903, %v7457
    %7459 = vmatmul.mubr.f32.gmra.mrb[0].mxu0 %v7458
    %v7460 = vpop.f32.mrb[0].mxu0
    %v7461 = vadd.f32 %v7285, %v7460
    %v7462 = vpop.f32.mrb[0].mxu0
    %7463 = vmatprep.mubr.f32.mxu0 0.0
    %v7464 = vand.u32 %v6906, 4294901760
    %v7465 = vsub.f32 %v6906, %v7464
    %7466 = vmatmul.mubr.f32.gmra.mrb[0].mxu0 %v7465
    %v7467 = vpop.f32.mrb[0].mxu0
    %v7468 = vadd.f32 %v7291, %v7467
    %v7469 = vpop.f32.mrb[0].mxu0
    %7470 = vmatprep.mubr.f32.mxu0 0.0
    %v7471 = vand.u32 %v6909, 4294901760
    %v7472 = vsub.f32 %v6909, %v7471
    %7473 = vmatmul.mubr.f32.gmra.mrb[0].mxu0 %v7472
    %v7474 = vpop.f32.mrb[0].mxu0
    %v7475 = vadd.f32 %v7297, %v7474
    %v7476 = vpop.f32.mrb[0].mxu0
    %7477 = vmatprep.mubr.f32.mxu0 0.0
    %v7478 = vand.u32 %v6912, 4294901760
    %v7479 = vsub.f32 %v6912, %v7478
    %7480 = vmatmul.mubr.f32.gmra.mrb[0].mxu0 %v7479
    %v7481 = vpop.f32.mrb[0].mxu0
    %v7482 = vadd.f32 %v7303, %v7481
    %v7483 = vpop.f32.mrb[0].mxu0
    %7484 = vdwg.mxu0
    %7485 = vmatprep.subr.mxu0 0.0
    %v7486 = vand.u32 %v21, 4294901760
    %7487 = vmatpush1.msra.mxu0 %v7486
    %7488 = vmatprep.subr.mxu0 0.0
    %7489 = vmatpush1.msra.mxu0 0.0
    %7490 = vmatprep.subr.mxu0 0.0
    %7491 = vmatpush1.msra.mxu0 0.0
    %7492 = vmatprep.subr.mxu0 0.0
    %7493 = vmatpush1.msra.mxu0 0.0
    %7494 = vmatprep.subr.mxu0 0.0
    %7495 = vmatpush1.msra.mxu0 0.0
    %7496 = vmatprep.subr.mxu0 0.0
    %7497 = vmatpush1.msra.mxu0 0.0
    %7498 = vmatprep.subr.mxu0 0.0
    %7499 = vmatpush1.msra.mxu0 0.0
    %7500 = vmatprep.subr.mxu0 0.0
    %7501 = vmatpush1.msra.mxu0 0.0
    %7502 = vmatprep.subr.mxu0 0.0
    %7503 = vmatpush1.msra.mxu0 0.0
    %7504 = vmatprep.subr.mxu0 0.0
    %7505 = vmatpush1.msra.mxu0 0.0
    %7506 = vmatprep.subr.mxu0 0.0
    %7507 = vmatpush1.msra.mxu0 0.0
    %7508 = vmatprep.subr.mxu0 0.0
    %7509 = vmatpush1.msra.mxu0 0.0
    %7510 = vmatprep.subr.mxu0 0.0
    %7511 = vmatpush1.msra.mxu0 0.0
    %7512 = vmatprep.subr.mxu0 0.0
    %7513 = vmatpush1.msra.mxu0 0.0
    %7514 = vmatprep.subr.mxu0 0.0
    %7515 = vmatpush1.msra.mxu0 0.0
    %7516 = vmatprep.subr.mxu0 0.0
    %7517 = vmatpush1.msra.mxu0 0.0
    %7518 = vmatprep.subr.mxu0 0.0
    %7519 = vmatpush1.msra.mxu0 0.0
    %7520 = vmatprep.subr.mxu0 0.0
    %7521 = vmatpush1.msra.mxu0 0.0
    %7522 = vmatprep.subr.mxu0 0.0
    %7523 = vmatpush1.msra.mxu0 0.0
    %7524 = vmatprep.subr.mxu0 0.0
    %7525 = vmatpush1.msra.mxu0 0.0
    %7526 = vmatprep.subr.mxu0 0.0
    %7527 = vmatpush1.msra.mxu0 0.0
    %7528 = vmatprep.subr.mxu0 0.0
    %7529 = vmatpush1.msra.mxu0 0.0
    %7530 = vmatprep.subr.mxu0 0.0
    %7531 = vmatpush1.msra.mxu0 0.0
    %7532 = vmatprep.subr.mxu0 0.0
    %7533 = vmatpush1.msra.mxu0 0.0
    %7534 = vmatprep.subr.mxu0 0.0
    %7535 = vmatpush1.msra.mxu0 0.0
    %7536 = vmatprep.subr.mxu0 0.0
    %7537 = vmatpush1.msra.mxu0 0.0
    %7538 = vmatprep.subr.mxu0 0.0
    %7539 = vmatpush1.msra.mxu0 0.0
    %7540 = vmatprep.subr.mxu0 0.0
    %7541 = vmatpush1.msra.mxu0 0.0
    %7542 = vmatprep.subr.mxu0 0.0
    %7543 = vmatpush1.msra.mxu0 0.0
    %7544 = vmatprep.subr.mxu0 0.0
    %7545 = vmatpush1.msra.mxu0 0.0
    %7546 = vmatprep.subr.mxu0 0.0
    %7547 = vmatpush1.msra.mxu0 0.0
    %7548 = vmatprep.subr.mxu0 0.0
    %7549 = vmatpush1.msra.mxu0 0.0
    %7550 = vmatprep.mubr.f32.mxu0 0.0
    %v7551 = vand.u32 %v6867, 4294901760
    %v7552 = vsub.f32 %v6867, %v7551
    %v7553 = vand.u32 %v7552, 4294901760
    %7554 = vmatmul.mubr.f32.gmra.mrb[0].mxu0 %v7553
    %v7555 = vpop.f32.mrb[0].mxu0
    %v7556 = vadd.f32 %v7377, %v7555
    %v7557 = vpop.f32.mrb[0].mxu0
    %7558 = vmatprep.mubr.f32.mxu0 0.0
    %v7559 = vand.u32 %v6870, 4294901760
    %v7560 = vsub.f32 %v6870, %v7559
    %v7561 = vand.u32 %v7560, 4294901760
    %7562 = vmatmul.mubr.f32.gmra.mrb[0].mxu0 %v7561
    %v7563 = vpop.f32.mrb[0].mxu0
    %v7564 = vadd.f32 %v7384, %v7563
    %v7565 = vpop.f32.mrb[0].mxu0
    %7566 = vmatprep.mubr.f32.mxu0 0.0
    %v7567 = vand.u32 %v6873, 4294901760
    %v7568 = vsub.f32 %v6873, %v7567
    %v7569 = vand.u32 %v7568, 4294901760
    %7570 = vmatmul.mubr.f32.gmra.mrb[0].mxu0 %v7569
    %v7571 = vpop.f32.mrb[0].mxu0
    %v7572 = vadd.f32 %v7391, %v7571
    %v7573 = vpop.f32.mrb[0].mxu0
    %7574 = vmatprep.mubr.f32.mxu0 0.0
    %v7575 = vand.u32 %v6876, 4294901760
    %v7576 = vsub.f32 %v6876, %v7575
    %v7577 = vand.u32 %v7576, 4294901760
    %7578 = vmatmul.mubr.f32.gmra.mrb[0].mxu0 %v7577
    %v7579 = vpop.f32.mrb[0].mxu0
    %v7580 = vadd.f32 %v7398, %v7579
    %v7581 = vpop.f32.mrb[0].mxu0
    %7582 = vmatprep.mubr.f32.mxu0 0.0
    %v7583 = vand.u32 %v6879, 4294901760
    %v7584 = vsub.f32 %v6879, %v7583
    %v7585 = vand.u32 %v7584, 4294901760
    %7586 = vmatmul.mubr.f32.gmra.mrb[0].mxu0 %v7585
    %v7587 = vpop.f32.mrb[0].mxu0
    %v7588 = vadd.f32 %v7405, %v7587
    %v7589 = vpop.f32.mrb[0].mxu0
    %7590 = vmatprep.mubr.f32.mxu0 0.0
    %v7591 = vand.u32 %v6882, 4294901760
    %v7592 = vsub.f32 %v6882, %v7591
    %v7593 = vand.u32 %v7592, 4294901760
    %7594 = vmatmul.mubr.f32.gmra.mrb[0].mxu0 %v7593
    %v7595 = vpop.f32.mrb[0].mxu0
    %v7596 = vadd.f32 %v7412, %v7595
    %v7597 = vpop.f32.mrb[0].mxu0
    %7598 = vmatprep.mubr.f32.mxu0 0.0
    %v7599 = vand.u32 %v6885, 4294901760
    %v7600 = vsub.f32 %v6885, %v7599
    %v7601 = vand.u32 %v7600, 4294901760
    %7602 = vmatmul.mubr.f32.gmra.mrb[0].mxu0 %v7601
    %v7603 = vpop.f32.mrb[0].mxu0
    %v7604 = vadd.f32 %v7419, %v7603
    %v7605 = vpop.f32.mrb[0].mxu0
    %7606 = vmatprep.mubr.f32.mxu0 0.0
    %v7607 = vand.u32 %v6888, 4294901760
    %v7608 = vsub.f32 %v6888, %v7607
    %v7609 = vand.u32 %v7608, 4294901760
    %7610 = vmatmul.mubr.f32.gmra.mrb[0].mxu0 %v7609
    %v7611 = vpop.f32.mrb[0].mxu0
    %v7612 = vadd.f32 %v7426, %v7611
    %v7613 = vpop.f32.mrb[0].mxu0
    %7614 = vmatprep.mubr.f32.mxu0 0.0
    %v7615 = vand.u32 %v6891, 4294901760
    %v7616 = vsub.f32 %v6891, %v7615
    %v7617 = vand.u32 %v7616, 4294901760
    %7618 = vmatmul.mubr.f32.gmra.mrb[0].mxu0 %v7617
    %v7619 = vpop.f32.mrb[0].mxu0
    %v7620 = vadd.f32 %v7433, %v7619
    %v7621 = vpop.f32.mrb[0].mxu0
    %7622 = vmatprep.mubr.f32.mxu0 0.0
    %v7623 = vand.u32 %v6894, 4294901760
    %v7624 = vsub.f32 %v6894, %v7623
    %v7625 = vand.u32 %v7624, 4294901760
    %7626 = vmatmul.mubr.f32.gmra.mrb[0].mxu0 %v7625
    %v7627 = vpop.f32.mrb[0].mxu0
    %v7628 = vadd.f32 %v7440, %v7627
    %v7629 = vpop.f32.mrb[0].mxu0
    %7630 = vmatprep.mubr.f32.mxu0 0.0
    %v7631 = vand.u32 %v6897, 4294901760
    %v7632 = vsub.f32 %v6897, %v7631
    %v7633 = vand.u32 %v7632, 4294901760
    %7634 = vmatmul.mubr.f32.gmra.mrb[0].mxu0 %v7633
    %v7635 = vpop.f32.mrb[0].mxu0
    %v7636 = vadd.f32 %v7447, %v7635
    %v7637 = vpop.f32.mrb[0].mxu0
    %7638 = vmatprep.mubr.f32.mxu0 0.0
    %v7639 = vand.u32 %v6900, 4294901760
    %v7640 = vsub.f32 %v6900, %v7639
    %v7641 = vand.u32 %v7640, 4294901760
    %7642 = vmatmul.mubr.f32.gmra.mrb[0].mxu0 %v7641
    %v7643 = vpop.f32.mrb[0].mxu0
    %v7644 = vadd.f32 %v7454, %v7643
    %v7645 = vpop.f32.mrb[0].mxu0
    %7646 = vmatprep.mubr.f32.mxu0 0.0
    %v7647 = vand.u32 %v6903, 4294901760
    %v7648 = vsub.f32 %v6903, %v7647
    %v7649 = vand.u32 %v7648, 4294901760
    %7650 = vmatmul.mubr.f32.gmra.mrb[0].mxu0 %v7649
    %v7651 = vpop.f32.mrb[0].mxu0
    %v7652 = vadd.f32 %v7461, %v7651
    %v7653 = vpop.f32.mrb[0].mxu0
    %7654 = vmatprep.mubr.f32.mxu0 0.0
    %v7655 = vand.u32 %v6906, 4294901760
    %v7656 = vsub.f32 %v6906, %v7655
    %v7657 = vand.u32 %v7656, 4294901760
    %7658 = vmatmul.mubr.f32.gmra.mrb[0].mxu0 %v7657
    %v7659 = vpop.f32.mrb[0].mxu0
    %v7660 = vadd.f32 %v7468, %v7659
    %v7661 = vpop.f32.mrb[0].mxu0
    %7662 = vmatprep.mubr.f32.mxu0 0.0
    %v7663 = vand.u32 %v6909, 4294901760
    %v7664 = vsub.f32 %v6909, %v7663
    %v7665 = vand.u32 %v7664, 4294901760
    %7666 = vmatmul.mubr.f32.gmra.mrb[0].mxu0 %v7665
    %v7667 = vpop.f32.mrb[0].mxu0
    %v7668 = vadd.f32 %v7475, %v7667
    %v7669 = vpop.f32.mrb[0].mxu0
    %7670 = vmatprep.mubr.f32.mxu0 0.0
    %v7671 = vand.u32 %v6912, 4294901760
    %v7672 = vsub.f32 %v6912, %v7671
    %v7673 = vand.u32 %v7672, 4294901760
    %7674 = vmatmul.mubr.f32.gmra.mrb[0].mxu0 %v7673
    %v7675 = vpop.f32.mrb[0].mxu0
    %v7676 = vadd.f32 %v7482, %v7675
    %v7677 = vpop.f32.mrb[0].mxu0
    %7678 = vdwg.mxu0
    %7679 = vmatprep.subr.mxu0 0.0
    %v7680 = vand.u32 %v21, 4294901760
    %v7681 = vsub.f32 %v21, %v7680
    %v7682 = vand.u32 %v7681, 4294901760
    %7683 = vmatpush1.msra.mxu0 %v7682
    %7684 = vmatprep.subr.mxu0 0.0
    %7685 = vmatpush1.msra.mxu0 0.0
    %7686 = vmatprep.subr.mxu0 0.0
    %7687 = vmatpush1.msra.mxu0 0.0
    %7688 = vmatprep.subr.mxu0 0.0
    %7689 = vmatpush1.msra.mxu0 0.0
    %7690 = vmatprep.subr.mxu0 0.0
    %7691 = vmatpush1.msra.mxu0 0.0
    %7692 = vmatprep.subr.mxu0 0.0
    %7693 = vmatpush1.msra.mxu0 0.0
    %7694 = vmatprep.subr.mxu0 0.0
    %7695 = vmatpush1.msra.mxu0 0.0
    %7696 = vmatprep.subr.mxu0 0.0
    %7697 = vmatpush1.msra.mxu0 0.0
    %7698 = vmatprep.subr.mxu0 0.0
    %7699 = vmatpush1.msra.mxu0 0.0
    %7700 = vmatprep.subr.mxu0 0.0
    %7701 = vmatpush1.msra.mxu0 0.0
    %7702 = vmatprep.subr.mxu0 0.0
    %7703 = vmatpush1.msra.mxu0 0.0
    %7704 = vmatprep.subr.mxu0 0.0
    %7705 = vmatpush1.msra.mxu0 0.0
    %7706 = vmatprep.subr.mxu0 0.0
    %7707 = vmatpush1.msra.mxu0 0.0
    %7708 = vmatprep.subr.mxu0 0.0
    %7709 = vmatpush1.msra.mxu0 0.0
    %7710 = vmatprep.subr.mxu0 0.0
    %7711 = vmatpush1.msra.mxu0 0.0
    %7712 = vmatprep.subr.mxu0 0.0
    %7713 = vmatpush1.msra.mxu0 0.0
    %7714 = vmatprep.subr.mxu0 0.0
    %7715 = vmatpush1.msra.mxu0 0.0
    %7716 = vmatprep.subr.mxu0 0.0
    %7717 = vmatpush1.msra.mxu0 0.0
    %7718 = vmatprep.subr.mxu0 0.0
    %7719 = vmatpush1.msra.mxu0 0.0
    %7720 = vmatprep.subr.mxu0 0.0
    %7721 = vmatpush1.msra.mxu0 0.0
    %7722 = vmatprep.subr.mxu0 0.0
    %7723 = vmatpush1.msra.mxu0 0.0
    %7724 = vmatprep.subr.mxu0 0.0
    %7725 = vmatpush1.msra.mxu0 0.0
    %7726 = vmatprep.subr.mxu0 0.0
    %7727 = vmatpush1.msra.mxu0 0.0
    %7728 = vmatprep.subr.mxu0 0.0
    %7729 = vmatpush1.msra.mxu0 0.0
    %7730 = vmatprep.subr.mxu0 0.0
    %7731 = vmatpush1.msra.mxu0 0.0
    %7732 = vmatprep.subr.mxu0 0.0
    %7733 = vmatpush1.msra.mxu0 0.0
    %7734 = vmatprep.subr.mxu0 0.0
    %7735 = vmatpush1.msra.mxu0 0.0
    %7736 = vmatprep.subr.mxu0 0.0
    %7737 = vmatpush1.msra.mxu0 0.0
    %7738 = vmatprep.subr.mxu0 0.0
    %7739 = vmatpush1.msra.mxu0 0.0
    %7740 = vmatprep.subr.mxu0 0.0
    %7741 = vmatpush1.msra.mxu0 0.0
    %7742 = vmatprep.subr.mxu0 0.0
    %7743 = vmatpush1.msra.mxu0 0.0
    %7744 = vmatprep.subr.mxu0 0.0
    %7745 = vmatpush1.msra.mxu0 0.0
    %7746 = vmatprep.mubr.f32.mxu0 0.0
    %v7747 = vand.u32 %v6867, 4294901760
    %7748 = vmatmul.mubr.f32.gmra.mrb[0].mxu0 %v7747
    %v7749 = vpop.f32.mrb[0].mxu0
    %v7750 = vadd.f32 %v7556, %v7749
    %v7751 = vpop.f32.mrb[0].mxu0
    %7752 = vmatprep.mubr.f32.mxu0 0.0
    %v7753 = vand.u32 %v6870, 4294901760
    %7754 = vmatmul.mubr.f32.gmra.mrb[0].mxu0 %v7753
    %v7755 = vpop.f32.mrb[0].mxu0
    %v7756 = vadd.f32 %v7564, %v7755
    %v7757 = vpop.f32.mrb[0].mxu0
    %7758 = vmatprep.mubr.f32.mxu0 0.0
    %v7759 = vand.u32 %v6873, 4294901760
    %7760 = vmatmul.mubr.f32.gmra.mrb[0].mxu0 %v7759
    %v7761 = vpop.f32.mrb[0].mxu0
    %v7762 = vadd.f32 %v7572, %v7761
    %v7763 = vpop.f32.mrb[0].mxu0
    %7764 = vmatprep.mubr.f32.mxu0 0.0
    %v7765 = vand.u32 %v6876, 4294901760
    %7766 = vmatmul.mubr.f32.gmra.mrb[0].mxu0 %v7765
    %v7767 = vpop.f32.mrb[0].mxu0
    %v7768 = vadd.f32 %v7580, %v7767
    %v7769 = vpop.f32.mrb[0].mxu0
    %7770 = vmatprep.mubr.f32.mxu0 0.0
    %v7771 = vand.u32 %v6879, 4294901760
    %7772 = vmatmul.mubr.f32.gmra.mrb[0].mxu0 %v7771
    %v7773 = vpop.f32.mrb[0].mxu0
    %v7774 = vadd.f32 %v7588, %v7773
    %v7775 = vpop.f32.mrb[0].mxu0
    %7776 = vmatprep.mubr.f32.mxu0 0.0
    %v7777 = vand.u32 %v6882, 4294901760
    %7778 = vmatmul.mubr.f32.gmra.mrb[0].mxu0 %v7777
    %v7779 = vpop.f32.mrb[0].mxu0
    %v7780 = vadd.f32 %v7596, %v7779
    %v7781 = vpop.f32.mrb[0].mxu0
    %7782 = vmatprep.mubr.f32.mxu0 0.0
    %v7783 = vand.u32 %v6885, 4294901760
    %7784 = vmatmul.mubr.f32.gmra.mrb[0].mxu0 %v7783
    %v7785 = vpop.f32.mrb[0].mxu0
    %v7786 = vadd.f32 %v7604, %v7785
    %v7787 = vpop.f32.mrb[0].mxu0
    %7788 = vmatprep.mubr.f32.mxu0 0.0
    %v7789 = vand.u32 %v6888, 4294901760
    %7790 = vmatmul.mubr.f32.gmra.mrb[0].mxu0 %v7789
    %v7791 = vpop.f32.mrb[0].mxu0
    %v7792 = vadd.f32 %v7612, %v7791
    %v7793 = vpop.f32.mrb[0].mxu0
    %7794 = vmatprep.mubr.f32.mxu0 0.0
    %v7795 = vand.u32 %v6891, 4294901760
    %7796 = vmatmul.mubr.f32.gmra.mrb[0].mxu0 %v7795
    %v7797 = vpop.f32.mrb[0].mxu0
    %v7798 = vadd.f32 %v7620, %v7797
    %v7799 = vpop.f32.mrb[0].mxu0
    %7800 = vmatprep.mubr.f32.mxu0 0.0
    %v7801 = vand.u32 %v6894, 4294901760
    %7802 = vmatmul.mubr.f32.gmra.mrb[0].mxu0 %v7801
    %v7803 = vpop.f32.mrb[0].mxu0
    %v7804 = vadd.f32 %v7628, %v7803
    %v7805 = vpop.f32.mrb[0].mxu0
    %7806 = vmatprep.mubr.f32.mxu0 0.0
    %v7807 = vand.u32 %v6897, 4294901760
    %7808 = vmatmul.mubr.f32.gmra.mrb[0].mxu0 %v7807
    %v7809 = vpop.f32.mrb[0].mxu0
    %v7810 = vadd.f32 %v7636, %v7809
    %v7811 = vpop.f32.mrb[0].mxu0
    %7812 = vmatprep.mubr.f32.mxu0 0.0
    %v7813 = vand.u32 %v6900, 4294901760
    %7814 = vmatmul.mubr.f32.gmra.mrb[0].mxu0 %v7813
    %v7815 = vpop.f32.mrb[0].mxu0
    %v7816 = vadd.f32 %v7644, %v7815
    %v7817 = vpop.f32.mrb[0].mxu0
    %7818 = vmatprep.mubr.f32.mxu0 0.0
    %v7819 = vand.u32 %v6903, 4294901760
    %7820 = vmatmul.mubr.f32.gmra.mrb[0].mxu0 %v7819
    %v7821 = vpop.f32.mrb[0].mxu0
    %v7822 = vadd.f32 %v7652, %v7821
    %v7823 = vpop.f32.mrb[0].mxu0
    %7824 = vmatprep.mubr.f32.mxu0 0.0
    %v7825 = vand.u32 %v6906, 4294901760
    %7826 = vmatmul.mubr.f32.gmra.mrb[0].mxu0 %v7825
    %v7827 = vpop.f32.mrb[0].mxu0
    %v7828 = vadd.f32 %v7660, %v7827
    %v7829 = vpop.f32.mrb[0].mxu0
    %7830 = vmatprep.mubr.f32.mxu0 0.0
    %v7831 = vand.u32 %v6909, 4294901760
    %7832 = vmatmul.mubr.f32.gmra.mrb[0].mxu0 %v7831
    %v7833 = vpop.f32.mrb[0].mxu0
    %v7834 = vadd.f32 %v7668, %v7833
    %v7835 = vpop.f32.mrb[0].mxu0
    %7836 = vmatprep.mubr.f32.mxu0 0.0
    %v7837 = vand.u32 %v6912, 4294901760
    %7838 = vmatmul.mubr.f32.gmra.mrb[0].mxu0 %v7837
    %v7839 = vpop.f32.mrb[0].mxu0
    %v7840 = vadd.f32 %v7676, %v7839
    %v7841 = vpop.f32.mrb[0].mxu0
    %7842 = vdwg.mxu0
    %7843 = vmatprep.subr.mxu0 0.0
    %v7844 = vand.u32 %v21, 4294901760
    %7845 = vmatpush1.msra.mxu0 %v7844
    %7846 = vmatprep.subr.mxu0 0.0
    %7847 = vmatpush1.msra.mxu0 0.0
    %7848 = vmatprep.subr.mxu0 0.0
    %7849 = vmatpush1.msra.mxu0 0.0
    %7850 = vmatprep.subr.mxu0 0.0
    %7851 = vmatpush1.msra.mxu0 0.0
    %7852 = vmatprep.subr.mxu0 0.0
    %7853 = vmatpush1.msra.mxu0 0.0
    %7854 = vmatprep.subr.mxu0 0.0
    %7855 = vmatpush1.msra.mxu0 0.0
    %7856 = vmatprep.subr.mxu0 0.0
    %7857 = vmatpush1.msra.mxu0 0.0
    %7858 = vmatprep.subr.mxu0 0.0
    %7859 = vmatpush1.msra.mxu0 0.0
    %7860 = vmatprep.subr.mxu0 0.0
    %7861 = vmatpush1.msra.mxu0 0.0
    %7862 = vmatprep.subr.mxu0 0.0
    %7863 = vmatpush1.msra.mxu0 0.0
    %7864 = vmatprep.subr.mxu0 0.0
    %7865 = vmatpush1.msra.mxu0 0.0
    %7866 = vmatprep.subr.mxu0 0.0
    %7867 = vmatpush1.msra.mxu0 0.0
    %7868 = vmatprep.subr.mxu0 0.0
    %7869 = vmatpush1.msra.mxu0 0.0
    %7870 = vmatprep.subr.mxu0 0.0
    %7871 = vmatpush1.msra.mxu0 0.0
    %7872 = vmatprep.subr.mxu0 0.0
    %7873 = vmatpush1.msra.mxu0 0.0
    %7874 = vmatprep.subr.mxu0 0.0
    %7875 = vmatpush1.msra.mxu0 0.0
    %7876 = vmatprep.subr.mxu0 0.0
    %7877 = vmatpush1.msra.mxu0 0.0
    %7878 = vmatprep.subr.mxu0 0.0
    %7879 = vmatpush1.msra.mxu0 0.0
    %7880 = vmatprep.subr.mxu0 0.0
    %7881 = vmatpush1.msra.mxu0 0.0
    %7882 = vmatprep.subr.mxu0 0.0
    %7883 = vmatpush1.msra.mxu0 0.0
    %7884 = vmatprep.subr.mxu0 0.0
    %7885 = vmatpush1.msra.mxu0 0.0
    %7886 = vmatprep.subr.mxu0 0.0
    %7887 = vmatpush1.msra.mxu0 0.0
    %7888 = vmatprep.subr.mxu0 0.0
    %7889 = vmatpush1.msra.mxu0 0.0
    %7890 = vmatprep.subr.mxu0 0.0
    %7891 = vmatpush1.msra.mxu0 0.0
    %7892 = vmatprep.subr.mxu0 0.0
    %7893 = vmatpush1.msra.mxu0 0.0
    %7894 = vmatprep.subr.mxu0 0.0
    %7895 = vmatpush1.msra.mxu0 0.0
    %7896 = vmatprep.subr.mxu0 0.0
    %7897 = vmatpush1.msra.mxu0 0.0
    %7898 = vmatprep.subr.mxu0 0.0
    %7899 = vmatpush1.msra.mxu0 0.0
    %7900 = vmatprep.subr.mxu0 0.0
    %7901 = vmatpush1.msra.mxu0 0.0
    %7902 = vmatprep.subr.mxu0 0.0
    %7903 = vmatpush1.msra.mxu0 0.0
    %7904 = vmatprep.subr.mxu0 0.0
    %7905 = vmatpush1.msra.mxu0 0.0
    %7906 = vmatprep.subr.mxu0 0.0
    %7907 = vmatpush1.msra.mxu0 0.0
    %7908 = vmatprep.mubr.f32.mxu0 0.0
    %v7909 = vand.u32 %v6867, 4294901760
    %7910 = vmatmul.mubr.f32.gmra.mrb[0].mxu0 %v7909
    %v7911 = vpop.f32.mrb[0].mxu0
    %v7912 = vadd.f32 %v7750, %v7911
    %v7913 = vpop.f32.mrb[0].mxu0
    %7914 = vmatprep.mubr.f32.mxu0 0.0
    %v7915 = vand.u32 %v6870, 4294901760
    %7916 = vmatmul.mubr.f32.gmra.mrb[0].mxu0 %v7915
    %v7917 = vpop.f32.mrb[0].mxu0
    %v7918 = vadd.f32 %v7756, %v7917
    %v7919 = vpop.f32.mrb[0].mxu0
    %7920 = vmatprep.mubr.f32.mxu0 0.0
    %v7921 = vand.u32 %v6873, 4294901760
    %7922 = vmatmul.mubr.f32.gmra.mrb[0].mxu0 %v7921
    %v7923 = vpop.f32.mrb[0].mxu0
    %v7924 = vadd.f32 %v7762, %v7923
    %v7925 = vpop.f32.mrb[0].mxu0
    %7926 = vmatprep.mubr.f32.mxu0 0.0
    %v7927 = vand.u32 %v6876, 4294901760
    %7928 = vmatmul.mubr.f32.gmra.mrb[0].mxu0 %v7927
    %v7929 = vpop.f32.mrb[0].mxu0
    %v7930 = vadd.f32 %v7768, %v7929
    %v7931 = vpop.f32.mrb[0].mxu0
    %7932 = vmatprep.mubr.f32.mxu0 0.0
    %v7933 = vand.u32 %v6879, 4294901760
    %7934 = vmatmul.mubr.f32.gmra.mrb[0].mxu0 %v7933
    %v7935 = vpop.f32.mrb[0].mxu0
    %v7936 = vadd.f32 %v7774, %v7935
    %v7937 = vpop.f32.mrb[0].mxu0
    %7938 = vmatprep.mubr.f32.mxu0 0.0
    %v7939 = vand.u32 %v6882, 4294901760
    %7940 = vmatmul.mubr.f32.gmra.mrb[0].mxu0 %v7939
    %v7941 = vpop.f32.mrb[0].mxu0
    %v7942 = vadd.f32 %v7780, %v7941
    %v7943 = vpop.f32.mrb[0].mxu0
    %7944 = vmatprep.mubr.f32.mxu0 0.0
    %v7945 = vand.u32 %v6885, 4294901760
    %7946 = vmatmul.mubr.f32.gmra.mrb[0].mxu0 %v7945
    %v7947 = vpop.f32.mrb[0].mxu0
    %v7948 = vadd.f32 %v7786, %v7947
    %v7949 = vpop.f32.mrb[0].mxu0
    %7950 = vmatprep.mubr.f32.mxu0 0.0
    %v7951 = vand.u32 %v6888, 4294901760
    %7952 = vmatmul.mubr.f32.gmra.mrb[0].mxu0 %v7951
    %v7953 = vpop.f32.mrb[0].mxu0
    %v7954 = vadd.f32 %v7792, %v7953
    %v7955 = vpop.f32.mrb[0].mxu0
    %7956 = vmatprep.mubr.f32.mxu0 0.0
    %v7957 = vand.u32 %v6891, 4294901760
    %7958 = vmatmul.mubr.f32.gmra.mrb[0].mxu0 %v7957
    %v7959 = vpop.f32.mrb[0].mxu0
    %v7960 = vadd.f32 %v7798, %v7959
    %v7961 = vpop.f32.mrb[0].mxu0
    %7962 = vmatprep.mubr.f32.mxu0 0.0
    %v7963 = vand.u32 %v6894, 4294901760
    %7964 = vmatmul.mubr.f32.gmra.mrb[0].mxu0 %v7963
    %v7965 = vpop.f32.mrb[0].mxu0
    %v7966 = vadd.f32 %v7804, %v7965
    %v7967 = vpop.f32.mrb[0].mxu0
    %7968 = vmatprep.mubr.f32.mxu0 0.0
    %v7969 = vand.u32 %v6897, 4294901760
    %7970 = vmatmul.mubr.f32.gmra.mrb[0].mxu0 %v7969
    %v7971 = vpop.f32.mrb[0].mxu0
    %v7972 = vadd.f32 %v7810, %v7971
    %v7973 = vpop.f32.mrb[0].mxu0
    %7974 = vmatprep.mubr.f32.mxu0 0.0
    %v7975 = vand.u32 %v6900, 4294901760
    %7976 = vmatmul.mubr.f32.gmra.mrb[0].mxu0 %v7975
    %v7977 = vpop.f32.mrb[0].mxu0
    %v7978 = vadd.f32 %v7816, %v7977
    %v7979 = vpop.f32.mrb[0].mxu0
    %7980 = vmatprep.mubr.f32.mxu0 0.0
    %v7981 = vand.u32 %v6903, 4294901760
    %7982 = vmatmul.mubr.f32.gmra.mrb[0].mxu0 %v7981
    %v7983 = vpop.f32.mrb[0].mxu0
    %v7984 = vadd.f32 %v7822, %v7983
    %v7985 = vpop.f32.mrb[0].mxu0
    %7986 = vmatprep.mubr.f32.mxu0 0.0
    %v7987 = vand.u32 %v6906, 4294901760
    %7988 = vmatmul.mubr.f32.gmra.mrb[0].mxu0 %v7987
    %v7989 = vpop.f32.mrb[0].mxu0
    %v7990 = vadd.f32 %v7828, %v7989
    %v7991 = vpop.f32.mrb[0].mxu0
    %7992 = vmatprep.mubr.f32.mxu0 0.0
    %v7993 = vand.u32 %v6909, 4294901760
    %7994 = vmatmul.mubr.f32.gmra.mrb[0].mxu0 %v7993
    %v7995 = vpop.f32.mrb[0].mxu0
    %v7996 = vadd.f32 %v7834, %v7995
    %v7997 = vpop.f32.mrb[0].mxu0
    %7998 = vmatprep.mubr.f32.mxu0 0.0
    %v7999 = vand.u32 %v6912, 4294901760
    %8000 = vmatmul.mubr.f32.gmra.mrb[0].mxu0 %v7999
    %v8001 = vpop.f32.mrb[0].mxu0
    %v8002 = vadd.f32 %v7840, %v8001
    %v8003 = vpop.f32.mrb[0].mxu0
    %8004 = vdwg.mxu0
    %v8005 = vsel %vm45, %v7912, -inf
    %8006 = vmax.xlane.f32.xlu0 %v8005
    %v8007 = vpop.xlane.xlu0 %8006
    %v8008 = vsel %vm45, %v7918, -inf
    %8009 = vmax.xlane.f32.xlu0 %v8008
    %v8010 = vpop.xlane.xlu0 %8009
    %v8011 = vsel %vm45, %v7924, -inf
    %8012 = vmax.xlane.f32.xlu0 %v8011
    %v8013 = vpop.xlane.xlu0 %8012
    %v8014 = vsel %vm45, %v7930, -inf
    %8015 = vmax.xlane.f32.xlu0 %v8014
    %v8016 = vpop.xlane.xlu0 %8015
    %v8017 = vsel %vm45, %v7936, -inf
    %8018 = vmax.xlane.f32.xlu0 %v8017
    %v8019 = vpop.xlane.xlu0 %8018
    %v8020 = vsel %vm45, %v7942, -inf
    %8021 = vmax.xlane.f32.xlu0 %v8020
    %v8022 = vpop.xlane.xlu0 %8021
    %v8023 = vsel %vm45, %v7948, -inf
    %8024 = vmax.xlane.f32.xlu0 %v8023
    %v8025 = vpop.xlane.xlu0 %8024
    %v8026 = vsel %vm45, %v7954, -inf
    %8027 = vmax.xlane.f32.xlu0 %v8026
    %v8028 = vpop.xlane.xlu0 %8027
    %v8029 = vsel %vm45, %v7960, -inf
    %8030 = vmax.xlane.f32.xlu0 %v8029
    %v8031 = vpop.xlane.xlu0 %8030
    %v8032 = vsel %vm45, %v7966, -inf
    %8033 = vmax.xlane.f32.xlu0 %v8032
    %v8034 = vpop.xlane.xlu0 %8033
    %v8035 = vsel %vm45, %v7972, -inf
    %8036 = vmax.xlane.f32.xlu0 %v8035
    %v8037 = vpop.xlane.xlu0 %8036
    %v8038 = vsel %vm45, %v7978, -inf
    %8039 = vmax.xlane.f32.xlu0 %v8038
    %v8040 = vpop.xlane.xlu0 %8039
    %v8041 = vsel %vm45, %v7984, -inf
    %8042 = vmax.xlane.f32.xlu0 %v8041
    %v8043 = vpop.xlane.xlu0 %8042
    %v8044 = vsel %vm45, %v7990, -inf
    %8045 = vmax.xlane.f32.xlu0 %v8044
    %v8046 = vpop.xlane.xlu0 %8045
    %v8047 = vsel %vm45, %v7996, -inf
    %8048 = vmax.xlane.f32.xlu0 %v8047
    %v8049 = vpop.xlane.xlu0 %8048
    %v8050 = vsel %vm45, %v8002, -inf
    %8051 = vmax.xlane.f32.xlu0 %v8050
    %v8052 = vpop.xlane.xlu0 %8051
    %v8053 = vsub.f32 %v7912, %v8007
    %v8054 = vsub.f32 %v7918, %v8010
    %v8055 = vsub.f32 %v7924, %v8013
    %v8056 = vsub.f32 %v7930, %v8016
    %v8057 = vsub.f32 %v7936, %v8019
    %v8058 = vsub.f32 %v7942, %v8022
    %v8059 = vsub.f32 %v7948, %v8025
    %v8060 = vsub.f32 %v7954, %v8028
    %v8061 = vsub.f32 %v7960, %v8031
    %v8062 = vsub.f32 %v7966, %v8034
    %v8063 = vsub.f32 %v7972, %v8037
    %v8064 = vsub.f32 %v7978, %v8040
    %v8065 = vsub.f32 %v7984, %v8043
    %v8066 = vsub.f32 %v7990, %v8046
    %v8067 = vsub.f32 %v7996, %v8049
    %v8068 = vsub.f32 %v8002, %v8052
    %v8069 = vmul.f32 %v8053, 1.442695
    %v8070 = vpow.pop %v8069
    %v8071 = vmul.f32 %v8054, 1.442695
    %v8072 = vpow.pop %v8071
    %v8073 = vmul.f32 %v8055, 1.442695
    %v8074 = vpow.pop %v8073
    %v8075 = vmul.f32 %v8056, 1.442695
    %v8076 = vpow.pop %v8075
    %v8077 = vmul.f32 %v8057, 1.442695
    %v8078 = vpow.pop %v8077
    %v8079 = vmul.f32 %v8058, 1.442695
    %v8080 = vpow.pop %v8079
    %v8081 = vmul.f32 %v8059, 1.442695
    %v8082 = vpow.pop %v8081
    %v8083 = vmul.f32 %v8060, 1.442695
    %v8084 = vpow.pop %v8083
    %v8085 = vmul.f32 %v8061, 1.442695
    %v8086 = vpow.pop %v8085
    %v8087 = vmul.f32 %v8062, 1.442695
    %v8088 = vpow.pop %v8087
    %v8089 = vmul.f32 %v8063, 1.442695
    %v8090 = vpow.pop %v8089
    %v8091 = vmul.f32 %v8064, 1.442695
    %v8092 = vpow.pop %v8091
    %v8093 = vmul.f32 %v8065, 1.442695
    %v8094 = vpow.pop %v8093
    %v8095 = vmul.f32 %v8066, 1.442695
    %v8096 = vpow.pop %v8095
    %v8097 = vmul.f32 %v8067, 1.442695
    %v8098 = vpow.pop %v8097
    %v8099 = vmul.f32 %v8068, 1.442695
    %v8100 = vpow.pop %v8099
    %v8101 = vsel %vm45, %v8070, 0.0
    %8102 = vadd.xlane.f32.xlu0 %v8101
    %v8103 = vpop.xlane.xlu0 %8102
    %v8104 = vsel %vm45, %v8072, 0.0
    %8105 = vadd.xlane.f32.xlu0 %v8104
    %v8106 = vpop.xlane.xlu0 %8105
    %v8107 = vsel %vm45, %v8074, 0.0
    %8108 = vadd.xlane.f32.xlu0 %v8107
    %v8109 = vpop.xlane.xlu0 %8108
    %v8110 = vsel %vm45, %v8076, 0.0
    %8111 = vadd.xlane.f32.xlu0 %v8110
    %v8112 = vpop.xlane.xlu0 %8111
    %v8113 = vsel %vm45, %v8078, 0.0
    %8114 = vadd.xlane.f32.xlu0 %v8113
    %v8115 = vpop.xlane.xlu0 %8114
    %v8116 = vsel %vm45, %v8080, 0.0
    %8117 = vadd.xlane.f32.xlu0 %v8116
    %v8118 = vpop.xlane.xlu0 %8117
    %v8119 = vsel %vm45, %v8082, 0.0
    %8120 = vadd.xlane.f32.xlu0 %v8119
    %v8121 = vpop.xlane.xlu0 %8120
    %v8122 = vsel %vm45, %v8084, 0.0
    %8123 = vadd.xlane.f32.xlu0 %v8122
    %v8124 = vpop.xlane.xlu0 %8123
    %v8125 = vsel %vm45, %v8086, 0.0
    %8126 = vadd.xlane.f32.xlu0 %v8125
    %v8127 = vpop.xlane.xlu0 %8126
    %v8128 = vsel %vm45, %v8088, 0.0
    %8129 = vadd.xlane.f32.xlu0 %v8128
    %v8130 = vpop.xlane.xlu0 %8129
    %v8131 = vsel %vm45, %v8090, 0.0
    %8132 = vadd.xlane.f32.xlu0 %v8131
    %v8133 = vpop.xlane.xlu0 %8132
    %v8134 = vsel %vm45, %v8092, 0.0
    %8135 = vadd.xlane.f32.xlu0 %v8134
    %v8136 = vpop.xlane.xlu0 %8135
    %v8137 = vsel %vm45, %v8094, 0.0
    %8138 = vadd.xlane.f32.xlu0 %v8137
    %v8139 = vpop.xlane.xlu0 %8138
    %v8140 = vsel %vm45, %v8096, 0.0
    %8141 = vadd.xlane.f32.xlu0 %v8140
    %v8142 = vpop.xlane.xlu0 %8141
    %v8143 = vsel %vm45, %v8098, 0.0
    %8144 = vadd.xlane.f32.xlu0 %v8143
    %v8145 = vpop.xlane.xlu0 %8144
    %v8146 = vsel %vm45, %v8100, 0.0
    %8147 = vadd.xlane.f32.xlu0 %v8146
    %v8148 = vpop.xlane.xlu0 %8147
    %v8149 = vrcp.pop %v8103
    %v8150 = vmul.f32 %v8070, %v8149
    %v8151 = vrcp.pop %v8106
    %v8152 = vmul.f32 %v8072, %v8151
    %v8153 = vrcp.pop %v8109
    %v8154 = vmul.f32 %v8074, %v8153
    %v8155 = vrcp.pop %v8112
    %v8156 = vmul.f32 %v8076, %v8155
    %v8157 = vrcp.pop %v8115
    %v8158 = vmul.f32 %v8078, %v8157
    %v8159 = vrcp.pop %v8118
    %v8160 = vmul.f32 %v8080, %v8159
    %v8161 = vrcp.pop %v8121
    %v8162 = vmul.f32 %v8082, %v8161
    %v8163 = vrcp.pop %v8124
    %v8164 = vmul.f32 %v8084, %v8163
    %v8165 = vrcp.pop %v8127
    %v8166 = vmul.f32 %v8086, %v8165
    %v8167 = vrcp.pop %v8130
    %v8168 = vmul.f32 %v8088, %v8167
    %v8169 = vrcp.pop %v8133
    %v8170 = vmul.f32 %v8090, %v8169
    %v8171 = vrcp.pop %v8136
    %v8172 = vmul.f32 %v8092, %v8171
    %v8173 = vrcp.pop %v8139
    %v8174 = vmul.f32 %v8094, %v8173
    %v8175 = vrcp.pop %v8142
    %v8176 = vmul.f32 %v8096, %v8175
    %v8177 = vrcp.pop %v8145
    %v8178 = vmul.f32 %v8098, %v8177
    %v8179 = vrcp.pop %v8148
    %v8180 = vmul.f32 %v8100, %v8179
    %v8181 = vmul.f32 %v8150, %v6850
    %v8182 = vmul.f32 %v8152, %v6851
    %v8183 = vmul.f32 %v8154, %v6852
    %v8184 = vmul.f32 %v8156, %v6853
    %v8185 = vmul.f32 %v8158, %v6854
    %v8186 = vmul.f32 %v8160, %v6855
    %v8187 = vmul.f32 %v8162, %v6856
    %v8188 = vmul.f32 %v8164, %v6857
    %v8189 = vmul.f32 %v8166, %v6858
    %v8190 = vmul.f32 %v8168, %v6859
    %v8191 = vmul.f32 %v8170, %v6860
    %v8192 = vmul.f32 %v8172, %v6861
    %v8193 = vmul.f32 %v8174, %v6862
    %v8194 = vmul.f32 %v8176, %v6863
    %v8195 = vmul.f32 %v8178, %v6864
    %v8196 = vmul.f32 %v8180, %v6865
    %v8197 = vadd.f32 %v6833, %v8181
    %v8198 = vadd.f32 %v6834, %v8182
    %v8199 = vadd.f32 %v6835, %v8183
    %v8200 = vadd.f32 %v6836, %v8184
    %v8201 = vadd.f32 %v6837, %v8185
    %v8202 = vadd.f32 %v6838, %v8186
    %v8203 = vadd.f32 %v6839, %v8187
    %v8204 = vadd.f32 %v6840, %v8188
    %v8205 = vadd.f32 %v6841, %v8189
    %v8206 = vadd.f32 %v6842, %v8190
    %v8207 = vadd.f32 %v6843, %v8191
    %v8208 = vadd.f32 %v6844, %v8192
    %v8209 = vadd.f32 %v6845, %v8193
    %v8210 = vadd.f32 %v6846, %v8194
    %v8211 = vadd.f32 %v6847, %v8195
    %v8212 = vadd.f32 %v6848, %v8196
    %s8213 = scalar_lea.vmem %s0, 768
    %v8214 = vld [vmem:[%s8213] sm:$0xff]
    %v8215 = vld [vmem:[%s8213 + $0x8] sm:$0xff]
    %v8216 = vld [vmem:[%s8213 + $0x10] sm:$0xff]
    %v8217 = vld [vmem:[%s8213 + $0x18] sm:$0xff]
    %v8218 = vld [vmem:[%s8213 + $0x20] sm:$0xff]
    %v8219 = vld [vmem:[%s8213 + $0x28] sm:$0xff]
    %v8220 = vld [vmem:[%s8213 + $0x30] sm:$0xff]
    %v8221 = vld [vmem:[%s8213 + $0x38] sm:$0xff]
    %v8222 = vld [vmem:[%s8213 + $0x40] sm:$0xff]
    %v8223 = vld [vmem:[%s8213 + $0x48] sm:$0xff]
    %v8224 = vld [vmem:[%s8213 + $0x50] sm:$0xff]
    %v8225 = vld [vmem:[%s8213 + $0x58] sm:$0xff]
    %v8226 = vld [vmem:[%s8213 + $0x60] sm:$0xff]
    %v8227 = vld [vmem:[%s8213 + $0x68] sm:$0xff]
    %v8228 = vld [vmem:[%s8213 + $0x70] sm:$0xff]
    %v8229 = vld [vmem:[%s8213 + $0x78] sm:$0xff]
    %v8231 = vsel %vm45, %v8214, 0
    %v8234 = vsel %vm45, %v8215, 0
    %v8237 = vsel %vm45, %v8216, 0
    %v8240 = vsel %vm45, %v8217, 0
    %v8243 = vsel %vm45, %v8218, 0
    %v8246 = vsel %vm45, %v8219, 0
    %v8249 = vsel %vm45, %v8220, 0
    %v8252 = vsel %vm45, %v8221, 0
    %v8255 = vsel %vm45, %v8222, 0
    %v8258 = vsel %vm45, %v8223, 0
    %v8261 = vsel %vm45, %v8224, 0
    %v8264 = vsel %vm45, %v8225, 0
    %v8267 = vsel %vm45, %v8226, 0
    %v8270 = vsel %vm45, %v8227, 0
    %v8273 = vsel %vm45, %v8228, 0
    %v8276 = vsel %vm45, %v8229, 0
    %8278 = vmatprep.subr.mxu0 0.0
    %v8279 = vand.u32 %v21, 4294901760
    %8280 = vmatpush1.msra.mxu0 %v8279
    %8281 = vmatprep.subr.mxu0 0.0
    %8282 = vmatpush1.msra.mxu0 0.0
    %8283 = vmatprep.subr.mxu0 0.0
    %8284 = vmatpush1.msra.mxu0 0.0
    %8285 = vmatprep.subr.mxu0 0.0
    %8286 = vmatpush1.msra.mxu0 0.0
    %8287 = vmatprep.subr.mxu0 0.0
    %8288 = vmatpush1.msra.mxu0 0.0
    %8289 = vmatprep.subr.mxu0 0.0
    %8290 = vmatpush1.msra.mxu0 0.0
    %8291 = vmatprep.subr.mxu0 0.0
    %8292 = vmatpush1.msra.mxu0 0.0
    %8293 = vmatprep.subr.mxu0 0.0
    %8294 = vmatpush1.msra.mxu0 0.0
    %8295 = vmatprep.subr.mxu0 0.0
    %8296 = vmatpush1.msra.mxu0 0.0
    %8297 = vmatprep.subr.mxu0 0.0
    %8298 = vmatpush1.msra.mxu0 0.0
    %8299 = vmatprep.subr.mxu0 0.0
    %8300 = vmatpush1.msra.mxu0 0.0
    %8301 = vmatprep.subr.mxu0 0.0
    %8302 = vmatpush1.msra.mxu0 0.0
    %8303 = vmatprep.subr.mxu0 0.0
    %8304 = vmatpush1.msra.mxu0 0.0
    %8305 = vmatprep.subr.mxu0 0.0
    %8306 = vmatpush1.msra.mxu0 0.0
    %8307 = vmatprep.subr.mxu0 0.0
    %8308 = vmatpush1.msra.mxu0 0.0
    %8309 = vmatprep.subr.mxu0 0.0
    %8310 = vmatpush1.msra.mxu0 0.0
    %8311 = vmatprep.subr.mxu0 0.0
    %8312 = vmatpush1.msra.mxu0 0.0
    %8313 = vmatprep.subr.mxu0 0.0
    %8314 = vmatpush1.msra.mxu0 0.0
    %8315 = vmatprep.subr.mxu0 0.0
    %8316 = vmatpush1.msra.mxu0 0.0
    %8317 = vmatprep.subr.mxu0 0.0
    %8318 = vmatpush1.msra.mxu0 0.0
    %8319 = vmatprep.subr.mxu0 0.0
    %8320 = vmatpush1.msra.mxu0 0.0
    %8321 = vmatprep.subr.mxu0 0.0
    %8322 = vmatpush1.msra.mxu0 0.0
    %8323 = vmatprep.subr.mxu0 0.0
    %8324 = vmatpush1.msra.mxu0 0.0
    %8325 = vmatprep.subr.mxu0 0.0
    %8326 = vmatpush1.msra.mxu0 0.0
    %8327 = vmatprep.subr.mxu0 0.0
    %8328 = vmatpush1.msra.mxu0 0.0
    %8329 = vmatprep.subr.mxu0 0.0
    %8330 = vmatpush1.msra.mxu0 0.0
    %8331 = vmatprep.subr.mxu0 0.0
    %8332 = vmatpush1.msra.mxu0 0.0
    %8333 = vmatprep.subr.mxu0 0.0
    %8334 = vmatpush1.msra.mxu0 0.0
    %8335 = vmatprep.subr.mxu0 0.0
    %8336 = vmatpush1.msra.mxu0 0.0
    %8337 = vmatprep.subr.mxu0 0.0
    %8338 = vmatpush1.msra.mxu0 0.0
    %8339 = vmatprep.subr.mxu0 0.0
    %8340 = vmatpush1.msra.mxu0 0.0
    %8341 = vmatprep.subr.mxu0 0.0
    %8342 = vmatpush1.msra.mxu0 0.0
    %8343 = vmatprep.mubr.f32.mxu0 0.0
    %v8344 = vand.u32 %v8231, 4294901760
    %v8345 = vsub.f32 %v8231, %v8344
    %v8346 = vand.u32 %v8345, 4294901760
    %v8347 = vsub.f32 %v8345, %v8346
    %v8348 = vand.u32 %v8347, 4294901760
    %8349 = vmatmul.mubr.f32.gmra.mrb[0].mxu0 %v8348
    %v8350 = vpop.f32.mrb[0].mxu0
    %v8351 = vadd.f32 %v43, %v8350
    %v8352 = vpop.f32.mrb[0].mxu0
    %8353 = vmatprep.mubr.f32.mxu0 0.0
    %v8354 = vand.u32 %v8234, 4294901760
    %v8355 = vsub.f32 %v8234, %v8354
    %v8356 = vand.u32 %v8355, 4294901760
    %v8357 = vsub.f32 %v8355, %v8356
    %v8358 = vand.u32 %v8357, 4294901760
    %8359 = vmatmul.mubr.f32.gmra.mrb[0].mxu0 %v8358
    %v8360 = vpop.f32.mrb[0].mxu0
    %v8361 = vadd.f32 %v43, %v8360
    %v8362 = vpop.f32.mrb[0].mxu0
    %8363 = vmatprep.mubr.f32.mxu0 0.0
    %v8364 = vand.u32 %v8237, 4294901760
    %v8365 = vsub.f32 %v8237, %v8364
    %v8366 = vand.u32 %v8365, 4294901760
    %v8367 = vsub.f32 %v8365, %v8366
    %v8368 = vand.u32 %v8367, 4294901760
    %8369 = vmatmul.mubr.f32.gmra.mrb[0].mxu0 %v8368
    %v8370 = vpop.f32.mrb[0].mxu0
    %v8371 = vadd.f32 %v43, %v8370
    %v8372 = vpop.f32.mrb[0].mxu0
    %8373 = vmatprep.mubr.f32.mxu0 0.0
    %v8374 = vand.u32 %v8240, 4294901760
    %v8375 = vsub.f32 %v8240, %v8374
    %v8376 = vand.u32 %v8375, 4294901760
    %v8377 = vsub.f32 %v8375, %v8376
    %v8378 = vand.u32 %v8377, 4294901760
    %8379 = vmatmul.mubr.f32.gmra.mrb[0].mxu0 %v8378
    %v8380 = vpop.f32.mrb[0].mxu0
    %v8381 = vadd.f32 %v43, %v8380
    %v8382 = vpop.f32.mrb[0].mxu0
    %8383 = vmatprep.mubr.f32.mxu0 0.0
    %v8384 = vand.u32 %v8243, 4294901760
    %v8385 = vsub.f32 %v8243, %v8384
    %v8386 = vand.u32 %v8385, 4294901760
    %v8387 = vsub.f32 %v8385, %v8386
    %v8388 = vand.u32 %v8387, 4294901760
    %8389 = vmatmul.mubr.f32.gmra.mrb[0].mxu0 %v8388
    %v8390 = vpop.f32.mrb[0].mxu0
    %v8391 = vadd.f32 %v43, %v8390
    %v8392 = vpop.f32.mrb[0].mxu0
    %8393 = vmatprep.mubr.f32.mxu0 0.0
    %v8394 = vand.u32 %v8246, 4294901760
    %v8395 = vsub.f32 %v8246, %v8394
    %v8396 = vand.u32 %v8395, 4294901760
    %v8397 = vsub.f32 %v8395, %v8396
    %v8398 = vand.u32 %v8397, 4294901760
    %8399 = vmatmul.mubr.f32.gmra.mrb[0].mxu0 %v8398
    %v8400 = vpop.f32.mrb[0].mxu0
    %v8401 = vadd.f32 %v43, %v8400
    %v8402 = vpop.f32.mrb[0].mxu0
    %8403 = vmatprep.mubr.f32.mxu0 0.0
    %v8404 = vand.u32 %v8249, 4294901760
    %v8405 = vsub.f32 %v8249, %v8404
    %v8406 = vand.u32 %v8405, 4294901760
    %v8407 = vsub.f32 %v8405, %v8406
    %v8408 = vand.u32 %v8407, 4294901760
    %8409 = vmatmul.mubr.f32.gmra.mrb[0].mxu0 %v8408
    %v8410 = vpop.f32.mrb[0].mxu0
    %v8411 = vadd.f32 %v43, %v8410
    %v8412 = vpop.f32.mrb[0].mxu0
    %8413 = vmatprep.mubr.f32.mxu0 0.0
    %v8414 = vand.u32 %v8252, 4294901760
    %v8415 = vsub.f32 %v8252, %v8414
    %v8416 = vand.u32 %v8415, 4294901760
    %v8417 = vsub.f32 %v8415, %v8416
    %v8418 = vand.u32 %v8417, 4294901760
    %8419 = vmatmul.mubr.f32.gmra.mrb[0].mxu0 %v8418
    %v8420 = vpop.f32.mrb[0].mxu0
    %v8421 = vadd.f32 %v43, %v8420
    %v8422 = vpop.f32.mrb[0].mxu0
    %8423 = vmatprep.mubr.f32.mxu0 0.0
    %v8424 = vand.u32 %v8255, 4294901760
    %v8425 = vsub.f32 %v8255, %v8424
    %v8426 = vand.u32 %v8425, 4294901760
    %v8427 = vsub.f32 %v8425, %v8426
    %v8428 = vand.u32 %v8427, 4294901760
    %8429 = vmatmul.mubr.f32.gmra.mrb[0].mxu0 %v8428
    %v8430 = vpop.f32.mrb[0].mxu0
    %v8431 = vadd.f32 %v43, %v8430
    %v8432 = vpop.f32.mrb[0].mxu0
    %8433 = vmatprep.mubr.f32.mxu0 0.0
    %v8434 = vand.u32 %v8258, 4294901760
    %v8435 = vsub.f32 %v8258, %v8434
    %v8436 = vand.u32 %v8435, 4294901760
    %v8437 = vsub.f32 %v8435, %v8436
    %v8438 = vand.u32 %v8437, 4294901760
    %8439 = vmatmul.mubr.f32.gmra.mrb[0].mxu0 %v8438
    %v8440 = vpop.f32.mrb[0].mxu0
    %v8441 = vadd.f32 %v43, %v8440
    %v8442 = vpop.f32.mrb[0].mxu0
    %8443 = vmatprep.mubr.f32.mxu0 0.0
    %v8444 = vand.u32 %v8261, 4294901760
    %v8445 = vsub.f32 %v8261, %v8444
    %v8446 = vand.u32 %v8445, 4294901760
    %v8447 = vsub.f32 %v8445, %v8446
    %v8448 = vand.u32 %v8447, 4294901760
    %8449 = vmatmul.mubr.f32.gmra.mrb[0].mxu0 %v8448
    %v8450 = vpop.f32.mrb[0].mxu0
    %v8451 = vadd.f32 %v43, %v8450
    %v8452 = vpop.f32.mrb[0].mxu0
    %8453 = vmatprep.mubr.f32.mxu0 0.0
    %v8454 = vand.u32 %v8264, 4294901760
    %v8455 = vsub.f32 %v8264, %v8454
    %v8456 = vand.u32 %v8455, 4294901760
    %v8457 = vsub.f32 %v8455, %v8456
    %v8458 = vand.u32 %v8457, 4294901760
    %8459 = vmatmul.mubr.f32.gmra.mrb[0].mxu0 %v8458
    %v8460 = vpop.f32.mrb[0].mxu0
    %v8461 = vadd.f32 %v43, %v8460
    %v8462 = vpop.f32.mrb[0].mxu0
    %8463 = vmatprep.mubr.f32.mxu0 0.0
    %v8464 = vand.u32 %v8267, 4294901760
    %v8465 = vsub.f32 %v8267, %v8464
    %v8466 = vand.u32 %v8465, 4294901760
    %v8467 = vsub.f32 %v8465, %v8466
    %v8468 = vand.u32 %v8467, 4294901760
    %8469 = vmatmul.mubr.f32.gmra.mrb[0].mxu0 %v8468
    %v8470 = vpop.f32.mrb[0].mxu0
    %v8471 = vadd.f32 %v43, %v8470
    %v8472 = vpop.f32.mrb[0].mxu0
    %8473 = vmatprep.mubr.f32.mxu0 0.0
    %v8474 = vand.u32 %v8270, 4294901760
    %v8475 = vsub.f32 %v8270, %v8474
    %v8476 = vand.u32 %v8475, 4294901760
    %v8477 = vsub.f32 %v8475, %v8476
    %v8478 = vand.u32 %v8477, 4294901760
    %8479 = vmatmul.mubr.f32.gmra.mrb[0].mxu0 %v8478
    %v8480 = vpop.f32.mrb[0].mxu0
    %v8481 = vadd.f32 %v43, %v8480
    %v8482 = vpop.f32.mrb[0].mxu0
    %8483 = vmatprep.mubr.f32.mxu0 0.0
    %v8484 = vand.u32 %v8273, 4294901760
    %v8485 = vsub.f32 %v8273, %v8484
    %v8486 = vand.u32 %v8485, 4294901760
    %v8487 = vsub.f32 %v8485, %v8486
    %v8488 = vand.u32 %v8487, 4294901760
    %8489 = vmatmul.mubr.f32.gmra.mrb[0].mxu0 %v8488
    %v8490 = vpop.f32.mrb[0].mxu0
    %v8491 = vadd.f32 %v43, %v8490
    %v8492 = vpop.f32.mrb[0].mxu0
    %8493 = vmatprep.mubr.f32.mxu0 0.0
    %v8494 = vand.u32 %v8276, 4294901760
    %v8495 = vsub.f32 %v8276, %v8494
    %v8496 = vand.u32 %v8495, 4294901760
    %v8497 = vsub.f32 %v8495, %v8496
    %v8498 = vand.u32 %v8497, 4294901760
    %8499 = vmatmul.mubr.f32.gmra.mrb[0].mxu0 %v8498
    %v8500 = vpop.f32.mrb[0].mxu0
    %v8501 = vadd.f32 %v43, %v8500
    %v8502 = vpop.f32.mrb[0].mxu0
    %8503 = vdwg.mxu0
    %8504 = vmatprep.subr.mxu0 0.0
    %v8505 = vand.u32 %v21, 4294901760
    %v8506 = vsub.f32 %v21, %v8505
    %v8507 = vand.u32 %v8506, 4294901760
    %v8508 = vsub.f32 %v8506, %v8507
    %v8509 = vand.u32 %v8508, 4294901760
    %8510 = vmatpush1.msra.mxu0 %v8509
    %8511 = vmatprep.subr.mxu0 0.0
    %8512 = vmatpush1.msra.mxu0 0.0
    %8513 = vmatprep.subr.mxu0 0.0
    %8514 = vmatpush1.msra.mxu0 0.0
    %8515 = vmatprep.subr.mxu0 0.0
    %8516 = vmatpush1.msra.mxu0 0.0
    %8517 = vmatprep.subr.mxu0 0.0
    %8518 = vmatpush1.msra.mxu0 0.0
    %8519 = vmatprep.subr.mxu0 0.0
    %8520 = vmatpush1.msra.mxu0 0.0
    %8521 = vmatprep.subr.mxu0 0.0
    %8522 = vmatpush1.msra.mxu0 0.0
    %8523 = vmatprep.subr.mxu0 0.0
    %8524 = vmatpush1.msra.mxu0 0.0
    %8525 = vmatprep.subr.mxu0 0.0
    %8526 = vmatpush1.msra.mxu0 0.0
    %8527 = vmatprep.subr.mxu0 0.0
    %8528 = vmatpush1.msra.mxu0 0.0
    %8529 = vmatprep.subr.mxu0 0.0
    %8530 = vmatpush1.msra.mxu0 0.0
    %8531 = vmatprep.subr.mxu0 0.0
    %8532 = vmatpush1.msra.mxu0 0.0
    %8533 = vmatprep.subr.mxu0 0.0
    %8534 = vmatpush1.msra.mxu0 0.0
    %8535 = vmatprep.subr.mxu0 0.0
    %8536 = vmatpush1.msra.mxu0 0.0
    %8537 = vmatprep.subr.mxu0 0.0
    %8538 = vmatpush1.msra.mxu0 0.0
    %8539 = vmatprep.subr.mxu0 0.0
    %8540 = vmatpush1.msra.mxu0 0.0
    %8541 = vmatprep.subr.mxu0 0.0
    %8542 = vmatpush1.msra.mxu0 0.0
    %8543 = vmatprep.subr.mxu0 0.0
    %8544 = vmatpush1.msra.mxu0 0.0
    %8545 = vmatprep.subr.mxu0 0.0
    %8546 = vmatpush1.msra.mxu0 0.0
    %8547 = vmatprep.subr.mxu0 0.0
    %8548 = vmatpush1.msra.mxu0 0.0
    %8549 = vmatprep.subr.mxu0 0.0
    %8550 = vmatpush1.msra.mxu0 0.0
    %8551 = vmatprep.subr.mxu0 0.0
    %8552 = vmatpush1.msra.mxu0 0.0
    %8553 = vmatprep.subr.mxu0 0.0
    %8554 = vmatpush1.msra.mxu0 0.0
    %8555 = vmatprep.subr.mxu0 0.0
    %8556 = vmatpush1.msra.mxu0 0.0
    %8557 = vmatprep.subr.mxu0 0.0
    %8558 = vmatpush1.msra.mxu0 0.0
    %8559 = vmatprep.subr.mxu0 0.0
    %8560 = vmatpush1.msra.mxu0 0.0
    %8561 = vmatprep.subr.mxu0 0.0
    %8562 = vmatpush1.msra.mxu0 0.0
    %8563 = vmatprep.subr.mxu0 0.0
    %8564 = vmatpush1.msra.mxu0 0.0
    %8565 = vmatprep.subr.mxu0 0.0
    %8566 = vmatpush1.msra.mxu0 0.0
    %8567 = vmatprep.subr.mxu0 0.0
    %8568 = vmatpush1.msra.mxu0 0.0
    %8569 = vmatprep.subr.mxu0 0.0
    %8570 = vmatpush1.msra.mxu0 0.0
    %8571 = vmatprep.subr.mxu0 0.0
    %8572 = vmatpush1.msra.mxu0 0.0
    %8573 = vmatprep.mubr.f32.mxu0 0.0
    %v8574 = vand.u32 %v8231, 4294901760
    %8575 = vmatmul.mubr.f32.gmra.mrb[0].mxu0 %v8574
    %v8576 = vpop.f32.mrb[0].mxu0
    %v8577 = vadd.f32 %v8351, %v8576
    %v8578 = vpop.f32.mrb[0].mxu0
    %8579 = vmatprep.mubr.f32.mxu0 0.0
    %v8580 = vand.u32 %v8234, 4294901760
    %8581 = vmatmul.mubr.f32.gmra.mrb[0].mxu0 %v8580
    %v8582 = vpop.f32.mrb[0].mxu0
    %v8583 = vadd.f32 %v8361, %v8582
    %v8584 = vpop.f32.mrb[0].mxu0
    %8585 = vmatprep.mubr.f32.mxu0 0.0
    %v8586 = vand.u32 %v8237, 4294901760
    %8587 = vmatmul.mubr.f32.gmra.mrb[0].mxu0 %v8586
    %v8588 = vpop.f32.mrb[0].mxu0
    %v8589 = vadd.f32 %v8371, %v8588
    %v8590 = vpop.f32.mrb[0].mxu0
    %8591 = vmatprep.mubr.f32.mxu0 0.0
    %v8592 = vand.u32 %v8240, 4294901760
    %8593 = vmatmul.mubr.f32.gmra.mrb[0].mxu0 %v8592
    %v8594 = vpop.f32.mrb[0].mxu0
    %v8595 = vadd.f32 %v8381, %v8594
    %v8596 = vpop.f32.mrb[0].mxu0
    %8597 = vmatprep.mubr.f32.mxu0 0.0
    %v8598 = vand.u32 %v8243, 4294901760
    %8599 = vmatmul.mubr.f32.gmra.mrb[0].mxu0 %v8598
    %v8600 = vpop.f32.mrb[0].mxu0
    %v8601 = vadd.f32 %v8391, %v8600
    %v8602 = vpop.f32.mrb[0].mxu0
    %8603 = vmatprep.mubr.f32.mxu0 0.0
    %v8604 = vand.u32 %v8246, 4294901760
    %8605 = vmatmul.mubr.f32.gmra.mrb[0].mxu0 %v8604
    %v8606 = vpop.f32.mrb[0].mxu0
    %v8607 = vadd.f32 %v8401, %v8606
    %v8608 = vpop.f32.mrb[0].mxu0
    %8609 = vmatprep.mubr.f32.mxu0 0.0
    %v8610 = vand.u32 %v8249, 4294901760
    %8611 = vmatmul.mubr.f32.gmra.mrb[0].mxu0 %v8610
    %v8612 = vpop.f32.mrb[0].mxu0
    %v8613 = vadd.f32 %v8411, %v8612
    %v8614 = vpop.f32.mrb[0].mxu0
    %8615 = vmatprep.mubr.f32.mxu0 0.0
    %v8616 = vand.u32 %v8252, 4294901760
    %8617 = vmatmul.mubr.f32.gmra.mrb[0].mxu0 %v8616
    %v8618 = vpop.f32.mrb[0].mxu0
    %v8619 = vadd.f32 %v8421, %v8618
    %v8620 = vpop.f32.mrb[0].mxu0
    %8621 = vmatprep.mubr.f32.mxu0 0.0
    %v8622 = vand.u32 %v8255, 4294901760
    %8623 = vmatmul.mubr.f32.gmra.mrb[0].mxu0 %v8622
    %v8624 = vpop.f32.mrb[0].mxu0
    %v8625 = vadd.f32 %v8431, %v8624
    %v8626 = vpop.f32.mrb[0].mxu0
    %8627 = vmatprep.mubr.f32.mxu0 0.0
    %v8628 = vand.u32 %v8258, 4294901760
    %8629 = vmatmul.mubr.f32.gmra.mrb[0].mxu0 %v8628
    %v8630 = vpop.f32.mrb[0].mxu0
    %v8631 = vadd.f32 %v8441, %v8630
    %v8632 = vpop.f32.mrb[0].mxu0
    %8633 = vmatprep.mubr.f32.mxu0 0.0
    %v8634 = vand.u32 %v8261, 4294901760
    %8635 = vmatmul.mubr.f32.gmra.mrb[0].mxu0 %v8634
    %v8636 = vpop.f32.mrb[0].mxu0
    %v8637 = vadd.f32 %v8451, %v8636
    %v8638 = vpop.f32.mrb[0].mxu0
    %8639 = vmatprep.mubr.f32.mxu0 0.0
    %v8640 = vand.u32 %v8264, 4294901760
    %8641 = vmatmul.mubr.f32.gmra.mrb[0].mxu0 %v8640
    %v8642 = vpop.f32.mrb[0].mxu0
    %v8643 = vadd.f32 %v8461, %v8642
    %v8644 = vpop.f32.mrb[0].mxu0
    %8645 = vmatprep.mubr.f32.mxu0 0.0
    %v8646 = vand.u32 %v8267, 4294901760
    %8647 = vmatmul.mubr.f32.gmra.mrb[0].mxu0 %v8646
    %v8648 = vpop.f32.mrb[0].mxu0
    %v8649 = vadd.f32 %v8471, %v8648
    %v8650 = vpop.f32.mrb[0].mxu0
    %8651 = vmatprep.mubr.f32.mxu0 0.0
    %v8652 = vand.u32 %v8270, 4294901760
    %8653 = vmatmul.mubr.f32.gmra.mrb[0].mxu0 %v8652
    %v8654 = vpop.f32.mrb[0].mxu0
    %v8655 = vadd.f32 %v8481, %v8654
    %v8656 = vpop.f32.mrb[0].mxu0
    %8657 = vmatprep.mubr.f32.mxu0 0.0
    %v8658 = vand.u32 %v8273, 4294901760
    %8659 = vmatmul.mubr.f32.gmra.mrb[0].mxu0 %v8658
    %v8660 = vpop.f32.mrb[0].mxu0
    %v8661 = vadd.f32 %v8491, %v8660
    %v8662 = vpop.f32.mrb[0].mxu0
    %8663 = vmatprep.mubr.f32.mxu0 0.0
    %v8664 = vand.u32 %v8276, 4294901760
    %8665 = vmatmul.mubr.f32.gmra.mrb[0].mxu0 %v8664
    %v8666 = vpop.f32.mrb[0].mxu0
    %v8667 = vadd.f32 %v8501, %v8666
    %v8668 = vpop.f32.mrb[0].mxu0
    %8669 = vdwg.mxu0
    %8670 = vmatprep.subr.mxu0 0.0
    %v8671 = vand.u32 %v21, 4294901760
    %v8672 = vsub.f32 %v21, %v8671
    %8673 = vmatpush1.msra.mxu0 %v8672
    %8674 = vmatprep.subr.mxu0 0.0
    %8675 = vmatpush1.msra.mxu0 0.0
    %8676 = vmatprep.subr.mxu0 0.0
    %8677 = vmatpush1.msra.mxu0 0.0
    %8678 = vmatprep.subr.mxu0 0.0
    %8679 = vmatpush1.msra.mxu0 0.0
    %8680 = vmatprep.subr.mxu0 0.0
    %8681 = vmatpush1.msra.mxu0 0.0
    %8682 = vmatprep.subr.mxu0 0.0
    %8683 = vmatpush1.msra.mxu0 0.0
    %8684 = vmatprep.subr.mxu0 0.0
    %8685 = vmatpush1.msra.mxu0 0.0
    %8686 = vmatprep.subr.mxu0 0.0
    %8687 = vmatpush1.msra.mxu0 0.0
    %8688 = vmatprep.subr.mxu0 0.0
    %8689 = vmatpush1.msra.mxu0 0.0
    %8690 = vmatprep.subr.mxu0 0.0
    %8691 = vmatpush1.msra.mxu0 0.0
    %8692 = vmatprep.subr.mxu0 0.0
    %8693 = vmatpush1.msra.mxu0 0.0
    %8694 = vmatprep.subr.mxu0 0.0
    %8695 = vmatpush1.msra.mxu0 0.0
    %8696 = vmatprep.subr.mxu0 0.0
    %8697 = vmatpush1.msra.mxu0 0.0
    %8698 = vmatprep.subr.mxu0 0.0
    %8699 = vmatpush1.msra.mxu0 0.0
    %8700 = vmatprep.subr.mxu0 0.0
    %8701 = vmatpush1.msra.mxu0 0.0
    %8702 = vmatprep.subr.mxu0 0.0
    %8703 = vmatpush1.msra.mxu0 0.0
    %8704 = vmatprep.subr.mxu0 0.0
    %8705 = vmatpush1.msra.mxu0 0.0
    %8706 = vmatprep.subr.mxu0 0.0
    %8707 = vmatpush1.msra.mxu0 0.0
    %8708 = vmatprep.subr.mxu0 0.0
    %8709 = vmatpush1.msra.mxu0 0.0
    %8710 = vmatprep.subr.mxu0 0.0
    %8711 = vmatpush1.msra.mxu0 0.0
    %8712 = vmatprep.subr.mxu0 0.0
    %8713 = vmatpush1.msra.mxu0 0.0
    %8714 = vmatprep.subr.mxu0 0.0
    %8715 = vmatpush1.msra.mxu0 0.0
    %8716 = vmatprep.subr.mxu0 0.0
    %8717 = vmatpush1.msra.mxu0 0.0
    %8718 = vmatprep.subr.mxu0 0.0
    %8719 = vmatpush1.msra.mxu0 0.0
    %8720 = vmatprep.subr.mxu0 0.0
    %8721 = vmatpush1.msra.mxu0 0.0
    %8722 = vmatprep.subr.mxu0 0.0
    %8723 = vmatpush1.msra.mxu0 0.0
    %8724 = vmatprep.subr.mxu0 0.0
    %8725 = vmatpush1.msra.mxu0 0.0
    %8726 = vmatprep.subr.mxu0 0.0
    %8727 = vmatpush1.msra.mxu0 0.0
    %8728 = vmatprep.subr.mxu0 0.0
    %8729 = vmatpush1.msra.mxu0 0.0
    %8730 = vmatprep.subr.mxu0 0.0
    %8731 = vmatpush1.msra.mxu0 0.0
    %8732 = vmatprep.subr.mxu0 0.0
    %8733 = vmatpush1.msra.mxu0 0.0
    %8734 = vmatprep.subr.mxu0 0.0
    %8735 = vmatpush1.msra.mxu0 0.0
    %8736 = vmatprep.mubr.f32.mxu0 0.0
    %v8737 = vand.u32 %v8231, 4294901760
    %v8738 = vsub.f32 %v8231, %v8737
    %8739 = vmatmul.mubr.f32.gmra.mrb[0].mxu0 %v8738
    %v8740 = vpop.f32.mrb[0].mxu0
    %v8741 = vadd.f32 %v8577, %v8740
    %v8742 = vpop.f32.mrb[0].mxu0
    %8743 = vmatprep.mubr.f32.mxu0 0.0
    %v8744 = vand.u32 %v8234, 4294901760
    %v8745 = vsub.f32 %v8234, %v8744
    %8746 = vmatmul.mubr.f32.gmra.mrb[0].mxu0 %v8745
    %v8747 = vpop.f32.mrb[0].mxu0
    %v8748 = vadd.f32 %v8583, %v8747
    %v8749 = vpop.f32.mrb[0].mxu0
    %8750 = vmatprep.mubr.f32.mxu0 0.0
    %v8751 = vand.u32 %v8237, 4294901760
    %v8752 = vsub.f32 %v8237, %v8751
    %8753 = vmatmul.mubr.f32.gmra.mrb[0].mxu0 %v8752
    %v8754 = vpop.f32.mrb[0].mxu0
    %v8755 = vadd.f32 %v8589, %v8754
    %v8756 = vpop.f32.mrb[0].mxu0
    %8757 = vmatprep.mubr.f32.mxu0 0.0
    %v8758 = vand.u32 %v8240, 4294901760
    %v8759 = vsub.f32 %v8240, %v8758
    %8760 = vmatmul.mubr.f32.gmra.mrb[0].mxu0 %v8759
    %v8761 = vpop.f32.mrb[0].mxu0
    %v8762 = vadd.f32 %v8595, %v8761
    %v8763 = vpop.f32.mrb[0].mxu0
    %8764 = vmatprep.mubr.f32.mxu0 0.0
    %v8765 = vand.u32 %v8243, 4294901760
    %v8766 = vsub.f32 %v8243, %v8765
    %8767 = vmatmul.mubr.f32.gmra.mrb[0].mxu0 %v8766
    %v8768 = vpop.f32.mrb[0].mxu0
    %v8769 = vadd.f32 %v8601, %v8768
    %v8770 = vpop.f32.mrb[0].mxu0
    %8771 = vmatprep.mubr.f32.mxu0 0.0
    %v8772 = vand.u32 %v8246, 4294901760
    %v8773 = vsub.f32 %v8246, %v8772
    %8774 = vmatmul.mubr.f32.gmra.mrb[0].mxu0 %v8773
    %v8775 = vpop.f32.mrb[0].mxu0
    %v8776 = vadd.f32 %v8607, %v8775
    %v8777 = vpop.f32.mrb[0].mxu0
    %8778 = vmatprep.mubr.f32.mxu0 0.0
    %v8779 = vand.u32 %v8249, 4294901760
    %v8780 = vsub.f32 %v8249, %v8779
    %8781 = vmatmul.mubr.f32.gmra.mrb[0].mxu0 %v8780
    %v8782 = vpop.f32.mrb[0].mxu0
    %v8783 = vadd.f32 %v8613, %v8782
    %v8784 = vpop.f32.mrb[0].mxu0
    %8785 = vmatprep.mubr.f32.mxu0 0.0
    %v8786 = vand.u32 %v8252, 4294901760
    %v8787 = vsub.f32 %v8252, %v8786
    %8788 = vmatmul.mubr.f32.gmra.mrb[0].mxu0 %v8787
    %v8789 = vpop.f32.mrb[0].mxu0
    %v8790 = vadd.f32 %v8619, %v8789
    %v8791 = vpop.f32.mrb[0].mxu0
    %8792 = vmatprep.mubr.f32.mxu0 0.0
    %v8793 = vand.u32 %v8255, 4294901760
    %v8794 = vsub.f32 %v8255, %v8793
    %8795 = vmatmul.mubr.f32.gmra.mrb[0].mxu0 %v8794
    %v8796 = vpop.f32.mrb[0].mxu0
    %v8797 = vadd.f32 %v8625, %v8796
    %v8798 = vpop.f32.mrb[0].mxu0
    %8799 = vmatprep.mubr.f32.mxu0 0.0
    %v8800 = vand.u32 %v8258, 4294901760
    %v8801 = vsub.f32 %v8258, %v8800
    %8802 = vmatmul.mubr.f32.gmra.mrb[0].mxu0 %v8801
    %v8803 = vpop.f32.mrb[0].mxu0
    %v8804 = vadd.f32 %v8631, %v8803
    %v8805 = vpop.f32.mrb[0].mxu0
    %8806 = vmatprep.mubr.f32.mxu0 0.0
    %v8807 = vand.u32 %v8261, 4294901760
    %v8808 = vsub.f32 %v8261, %v8807
    %8809 = vmatmul.mubr.f32.gmra.mrb[0].mxu0 %v8808
    %v8810 = vpop.f32.mrb[0].mxu0
    %v8811 = vadd.f32 %v8637, %v8810
    %v8812 = vpop.f32.mrb[0].mxu0
    %8813 = vmatprep.mubr.f32.mxu0 0.0
    %v8814 = vand.u32 %v8264, 4294901760
    %v8815 = vsub.f32 %v8264, %v8814
    %8816 = vmatmul.mubr.f32.gmra.mrb[0].mxu0 %v8815
    %v8817 = vpop.f32.mrb[0].mxu0
    %v8818 = vadd.f32 %v8643, %v8817
    %v8819 = vpop.f32.mrb[0].mxu0
    %8820 = vmatprep.mubr.f32.mxu0 0.0
    %v8821 = vand.u32 %v8267, 4294901760
    %v8822 = vsub.f32 %v8267, %v8821
    %8823 = vmatmul.mubr.f32.gmra.mrb[0].mxu0 %v8822
    %v8824 = vpop.f32.mrb[0].mxu0
    %v8825 = vadd.f32 %v8649, %v8824
    %v8826 = vpop.f32.mrb[0].mxu0
    %8827 = vmatprep.mubr.f32.mxu0 0.0
    %v8828 = vand.u32 %v8270, 4294901760
    %v8829 = vsub.f32 %v8270, %v8828
    %8830 = vmatmul.mubr.f32.gmra.mrb[0].mxu0 %v8829
    %v8831 = vpop.f32.mrb[0].mxu0
    %v8832 = vadd.f32 %v8655, %v8831
    %v8833 = vpop.f32.mrb[0].mxu0
    %8834 = vmatprep.mubr.f32.mxu0 0.0
    %v8835 = vand.u32 %v8273, 4294901760
    %v8836 = vsub.f32 %v8273, %v8835
    %8837 = vmatmul.mubr.f32.gmra.mrb[0].mxu0 %v8836
    %v8838 = vpop.f32.mrb[0].mxu0
    %v8839 = vadd.f32 %v8661, %v8838
    %v8840 = vpop.f32.mrb[0].mxu0
    %8841 = vmatprep.mubr.f32.mxu0 0.0
    %v8842 = vand.u32 %v8276, 4294901760
    %v8843 = vsub.f32 %v8276, %v8842
    %8844 = vmatmul.mubr.f32.gmra.mrb[0].mxu0 %v8843
    %v8845 = vpop.f32.mrb[0].mxu0
    %v8846 = vadd.f32 %v8667, %v8845
    %v8847 = vpop.f32.mrb[0].mxu0
    %8848 = vdwg.mxu0
    %8849 = vmatprep.subr.mxu0 0.0
    %v8850 = vand.u32 %v21, 4294901760
    %8851 = vmatpush1.msra.mxu0 %v8850
    %8852 = vmatprep.subr.mxu0 0.0
    %8853 = vmatpush1.msra.mxu0 0.0
    %8854 = vmatprep.subr.mxu0 0.0
    %8855 = vmatpush1.msra.mxu0 0.0
    %8856 = vmatprep.subr.mxu0 0.0
    %8857 = vmatpush1.msra.mxu0 0.0
    %8858 = vmatprep.subr.mxu0 0.0
    %8859 = vmatpush1.msra.mxu0 0.0
    %8860 = vmatprep.subr.mxu0 0.0
    %8861 = vmatpush1.msra.mxu0 0.0
    %8862 = vmatprep.subr.mxu0 0.0
    %8863 = vmatpush1.msra.mxu0 0.0
    %8864 = vmatprep.subr.mxu0 0.0
    %8865 = vmatpush1.msra.mxu0 0.0
    %8866 = vmatprep.subr.mxu0 0.0
    %8867 = vmatpush1.msra.mxu0 0.0
    %8868 = vmatprep.subr.mxu0 0.0
    %8869 = vmatpush1.msra.mxu0 0.0
    %8870 = vmatprep.subr.mxu0 0.0
    %8871 = vmatpush1.msra.mxu0 0.0
    %8872 = vmatprep.subr.mxu0 0.0
    %8873 = vmatpush1.msra.mxu0 0.0
    %8874 = vmatprep.subr.mxu0 0.0
    %8875 = vmatpush1.msra.mxu0 0.0
    %8876 = vmatprep.subr.mxu0 0.0
    %8877 = vmatpush1.msra.mxu0 0.0
    %8878 = vmatprep.subr.mxu0 0.0
    %8879 = vmatpush1.msra.mxu0 0.0
    %8880 = vmatprep.subr.mxu0 0.0
    %8881 = vmatpush1.msra.mxu0 0.0
    %8882 = vmatprep.subr.mxu0 0.0
    %8883 = vmatpush1.msra.mxu0 0.0
    %8884 = vmatprep.subr.mxu0 0.0
    %8885 = vmatpush1.msra.mxu0 0.0
    %8886 = vmatprep.subr.mxu0 0.0
    %8887 = vmatpush1.msra.mxu0 0.0
    %8888 = vmatprep.subr.mxu0 0.0
    %8889 = vmatpush1.msra.mxu0 0.0
    %8890 = vmatprep.subr.mxu0 0.0
    %8891 = vmatpush1.msra.mxu0 0.0
    %8892 = vmatprep.subr.mxu0 0.0
    %8893 = vmatpush1.msra.mxu0 0.0
    %8894 = vmatprep.subr.mxu0 0.0
    %8895 = vmatpush1.msra.mxu0 0.0
    %8896 = vmatprep.subr.mxu0 0.0
    %8897 = vmatpush1.msra.mxu0 0.0
    %8898 = vmatprep.subr.mxu0 0.0
    %8899 = vmatpush1.msra.mxu0 0.0
    %8900 = vmatprep.subr.mxu0 0.0
    %8901 = vmatpush1.msra.mxu0 0.0
    %8902 = vmatprep.subr.mxu0 0.0
    %8903 = vmatpush1.msra.mxu0 0.0
    %8904 = vmatprep.subr.mxu0 0.0
    %8905 = vmatpush1.msra.mxu0 0.0
    %8906 = vmatprep.subr.mxu0 0.0
    %8907 = vmatpush1.msra.mxu0 0.0
    %8908 = vmatprep.subr.mxu0 0.0
    %8909 = vmatpush1.msra.mxu0 0.0
    %8910 = vmatprep.subr.mxu0 0.0
    %8911 = vmatpush1.msra.mxu0 0.0
    %8912 = vmatprep.subr.mxu0 0.0
    %8913 = vmatpush1.msra.mxu0 0.0
    %8914 = vmatprep.mubr.f32.mxu0 0.0
    %v8915 = vand.u32 %v8231, 4294901760
    %v8916 = vsub.f32 %v8231, %v8915
    %v8917 = vand.u32 %v8916, 4294901760
    %8918 = vmatmul.mubr.f32.gmra.mrb[0].mxu0 %v8917
    %v8919 = vpop.f32.mrb[0].mxu0
    %v8920 = vadd.f32 %v8741, %v8919
    %v8921 = vpop.f32.mrb[0].mxu0
    %8922 = vmatprep.mubr.f32.mxu0 0.0
    %v8923 = vand.u32 %v8234, 4294901760
    %v8924 = vsub.f32 %v8234, %v8923
    %v8925 = vand.u32 %v8924, 4294901760
    %8926 = vmatmul.mubr.f32.gmra.mrb[0].mxu0 %v8925
    %v8927 = vpop.f32.mrb[0].mxu0
    %v8928 = vadd.f32 %v8748, %v8927
    %v8929 = vpop.f32.mrb[0].mxu0
    %8930 = vmatprep.mubr.f32.mxu0 0.0
    %v8931 = vand.u32 %v8237, 4294901760
    %v8932 = vsub.f32 %v8237, %v8931
    %v8933 = vand.u32 %v8932, 4294901760
    %8934 = vmatmul.mubr.f32.gmra.mrb[0].mxu0 %v8933
    %v8935 = vpop.f32.mrb[0].mxu0
    %v8936 = vadd.f32 %v8755, %v8935
    %v8937 = vpop.f32.mrb[0].mxu0
    %8938 = vmatprep.mubr.f32.mxu0 0.0
    %v8939 = vand.u32 %v8240, 4294901760
    %v8940 = vsub.f32 %v8240, %v8939
    %v8941 = vand.u32 %v8940, 4294901760
    %8942 = vmatmul.mubr.f32.gmra.mrb[0].mxu0 %v8941
    %v8943 = vpop.f32.mrb[0].mxu0
    %v8944 = vadd.f32 %v8762, %v8943
    %v8945 = vpop.f32.mrb[0].mxu0
    %8946 = vmatprep.mubr.f32.mxu0 0.0
    %v8947 = vand.u32 %v8243, 4294901760
    %v8948 = vsub.f32 %v8243, %v8947
    %v8949 = vand.u32 %v8948, 4294901760
    %8950 = vmatmul.mubr.f32.gmra.mrb[0].mxu0 %v8949
    %v8951 = vpop.f32.mrb[0].mxu0
    %v8952 = vadd.f32 %v8769, %v8951
    %v8953 = vpop.f32.mrb[0].mxu0
    %8954 = vmatprep.mubr.f32.mxu0 0.0
    %v8955 = vand.u32 %v8246, 4294901760
    %v8956 = vsub.f32 %v8246, %v8955
    %v8957 = vand.u32 %v8956, 4294901760
    %8958 = vmatmul.mubr.f32.gmra.mrb[0].mxu0 %v8957
    %v8959 = vpop.f32.mrb[0].mxu0
    %v8960 = vadd.f32 %v8776, %v8959
    %v8961 = vpop.f32.mrb[0].mxu0
    %8962 = vmatprep.mubr.f32.mxu0 0.0
    %v8963 = vand.u32 %v8249, 4294901760
    %v8964 = vsub.f32 %v8249, %v8963
    %v8965 = vand.u32 %v8964, 4294901760
    %8966 = vmatmul.mubr.f32.gmra.mrb[0].mxu0 %v8965
    %v8967 = vpop.f32.mrb[0].mxu0
    %v8968 = vadd.f32 %v8783, %v8967
    %v8969 = vpop.f32.mrb[0].mxu0
    %8970 = vmatprep.mubr.f32.mxu0 0.0
    %v8971 = vand.u32 %v8252, 4294901760
    %v8972 = vsub.f32 %v8252, %v8971
    %v8973 = vand.u32 %v8972, 4294901760
    %8974 = vmatmul.mubr.f32.gmra.mrb[0].mxu0 %v8973
    %v8975 = vpop.f32.mrb[0].mxu0
    %v8976 = vadd.f32 %v8790, %v8975
    %v8977 = vpop.f32.mrb[0].mxu0
    %8978 = vmatprep.mubr.f32.mxu0 0.0
    %v8979 = vand.u32 %v8255, 4294901760
    %v8980 = vsub.f32 %v8255, %v8979
    %v8981 = vand.u32 %v8980, 4294901760
    %8982 = vmatmul.mubr.f32.gmra.mrb[0].mxu0 %v8981
    %v8983 = vpop.f32.mrb[0].mxu0
    %v8984 = vadd.f32 %v8797, %v8983
    %v8985 = vpop.f32.mrb[0].mxu0
    %8986 = vmatprep.mubr.f32.mxu0 0.0
    %v8987 = vand.u32 %v8258, 4294901760
    %v8988 = vsub.f32 %v8258, %v8987
    %v8989 = vand.u32 %v8988, 4294901760
    %8990 = vmatmul.mubr.f32.gmra.mrb[0].mxu0 %v8989
    %v8991 = vpop.f32.mrb[0].mxu0
    %v8992 = vadd.f32 %v8804, %v8991
    %v8993 = vpop.f32.mrb[0].mxu0
    %8994 = vmatprep.mubr.f32.mxu0 0.0
    %v8995 = vand.u32 %v8261, 4294901760
    %v8996 = vsub.f32 %v8261, %v8995
    %v8997 = vand.u32 %v8996, 4294901760
    %8998 = vmatmul.mubr.f32.gmra.mrb[0].mxu0 %v8997
    %v8999 = vpop.f32.mrb[0].mxu0
    %v9000 = vadd.f32 %v8811, %v8999
    %v9001 = vpop.f32.mrb[0].mxu0
    %9002 = vmatprep.mubr.f32.mxu0 0.0
    %v9003 = vand.u32 %v8264, 4294901760
    %v9004 = vsub.f32 %v8264, %v9003
    %v9005 = vand.u32 %v9004, 4294901760
    %9006 = vmatmul.mubr.f32.gmra.mrb[0].mxu0 %v9005
    %v9007 = vpop.f32.mrb[0].mxu0
    %v9008 = vadd.f32 %v8818, %v9007
    %v9009 = vpop.f32.mrb[0].mxu0
    %9010 = vmatprep.mubr.f32.mxu0 0.0
    %v9011 = vand.u32 %v8267, 4294901760
    %v9012 = vsub.f32 %v8267, %v9011
    %v9013 = vand.u32 %v9012, 4294901760
    %9014 = vmatmul.mubr.f32.gmra.mrb[0].mxu0 %v9013
    %v9015 = vpop.f32.mrb[0].mxu0
    %v9016 = vadd.f32 %v8825, %v9015
    %v9017 = vpop.f32.mrb[0].mxu0
    %9018 = vmatprep.mubr.f32.mxu0 0.0
    %v9019 = vand.u32 %v8270, 4294901760
    %v9020 = vsub.f32 %v8270, %v9019
    %v9021 = vand.u32 %v9020, 4294901760
    %9022 = vmatmul.mubr.f32.gmra.mrb[0].mxu0 %v9021
    %v9023 = vpop.f32.mrb[0].mxu0
    %v9024 = vadd.f32 %v8832, %v9023
    %v9025 = vpop.f32.mrb[0].mxu0
    %9026 = vmatprep.mubr.f32.mxu0 0.0
    %v9027 = vand.u32 %v8273, 4294901760
    %v9028 = vsub.f32 %v8273, %v9027
    %v9029 = vand.u32 %v9028, 4294901760
    %9030 = vmatmul.mubr.f32.gmra.mrb[0].mxu0 %v9029
    %v9031 = vpop.f32.mrb[0].mxu0
    %v9032 = vadd.f32 %v8839, %v9031
    %v9033 = vpop.f32.mrb[0].mxu0
    %9034 = vmatprep.mubr.f32.mxu0 0.0
    %v9035 = vand.u32 %v8276, 4294901760
    %v9036 = vsub.f32 %v8276, %v9035
    %v9037 = vand.u32 %v9036, 4294901760
    %9038 = vmatmul.mubr.f32.gmra.mrb[0].mxu0 %v9037
    %v9039 = vpop.f32.mrb[0].mxu0
    %v9040 = vadd.f32 %v8846, %v9039
    %v9041 = vpop.f32.mrb[0].mxu0
    %9042 = vdwg.mxu0
    %9043 = vmatprep.subr.mxu0 0.0
    %v9044 = vand.u32 %v21, 4294901760
    %v9045 = vsub.f32 %v21, %v9044
    %v9046 = vand.u32 %v9045, 4294901760
    %9047 = vmatpush1.msra.mxu0 %v9046
    %9048 = vmatprep.subr.mxu0 0.0
    %9049 = vmatpush1.msra.mxu0 0.0
    %9050 = vmatprep.subr.mxu0 0.0
    %9051 = vmatpush1.msra.mxu0 0.0
    %9052 = vmatprep.subr.mxu0 0.0
    %9053 = vmatpush1.msra.mxu0 0.0
    %9054 = vmatprep.subr.mxu0 0.0
    %9055 = vmatpush1.msra.mxu0 0.0
    %9056 = vmatprep.subr.mxu0 0.0
    %9057 = vmatpush1.msra.mxu0 0.0
    %9058 = vmatprep.subr.mxu0 0.0
    %9059 = vmatpush1.msra.mxu0 0.0
    %9060 = vmatprep.subr.mxu0 0.0
    %9061 = vmatpush1.msra.mxu0 0.0
    %9062 = vmatprep.subr.mxu0 0.0
    %9063 = vmatpush1.msra.mxu0 0.0
    %9064 = vmatprep.subr.mxu0 0.0
    %9065 = vmatpush1.msra.mxu0 0.0
    %9066 = vmatprep.subr.mxu0 0.0
    %9067 = vmatpush1.msra.mxu0 0.0
    %9068 = vmatprep.subr.mxu0 0.0
    %9069 = vmatpush1.msra.mxu0 0.0
    %9070 = vmatprep.subr.mxu0 0.0
    %9071 = vmatpush1.msra.mxu0 0.0
    %9072 = vmatprep.subr.mxu0 0.0
    %9073 = vmatpush1.msra.mxu0 0.0
    %9074 = vmatprep.subr.mxu0 0.0
    %9075 = vmatpush1.msra.mxu0 0.0
    %9076 = vmatprep.subr.mxu0 0.0
    %9077 = vmatpush1.msra.mxu0 0.0
    %9078 = vmatprep.subr.mxu0 0.0
    %9079 = vmatpush1.msra.mxu0 0.0
    %9080 = vmatprep.subr.mxu0 0.0
    %9081 = vmatpush1.msra.mxu0 0.0
    %9082 = vmatprep.subr.mxu0 0.0
    %9083 = vmatpush1.msra.mxu0 0.0
    %9084 = vmatprep.subr.mxu0 0.0
    %9085 = vmatpush1.msra.mxu0 0.0
    %9086 = vmatprep.subr.mxu0 0.0
    %9087 = vmatpush1.msra.mxu0 0.0
    %9088 = vmatprep.subr.mxu0 0.0
    %9089 = vmatpush1.msra.mxu0 0.0
    %9090 = vmatprep.subr.mxu0 0.0
    %9091 = vmatpush1.msra.mxu0 0.0
    %9092 = vmatprep.subr.mxu0 0.0
    %9093 = vmatpush1.msra.mxu0 0.0
    %9094 = vmatprep.subr.mxu0 0.0
    %9095 = vmatpush1.msra.mxu0 0.0
    %9096 = vmatprep.subr.mxu0 0.0
    %9097 = vmatpush1.msra.mxu0 0.0
    %9098 = vmatprep.subr.mxu0 0.0
    %9099 = vmatpush1.msra.mxu0 0.0
    %9100 = vmatprep.subr.mxu0 0.0
    %9101 = vmatpush1.msra.mxu0 0.0
    %9102 = vmatprep.subr.mxu0 0.0
    %9103 = vmatpush1.msra.mxu0 0.0
    %9104 = vmatprep.subr.mxu0 0.0
    %9105 = vmatpush1.msra.mxu0 0.0
    %9106 = vmatprep.subr.mxu0 0.0
    %9107 = vmatpush1.msra.mxu0 0.0
    %9108 = vmatprep.subr.mxu0 0.0
    %9109 = vmatpush1.msra.mxu0 0.0
    %9110 = vmatprep.mubr.f32.mxu0 0.0
    %v9111 = vand.u32 %v8231, 4294901760
    %9112 = vmatmul.mubr.f32.gmra.mrb[0].mxu0 %v9111
    %v9113 = vpop.f32.mrb[0].mxu0
    %v9114 = vadd.f32 %v8920, %v9113
    %v9115 = vpop.f32.mrb[0].mxu0
    %9116 = vmatprep.mubr.f32.mxu0 0.0
    %v9117 = vand.u32 %v8234, 4294901760
    %9118 = vmatmul.mubr.f32.gmra.mrb[0].mxu0 %v9117
    %v9119 = vpop.f32.mrb[0].mxu0
    %v9120 = vadd.f32 %v8928, %v9119
    %v9121 = vpop.f32.mrb[0].mxu0
    %9122 = vmatprep.mubr.f32.mxu0 0.0
    %v9123 = vand.u32 %v8237, 4294901760
    %9124 = vmatmul.mubr.f32.gmra.mrb[0].mxu0 %v9123
    %v9125 = vpop.f32.mrb[0].mxu0
    %v9126 = vadd.f32 %v8936, %v9125
    %v9127 = vpop.f32.mrb[0].mxu0
    %9128 = vmatprep.mubr.f32.mxu0 0.0
    %v9129 = vand.u32 %v8240, 4294901760
    %9130 = vmatmul.mubr.f32.gmra.mrb[0].mxu0 %v9129
    %v9131 = vpop.f32.mrb[0].mxu0
    %v9132 = vadd.f32 %v8944, %v9131
    %v9133 = vpop.f32.mrb[0].mxu0
    %9134 = vmatprep.mubr.f32.mxu0 0.0
    %v9135 = vand.u32 %v8243, 4294901760
    %9136 = vmatmul.mubr.f32.gmra.mrb[0].mxu0 %v9135
    %v9137 = vpop.f32.mrb[0].mxu0
    %v9138 = vadd.f32 %v8952, %v9137
    %v9139 = vpop.f32.mrb[0].mxu0
    %9140 = vmatprep.mubr.f32.mxu0 0.0
    %v9141 = vand.u32 %v8246, 4294901760
    %9142 = vmatmul.mubr.f32.gmra.mrb[0].mxu0 %v9141
    %v9143 = vpop.f32.mrb[0].mxu0
    %v9144 = vadd.f32 %v8960, %v9143
    %v9145 = vpop.f32.mrb[0].mxu0
    %9146 = vmatprep.mubr.f32.mxu0 0.0
    %v9147 = vand.u32 %v8249, 4294901760
    %9148 = vmatmul.mubr.f32.gmra.mrb[0].mxu0 %v9147
    %v9149 = vpop.f32.mrb[0].mxu0
    %v9150 = vadd.f32 %v8968, %v9149
    %v9151 = vpop.f32.mrb[0].mxu0
    %9152 = vmatprep.mubr.f32.mxu0 0.0
    %v9153 = vand.u32 %v8252, 4294901760
    %9154 = vmatmul.mubr.f32.gmra.mrb[0].mxu0 %v9153
    %v9155 = vpop.f32.mrb[0].mxu0
    %v9156 = vadd.f32 %v8976, %v9155
    %v9157 = vpop.f32.mrb[0].mxu0
    %9158 = vmatprep.mubr.f32.mxu0 0.0
    %v9159 = vand.u32 %v8255, 4294901760
    %9160 = vmatmul.mubr.f32.gmra.mrb[0].mxu0 %v9159
    %v9161 = vpop.f32.mrb[0].mxu0
    %v9162 = vadd.f32 %v8984, %v9161
    %v9163 = vpop.f32.mrb[0].mxu0
    %9164 = vmatprep.mubr.f32.mxu0 0.0
    %v9165 = vand.u32 %v8258, 4294901760
    %9166 = vmatmul.mubr.f32.gmra.mrb[0].mxu0 %v9165
    %v9167 = vpop.f32.mrb[0].mxu0
    %v9168 = vadd.f32 %v8992, %v9167
    %v9169 = vpop.f32.mrb[0].mxu0
    %9170 = vmatprep.mubr.f32.mxu0 0.0
    %v9171 = vand.u32 %v8261, 4294901760
    %9172 = vmatmul.mubr.f32.gmra.mrb[0].mxu0 %v9171
    %v9173 = vpop.f32.mrb[0].mxu0
    %v9174 = vadd.f32 %v9000, %v9173
    %v9175 = vpop.f32.mrb[0].mxu0
    %9176 = vmatprep.mubr.f32.mxu0 0.0
    %v9177 = vand.u32 %v8264, 4294901760
    %9178 = vmatmul.mubr.f32.gmra.mrb[0].mxu0 %v9177
    %v9179 = vpop.f32.mrb[0].mxu0
    %v9180 = vadd.f32 %v9008, %v9179
    %v9181 = vpop.f32.mrb[0].mxu0
    %9182 = vmatprep.mubr.f32.mxu0 0.0
    %v9183 = vand.u32 %v8267, 4294901760
    %9184 = vmatmul.mubr.f32.gmra.mrb[0].mxu0 %v9183
    %v9185 = vpop.f32.mrb[0].mxu0
    %v9186 = vadd.f32 %v9016, %v9185
    %v9187 = vpop.f32.mrb[0].mxu0
    %9188 = vmatprep.mubr.f32.mxu0 0.0
    %v9189 = vand.u32 %v8270, 4294901760
    %9190 = vmatmul.mubr.f32.gmra.mrb[0].mxu0 %v9189
    %v9191 = vpop.f32.mrb[0].mxu0
    %v9192 = vadd.f32 %v9024, %v9191
    %v9193 = vpop.f32.mrb[0].mxu0
    %9194 = vmatprep.mubr.f32.mxu0 0.0
    %v9195 = vand.u32 %v8273, 4294901760
    %9196 = vmatmul.mubr.f32.gmra.mrb[0].mxu0 %v9195
    %v9197 = vpop.f32.mrb[0].mxu0
    %v9198 = vadd.f32 %v9032, %v9197
    %v9199 = vpop.f32.mrb[0].mxu0
    %9200 = vmatprep.mubr.f32.mxu0 0.0
    %v9201 = vand.u32 %v8276, 4294901760
    %9202 = vmatmul.mubr.f32.gmra.mrb[0].mxu0 %v9201
    %v9203 = vpop.f32.mrb[0].mxu0
    %v9204 = vadd.f32 %v9040, %v9203
    %v9205 = vpop.f32.mrb[0].mxu0
    %9206 = vdwg.mxu0
    %9207 = vmatprep.subr.mxu0 0.0
    %v9208 = vand.u32 %v21, 4294901760
    %9209 = vmatpush1.msra.mxu0 %v9208
    %9210 = vmatprep.subr.mxu0 0.0
    %9211 = vmatpush1.msra.mxu0 0.0
    %9212 = vmatprep.subr.mxu0 0.0
    %9213 = vmatpush1.msra.mxu0 0.0
    %9214 = vmatprep.subr.mxu0 0.0
    %9215 = vmatpush1.msra.mxu0 0.0
    %9216 = vmatprep.subr.mxu0 0.0
    %9217 = vmatpush1.msra.mxu0 0.0
    %9218 = vmatprep.subr.mxu0 0.0
    %9219 = vmatpush1.msra.mxu0 0.0
    %9220 = vmatprep.subr.mxu0 0.0
    %9221 = vmatpush1.msra.mxu0 0.0
    %9222 = vmatprep.subr.mxu0 0.0
    %9223 = vmatpush1.msra.mxu0 0.0
    %9224 = vmatprep.subr.mxu0 0.0
    %9225 = vmatpush1.msra.mxu0 0.0
    %9226 = vmatprep.subr.mxu0 0.0
    %9227 = vmatpush1.msra.mxu0 0.0
    %9228 = vmatprep.subr.mxu0 0.0
    %9229 = vmatpush1.msra.mxu0 0.0
    %9230 = vmatprep.subr.mxu0 0.0
    %9231 = vmatpush1.msra.mxu0 0.0
    %9232 = vmatprep.subr.mxu0 0.0
    %9233 = vmatpush1.msra.mxu0 0.0
    %9234 = vmatprep.subr.mxu0 0.0
    %9235 = vmatpush1.msra.mxu0 0.0
    %9236 = vmatprep.subr.mxu0 0.0
    %9237 = vmatpush1.msra.mxu0 0.0
    %9238 = vmatprep.subr.mxu0 0.0
    %9239 = vmatpush1.msra.mxu0 0.0
    %9240 = vmatprep.subr.mxu0 0.0
    %9241 = vmatpush1.msra.mxu0 0.0
    %9242 = vmatprep.subr.mxu0 0.0
    %9243 = vmatpush1.msra.mxu0 0.0
    %9244 = vmatprep.subr.mxu0 0.0
    %9245 = vmatpush1.msra.mxu0 0.0
    %9246 = vmatprep.subr.mxu0 0.0
    %9247 = vmatpush1.msra.mxu0 0.0
    %9248 = vmatprep.subr.mxu0 0.0
    %9249 = vmatpush1.msra.mxu0 0.0
    %9250 = vmatprep.subr.mxu0 0.0
    %9251 = vmatpush1.msra.mxu0 0.0
    %9252 = vmatprep.subr.mxu0 0.0
    %9253 = vmatpush1.msra.mxu0 0.0
    %9254 = vmatprep.subr.mxu0 0.0
    %9255 = vmatpush1.msra.mxu0 0.0
    %9256 = vmatprep.subr.mxu0 0.0
    %9257 = vmatpush1.msra.mxu0 0.0
    %9258 = vmatprep.subr.mxu0 0.0
    %9259 = vmatpush1.msra.mxu0 0.0
    %9260 = vmatprep.subr.mxu0 0.0
    %9261 = vmatpush1.msra.mxu0 0.0
    %9262 = vmatprep.subr.mxu0 0.0
    %9263 = vmatpush1.msra.mxu0 0.0
    %9264 = vmatprep.subr.mxu0 0.0
    %9265 = vmatpush1.msra.mxu0 0.0
    %9266 = vmatprep.subr.mxu0 0.0
    %9267 = vmatpush1.msra.mxu0 0.0
    %9268 = vmatprep.subr.mxu0 0.0
    %9269 = vmatpush1.msra.mxu0 0.0
    %9270 = vmatprep.subr.mxu0 0.0
    %9271 = vmatpush1.msra.mxu0 0.0
    %9272 = vmatprep.mubr.f32.mxu0 0.0
    %v9273 = vand.u32 %v8231, 4294901760
    %9274 = vmatmul.mubr.f32.gmra.mrb[0].mxu0 %v9273
    %v9275 = vpop.f32.mrb[0].mxu0
    %v9276 = vadd.f32 %v9114, %v9275
    %v9277 = vpop.f32.mrb[0].mxu0
    %9278 = vmatprep.mubr.f32.mxu0 0.0
    %v9279 = vand.u32 %v8234, 4294901760
    %9280 = vmatmul.mubr.f32.gmra.mrb[0].mxu0 %v9279
    %v9281 = vpop.f32.mrb[0].mxu0
    %v9282 = vadd.f32 %v9120, %v9281
    %v9283 = vpop.f32.mrb[0].mxu0
    %9284 = vmatprep.mubr.f32.mxu0 0.0
    %v9285 = vand.u32 %v8237, 4294901760
    %9286 = vmatmul.mubr.f32.gmra.mrb[0].mxu0 %v9285
    %v9287 = vpop.f32.mrb[0].mxu0
    %v9288 = vadd.f32 %v9126, %v9287
    %v9289 = vpop.f32.mrb[0].mxu0
    %9290 = vmatprep.mubr.f32.mxu0 0.0
    %v9291 = vand.u32 %v8240, 4294901760
    %9292 = vmatmul.mubr.f32.gmra.mrb[0].mxu0 %v9291
    %v9293 = vpop.f32.mrb[0].mxu0
    %v9294 = vadd.f32 %v9132, %v9293
    %v9295 = vpop.f32.mrb[0].mxu0
    %9296 = vmatprep.mubr.f32.mxu0 0.0
    %v9297 = vand.u32 %v8243, 4294901760
    %9298 = vmatmul.mubr.f32.gmra.mrb[0].mxu0 %v9297
    %v9299 = vpop.f32.mrb[0].mxu0
    %v9300 = vadd.f32 %v9138, %v9299
    %v9301 = vpop.f32.mrb[0].mxu0
    %9302 = vmatprep.mubr.f32.mxu0 0.0
    %v9303 = vand.u32 %v8246, 4294901760
    %9304 = vmatmul.mubr.f32.gmra.mrb[0].mxu0 %v9303
    %v9305 = vpop.f32.mrb[0].mxu0
    %v9306 = vadd.f32 %v9144, %v9305
    %v9307 = vpop.f32.mrb[0].mxu0
    %9308 = vmatprep.mubr.f32.mxu0 0.0
    %v9309 = vand.u32 %v8249, 4294901760
    %9310 = vmatmul.mubr.f32.gmra.mrb[0].mxu0 %v9309
    %v9311 = vpop.f32.mrb[0].mxu0
    %v9312 = vadd.f32 %v9150, %v9311
    %v9313 = vpop.f32.mrb[0].mxu0
    %9314 = vmatprep.mubr.f32.mxu0 0.0
    %v9315 = vand.u32 %v8252, 4294901760
    %9316 = vmatmul.mubr.f32.gmra.mrb[0].mxu0 %v9315
    %v9317 = vpop.f32.mrb[0].mxu0
    %v9318 = vadd.f32 %v9156, %v9317
    %v9319 = vpop.f32.mrb[0].mxu0
    %9320 = vmatprep.mubr.f32.mxu0 0.0
    %v9321 = vand.u32 %v8255, 4294901760
    %9322 = vmatmul.mubr.f32.gmra.mrb[0].mxu0 %v9321
    %v9323 = vpop.f32.mrb[0].mxu0
    %v9324 = vadd.f32 %v9162, %v9323
    %v9325 = vpop.f32.mrb[0].mxu0
    %9326 = vmatprep.mubr.f32.mxu0 0.0
    %v9327 = vand.u32 %v8258, 4294901760
    %9328 = vmatmul.mubr.f32.gmra.mrb[0].mxu0 %v9327
    %v9329 = vpop.f32.mrb[0].mxu0
    %v9330 = vadd.f32 %v9168, %v9329
    %v9331 = vpop.f32.mrb[0].mxu0
    %9332 = vmatprep.mubr.f32.mxu0 0.0
    %v9333 = vand.u32 %v8261, 4294901760
    %9334 = vmatmul.mubr.f32.gmra.mrb[0].mxu0 %v9333
    %v9335 = vpop.f32.mrb[0].mxu0
    %v9336 = vadd.f32 %v9174, %v9335
    %v9337 = vpop.f32.mrb[0].mxu0
    %9338 = vmatprep.mubr.f32.mxu0 0.0
    %v9339 = vand.u32 %v8264, 4294901760
    %9340 = vmatmul.mubr.f32.gmra.mrb[0].mxu0 %v9339
    %v9341 = vpop.f32.mrb[0].mxu0
    %v9342 = vadd.f32 %v9180, %v9341
    %v9343 = vpop.f32.mrb[0].mxu0
    %9344 = vmatprep.mubr.f32.mxu0 0.0
    %v9345 = vand.u32 %v8267, 4294901760
    %9346 = vmatmul.mubr.f32.gmra.mrb[0].mxu0 %v9345
    %v9347 = vpop.f32.mrb[0].mxu0
    %v9348 = vadd.f32 %v9186, %v9347
    %v9349 = vpop.f32.mrb[0].mxu0
    %9350 = vmatprep.mubr.f32.mxu0 0.0
    %v9351 = vand.u32 %v8270, 4294901760
    %9352 = vmatmul.mubr.f32.gmra.mrb[0].mxu0 %v9351
    %v9353 = vpop.f32.mrb[0].mxu0
    %v9354 = vadd.f32 %v9192, %v9353
    %v9355 = vpop.f32.mrb[0].mxu0
    %9356 = vmatprep.mubr.f32.mxu0 0.0
    %v9357 = vand.u32 %v8273, 4294901760
    %9358 = vmatmul.mubr.f32.gmra.mrb[0].mxu0 %v9357
    %v9359 = vpop.f32.mrb[0].mxu0
    %v9360 = vadd.f32 %v9198, %v9359
    %v9361 = vpop.f32.mrb[0].mxu0
    %9362 = vmatprep.mubr.f32.mxu0 0.0
    %v9363 = vand.u32 %v8276, 4294901760
    %9364 = vmatmul.mubr.f32.gmra.mrb[0].mxu0 %v9363
    %v9365 = vpop.f32.mrb[0].mxu0
    %v9366 = vadd.f32 %v9204, %v9365
    %v9367 = vpop.f32.mrb[0].mxu0
    %9368 = vdwg.mxu0
    %v9369 = vsel %vm45, %v9276, -inf
    %9370 = vmax.xlane.f32.xlu0 %v9369
    %v9371 = vpop.xlane.xlu0 %9370
    %v9372 = vsel %vm45, %v9282, -inf
    %9373 = vmax.xlane.f32.xlu0 %v9372
    %v9374 = vpop.xlane.xlu0 %9373
    %v9375 = vsel %vm45, %v9288, -inf
    %9376 = vmax.xlane.f32.xlu0 %v9375
    %v9377 = vpop.xlane.xlu0 %9376
    %v9378 = vsel %vm45, %v9294, -inf
    %9379 = vmax.xlane.f32.xlu0 %v9378
    %v9380 = vpop.xlane.xlu0 %9379
    %v9381 = vsel %vm45, %v9300, -inf
    %9382 = vmax.xlane.f32.xlu0 %v9381
    %v9383 = vpop.xlane.xlu0 %9382
    %v9384 = vsel %vm45, %v9306, -inf
    %9385 = vmax.xlane.f32.xlu0 %v9384
    %v9386 = vpop.xlane.xlu0 %9385
    %v9387 = vsel %vm45, %v9312, -inf
    %9388 = vmax.xlane.f32.xlu0 %v9387
    %v9389 = vpop.xlane.xlu0 %9388
    %v9390 = vsel %vm45, %v9318, -inf
    %9391 = vmax.xlane.f32.xlu0 %v9390
    %v9392 = vpop.xlane.xlu0 %9391
    %v9393 = vsel %vm45, %v9324, -inf
    %9394 = vmax.xlane.f32.xlu0 %v9393
    %v9395 = vpop.xlane.xlu0 %9394
    %v9396 = vsel %vm45, %v9330, -inf
    %9397 = vmax.xlane.f32.xlu0 %v9396
    %v9398 = vpop.xlane.xlu0 %9397
    %v9399 = vsel %vm45, %v9336, -inf
    %9400 = vmax.xlane.f32.xlu0 %v9399
    %v9401 = vpop.xlane.xlu0 %9400
    %v9402 = vsel %vm45, %v9342, -inf
    %9403 = vmax.xlane.f32.xlu0 %v9402
    %v9404 = vpop.xlane.xlu0 %9403
    %v9405 = vsel %vm45, %v9348, -inf
    %9406 = vmax.xlane.f32.xlu0 %v9405
    %v9407 = vpop.xlane.xlu0 %9406
    %v9408 = vsel %vm45, %v9354, -inf
    %9409 = vmax.xlane.f32.xlu0 %v9408
    %v9410 = vpop.xlane.xlu0 %9409
    %v9411 = vsel %vm45, %v9360, -inf
    %9412 = vmax.xlane.f32.xlu0 %v9411
    %v9413 = vpop.xlane.xlu0 %9412
    %v9414 = vsel %vm45, %v9366, -inf
    %9415 = vmax.xlane.f32.xlu0 %v9414
    %v9416 = vpop.xlane.xlu0 %9415
    %v9417 = vsub.f32 %v9276, %v9371
    %v9418 = vsub.f32 %v9282, %v9374
    %v9419 = vsub.f32 %v9288, %v9377
    %v9420 = vsub.f32 %v9294, %v9380
    %v9421 = vsub.f32 %v9300, %v9383
    %v9422 = vsub.f32 %v9306, %v9386
    %v9423 = vsub.f32 %v9312, %v9389
    %v9424 = vsub.f32 %v9318, %v9392
    %v9425 = vsub.f32 %v9324, %v9395
    %v9426 = vsub.f32 %v9330, %v9398
    %v9427 = vsub.f32 %v9336, %v9401
    %v9428 = vsub.f32 %v9342, %v9404
    %v9429 = vsub.f32 %v9348, %v9407
    %v9430 = vsub.f32 %v9354, %v9410
    %v9431 = vsub.f32 %v9360, %v9413
    %v9432 = vsub.f32 %v9366, %v9416
    %v9433 = vmul.f32 %v9417, 1.442695
    %v9434 = vpow.pop %v9433
    %v9435 = vmul.f32 %v9418, 1.442695
    %v9436 = vpow.pop %v9435
    %v9437 = vmul.f32 %v9419, 1.442695
    %v9438 = vpow.pop %v9437
    %v9439 = vmul.f32 %v9420, 1.442695
    %v9440 = vpow.pop %v9439
    %v9441 = vmul.f32 %v9421, 1.442695
    %v9442 = vpow.pop %v9441
    %v9443 = vmul.f32 %v9422, 1.442695
    %v9444 = vpow.pop %v9443
    %v9445 = vmul.f32 %v9423, 1.442695
    %v9446 = vpow.pop %v9445
    %v9447 = vmul.f32 %v9424, 1.442695
    %v9448 = vpow.pop %v9447
    %v9449 = vmul.f32 %v9425, 1.442695
    %v9450 = vpow.pop %v9449
    %v9451 = vmul.f32 %v9426, 1.442695
    %v9452 = vpow.pop %v9451
    %v9453 = vmul.f32 %v9427, 1.442695
    %v9454 = vpow.pop %v9453
    %v9455 = vmul.f32 %v9428, 1.442695
    %v9456 = vpow.pop %v9455
    %v9457 = vmul.f32 %v9429, 1.442695
    %v9458 = vpow.pop %v9457
    %v9459 = vmul.f32 %v9430, 1.442695
    %v9460 = vpow.pop %v9459
    %v9461 = vmul.f32 %v9431, 1.442695
    %v9462 = vpow.pop %v9461
    %v9463 = vmul.f32 %v9432, 1.442695
    %v9464 = vpow.pop %v9463
    %v9465 = vsel %vm45, %v9434, 0.0
    %9466 = vadd.xlane.f32.xlu0 %v9465
    %v9467 = vpop.xlane.xlu0 %9466
    %v9468 = vsel %vm45, %v9436, 0.0
    %9469 = vadd.xlane.f32.xlu0 %v9468
    %v9470 = vpop.xlane.xlu0 %9469
    %v9471 = vsel %vm45, %v9438, 0.0
    %9472 = vadd.xlane.f32.xlu0 %v9471
    %v9473 = vpop.xlane.xlu0 %9472
    %v9474 = vsel %vm45, %v9440, 0.0
    %9475 = vadd.xlane.f32.xlu0 %v9474
    %v9476 = vpop.xlane.xlu0 %9475
    %v9477 = vsel %vm45, %v9442, 0.0
    %9478 = vadd.xlane.f32.xlu0 %v9477
    %v9479 = vpop.xlane.xlu0 %9478
    %v9480 = vsel %vm45, %v9444, 0.0
    %9481 = vadd.xlane.f32.xlu0 %v9480
    %v9482 = vpop.xlane.xlu0 %9481
    %v9483 = vsel %vm45, %v9446, 0.0
    %9484 = vadd.xlane.f32.xlu0 %v9483
    %v9485 = vpop.xlane.xlu0 %9484
    %v9486 = vsel %vm45, %v9448, 0.0
    %9487 = vadd.xlane.f32.xlu0 %v9486
    %v9488 = vpop.xlane.xlu0 %9487
    %v9489 = vsel %vm45, %v9450, 0.0
    %9490 = vadd.xlane.f32.xlu0 %v9489
    %v9491 = vpop.xlane.xlu0 %9490
    %v9492 = vsel %vm45, %v9452, 0.0
    %9493 = vadd.xlane.f32.xlu0 %v9492
    %v9494 = vpop.xlane.xlu0 %9493
    %v9495 = vsel %vm45, %v9454, 0.0
    %9496 = vadd.xlane.f32.xlu0 %v9495
    %v9497 = vpop.xlane.xlu0 %9496
    %v9498 = vsel %vm45, %v9456, 0.0
    %9499 = vadd.xlane.f32.xlu0 %v9498
    %v9500 = vpop.xlane.xlu0 %9499
    %v9501 = vsel %vm45, %v9458, 0.0
    %9502 = vadd.xlane.f32.xlu0 %v9501
    %v9503 = vpop.xlane.xlu0 %9502
    %v9504 = vsel %vm45, %v9460, 0.0
    %9505 = vadd.xlane.f32.xlu0 %v9504
    %v9506 = vpop.xlane.xlu0 %9505
    %v9507 = vsel %vm45, %v9462, 0.0
    %9508 = vadd.xlane.f32.xlu0 %v9507
    %v9509 = vpop.xlane.xlu0 %9508
    %v9510 = vsel %vm45, %v9464, 0.0
    %9511 = vadd.xlane.f32.xlu0 %v9510
    %v9512 = vpop.xlane.xlu0 %9511
    %v9513 = vrcp.pop %v9467
    %v9514 = vmul.f32 %v9434, %v9513
    %v9515 = vrcp.pop %v9470
    %v9516 = vmul.f32 %v9436, %v9515
    %v9517 = vrcp.pop %v9473
    %v9518 = vmul.f32 %v9438, %v9517
    %v9519 = vrcp.pop %v9476
    %v9520 = vmul.f32 %v9440, %v9519
    %v9521 = vrcp.pop %v9479
    %v9522 = vmul.f32 %v9442, %v9521
    %v9523 = vrcp.pop %v9482
    %v9524 = vmul.f32 %v9444, %v9523
    %v9525 = vrcp.pop %v9485
    %v9526 = vmul.f32 %v9446, %v9525
    %v9527 = vrcp.pop %v9488
    %v9528 = vmul.f32 %v9448, %v9527
    %v9529 = vrcp.pop %v9491
    %v9530 = vmul.f32 %v9450, %v9529
    %v9531 = vrcp.pop %v9494
    %v9532 = vmul.f32 %v9452, %v9531
    %v9533 = vrcp.pop %v9497
    %v9534 = vmul.f32 %v9454, %v9533
    %v9535 = vrcp.pop %v9500
    %v9536 = vmul.f32 %v9456, %v9535
    %v9537 = vrcp.pop %v9503
    %v9538 = vmul.f32 %v9458, %v9537
    %v9539 = vrcp.pop %v9506
    %v9540 = vmul.f32 %v9460, %v9539
    %v9541 = vrcp.pop %v9509
    %v9542 = vmul.f32 %v9462, %v9541
    %v9543 = vrcp.pop %v9512
    %v9544 = vmul.f32 %v9464, %v9543
    %v9545 = vmul.f32 %v9514, %v8214
    %v9546 = vmul.f32 %v9516, %v8215
    %v9547 = vmul.f32 %v9518, %v8216
    %v9548 = vmul.f32 %v9520, %v8217
    %v9549 = vmul.f32 %v9522, %v8218
    %v9550 = vmul.f32 %v9524, %v8219
    %v9551 = vmul.f32 %v9526, %v8220
    %v9552 = vmul.f32 %v9528, %v8221
    %v9553 = vmul.f32 %v9530, %v8222
    %v9554 = vmul.f32 %v9532, %v8223
    %v9555 = vmul.f32 %v9534, %v8224
    %v9556 = vmul.f32 %v9536, %v8225
    %v9557 = vmul.f32 %v9538, %v8226
    %v9558 = vmul.f32 %v9540, %v8227
    %v9559 = vmul.f32 %v9542, %v8228
    %v9560 = vmul.f32 %v9544, %v8229
    %v9561 = vadd.f32 %v8197, %v9545
    %v9562 = vadd.f32 %v8198, %v9546
    %v9563 = vadd.f32 %v8199, %v9547
    %v9564 = vadd.f32 %v8200, %v9548
    %v9565 = vadd.f32 %v8201, %v9549
    %v9566 = vadd.f32 %v8202, %v9550
    %v9567 = vadd.f32 %v8203, %v9551
    %v9568 = vadd.f32 %v8204, %v9552
    %v9569 = vadd.f32 %v8205, %v9553
    %v9570 = vadd.f32 %v8206, %v9554
    %v9571 = vadd.f32 %v8207, %v9555
    %v9572 = vadd.f32 %v8208, %v9556
    %v9573 = vadd.f32 %v8209, %v9557
    %v9574 = vadd.f32 %v8210, %v9558
    %v9575 = vadd.f32 %v8211, %v9559
    %v9576 = vadd.f32 %v8212, %v9560
    %s9577 = scalar_lea.vmem %s0, 896
    %v9578 = vld [vmem:[%s9577] sm:$0xff]
    %v9579 = vld [vmem:[%s9577 + $0x8] sm:$0xff]
    %v9580 = vld [vmem:[%s9577 + $0x10] sm:$0xff]
    %v9581 = vld [vmem:[%s9577 + $0x18] sm:$0xff]
    %v9582 = vld [vmem:[%s9577 + $0x20] sm:$0xff]
    %v9583 = vld [vmem:[%s9577 + $0x28] sm:$0xff]
    %v9584 = vld [vmem:[%s9577 + $0x30] sm:$0xff]
    %v9585 = vld [vmem:[%s9577 + $0x38] sm:$0xff]
    %v9586 = vld [vmem:[%s9577 + $0x40] sm:$0xff]
    %v9587 = vld [vmem:[%s9577 + $0x48] sm:$0xff]
    %v9588 = vld [vmem:[%s9577 + $0x50] sm:$0xff]
    %v9589 = vld [vmem:[%s9577 + $0x58] sm:$0xff]
    %v9590 = vld [vmem:[%s9577 + $0x60] sm:$0xff]
    %v9591 = vld [vmem:[%s9577 + $0x68] sm:$0xff]
    %v9592 = vld [vmem:[%s9577 + $0x70] sm:$0xff]
    %v9593 = vld [vmem:[%s9577 + $0x78] sm:$0xff]
    %v9595 = vsel %vm45, %v9578, 0
    %v9598 = vsel %vm45, %v9579, 0
    %v9601 = vsel %vm45, %v9580, 0
    %v9604 = vsel %vm45, %v9581, 0
    %v9607 = vsel %vm45, %v9582, 0
    %v9610 = vsel %vm45, %v9583, 0
    %v9613 = vsel %vm45, %v9584, 0
    %v9616 = vsel %vm45, %v9585, 0
    %v9619 = vsel %vm45, %v9586, 0
    %v9622 = vsel %vm45, %v9587, 0
    %v9625 = vsel %vm45, %v9588, 0
    %v9628 = vsel %vm45, %v9589, 0
    %v9631 = vsel %vm45, %v9590, 0
    %v9634 = vsel %vm45, %v9591, 0
    %v9637 = vsel %vm45, %v9592, 0
    %v9640 = vsel %vm45, %v9593, 0
    %9642 = vmatprep.subr.mxu0 0.0
    %v9643 = vand.u32 %v21, 4294901760
    %9644 = vmatpush1.msra.mxu0 %v9643
    %9645 = vmatprep.subr.mxu0 0.0
    %9646 = vmatpush1.msra.mxu0 0.0
    %9647 = vmatprep.subr.mxu0 0.0
    %9648 = vmatpush1.msra.mxu0 0.0
    %9649 = vmatprep.subr.mxu0 0.0
    %9650 = vmatpush1.msra.mxu0 0.0
    %9651 = vmatprep.subr.mxu0 0.0
    %9652 = vmatpush1.msra.mxu0 0.0
    %9653 = vmatprep.subr.mxu0 0.0
    %9654 = vmatpush1.msra.mxu0 0.0
    %9655 = vmatprep.subr.mxu0 0.0
    %9656 = vmatpush1.msra.mxu0 0.0
    %9657 = vmatprep.subr.mxu0 0.0
    %9658 = vmatpush1.msra.mxu0 0.0
    %9659 = vmatprep.subr.mxu0 0.0
    %9660 = vmatpush1.msra.mxu0 0.0
    %9661 = vmatprep.subr.mxu0 0.0
    %9662 = vmatpush1.msra.mxu0 0.0
    %9663 = vmatprep.subr.mxu0 0.0
    %9664 = vmatpush1.msra.mxu0 0.0
    %9665 = vmatprep.subr.mxu0 0.0
    %9666 = vmatpush1.msra.mxu0 0.0
    %9667 = vmatprep.subr.mxu0 0.0
    %9668 = vmatpush1.msra.mxu0 0.0
    %9669 = vmatprep.subr.mxu0 0.0
    %9670 = vmatpush1.msra.mxu0 0.0
    %9671 = vmatprep.subr.mxu0 0.0
    %9672 = vmatpush1.msra.mxu0 0.0
    %9673 = vmatprep.subr.mxu0 0.0
    %9674 = vmatpush1.msra.mxu0 0.0
    %9675 = vmatprep.subr.mxu0 0.0
    %9676 = vmatpush1.msra.mxu0 0.0
    %9677 = vmatprep.subr.mxu0 0.0
    %9678 = vmatpush1.msra.mxu0 0.0
    %9679 = vmatprep.subr.mxu0 0.0
    %9680 = vmatpush1.msra.mxu0 0.0
    %9681 = vmatprep.subr.mxu0 0.0
    %9682 = vmatpush1.msra.mxu0 0.0
    %9683 = vmatprep.subr.mxu0 0.0
    %9684 = vmatpush1.msra.mxu0 0.0
    %9685 = vmatprep.subr.mxu0 0.0
    %9686 = vmatpush1.msra.mxu0 0.0
    %9687 = vmatprep.subr.mxu0 0.0
    %9688 = vmatpush1.msra.mxu0 0.0
    %9689 = vmatprep.subr.mxu0 0.0
    %9690 = vmatpush1.msra.mxu0 0.0
    %9691 = vmatprep.subr.mxu0 0.0
    %9692 = vmatpush1.msra.mxu0 0.0
    %9693 = vmatprep.subr.mxu0 0.0
    %9694 = vmatpush1.msra.mxu0 0.0
    %9695 = vmatprep.subr.mxu0 0.0
    %9696 = vmatpush1.msra.mxu0 0.0
    %9697 = vmatprep.subr.mxu0 0.0
    %9698 = vmatpush1.msra.mxu0 0.0
    %9699 = vmatprep.subr.mxu0 0.0
    %9700 = vmatpush1.msra.mxu0 0.0
    %9701 = vmatprep.subr.mxu0 0.0
    %9702 = vmatpush1.msra.mxu0 0.0
    %9703 = vmatprep.subr.mxu0 0.0
    %9704 = vmatpush1.msra.mxu0 0.0
    %9705 = vmatprep.subr.mxu0 0.0
    %9706 = vmatpush1.msra.mxu0 0.0
    %9707 = vmatprep.mubr.f32.mxu0 0.0
    %v9708 = vand.u32 %v9595, 4294901760
    %v9709 = vsub.f32 %v9595, %v9708
    %v9710 = vand.u32 %v9709, 4294901760
    %v9711 = vsub.f32 %v9709, %v9710
    %v9712 = vand.u32 %v9711, 4294901760
    %9713 = vmatmul.mubr.f32.gmra.mrb[0].mxu0 %v9712
    %v9714 = vpop.f32.mrb[0].mxu0
    %v9715 = vadd.f32 %v43, %v9714
    %v9716 = vpop.f32.mrb[0].mxu0
    %9717 = vmatprep.mubr.f32.mxu0 0.0
    %v9718 = vand.u32 %v9598, 4294901760
    %v9719 = vsub.f32 %v9598, %v9718
    %v9720 = vand.u32 %v9719, 4294901760
    %v9721 = vsub.f32 %v9719, %v9720
    %v9722 = vand.u32 %v9721, 4294901760
    %9723 = vmatmul.mubr.f32.gmra.mrb[0].mxu0 %v9722
    %v9724 = vpop.f32.mrb[0].mxu0
    %v9725 = vadd.f32 %v43, %v9724
    %v9726 = vpop.f32.mrb[0].mxu0
    %9727 = vmatprep.mubr.f32.mxu0 0.0
    %v9728 = vand.u32 %v9601, 4294901760
    %v9729 = vsub.f32 %v9601, %v9728
    %v9730 = vand.u32 %v9729, 4294901760
    %v9731 = vsub.f32 %v9729, %v9730
    %v9732 = vand.u32 %v9731, 4294901760
    %9733 = vmatmul.mubr.f32.gmra.mrb[0].mxu0 %v9732
    %v9734 = vpop.f32.mrb[0].mxu0
    %v9735 = vadd.f32 %v43, %v9734
    %v9736 = vpop.f32.mrb[0].mxu0
    %9737 = vmatprep.mubr.f32.mxu0 0.0
    %v9738 = vand.u32 %v9604, 4294901760
    %v9739 = vsub.f32 %v9604, %v9738
    %v9740 = vand.u32 %v9739, 4294901760
    %v9741 = vsub.f32 %v9739, %v9740
    %v9742 = vand.u32 %v9741, 4294901760
    %9743 = vmatmul.mubr.f32.gmra.mrb[0].mxu0 %v9742
    %v9744 = vpop.f32.mrb[0].mxu0
    %v9745 = vadd.f32 %v43, %v9744
    %v9746 = vpop.f32.mrb[0].mxu0
    %9747 = vmatprep.mubr.f32.mxu0 0.0
    %v9748 = vand.u32 %v9607, 4294901760
    %v9749 = vsub.f32 %v9607, %v9748
    %v9750 = vand.u32 %v9749, 4294901760
    %v9751 = vsub.f32 %v9749, %v9750
    %v9752 = vand.u32 %v9751, 4294901760
    %9753 = vmatmul.mubr.f32.gmra.mrb[0].mxu0 %v9752
    %v9754 = vpop.f32.mrb[0].mxu0
    %v9755 = vadd.f32 %v43, %v9754
    %v9756 = vpop.f32.mrb[0].mxu0
    %9757 = vmatprep.mubr.f32.mxu0 0.0
    %v9758 = vand.u32 %v9610, 4294901760
    %v9759 = vsub.f32 %v9610, %v9758
    %v9760 = vand.u32 %v9759, 4294901760
    %v9761 = vsub.f32 %v9759, %v9760
    %v9762 = vand.u32 %v9761, 4294901760
    %9763 = vmatmul.mubr.f32.gmra.mrb[0].mxu0 %v9762
    %v9764 = vpop.f32.mrb[0].mxu0
    %v9765 = vadd.f32 %v43, %v9764
    %v9766 = vpop.f32.mrb[0].mxu0
    %9767 = vmatprep.mubr.f32.mxu0 0.0
    %v9768 = vand.u32 %v9613, 4294901760
    %v9769 = vsub.f32 %v9613, %v9768
    %v9770 = vand.u32 %v9769, 4294901760
    %v9771 = vsub.f32 %v9769, %v9770
    %v9772 = vand.u32 %v9771, 4294901760
    %9773 = vmatmul.mubr.f32.gmra.mrb[0].mxu0 %v9772
    %v9774 = vpop.f32.mrb[0].mxu0
    %v9775 = vadd.f32 %v43, %v9774
    %v9776 = vpop.f32.mrb[0].mxu0
    %9777 = vmatprep.mubr.f32.mxu0 0.0
    %v9778 = vand.u32 %v9616, 4294901760
    %v9779 = vsub.f32 %v9616, %v9778
    %v9780 = vand.u32 %v9779, 4294901760
    %v9781 = vsub.f32 %v9779, %v9780
    %v9782 = vand.u32 %v9781, 4294901760
    %9783 = vmatmul.mubr.f32.gmra.mrb[0].mxu0 %v9782
    %v9784 = vpop.f32.mrb[0].mxu0
    %v9785 = vadd.f32 %v43, %v9784
    %v9786 = vpop.f32.mrb[0].mxu0
    %9787 = vmatprep.mubr.f32.mxu0 0.0
    %v9788 = vand.u32 %v9619, 4294901760
    %v9789 = vsub.f32 %v9619, %v9788
    %v9790 = vand.u32 %v9789, 4294901760
    %v9791 = vsub.f32 %v9789, %v9790
    %v9792 = vand.u32 %v9791, 4294901760
    %9793 = vmatmul.mubr.f32.gmra.mrb[0].mxu0 %v9792
    %v9794 = vpop.f32.mrb[0].mxu0
    %v9795 = vadd.f32 %v43, %v9794
    %v9796 = vpop.f32.mrb[0].mxu0
    %9797 = vmatprep.mubr.f32.mxu0 0.0
    %v9798 = vand.u32 %v9622, 4294901760
    %v9799 = vsub.f32 %v9622, %v9798
    %v9800 = vand.u32 %v9799, 4294901760
    %v9801 = vsub.f32 %v9799, %v9800
    %v9802 = vand.u32 %v9801, 4294901760
    %9803 = vmatmul.mubr.f32.gmra.mrb[0].mxu0 %v9802
    %v9804 = vpop.f32.mrb[0].mxu0
    %v9805 = vadd.f32 %v43, %v9804
    %v9806 = vpop.f32.mrb[0].mxu0
    %9807 = vmatprep.mubr.f32.mxu0 0.0
    %v9808 = vand.u32 %v9625, 4294901760
    %v9809 = vsub.f32 %v9625, %v9808
    %v9810 = vand.u32 %v9809, 4294901760
    %v9811 = vsub.f32 %v9809, %v9810
    %v9812 = vand.u32 %v9811, 4294901760
    %9813 = vmatmul.mubr.f32.gmra.mrb[0].mxu0 %v9812
    %v9814 = vpop.f32.mrb[0].mxu0
    %v9815 = vadd.f32 %v43, %v9814
    %v9816 = vpop.f32.mrb[0].mxu0
    %9817 = vmatprep.mubr.f32.mxu0 0.0
    %v9818 = vand.u32 %v9628, 4294901760
    %v9819 = vsub.f32 %v9628, %v9818
    %v9820 = vand.u32 %v9819, 4294901760
    %v9821 = vsub.f32 %v9819, %v9820
    %v9822 = vand.u32 %v9821, 4294901760
    %9823 = vmatmul.mubr.f32.gmra.mrb[0].mxu0 %v9822
    %v9824 = vpop.f32.mrb[0].mxu0
    %v9825 = vadd.f32 %v43, %v9824
    %v9826 = vpop.f32.mrb[0].mxu0
    %9827 = vmatprep.mubr.f32.mxu0 0.0
    %v9828 = vand.u32 %v9631, 4294901760
    %v9829 = vsub.f32 %v9631, %v9828
    %v9830 = vand.u32 %v9829, 4294901760
    %v9831 = vsub.f32 %v9829, %v9830
    %v9832 = vand.u32 %v9831, 4294901760
    %9833 = vmatmul.mubr.f32.gmra.mrb[0].mxu0 %v9832
    %v9834 = vpop.f32.mrb[0].mxu0
    %v9835 = vadd.f32 %v43, %v9834
    %v9836 = vpop.f32.mrb[0].mxu0
    %9837 = vmatprep.mubr.f32.mxu0 0.0
    %v9838 = vand.u32 %v9634, 4294901760
    %v9839 = vsub.f32 %v9634, %v9838
    %v9840 = vand.u32 %v9839, 4294901760
    %v9841 = vsub.f32 %v9839, %v9840
    %v9842 = vand.u32 %v9841, 4294901760
    %9843 = vmatmul.mubr.f32.gmra.mrb[0].mxu0 %v9842
    %v9844 = vpop.f32.mrb[0].mxu0
    %v9845 = vadd.f32 %v43, %v9844
    %v9846 = vpop.f32.mrb[0].mxu0
    %9847 = vmatprep.mubr.f32.mxu0 0.0
    %v9848 = vand.u32 %v9637, 4294901760
    %v9849 = vsub.f32 %v9637, %v9848
    %v9850 = vand.u32 %v9849, 4294901760
    %v9851 = vsub.f32 %v9849, %v9850
    %v9852 = vand.u32 %v9851, 4294901760
    %9853 = vmatmul.mubr.f32.gmra.mrb[0].mxu0 %v9852
    %v9854 = vpop.f32.mrb[0].mxu0
    %v9855 = vadd.f32 %v43, %v9854
    %v9856 = vpop.f32.mrb[0].mxu0
    %9857 = vmatprep.mubr.f32.mxu0 0.0
    %v9858 = vand.u32 %v9640, 4294901760
    %v9859 = vsub.f32 %v9640, %v9858
    %v9860 = vand.u32 %v9859, 4294901760
    %v9861 = vsub.f32 %v9859, %v9860
    %v9862 = vand.u32 %v9861, 4294901760
    %9863 = vmatmul.mubr.f32.gmra.mrb[0].mxu0 %v9862
    %v9864 = vpop.f32.mrb[0].mxu0
    %v9865 = vadd.f32 %v43, %v9864
    %v9866 = vpop.f32.mrb[0].mxu0
    %9867 = vdwg.mxu0
    %9868 = vmatprep.subr.mxu0 0.0
    %v9869 = vand.u32 %v21, 4294901760
    %v9870 = vsub.f32 %v21, %v9869
    %v9871 = vand.u32 %v9870, 4294901760
    %v9872 = vsub.f32 %v9870, %v9871
    %v9873 = vand.u32 %v9872, 4294901760
    %9874 = vmatpush1.msra.mxu0 %v9873
    %9875 = vmatprep.subr.mxu0 0.0
    %9876 = vmatpush1.msra.mxu0 0.0
    %9877 = vmatprep.subr.mxu0 0.0
    %9878 = vmatpush1.msra.mxu0 0.0
    %9879 = vmatprep.subr.mxu0 0.0
    %9880 = vmatpush1.msra.mxu0 0.0
    %9881 = vmatprep.subr.mxu0 0.0
    %9882 = vmatpush1.msra.mxu0 0.0
    %9883 = vmatprep.subr.mxu0 0.0
    %9884 = vmatpush1.msra.mxu0 0.0
    %9885 = vmatprep.subr.mxu0 0.0
    %9886 = vmatpush1.msra.mxu0 0.0
    %9887 = vmatprep.subr.mxu0 0.0
    %9888 = vmatpush1.msra.mxu0 0.0
    %9889 = vmatprep.subr.mxu0 0.0
    %9890 = vmatpush1.msra.mxu0 0.0
    %9891 = vmatprep.subr.mxu0 0.0
    %9892 = vmatpush1.msra.mxu0 0.0
    %9893 = vmatprep.subr.mxu0 0.0
    %9894 = vmatpush1.msra.mxu0 0.0
    %9895 = vmatprep.subr.mxu0 0.0
    %9896 = vmatpush1.msra.mxu0 0.0
    %9897 = vmatprep.subr.mxu0 0.0
    %9898 = vmatpush1.msra.mxu0 0.0
    %9899 = vmatprep.subr.mxu0 0.0
    %9900 = vmatpush1.msra.mxu0 0.0
    %9901 = vmatprep.subr.mxu0 0.0
    %9902 = vmatpush1.msra.mxu0 0.0
    %9903 = vmatprep.subr.mxu0 0.0
    %9904 = vmatpush1.msra.mxu0 0.0
    %9905 = vmatprep.subr.mxu0 0.0
    %9906 = vmatpush1.msra.mxu0 0.0
    %9907 = vmatprep.subr.mxu0 0.0
    %9908 = vmatpush1.msra.mxu0 0.0
    %9909 = vmatprep.subr.mxu0 0.0
    %9910 = vmatpush1.msra.mxu0 0.0
    %9911 = vmatprep.subr.mxu0 0.0
    %9912 = vmatpush1.msra.mxu0 0.0
    %9913 = vmatprep.subr.mxu0 0.0
    %9914 = vmatpush1.msra.mxu0 0.0
    %9915 = vmatprep.subr.mxu0 0.0
    %9916 = vmatpush1.msra.mxu0 0.0
    %9917 = vmatprep.subr.mxu0 0.0
    %9918 = vmatpush1.msra.mxu0 0.0
    %9919 = vmatprep.subr.mxu0 0.0
    %9920 = vmatpush1.msra.mxu0 0.0
    %9921 = vmatprep.subr.mxu0 0.0
    %9922 = vmatpush1.msra.mxu0 0.0
    %9923 = vmatprep.subr.mxu0 0.0
    %9924 = vmatpush1.msra.mxu0 0.0
    %9925 = vmatprep.subr.mxu0 0.0
    %9926 = vmatpush1.msra.mxu0 0.0
    %9927 = vmatprep.subr.mxu0 0.0
    %9928 = vmatpush1.msra.mxu0 0.0
    %9929 = vmatprep.subr.mxu0 0.0
    %9930 = vmatpush1.msra.mxu0 0.0
    %9931 = vmatprep.subr.mxu0 0.0
    %9932 = vmatpush1.msra.mxu0 0.0
    %9933 = vmatprep.subr.mxu0 0.0
    %9934 = vmatpush1.msra.mxu0 0.0
    %9935 = vmatprep.subr.mxu0 0.0
    %9936 = vmatpush1.msra.mxu0 0.0
    %9937 = vmatprep.mubr.f32.mxu0 0.0
    %v9938 = vand.u32 %v9595, 4294901760
    %9939 = vmatmul.mubr.f32.gmra.mrb[0].mxu0 %v9938
    %v9940 = vpop.f32.mrb[0].mxu0
    %v9941 = vadd.f32 %v9715, %v9940
    %v9942 = vpop.f32.mrb[0].mxu0
    %9943 = vmatprep.mubr.f32.mxu0 0.0
    %v9944 = vand.u32 %v9598, 4294901760
    %9945 = vmatmul.mubr.f32.gmra.mrb[0].mxu0 %v9944
    %v9946 = vpop.f32.mrb[0].mxu0
    %v9947 = vadd.f32 %v9725, %v9946
    %v9948 = vpop.f32.mrb[0].mxu0
    %9949 = vmatprep.mubr.f32.mxu0 0.0
    %v9950 = vand.u32 %v9601, 4294901760
    %9951 = vmatmul.mubr.f32.gmra.mrb[0].mxu0 %v9950
    %v9952 = vpop.f32.mrb[0].mxu0
    %v9953 = vadd.f32 %v9735, %v9952
    %v9954 = vpop.f32.mrb[0].mxu0
    %9955 = vmatprep.mubr.f32.mxu0 0.0
    %v9956 = vand.u32 %v9604, 4294901760
    %9957 = vmatmul.mubr.f32.gmra.mrb[0].mxu0 %v9956
    %v9958 = vpop.f32.mrb[0].mxu0
    %v9959 = vadd.f32 %v9745, %v9958
    %v9960 = vpop.f32.mrb[0].mxu0
    %9961 = vmatprep.mubr.f32.mxu0 0.0
    %v9962 = vand.u32 %v9607, 4294901760
    %9963 = vmatmul.mubr.f32.gmra.mrb[0].mxu0 %v9962
    %v9964 = vpop.f32.mrb[0].mxu0
    %v9965 = vadd.f32 %v9755, %v9964
    %v9966 = vpop.f32.mrb[0].mxu0
    %9967 = vmatprep.mubr.f32.mxu0 0.0
    %v9968 = vand.u32 %v9610, 4294901760
    %9969 = vmatmul.mubr.f32.gmra.mrb[0].mxu0 %v9968
    %v9970 = vpop.f32.mrb[0].mxu0
    %v9971 = vadd.f32 %v9765, %v9970
    %v9972 = vpop.f32.mrb[0].mxu0
    %9973 = vmatprep.mubr.f32.mxu0 0.0
    %v9974 = vand.u32 %v9613, 4294901760
    %9975 = vmatmul.mubr.f32.gmra.mrb[0].mxu0 %v9974
    %v9976 = vpop.f32.mrb[0].mxu0
    %v9977 = vadd.f32 %v9775, %v9976
    %v9978 = vpop.f32.mrb[0].mxu0
    %9979 = vmatprep.mubr.f32.mxu0 0.0
    %v9980 = vand.u32 %v9616, 4294901760
    %9981 = vmatmul.mubr.f32.gmra.mrb[0].mxu0 %v9980
    %v9982 = vpop.f32.mrb[0].mxu0
    %v9983 = vadd.f32 %v9785, %v9982
    %v9984 = vpop.f32.mrb[0].mxu0
    %9985 = vmatprep.mubr.f32.mxu0 0.0
    %v9986 = vand.u32 %v9619, 4294901760
    %9987 = vmatmul.mubr.f32.gmra.mrb[0].mxu0 %v9986
    %v9988 = vpop.f32.mrb[0].mxu0
    %v9989 = vadd.f32 %v9795, %v9988
    %v9990 = vpop.f32.mrb[0].mxu0
    %9991 = vmatprep.mubr.f32.mxu0 0.0
    %v9992 = vand.u32 %v9622, 4294901760
    %9993 = vmatmul.mubr.f32.gmra.mrb[0].mxu0 %v9992
    %v9994 = vpop.f32.mrb[0].mxu0
    %v9995 = vadd.f32 %v9805, %v9994
    %v9996 = vpop.f32.mrb[0].mxu0
    %9997 = vmatprep.mubr.f32.mxu0 0.0
    %v9998 = vand.u32 %v9625, 4294901760
    %9999 = vmatmul.mubr.f32.gmra.mrb[0].mxu0 %v9998
    %v10000 = vpop.f32.mrb[0].mxu0
    %v10001 = vadd.f32 %v9815, %v10000
    %v10002 = vpop.f32.mrb[0].mxu0
    %10003 = vmatprep.mubr.f32.mxu0 0.0
    %v10004 = vand.u32 %v9628, 4294901760
    %10005 = vmatmul.mubr.f32.gmra.mrb[0].mxu0 %v10004
    %v10006 = vpop.f32.mrb[0].mxu0
    %v10007 = vadd.f32 %v9825, %v10006
    %v10008 = vpop.f32.mrb[0].mxu0
    %10009 = vmatprep.mubr.f32.mxu0 0.0
    %v10010 = vand.u32 %v9631, 4294901760
    %10011 = vmatmul.mubr.f32.gmra.mrb[0].mxu0 %v10010
    %v10012 = vpop.f32.mrb[0].mxu0
    %v10013 = vadd.f32 %v9835, %v10012
    %v10014 = vpop.f32.mrb[0].mxu0
    %10015 = vmatprep.mubr.f32.mxu0 0.0
    %v10016 = vand.u32 %v9634, 4294901760
    %10017 = vmatmul.mubr.f32.gmra.mrb[0].mxu0 %v10016
    %v10018 = vpop.f32.mrb[0].mxu0
    %v10019 = vadd.f32 %v9845, %v10018
    %v10020 = vpop.f32.mrb[0].mxu0
    %10021 = vmatprep.mubr.f32.mxu0 0.0
    %v10022 = vand.u32 %v9637, 4294901760
    %10023 = vmatmul.mubr.f32.gmra.mrb[0].mxu0 %v10022
    %v10024 = vpop.f32.mrb[0].mxu0
    %v10025 = vadd.f32 %v9855, %v10024
    %v10026 = vpop.f32.mrb[0].mxu0
    %10027 = vmatprep.mubr.f32.mxu0 0.0
    %v10028 = vand.u32 %v9640, 4294901760
    %10029 = vmatmul.mubr.f32.gmra.mrb[0].mxu0 %v10028
    %v10030 = vpop.f32.mrb[0].mxu0
    %v10031 = vadd.f32 %v9865, %v10030
    %v10032 = vpop.f32.mrb[0].mxu0
    %10033 = vdwg.mxu0
    %10034 = vmatprep.subr.mxu0 0.0
    %v10035 = vand.u32 %v21, 4294901760
    %v10036 = vsub.f32 %v21, %v10035
    %10037 = vmatpush1.msra.mxu0 %v10036
    %10038 = vmatprep.subr.mxu0 0.0
    %10039 = vmatpush1.msra.mxu0 0.0
    %10040 = vmatprep.subr.mxu0 0.0
    %10041 = vmatpush1.msra.mxu0 0.0
    %10042 = vmatprep.subr.mxu0 0.0
    %10043 = vmatpush1.msra.mxu0 0.0
    %10044 = vmatprep.subr.mxu0 0.0
    %10045 = vmatpush1.msra.mxu0 0.0
    %10046 = vmatprep.subr.mxu0 0.0
    %10047 = vmatpush1.msra.mxu0 0.0
    %10048 = vmatprep.subr.mxu0 0.0
    %10049 = vmatpush1.msra.mxu0 0.0
    %10050 = vmatprep.subr.mxu0 0.0
    %10051 = vmatpush1.msra.mxu0 0.0
    %10052 = vmatprep.subr.mxu0 0.0
    %10053 = vmatpush1.msra.mxu0 0.0
    %10054 = vmatprep.subr.mxu0 0.0
    %10055 = vmatpush1.msra.mxu0 0.0
    %10056 = vmatprep.subr.mxu0 0.0
    %10057 = vmatpush1.msra.mxu0 0.0
    %10058 = vmatprep.subr.mxu0 0.0
    %10059 = vmatpush1.msra.mxu0 0.0
    %10060 = vmatprep.subr.mxu0 0.0
    %10061 = vmatpush1.msra.mxu0 0.0
    %10062 = vmatprep.subr.mxu0 0.0
    %10063 = vmatpush1.msra.mxu0 0.0
    %10064 = vmatprep.subr.mxu0 0.0
    %10065 = vmatpush1.msra.mxu0 0.0
    %10066 = vmatprep.subr.mxu0 0.0
    %10067 = vmatpush1.msra.mxu0 0.0
    %10068 = vmatprep.subr.mxu0 0.0
    %10069 = vmatpush1.msra.mxu0 0.0
    %10070 = vmatprep.subr.mxu0 0.0
    %10071 = vmatpush1.msra.mxu0 0.0
    %10072 = vmatprep.subr.mxu0 0.0
    %10073 = vmatpush1.msra.mxu0 0.0
    %10074 = vmatprep.subr.mxu0 0.0
    %10075 = vmatpush1.msra.mxu0 0.0
    %10076 = vmatprep.subr.mxu0 0.0
    %10077 = vmatpush1.msra.mxu0 0.0
    %10078 = vmatprep.subr.mxu0 0.0
    %10079 = vmatpush1.msra.mxu0 0.0
    %10080 = vmatprep.subr.mxu0 0.0
    %10081 = vmatpush1.msra.mxu0 0.0
    %10082 = vmatprep.subr.mxu0 0.0
    %10083 = vmatpush1.msra.mxu0 0.0
    %10084 = vmatprep.subr.mxu0 0.0
    %10085 = vmatpush1.msra.mxu0 0.0
    %10086 = vmatprep.subr.mxu0 0.0
    %10087 = vmatpush1.msra.mxu0 0.0
    %10088 = vmatprep.subr.mxu0 0.0
    %10089 = vmatpush1.msra.mxu0 0.0
    %10090 = vmatprep.subr.mxu0 0.0
    %10091 = vmatpush1.msra.mxu0 0.0
    %10092 = vmatprep.subr.mxu0 0.0
    %10093 = vmatpush1.msra.mxu0 0.0
    %10094 = vmatprep.subr.mxu0 0.0
    %10095 = vmatpush1.msra.mxu0 0.0
    %10096 = vmatprep.subr.mxu0 0.0
    %10097 = vmatpush1.msra.mxu0 0.0
    %10098 = vmatprep.subr.mxu0 0.0
    %10099 = vmatpush1.msra.mxu0 0.0
    %10100 = vmatprep.mubr.f32.mxu0 0.0
    %v10101 = vand.u32 %v9595, 4294901760
    %v10102 = vsub.f32 %v9595, %v10101
    %10103 = vmatmul.mubr.f32.gmra.mrb[0].mxu0 %v10102
    %v10104 = vpop.f32.mrb[0].mxu0
    %v10105 = vadd.f32 %v9941, %v10104
    %v10106 = vpop.f32.mrb[0].mxu0
    %10107 = vmatprep.mubr.f32.mxu0 0.0
    %v10108 = vand.u32 %v9598, 4294901760
    %v10109 = vsub.f32 %v9598, %v10108
    %10110 = vmatmul.mubr.f32.gmra.mrb[0].mxu0 %v10109
    %v10111 = vpop.f32.mrb[0].mxu0
    %v10112 = vadd.f32 %v9947, %v10111
    %v10113 = vpop.f32.mrb[0].mxu0
    %10114 = vmatprep.mubr.f32.mxu0 0.0
    %v10115 = vand.u32 %v9601, 4294901760
    %v10116 = vsub.f32 %v9601, %v10115
    %10117 = vmatmul.mubr.f32.gmra.mrb[0].mxu0 %v10116
    %v10118 = vpop.f32.mrb[0].mxu0
    %v10119 = vadd.f32 %v9953, %v10118
    %v10120 = vpop.f32.mrb[0].mxu0
    %10121 = vmatprep.mubr.f32.mxu0 0.0
    %v10122 = vand.u32 %v9604, 4294901760
    %v10123 = vsub.f32 %v9604, %v10122
    %10124 = vmatmul.mubr.f32.gmra.mrb[0].mxu0 %v10123
    %v10125 = vpop.f32.mrb[0].mxu0
    %v10126 = vadd.f32 %v9959, %v10125
    %v10127 = vpop.f32.mrb[0].mxu0
    %10128 = vmatprep.mubr.f32.mxu0 0.0
    %v10129 = vand.u32 %v9607, 4294901760
    %v10130 = vsub.f32 %v9607, %v10129
    %10131 = vmatmul.mubr.f32.gmra.mrb[0].mxu0 %v10130
    %v10132 = vpop.f32.mrb[0].mxu0
    %v10133 = vadd.f32 %v9965, %v10132
    %v10134 = vpop.f32.mrb[0].mxu0
    %10135 = vmatprep.mubr.f32.mxu0 0.0
    %v10136 = vand.u32 %v9610, 4294901760
    %v10137 = vsub.f32 %v9610, %v10136
    %10138 = vmatmul.mubr.f32.gmra.mrb[0].mxu0 %v10137
    %v10139 = vpop.f32.mrb[0].mxu0
    %v10140 = vadd.f32 %v9971, %v10139
    %v10141 = vpop.f32.mrb[0].mxu0
    %10142 = vmatprep.mubr.f32.mxu0 0.0
    %v10143 = vand.u32 %v9613, 4294901760
    %v10144 = vsub.f32 %v9613, %v10143
    %10145 = vmatmul.mubr.f32.gmra.mrb[0].mxu0 %v10144
    %v10146 = vpop.f32.mrb[0].mxu0
    %v10147 = vadd.f32 %v9977, %v10146
    %v10148 = vpop.f32.mrb[0].mxu0
    %10149 = vmatprep.mubr.f32.mxu0 0.0
    %v10150 = vand.u32 %v9616, 4294901760
    %v10151 = vsub.f32 %v9616, %v10150
    %10152 = vmatmul.mubr.f32.gmra.mrb[0].mxu0 %v10151
    %v10153 = vpop.f32.mrb[0].mxu0
    %v10154 = vadd.f32 %v9983, %v10153
    %v10155 = vpop.f32.mrb[0].mxu0
    %10156 = vmatprep.mubr.f32.mxu0 0.0
    %v10157 = vand.u32 %v9619, 4294901760
    %v10158 = vsub.f32 %v9619, %v10157
    %10159 = vmatmul.mubr.f32.gmra.mrb[0].mxu0 %v10158
    %v10160 = vpop.f32.mrb[0].mxu0
    %v10161 = vadd.f32 %v9989, %v10160
    %v10162 = vpop.f32.mrb[0].mxu0
    %10163 = vmatprep.mubr.f32.mxu0 0.0
    %v10164 = vand.u32 %v9622, 4294901760
    %v10165 = vsub.f32 %v9622, %v10164
    %10166 = vmatmul.mubr.f32.gmra.mrb[0].mxu0 %v10165
    %v10167 = vpop.f32.mrb[0].mxu0
    %v10168 = vadd.f32 %v9995, %v10167
    %v10169 = vpop.f32.mrb[0].mxu0
    %10170 = vmatprep.mubr.f32.mxu0 0.0
    %v10171 = vand.u32 %v9625, 4294901760
    %v10172 = vsub.f32 %v9625, %v10171
    %10173 = vmatmul.mubr.f32.gmra.mrb[0].mxu0 %v10172
    %v10174 = vpop.f32.mrb[0].mxu0
    %v10175 = vadd.f32 %v10001, %v10174
    %v10176 = vpop.f32.mrb[0].mxu0
    %10177 = vmatprep.mubr.f32.mxu0 0.0
    %v10178 = vand.u32 %v9628, 4294901760
    %v10179 = vsub.f32 %v9628, %v10178
    %10180 = vmatmul.mubr.f32.gmra.mrb[0].mxu0 %v10179
    %v10181 = vpop.f32.mrb[0].mxu0
    %v10182 = vadd.f32 %v10007, %v10181
    %v10183 = vpop.f32.mrb[0].mxu0
    %10184 = vmatprep.mubr.f32.mxu0 0.0
    %v10185 = vand.u32 %v9631, 4294901760
    %v10186 = vsub.f32 %v9631, %v10185
    %10187 = vmatmul.mubr.f32.gmra.mrb[0].mxu0 %v10186
    %v10188 = vpop.f32.mrb[0].mxu0
    %v10189 = vadd.f32 %v10013, %v10188
    %v10190 = vpop.f32.mrb[0].mxu0
    %10191 = vmatprep.mubr.f32.mxu0 0.0
    %v10192 = vand.u32 %v9634, 4294901760
    %v10193 = vsub.f32 %v9634, %v10192
    %10194 = vmatmul.mubr.f32.gmra.mrb[0].mxu0 %v10193
    %v10195 = vpop.f32.mrb[0].mxu0
    %v10196 = vadd.f32 %v10019, %v10195
    %v10197 = vpop.f32.mrb[0].mxu0
    %10198 = vmatprep.mubr.f32.mxu0 0.0
    %v10199 = vand.u32 %v9637, 4294901760
    %v10200 = vsub.f32 %v9637, %v10199
    %10201 = vmatmul.mubr.f32.gmra.mrb[0].mxu0 %v10200
    %v10202 = vpop.f32.mrb[0].mxu0
    %v10203 = vadd.f32 %v10025, %v10202
    %v10204 = vpop.f32.mrb[0].mxu0
    %10205 = vmatprep.mubr.f32.mxu0 0.0
    %v10206 = vand.u32 %v9640, 4294901760
    %v10207 = vsub.f32 %v9640, %v10206
    %10208 = vmatmul.mubr.f32.gmra.mrb[0].mxu0 %v10207
    %v10209 = vpop.f32.mrb[0].mxu0
    %v10210 = vadd.f32 %v10031, %v10209
    %v10211 = vpop.f32.mrb[0].mxu0
    %10212 = vdwg.mxu0
    %10213 = vmatprep.subr.mxu0 0.0
    %v10214 = vand.u32 %v21, 4294901760
    %10215 = vmatpush1.msra.mxu0 %v10214
    %10216 = vmatprep.subr.mxu0 0.0
    %10217 = vmatpush1.msra.mxu0 0.0
    %10218 = vmatprep.subr.mxu0 0.0
    %10219 = vmatpush1.msra.mxu0 0.0
    %10220 = vmatprep.subr.mxu0 0.0
    %10221 = vmatpush1.msra.mxu0 0.0
    %10222 = vmatprep.subr.mxu0 0.0
    %10223 = vmatpush1.msra.mxu0 0.0
    %10224 = vmatprep.subr.mxu0 0.0
    %10225 = vmatpush1.msra.mxu0 0.0
    %10226 = vmatprep.subr.mxu0 0.0
    %10227 = vmatpush1.msra.mxu0 0.0
    %10228 = vmatprep.subr.mxu0 0.0
    %10229 = vmatpush1.msra.mxu0 0.0
    %10230 = vmatprep.subr.mxu0 0.0
    %10231 = vmatpush1.msra.mxu0 0.0
    %10232 = vmatprep.subr.mxu0 0.0
    %10233 = vmatpush1.msra.mxu0 0.0
    %10234 = vmatprep.subr.mxu0 0.0
    %10235 = vmatpush1.msra.mxu0 0.0
    %10236 = vmatprep.subr.mxu0 0.0
    %10237 = vmatpush1.msra.mxu0 0.0
    %10238 = vmatprep.subr.mxu0 0.0
    %10239 = vmatpush1.msra.mxu0 0.0
    %10240 = vmatprep.subr.mxu0 0.0
    %10241 = vmatpush1.msra.mxu0 0.0
    %10242 = vmatprep.subr.mxu0 0.0
    %10243 = vmatpush1.msra.mxu0 0.0
    %10244 = vmatprep.subr.mxu0 0.0
    %10245 = vmatpush1.msra.mxu0 0.0
    %10246 = vmatprep.subr.mxu0 0.0
    %10247 = vmatpush1.msra.mxu0 0.0
    %10248 = vmatprep.subr.mxu0 0.0
    %10249 = vmatpush1.msra.mxu0 0.0
    %10250 = vmatprep.subr.mxu0 0.0
    %10251 = vmatpush1.msra.mxu0 0.0
    %10252 = vmatprep.subr.mxu0 0.0
    %10253 = vmatpush1.msra.mxu0 0.0
    %10254 = vmatprep.subr.mxu0 0.0
    %10255 = vmatpush1.msra.mxu0 0.0
    %10256 = vmatprep.subr.mxu0 0.0
    %10257 = vmatpush1.msra.mxu0 0.0
    %10258 = vmatprep.subr.mxu0 0.0
    %10259 = vmatpush1.msra.mxu0 0.0
    %10260 = vmatprep.subr.mxu0 0.0
    %10261 = vmatpush1.msra.mxu0 0.0
    %10262 = vmatprep.subr.mxu0 0.0
    %10263 = vmatpush1.msra.mxu0 0.0
    %10264 = vmatprep.subr.mxu0 0.0
    %10265 = vmatpush1.msra.mxu0 0.0
    %10266 = vmatprep.subr.mxu0 0.0
    %10267 = vmatpush1.msra.mxu0 0.0
    %10268 = vmatprep.subr.mxu0 0.0
    %10269 = vmatpush1.msra.mxu0 0.0
    %10270 = vmatprep.subr.mxu0 0.0
    %10271 = vmatpush1.msra.mxu0 0.0
    %10272 = vmatprep.subr.mxu0 0.0
    %10273 = vmatpush1.msra.mxu0 0.0
    %10274 = vmatprep.subr.mxu0 0.0
    %10275 = vmatpush1.msra.mxu0 0.0
    %10276 = vmatprep.subr.mxu0 0.0
    %10277 = vmatpush1.msra.mxu0 0.0
    %10278 = vmatprep.mubr.f32.mxu0 0.0
    %v10279 = vand.u32 %v9595, 4294901760
    %v10280 = vsub.f32 %v9595, %v10279
    %v10281 = vand.u32 %v10280, 4294901760
    %10282 = vmatmul.mubr.f32.gmra.mrb[0].mxu0 %v10281
    %v10283 = vpop.f32.mrb[0].mxu0
    %v10284 = vadd.f32 %v10105, %v10283
    %v10285 = vpop.f32.mrb[0].mxu0
    %10286 = vmatprep.mubr.f32.mxu0 0.0
    %v10287 = vand.u32 %v9598, 4294901760
    %v10288 = vsub.f32 %v9598, %v10287
    %v10289 = vand.u32 %v10288, 4294901760
    %10290 = vmatmul.mubr.f32.gmra.mrb[0].mxu0 %v10289
    %v10291 = vpop.f32.mrb[0].mxu0
    %v10292 = vadd.f32 %v10112, %v10291
    %v10293 = vpop.f32.mrb[0].mxu0
    %10294 = vmatprep.mubr.f32.mxu0 0.0
    %v10295 = vand.u32 %v9601, 4294901760
    %v10296 = vsub.f32 %v9601, %v10295
    %v10297 = vand.u32 %v10296, 4294901760
    %10298 = vmatmul.mubr.f32.gmra.mrb[0].mxu0 %v10297
    %v10299 = vpop.f32.mrb[0].mxu0
    %v10300 = vadd.f32 %v10119, %v10299
    %v10301 = vpop.f32.mrb[0].mxu0
    %10302 = vmatprep.mubr.f32.mxu0 0.0
    %v10303 = vand.u32 %v9604, 4294901760
    %v10304 = vsub.f32 %v9604, %v10303
    %v10305 = vand.u32 %v10304, 4294901760
    %10306 = vmatmul.mubr.f32.gmra.mrb[0].mxu0 %v10305
    %v10307 = vpop.f32.mrb[0].mxu0
    %v10308 = vadd.f32 %v10126, %v10307
    %v10309 = vpop.f32.mrb[0].mxu0
    %10310 = vmatprep.mubr.f32.mxu0 0.0
    %v10311 = vand.u32 %v9607, 4294901760
    %v10312 = vsub.f32 %v9607, %v10311
    %v10313 = vand.u32 %v10312, 4294901760
    %10314 = vmatmul.mubr.f32.gmra.mrb[0].mxu0 %v10313
    %v10315 = vpop.f32.mrb[0].mxu0
    %v10316 = vadd.f32 %v10133, %v10315
    %v10317 = vpop.f32.mrb[0].mxu0
    %10318 = vmatprep.mubr.f32.mxu0 0.0
    %v10319 = vand.u32 %v9610, 4294901760
    %v10320 = vsub.f32 %v9610, %v10319
    %v10321 = vand.u32 %v10320, 4294901760
    %10322 = vmatmul.mubr.f32.gmra.mrb[0].mxu0 %v10321
    %v10323 = vpop.f32.mrb[0].mxu0
    %v10324 = vadd.f32 %v10140, %v10323
    %v10325 = vpop.f32.mrb[0].mxu0
    %10326 = vmatprep.mubr.f32.mxu0 0.0
    %v10327 = vand.u32 %v9613, 4294901760
    %v10328 = vsub.f32 %v9613, %v10327
    %v10329 = vand.u32 %v10328, 4294901760
    %10330 = vmatmul.mubr.f32.gmra.mrb[0].mxu0 %v10329
    %v10331 = vpop.f32.mrb[0].mxu0
    %v10332 = vadd.f32 %v10147, %v10331
    %v10333 = vpop.f32.mrb[0].mxu0
    %10334 = vmatprep.mubr.f32.mxu0 0.0
    %v10335 = vand.u32 %v9616, 4294901760
    %v10336 = vsub.f32 %v9616, %v10335
    %v10337 = vand.u32 %v10336, 4294901760
    %10338 = vmatmul.mubr.f32.gmra.mrb[0].mxu0 %v10337
    %v10339 = vpop.f32.mrb[0].mxu0
    %v10340 = vadd.f32 %v10154, %v10339
    %v10341 = vpop.f32.mrb[0].mxu0
    %10342 = vmatprep.mubr.f32.mxu0 0.0
    %v10343 = vand.u32 %v9619, 4294901760
    %v10344 = vsub.f32 %v9619, %v10343
    %v10345 = vand.u32 %v10344, 4294901760
    %10346 = vmatmul.mubr.f32.gmra.mrb[0].mxu0 %v10345
    %v10347 = vpop.f32.mrb[0].mxu0
    %v10348 = vadd.f32 %v10161, %v10347
    %v10349 = vpop.f32.mrb[0].mxu0
    %10350 = vmatprep.mubr.f32.mxu0 0.0
    %v10351 = vand.u32 %v9622, 4294901760
    %v10352 = vsub.f32 %v9622, %v10351
    %v10353 = vand.u32 %v10352, 4294901760
    %10354 = vmatmul.mubr.f32.gmra.mrb[0].mxu0 %v10353
    %v10355 = vpop.f32.mrb[0].mxu0
    %v10356 = vadd.f32 %v10168, %v10355
    %v10357 = vpop.f32.mrb[0].mxu0
    %10358 = vmatprep.mubr.f32.mxu0 0.0
    %v10359 = vand.u32 %v9625, 4294901760
    %v10360 = vsub.f32 %v9625, %v10359
    %v10361 = vand.u32 %v10360, 4294901760
    %10362 = vmatmul.mubr.f32.gmra.mrb[0].mxu0 %v10361
    %v10363 = vpop.f32.mrb[0].mxu0
    %v10364 = vadd.f32 %v10175, %v10363
    %v10365 = vpop.f32.mrb[0].mxu0
    %10366 = vmatprep.mubr.f32.mxu0 0.0
    %v10367 = vand.u32 %v9628, 4294901760
    %v10368 = vsub.f32 %v9628, %v10367
    %v10369 = vand.u32 %v10368, 4294901760
    %10370 = vmatmul.mubr.f32.gmra.mrb[0].mxu0 %v10369
    %v10371 = vpop.f32.mrb[0].mxu0
    %v10372 = vadd.f32 %v10182, %v10371
    %v10373 = vpop.f32.mrb[0].mxu0
    %10374 = vmatprep.mubr.f32.mxu0 0.0
    %v10375 = vand.u32 %v9631, 4294901760
    %v10376 = vsub.f32 %v9631, %v10375
    %v10377 = vand.u32 %v10376, 4294901760
    %10378 = vmatmul.mubr.f32.gmra.mrb[0].mxu0 %v10377
    %v10379 = vpop.f32.mrb[0].mxu0
    %v10380 = vadd.f32 %v10189, %v10379
    %v10381 = vpop.f32.mrb[0].mxu0
    %10382 = vmatprep.mubr.f32.mxu0 0.0
    %v10383 = vand.u32 %v9634, 4294901760
    %v10384 = vsub.f32 %v9634, %v10383
    %v10385 = vand.u32 %v10384, 4294901760
    %10386 = vmatmul.mubr.f32.gmra.mrb[0].mxu0 %v10385
    %v10387 = vpop.f32.mrb[0].mxu0
    %v10388 = vadd.f32 %v10196, %v10387
    %v10389 = vpop.f32.mrb[0].mxu0
    %10390 = vmatprep.mubr.f32.mxu0 0.0
    %v10391 = vand.u32 %v9637, 4294901760
    %v10392 = vsub.f32 %v9637, %v10391
    %v10393 = vand.u32 %v10392, 4294901760
    %10394 = vmatmul.mubr.f32.gmra.mrb[0].mxu0 %v10393
    %v10395 = vpop.f32.mrb[0].mxu0
    %v10396 = vadd.f32 %v10203, %v10395
    %v10397 = vpop.f32.mrb[0].mxu0
    %10398 = vmatprep.mubr.f32.mxu0 0.0
    %v10399 = vand.u32 %v9640, 4294901760
    %v10400 = vsub.f32 %v9640, %v10399
    %v10401 = vand.u32 %v10400, 4294901760
    %10402 = vmatmul.mubr.f32.gmra.mrb[0].mxu0 %v10401
    %v10403 = vpop.f32.mrb[0].mxu0
    %v10404 = vadd.f32 %v10210, %v10403
    %v10405 = vpop.f32.mrb[0].mxu0
    %10406 = vdwg.mxu0
    %10407 = vmatprep.subr.mxu0 0.0
    %v10408 = vand.u32 %v21, 4294901760
    %v10409 = vsub.f32 %v21, %v10408
    %v10410 = vand.u32 %v10409, 4294901760
    %10411 = vmatpush1.msra.mxu0 %v10410
    %10412 = vmatprep.subr.mxu0 0.0
    %10413 = vmatpush1.msra.mxu0 0.0
    %10414 = vmatprep.subr.mxu0 0.0
    %10415 = vmatpush1.msra.mxu0 0.0
    %10416 = vmatprep.subr.mxu0 0.0
    %10417 = vmatpush1.msra.mxu0 0.0
    %10418 = vmatprep.subr.mxu0 0.0
    %10419 = vmatpush1.msra.mxu0 0.0
    %10420 = vmatprep.subr.mxu0 0.0
    %10421 = vmatpush1.msra.mxu0 0.0
    %10422 = vmatprep.subr.mxu0 0.0
    %10423 = vmatpush1.msra.mxu0 0.0
    %10424 = vmatprep.subr.mxu0 0.0
    %10425 = vmatpush1.msra.mxu0 0.0
    %10426 = vmatprep.subr.mxu0 0.0
    %10427 = vmatpush1.msra.mxu0 0.0
    %10428 = vmatprep.subr.mxu0 0.0
    %10429 = vmatpush1.msra.mxu0 0.0
    %10430 = vmatprep.subr.mxu0 0.0
    %10431 = vmatpush1.msra.mxu0 0.0
    %10432 = vmatprep.subr.mxu0 0.0
    %10433 = vmatpush1.msra.mxu0 0.0
    %10434 = vmatprep.subr.mxu0 0.0
    %10435 = vmatpush1.msra.mxu0 0.0
    %10436 = vmatprep.subr.mxu0 0.0
    %10437 = vmatpush1.msra.mxu0 0.0
    %10438 = vmatprep.subr.mxu0 0.0
    %10439 = vmatpush1.msra.mxu0 0.0
    %10440 = vmatprep.subr.mxu0 0.0
    %10441 = vmatpush1.msra.mxu0 0.0
    %10442 = vmatprep.subr.mxu0 0.0
    %10443 = vmatpush1.msra.mxu0 0.0
    %10444 = vmatprep.subr.mxu0 0.0
    %10445 = vmatpush1.msra.mxu0 0.0
    %10446 = vmatprep.subr.mxu0 0.0
    %10447 = vmatpush1.msra.mxu0 0.0
    %10448 = vmatprep.subr.mxu0 0.0
    %10449 = vmatpush1.msra.mxu0 0.0
    %10450 = vmatprep.subr.mxu0 0.0
    %10451 = vmatpush1.msra.mxu0 0.0
    %10452 = vmatprep.subr.mxu0 0.0
    %10453 = vmatpush1.msra.mxu0 0.0
    %10454 = vmatprep.subr.mxu0 0.0
    %10455 = vmatpush1.msra.mxu0 0.0
    %10456 = vmatprep.subr.mxu0 0.0
    %10457 = vmatpush1.msra.mxu0 0.0
    %10458 = vmatprep.subr.mxu0 0.0
    %10459 = vmatpush1.msra.mxu0 0.0
    %10460 = vmatprep.subr.mxu0 0.0
    %10461 = vmatpush1.msra.mxu0 0.0
    %10462 = vmatprep.subr.mxu0 0.0
    %10463 = vmatpush1.msra.mxu0 0.0
    %10464 = vmatprep.subr.mxu0 0.0
    %10465 = vmatpush1.msra.mxu0 0.0
    %10466 = vmatprep.subr.mxu0 0.0
    %10467 = vmatpush1.msra.mxu0 0.0
    %10468 = vmatprep.subr.mxu0 0.0
    %10469 = vmatpush1.msra.mxu0 0.0
    %10470 = vmatprep.subr.mxu0 0.0
    %10471 = vmatpush1.msra.mxu0 0.0
    %10472 = vmatprep.subr.mxu0 0.0
    %10473 = vmatpush1.msra.mxu0 0.0
    %10474 = vmatprep.mubr.f32.mxu0 0.0
    %v10475 = vand.u32 %v9595, 4294901760
    %10476 = vmatmul.mubr.f32.gmra.mrb[0].mxu0 %v10475
    %v10477 = vpop.f32.mrb[0].mxu0
    %v10478 = vadd.f32 %v10284, %v10477
    %v10479 = vpop.f32.mrb[0].mxu0
    %10480 = vmatprep.mubr.f32.mxu0 0.0
    %v10481 = vand.u32 %v9598, 4294901760
    %10482 = vmatmul.mubr.f32.gmra.mrb[0].mxu0 %v10481
    %v10483 = vpop.f32.mrb[0].mxu0
    %v10484 = vadd.f32 %v10292, %v10483
    %v10485 = vpop.f32.mrb[0].mxu0
    %10486 = vmatprep.mubr.f32.mxu0 0.0
    %v10487 = vand.u32 %v9601, 4294901760
    %10488 = vmatmul.mubr.f32.gmra.mrb[0].mxu0 %v10487
    %v10489 = vpop.f32.mrb[0].mxu0
    %v10490 = vadd.f32 %v10300, %v10489
    %v10491 = vpop.f32.mrb[0].mxu0
    %10492 = vmatprep.mubr.f32.mxu0 0.0
    %v10493 = vand.u32 %v9604, 4294901760
    %10494 = vmatmul.mubr.f32.gmra.mrb[0].mxu0 %v10493
    %v10495 = vpop.f32.mrb[0].mxu0
    %v10496 = vadd.f32 %v10308, %v10495
    %v10497 = vpop.f32.mrb[0].mxu0
    %10498 = vmatprep.mubr.f32.mxu0 0.0
    %v10499 = vand.u32 %v9607, 4294901760
    %10500 = vmatmul.mubr.f32.gmra.mrb[0].mxu0 %v10499
    %v10501 = vpop.f32.mrb[0].mxu0
    %v10502 = vadd.f32 %v10316, %v10501
    %v10503 = vpop.f32.mrb[0].mxu0
    %10504 = vmatprep.mubr.f32.mxu0 0.0
    %v10505 = vand.u32 %v9610, 4294901760
    %10506 = vmatmul.mubr.f32.gmra.mrb[0].mxu0 %v10505
    %v10507 = vpop.f32.mrb[0].mxu0
    %v10508 = vadd.f32 %v10324, %v10507
    %v10509 = vpop.f32.mrb[0].mxu0
    %10510 = vmatprep.mubr.f32.mxu0 0.0
    %v10511 = vand.u32 %v9613, 4294901760
    %10512 = vmatmul.mubr.f32.gmra.mrb[0].mxu0 %v10511
    %v10513 = vpop.f32.mrb[0].mxu0
    %v10514 = vadd.f32 %v10332, %v10513
    %v10515 = vpop.f32.mrb[0].mxu0
    %10516 = vmatprep.mubr.f32.mxu0 0.0
    %v10517 = vand.u32 %v9616, 4294901760
    %10518 = vmatmul.mubr.f32.gmra.mrb[0].mxu0 %v10517
    %v10519 = vpop.f32.mrb[0].mxu0
    %v10520 = vadd.f32 %v10340, %v10519
    %v10521 = vpop.f32.mrb[0].mxu0
    %10522 = vmatprep.mubr.f32.mxu0 0.0
    %v10523 = vand.u32 %v9619, 4294901760
    %10524 = vmatmul.mubr.f32.gmra.mrb[0].mxu0 %v10523
    %v10525 = vpop.f32.mrb[0].mxu0
    %v10526 = vadd.f32 %v10348, %v10525
    %v10527 = vpop.f32.mrb[0].mxu0
    %10528 = vmatprep.mubr.f32.mxu0 0.0
    %v10529 = vand.u32 %v9622, 4294901760
    %10530 = vmatmul.mubr.f32.gmra.mrb[0].mxu0 %v10529
    %v10531 = vpop.f32.mrb[0].mxu0
    %v10532 = vadd.f32 %v10356, %v10531
    %v10533 = vpop.f32.mrb[0].mxu0
    %10534 = vmatprep.mubr.f32.mxu0 0.0
    %v10535 = vand.u32 %v9625, 4294901760
    %10536 = vmatmul.mubr.f32.gmra.mrb[0].mxu0 %v10535
    %v10537 = vpop.f32.mrb[0].mxu0
    %v10538 = vadd.f32 %v10364, %v10537
    %v10539 = vpop.f32.mrb[0].mxu0
    %10540 = vmatprep.mubr.f32.mxu0 0.0
    %v10541 = vand.u32 %v9628, 4294901760
    %10542 = vmatmul.mubr.f32.gmra.mrb[0].mxu0 %v10541
    %v10543 = vpop.f32.mrb[0].mxu0
    %v10544 = vadd.f32 %v10372, %v10543
    %v10545 = vpop.f32.mrb[0].mxu0
    %10546 = vmatprep.mubr.f32.mxu0 0.0
    %v10547 = vand.u32 %v9631, 4294901760
    %10548 = vmatmul.mubr.f32.gmra.mrb[0].mxu0 %v10547
    %v10549 = vpop.f32.mrb[0].mxu0
    %v10550 = vadd.f32 %v10380, %v10549
    %v10551 = vpop.f32.mrb[0].mxu0
    %10552 = vmatprep.mubr.f32.mxu0 0.0
    %v10553 = vand.u32 %v9634, 4294901760
    %10554 = vmatmul.mubr.f32.gmra.mrb[0].mxu0 %v10553
    %v10555 = vpop.f32.mrb[0].mxu0
    %v10556 = vadd.f32 %v10388, %v10555
    %v10557 = vpop.f32.mrb[0].mxu0
    %10558 = vmatprep.mubr.f32.mxu0 0.0
    %v10559 = vand.u32 %v9637, 4294901760
    %10560 = vmatmul.mubr.f32.gmra.mrb[0].mxu0 %v10559
    %v10561 = vpop.f32.mrb[0].mxu0
    %v10562 = vadd.f32 %v10396, %v10561
    %v10563 = vpop.f32.mrb[0].mxu0
    %10564 = vmatprep.mubr.f32.mxu0 0.0
    %v10565 = vand.u32 %v9640, 4294901760
    %10566 = vmatmul.mubr.f32.gmra.mrb[0].mxu0 %v10565
    %v10567 = vpop.f32.mrb[0].mxu0
    %v10568 = vadd.f32 %v10404, %v10567
    %v10569 = vpop.f32.mrb[0].mxu0
    %10570 = vdwg.mxu0
    %10571 = vmatprep.subr.mxu0 0.0
    %v10572 = vand.u32 %v21, 4294901760
    %10573 = vmatpush1.msra.mxu0 %v10572
    %10574 = vmatprep.subr.mxu0 0.0
    %10575 = vmatpush1.msra.mxu0 0.0
    %10576 = vmatprep.subr.mxu0 0.0
    %10577 = vmatpush1.msra.mxu0 0.0
    %10578 = vmatprep.subr.mxu0 0.0
    %10579 = vmatpush1.msra.mxu0 0.0
    %10580 = vmatprep.subr.mxu0 0.0
    %10581 = vmatpush1.msra.mxu0 0.0
    %10582 = vmatprep.subr.mxu0 0.0
    %10583 = vmatpush1.msra.mxu0 0.0
    %10584 = vmatprep.subr.mxu0 0.0
    %10585 = vmatpush1.msra.mxu0 0.0
    %10586 = vmatprep.subr.mxu0 0.0
    %10587 = vmatpush1.msra.mxu0 0.0
    %10588 = vmatprep.subr.mxu0 0.0
    %10589 = vmatpush1.msra.mxu0 0.0
    %10590 = vmatprep.subr.mxu0 0.0
    %10591 = vmatpush1.msra.mxu0 0.0
    %10592 = vmatprep.subr.mxu0 0.0
    %10593 = vmatpush1.msra.mxu0 0.0
    %10594 = vmatprep.subr.mxu0 0.0
    %10595 = vmatpush1.msra.mxu0 0.0
    %10596 = vmatprep.subr.mxu0 0.0
    %10597 = vmatpush1.msra.mxu0 0.0
    %10598 = vmatprep.subr.mxu0 0.0
    %10599 = vmatpush1.msra.mxu0 0.0
    %10600 = vmatprep.subr.mxu0 0.0
    %10601 = vmatpush1.msra.mxu0 0.0
    %10602 = vmatprep.subr.mxu0 0.0
    %10603 = vmatpush1.msra.mxu0 0.0
    %10604 = vmatprep.subr.mxu0 0.0
    %10605 = vmatpush1.msra.mxu0 0.0
    %10606 = vmatprep.subr.mxu0 0.0
    %10607 = vmatpush1.msra.mxu0 0.0
    %10608 = vmatprep.subr.mxu0 0.0
    %10609 = vmatpush1.msra.mxu0 0.0
    %10610 = vmatprep.subr.mxu0 0.0
    %10611 = vmatpush1.msra.mxu0 0.0
    %10612 = vmatprep.subr.mxu0 0.0
    %10613 = vmatpush1.msra.mxu0 0.0
    %10614 = vmatprep.subr.mxu0 0.0
    %10615 = vmatpush1.msra.mxu0 0.0
    %10616 = vmatprep.subr.mxu0 0.0
    %10617 = vmatpush1.msra.mxu0 0.0
    %10618 = vmatprep.subr.mxu0 0.0
    %10619 = vmatpush1.msra.mxu0 0.0
    %10620 = vmatprep.subr.mxu0 0.0
    %10621 = vmatpush1.msra.mxu0 0.0
    %10622 = vmatprep.subr.mxu0 0.0
    %10623 = vmatpush1.msra.mxu0 0.0
    %10624 = vmatprep.subr.mxu0 0.0
    %10625 = vmatpush1.msra.mxu0 0.0
    %10626 = vmatprep.subr.mxu0 0.0
    %10627 = vmatpush1.msra.mxu0 0.0
    %10628 = vmatprep.subr.mxu0 0.0
    %10629 = vmatpush1.msra.mxu0 0.0
    %10630 = vmatprep.subr.mxu0 0.0
    %10631 = vmatpush1.msra.mxu0 0.0
    %10632 = vmatprep.subr.mxu0 0.0
    %10633 = vmatpush1.msra.mxu0 0.0
    %10634 = vmatprep.subr.mxu0 0.0
    %10635 = vmatpush1.msra.mxu0 0.0
    %10636 = vmatprep.mubr.f32.mxu0 0.0
    %v10637 = vand.u32 %v9595, 4294901760
    %10638 = vmatmul.mubr.f32.gmra.mrb[0].mxu0 %v10637
    %v10639 = vpop.f32.mrb[0].mxu0
    %v10640 = vadd.f32 %v10478, %v10639
    %v10641 = vpop.f32.mrb[0].mxu0
    %10642 = vmatprep.mubr.f32.mxu0 0.0
    %v10643 = vand.u32 %v9598, 4294901760
    %10644 = vmatmul.mubr.f32.gmra.mrb[0].mxu0 %v10643
    %v10645 = vpop.f32.mrb[0].mxu0
    %v10646 = vadd.f32 %v10484, %v10645
    %v10647 = vpop.f32.mrb[0].mxu0
    %10648 = vmatprep.mubr.f32.mxu0 0.0
    %v10649 = vand.u32 %v9601, 4294901760
    %10650 = vmatmul.mubr.f32.gmra.mrb[0].mxu0 %v10649
    %v10651 = vpop.f32.mrb[0].mxu0
    %v10652 = vadd.f32 %v10490, %v10651
    %v10653 = vpop.f32.mrb[0].mxu0
    %10654 = vmatprep.mubr.f32.mxu0 0.0
    %v10655 = vand.u32 %v9604, 4294901760
    %10656 = vmatmul.mubr.f32.gmra.mrb[0].mxu0 %v10655
    %v10657 = vpop.f32.mrb[0].mxu0
    %v10658 = vadd.f32 %v10496, %v10657
    %v10659 = vpop.f32.mrb[0].mxu0
    %10660 = vmatprep.mubr.f32.mxu0 0.0
    %v10661 = vand.u32 %v9607, 4294901760
    %10662 = vmatmul.mubr.f32.gmra.mrb[0].mxu0 %v10661
    %v10663 = vpop.f32.mrb[0].mxu0
    %v10664 = vadd.f32 %v10502, %v10663
    %v10665 = vpop.f32.mrb[0].mxu0
    %10666 = vmatprep.mubr.f32.mxu0 0.0
    %v10667 = vand.u32 %v9610, 4294901760
    %10668 = vmatmul.mubr.f32.gmra.mrb[0].mxu0 %v10667
    %v10669 = vpop.f32.mrb[0].mxu0
    %v10670 = vadd.f32 %v10508, %v10669
    %v10671 = vpop.f32.mrb[0].mxu0
    %10672 = vmatprep.mubr.f32.mxu0 0.0
    %v10673 = vand.u32 %v9613, 4294901760
    %10674 = vmatmul.mubr.f32.gmra.mrb[0].mxu0 %v10673
    %v10675 = vpop.f32.mrb[0].mxu0
    %v10676 = vadd.f32 %v10514, %v10675
    %v10677 = vpop.f32.mrb[0].mxu0
    %10678 = vmatprep.mubr.f32.mxu0 0.0
    %v10679 = vand.u32 %v9616, 4294901760
    %10680 = vmatmul.mubr.f32.gmra.mrb[0].mxu0 %v10679
    %v10681 = vpop.f32.mrb[0].mxu0
    %v10682 = vadd.f32 %v10520, %v10681
    %v10683 = vpop.f32.mrb[0].mxu0
    %10684 = vmatprep.mubr.f32.mxu0 0.0
    %v10685 = vand.u32 %v9619, 4294901760
    %10686 = vmatmul.mubr.f32.gmra.mrb[0].mxu0 %v10685
    %v10687 = vpop.f32.mrb[0].mxu0
    %v10688 = vadd.f32 %v10526, %v10687
    %v10689 = vpop.f32.mrb[0].mxu0
    %10690 = vmatprep.mubr.f32.mxu0 0.0
    %v10691 = vand.u32 %v9622, 4294901760
    %10692 = vmatmul.mubr.f32.gmra.mrb[0].mxu0 %v10691
    %v10693 = vpop.f32.mrb[0].mxu0
    %v10694 = vadd.f32 %v10532, %v10693
    %v10695 = vpop.f32.mrb[0].mxu0
    %10696 = vmatprep.mubr.f32.mxu0 0.0
    %v10697 = vand.u32 %v9625, 4294901760
    %10698 = vmatmul.mubr.f32.gmra.mrb[0].mxu0 %v10697
    %v10699 = vpop.f32.mrb[0].mxu0
    %v10700 = vadd.f32 %v10538, %v10699
    %v10701 = vpop.f32.mrb[0].mxu0
    %10702 = vmatprep.mubr.f32.mxu0 0.0
    %v10703 = vand.u32 %v9628, 4294901760
    %10704 = vmatmul.mubr.f32.gmra.mrb[0].mxu0 %v10703
    %v10705 = vpop.f32.mrb[0].mxu0
    %v10706 = vadd.f32 %v10544, %v10705
    %v10707 = vpop.f32.mrb[0].mxu0
    %10708 = vmatprep.mubr.f32.mxu0 0.0
    %v10709 = vand.u32 %v9631, 4294901760
    %10710 = vmatmul.mubr.f32.gmra.mrb[0].mxu0 %v10709
    %v10711 = vpop.f32.mrb[0].mxu0
    %v10712 = vadd.f32 %v10550, %v10711
    %v10713 = vpop.f32.mrb[0].mxu0
    %10714 = vmatprep.mubr.f32.mxu0 0.0
    %v10715 = vand.u32 %v9634, 4294901760
    %10716 = vmatmul.mubr.f32.gmra.mrb[0].mxu0 %v10715
    %v10717 = vpop.f32.mrb[0].mxu0
    %v10718 = vadd.f32 %v10556, %v10717
    %v10719 = vpop.f32.mrb[0].mxu0
    %10720 = vmatprep.mubr.f32.mxu0 0.0
    %v10721 = vand.u32 %v9637, 4294901760
    %10722 = vmatmul.mubr.f32.gmra.mrb[0].mxu0 %v10721
    %v10723 = vpop.f32.mrb[0].mxu0
    %v10724 = vadd.f32 %v10562, %v10723
    %v10725 = vpop.f32.mrb[0].mxu0
    %10726 = vmatprep.mubr.f32.mxu0 0.0
    %v10727 = vand.u32 %v9640, 4294901760
    %10728 = vmatmul.mubr.f32.gmra.mrb[0].mxu0 %v10727
    %v10729 = vpop.f32.mrb[0].mxu0
    %v10730 = vadd.f32 %v10568, %v10729
    %v10731 = vpop.f32.mrb[0].mxu0
    %10732 = vdwg.mxu0
    %v10733 = vsel %vm45, %v10640, -inf
    %10734 = vmax.xlane.f32.xlu0 %v10733
    %v10735 = vpop.xlane.xlu0 %10734
    %v10736 = vsel %vm45, %v10646, -inf
    %10737 = vmax.xlane.f32.xlu0 %v10736
    %v10738 = vpop.xlane.xlu0 %10737
    %v10739 = vsel %vm45, %v10652, -inf
    %10740 = vmax.xlane.f32.xlu0 %v10739
    %v10741 = vpop.xlane.xlu0 %10740
    %v10742 = vsel %vm45, %v10658, -inf
    %10743 = vmax.xlane.f32.xlu0 %v10742
    %v10744 = vpop.xlane.xlu0 %10743
    %v10745 = vsel %vm45, %v10664, -inf
    %10746 = vmax.xlane.f32.xlu0 %v10745
    %v10747 = vpop.xlane.xlu0 %10746
    %v10748 = vsel %vm45, %v10670, -inf
    %10749 = vmax.xlane.f32.xlu0 %v10748
    %v10750 = vpop.xlane.xlu0 %10749
    %v10751 = vsel %vm45, %v10676, -inf
    %10752 = vmax.xlane.f32.xlu0 %v10751
    %v10753 = vpop.xlane.xlu0 %10752
    %v10754 = vsel %vm45, %v10682, -inf
    %10755 = vmax.xlane.f32.xlu0 %v10754
    %v10756 = vpop.xlane.xlu0 %10755
    %v10757 = vsel %vm45, %v10688, -inf
    %10758 = vmax.xlane.f32.xlu0 %v10757
    %v10759 = vpop.xlane.xlu0 %10758
    %v10760 = vsel %vm45, %v10694, -inf
    %10761 = vmax.xlane.f32.xlu0 %v10760
    %v10762 = vpop.xlane.xlu0 %10761
    %v10763 = vsel %vm45, %v10700, -inf
    %10764 = vmax.xlane.f32.xlu0 %v10763
    %v10765 = vpop.xlane.xlu0 %10764
    %v10766 = vsel %vm45, %v10706, -inf
    %10767 = vmax.xlane.f32.xlu0 %v10766
    %v10768 = vpop.xlane.xlu0 %10767
    %v10769 = vsel %vm45, %v10712, -inf
    %10770 = vmax.xlane.f32.xlu0 %v10769
    %v10771 = vpop.xlane.xlu0 %10770
    %v10772 = vsel %vm45, %v10718, -inf
    %10773 = vmax.xlane.f32.xlu0 %v10772
    %v10774 = vpop.xlane.xlu0 %10773
    %v10775 = vsel %vm45, %v10724, -inf
    %10776 = vmax.xlane.f32.xlu0 %v10775
    %v10777 = vpop.xlane.xlu0 %10776
    %v10778 = vsel %vm45, %v10730, -inf
    %10779 = vmax.xlane.f32.xlu0 %v10778
    %v10780 = vpop.xlane.xlu0 %10779
    %v10781 = vsub.f32 %v10640, %v10735
    %v10782 = vsub.f32 %v10646, %v10738
    %v10783 = vsub.f32 %v10652, %v10741
    %v10784 = vsub.f32 %v10658, %v10744
    %v10785 = vsub.f32 %v10664, %v10747
    %v10786 = vsub.f32 %v10670, %v10750
    %v10787 = vsub.f32 %v10676, %v10753
    %v10788 = vsub.f32 %v10682, %v10756
    %v10789 = vsub.f32 %v10688, %v10759
    %v10790 = vsub.f32 %v10694, %v10762
    %v10791 = vsub.f32 %v10700, %v10765
    %v10792 = vsub.f32 %v10706, %v10768
    %v10793 = vsub.f32 %v10712, %v10771
    %v10794 = vsub.f32 %v10718, %v10774
    %v10795 = vsub.f32 %v10724, %v10777
    %v10796 = vsub.f32 %v10730, %v10780
    %v10797 = vmul.f32 %v10781, 1.442695
    %v10798 = vpow.pop %v10797
    %v10799 = vmul.f32 %v10782, 1.442695
    %v10800 = vpow.pop %v10799
    %v10801 = vmul.f32 %v10783, 1.442695
    %v10802 = vpow.pop %v10801
    %v10803 = vmul.f32 %v10784, 1.442695
    %v10804 = vpow.pop %v10803
    %v10805 = vmul.f32 %v10785, 1.442695
    %v10806 = vpow.pop %v10805
    %v10807 = vmul.f32 %v10786, 1.442695
    %v10808 = vpow.pop %v10807
    %v10809 = vmul.f32 %v10787, 1.442695
    %v10810 = vpow.pop %v10809
    %v10811 = vmul.f32 %v10788, 1.442695
    %v10812 = vpow.pop %v10811
    %v10813 = vmul.f32 %v10789, 1.442695
    %v10814 = vpow.pop %v10813
    %v10815 = vmul.f32 %v10790, 1.442695
    %v10816 = vpow.pop %v10815
    %v10817 = vmul.f32 %v10791, 1.442695
    %v10818 = vpow.pop %v10817
    %v10819 = vmul.f32 %v10792, 1.442695
    %v10820 = vpow.pop %v10819
    %v10821 = vmul.f32 %v10793, 1.442695
    %v10822 = vpow.pop %v10821
    %v10823 = vmul.f32 %v10794, 1.442695
    %v10824 = vpow.pop %v10823
    %v10825 = vmul.f32 %v10795, 1.442695
    %v10826 = vpow.pop %v10825
    %v10827 = vmul.f32 %v10796, 1.442695
    %v10828 = vpow.pop %v10827
    %v10829 = vsel %vm45, %v10798, 0.0
    %10830 = vadd.xlane.f32.xlu0 %v10829
    %v10831 = vpop.xlane.xlu0 %10830
    %v10832 = vsel %vm45, %v10800, 0.0
    %10833 = vadd.xlane.f32.xlu0 %v10832
    %v10834 = vpop.xlane.xlu0 %10833
    %v10835 = vsel %vm45, %v10802, 0.0
    %10836 = vadd.xlane.f32.xlu0 %v10835
    %v10837 = vpop.xlane.xlu0 %10836
    %v10838 = vsel %vm45, %v10804, 0.0
    %10839 = vadd.xlane.f32.xlu0 %v10838
    %v10840 = vpop.xlane.xlu0 %10839
    %v10841 = vsel %vm45, %v10806, 0.0
    %10842 = vadd.xlane.f32.xlu0 %v10841
    %v10843 = vpop.xlane.xlu0 %10842
    %v10844 = vsel %vm45, %v10808, 0.0
    %10845 = vadd.xlane.f32.xlu0 %v10844
    %v10846 = vpop.xlane.xlu0 %10845
    %v10847 = vsel %vm45, %v10810, 0.0
    %10848 = vadd.xlane.f32.xlu0 %v10847
    %v10849 = vpop.xlane.xlu0 %10848
    %v10850 = vsel %vm45, %v10812, 0.0
    %10851 = vadd.xlane.f32.xlu0 %v10850
    %v10852 = vpop.xlane.xlu0 %10851
    %v10853 = vsel %vm45, %v10814, 0.0
    %10854 = vadd.xlane.f32.xlu0 %v10853
    %v10855 = vpop.xlane.xlu0 %10854
    %v10856 = vsel %vm45, %v10816, 0.0
    %10857 = vadd.xlane.f32.xlu0 %v10856
    %v10858 = vpop.xlane.xlu0 %10857
    %v10859 = vsel %vm45, %v10818, 0.0
    %10860 = vadd.xlane.f32.xlu0 %v10859
    %v10861 = vpop.xlane.xlu0 %10860
    %v10862 = vsel %vm45, %v10820, 0.0
    %10863 = vadd.xlane.f32.xlu0 %v10862
    %v10864 = vpop.xlane.xlu0 %10863
    %v10865 = vsel %vm45, %v10822, 0.0
    %10866 = vadd.xlane.f32.xlu0 %v10865
    %v10867 = vpop.xlane.xlu0 %10866
    %v10868 = vsel %vm45, %v10824, 0.0
    %10869 = vadd.xlane.f32.xlu0 %v10868
    %v10870 = vpop.xlane.xlu0 %10869
    %v10871 = vsel %vm45, %v10826, 0.0
    %10872 = vadd.xlane.f32.xlu0 %v10871
    %v10873 = vpop.xlane.xlu0 %10872
    %v10874 = vsel %vm45, %v10828, 0.0
    %10875 = vadd.xlane.f32.xlu0 %v10874
    %v10876 = vpop.xlane.xlu0 %10875
    %v10877 = vrcp.pop %v10831
    %v10878 = vmul.f32 %v10798, %v10877
    %v10879 = vrcp.pop %v10834
    %v10880 = vmul.f32 %v10800, %v10879
    %v10881 = vrcp.pop %v10837
    %v10882 = vmul.f32 %v10802, %v10881
    %v10883 = vrcp.pop %v10840
    %v10884 = vmul.f32 %v10804, %v10883
    %v10885 = vrcp.pop %v10843
    %v10886 = vmul.f32 %v10806, %v10885
    %v10887 = vrcp.pop %v10846
    %v10888 = vmul.f32 %v10808, %v10887
    %v10889 = vrcp.pop %v10849
    %v10890 = vmul.f32 %v10810, %v10889
    %v10891 = vrcp.pop %v10852
    %v10892 = vmul.f32 %v10812, %v10891
    %v10893 = vrcp.pop %v10855
    %v10894 = vmul.f32 %v10814, %v10893
    %v10895 = vrcp.pop %v10858
    %v10896 = vmul.f32 %v10816, %v10895
    %v10897 = vrcp.pop %v10861
    %v10898 = vmul.f32 %v10818, %v10897
    %v10899 = vrcp.pop %v10864
    %v10900 = vmul.f32 %v10820, %v10899
    %v10901 = vrcp.pop %v10867
    %v10902 = vmul.f32 %v10822, %v10901
    %v10903 = vrcp.pop %v10870
    %v10904 = vmul.f32 %v10824, %v10903
    %v10905 = vrcp.pop %v10873
    %v10906 = vmul.f32 %v10826, %v10905
    %v10907 = vrcp.pop %v10876
    %v10908 = vmul.f32 %v10828, %v10907
    %v10909 = vmul.f32 %v10878, %v9578
    %v10910 = vmul.f32 %v10880, %v9579
    %v10911 = vmul.f32 %v10882, %v9580
    %v10912 = vmul.f32 %v10884, %v9581
    %v10913 = vmul.f32 %v10886, %v9582
    %v10914 = vmul.f32 %v10888, %v9583
    %v10915 = vmul.f32 %v10890, %v9584
    %v10916 = vmul.f32 %v10892, %v9585
    %v10917 = vmul.f32 %v10894, %v9586
    %v10918 = vmul.f32 %v10896, %v9587
    %v10919 = vmul.f32 %v10898, %v9588
    %v10920 = vmul.f32 %v10900, %v9589
    %v10921 = vmul.f32 %v10902, %v9590
    %v10922 = vmul.f32 %v10904, %v9591
    %v10923 = vmul.f32 %v10906, %v9592
    %v10924 = vmul.f32 %v10908, %v9593
    %v10925 = vadd.f32 %v9561, %v10909
    %v10926 = vadd.f32 %v9562, %v10910
    %v10927 = vadd.f32 %v9563, %v10911
    %v10928 = vadd.f32 %v9564, %v10912
    %v10929 = vadd.f32 %v9565, %v10913
    %v10930 = vadd.f32 %v9566, %v10914
    %v10931 = vadd.f32 %v9567, %v10915
    %v10932 = vadd.f32 %v9568, %v10916
    %v10933 = vadd.f32 %v9569, %v10917
    %v10934 = vadd.f32 %v9570, %v10918
    %v10935 = vadd.f32 %v9571, %v10919
    %v10936 = vadd.f32 %v9572, %v10920
    %v10937 = vadd.f32 %v9573, %v10921
    %v10938 = vadd.f32 %v9574, %v10922
    %v10939 = vadd.f32 %v9575, %v10923
    %v10940 = vadd.f32 %v9576, %v10924
    %v10941 = vld [vmem:[%s3] sm:$0xff]
    %v10942 = vld [vmem:[%s4] sm:$0x1]
    %v10944 = vlaneseq
    %v10945 = vshrl.u32 %v10944, 7
    %v10946 = vsub.s32 0, %v10945
    %v10947 = vrot.slane %v10942, %v10946
    %v10950 = vsel %vm45, %v10925, 0
    %v10953 = vsel %vm45, %v10926, 0
    %v10956 = vsel %vm45, %v10927, 0
    %v10959 = vsel %vm45, %v10928, 0
    %v10962 = vsel %vm45, %v10929, 0
    %v10965 = vsel %vm45, %v10930, 0
    %v10968 = vsel %vm45, %v10931, 0
    %v10971 = vsel %vm45, %v10932, 0
    %v10974 = vsel %vm45, %v10933, 0
    %v10977 = vsel %vm45, %v10934, 0
    %v10980 = vsel %vm45, %v10935, 0
    %v10983 = vsel %vm45, %v10936, 0
    %v10986 = vsel %vm45, %v10937, 0
    %v10989 = vsel %vm45, %v10938, 0
    %v10992 = vsel %vm45, %v10939, 0
    %v10995 = vsel %vm45, %v10940, 0
    %10997 = vmatprep.subr.mxu0 0.0
    %v10998 = vand.u32 %v10941, 4294901760
    %10999 = vmatpush1.msra.mxu0 %v10998
    %11000 = vmatprep.subr.mxu0 0.0
    %11001 = vmatpush1.msra.mxu0 0.0
    %11002 = vmatprep.subr.mxu0 0.0
    %11003 = vmatpush1.msra.mxu0 0.0
    %11004 = vmatprep.subr.mxu0 0.0
    %11005 = vmatpush1.msra.mxu0 0.0
    %11006 = vmatprep.subr.mxu0 0.0
    %11007 = vmatpush1.msra.mxu0 0.0
    %11008 = vmatprep.subr.mxu0 0.0
    %11009 = vmatpush1.msra.mxu0 0.0
    %11010 = vmatprep.subr.mxu0 0.0
    %11011 = vmatpush1.msra.mxu0 0.0
    %11012 = vmatprep.subr.mxu0 0.0
    %11013 = vmatpush1.msra.mxu0 0.0
    %11014 = vmatprep.subr.mxu0 0.0
    %11015 = vmatpush1.msra.mxu0 0.0
    %11016 = vmatprep.subr.mxu0 0.0
    %11017 = vmatpush1.msra.mxu0 0.0
    %11018 = vmatprep.subr.mxu0 0.0
    %11019 = vmatpush1.msra.mxu0 0.0
    %11020 = vmatprep.subr.mxu0 0.0
    %11021 = vmatpush1.msra.mxu0 0.0
    %11022 = vmatprep.subr.mxu0 0.0
    %11023 = vmatpush1.msra.mxu0 0.0
    %11024 = vmatprep.subr.mxu0 0.0
    %11025 = vmatpush1.msra.mxu0 0.0
    %11026 = vmatprep.subr.mxu0 0.0
    %11027 = vmatpush1.msra.mxu0 0.0
    %11028 = vmatprep.subr.mxu0 0.0
    %11029 = vmatpush1.msra.mxu0 0.0
    %11030 = vmatprep.subr.mxu0 0.0
    %11031 = vmatpush1.msra.mxu0 0.0
    %11032 = vmatprep.subr.mxu0 0.0
    %11033 = vmatpush1.msra.mxu0 0.0
    %11034 = vmatprep.subr.mxu0 0.0
    %11035 = vmatpush1.msra.mxu0 0.0
    %11036 = vmatprep.subr.mxu0 0.0
    %11037 = vmatpush1.msra.mxu0 0.0
    %11038 = vmatprep.subr.mxu0 0.0
    %11039 = vmatpush1.msra.mxu0 0.0
    %11040 = vmatprep.subr.mxu0 0.0
    %11041 = vmatpush1.msra.mxu0 0.0
    %11042 = vmatprep.subr.mxu0 0.0
    %11043 = vmatpush1.msra.mxu0 0.0
    %11044 = vmatprep.subr.mxu0 0.0
    %11045 = vmatpush1.msra.mxu0 0.0
    %11046 = vmatprep.subr.mxu0 0.0
    %11047 = vmatpush1.msra.mxu0 0.0
    %11048 = vmatprep.subr.mxu0 0.0
    %11049 = vmatpush1.msra.mxu0 0.0
    %11050 = vmatprep.subr.mxu0 0.0
    %11051 = vmatpush1.msra.mxu0 0.0
    %11052 = vmatprep.subr.mxu0 0.0
    %11053 = vmatpush1.msra.mxu0 0.0
    %11054 = vmatprep.subr.mxu0 0.0
    %11055 = vmatpush1.msra.mxu0 0.0
    %11056 = vmatprep.subr.mxu0 0.0
    %11057 = vmatpush1.msra.mxu0 0.0
    %11058 = vmatprep.subr.mxu0 0.0
    %11059 = vmatpush1.msra.mxu0 0.0
    %11060 = vmatprep.subr.mxu0 0.0
    %11061 = vmatpush1.msra.mxu0 0.0
    %11062 = vmatprep.mubr.f32.mxu0 0.0
    %v11063 = vand.u32 %v10950, 4294901760
    %v11064 = vsub.f32 %v10950, %v11063
    %v11065 = vand.u32 %v11064, 4294901760
    %v11066 = vsub.f32 %v11064, %v11065
    %v11067 = vand.u32 %v11066, 4294901760
    %11068 = vmatmul.mubr.f32.gmra.mrb[0].mxu0 %v11067
    %v11069 = vpop.f32.mrb[0].mxu0
    %v11070 = vadd.f32 %v10947, %v11069
    %v11071 = vpop.f32.mrb[0].mxu0
    %11072 = vmatprep.mubr.f32.mxu0 0.0
    %v11073 = vand.u32 %v10953, 4294901760
    %v11074 = vsub.f32 %v10953, %v11073
    %v11075 = vand.u32 %v11074, 4294901760
    %v11076 = vsub.f32 %v11074, %v11075
    %v11077 = vand.u32 %v11076, 4294901760
    %11078 = vmatmul.mubr.f32.gmra.mrb[0].mxu0 %v11077
    %v11079 = vpop.f32.mrb[0].mxu0
    %v11080 = vadd.f32 %v10947, %v11079
    %v11081 = vpop.f32.mrb[0].mxu0
    %11082 = vmatprep.mubr.f32.mxu0 0.0
    %v11083 = vand.u32 %v10956, 4294901760
    %v11084 = vsub.f32 %v10956, %v11083
    %v11085 = vand.u32 %v11084, 4294901760
    %v11086 = vsub.f32 %v11084, %v11085
    %v11087 = vand.u32 %v11086, 4294901760
    %11088 = vmatmul.mubr.f32.gmra.mrb[0].mxu0 %v11087
    %v11089 = vpop.f32.mrb[0].mxu0
    %v11090 = vadd.f32 %v10947, %v11089
    %v11091 = vpop.f32.mrb[0].mxu0
    %11092 = vmatprep.mubr.f32.mxu0 0.0
    %v11093 = vand.u32 %v10959, 4294901760
    %v11094 = vsub.f32 %v10959, %v11093
    %v11095 = vand.u32 %v11094, 4294901760
    %v11096 = vsub.f32 %v11094, %v11095
    %v11097 = vand.u32 %v11096, 4294901760
    %11098 = vmatmul.mubr.f32.gmra.mrb[0].mxu0 %v11097
    %v11099 = vpop.f32.mrb[0].mxu0
    %v11100 = vadd.f32 %v10947, %v11099
    %v11101 = vpop.f32.mrb[0].mxu0
    %11102 = vmatprep.mubr.f32.mxu0 0.0
    %v11103 = vand.u32 %v10962, 4294901760
    %v11104 = vsub.f32 %v10962, %v11103
    %v11105 = vand.u32 %v11104, 4294901760
    %v11106 = vsub.f32 %v11104, %v11105
    %v11107 = vand.u32 %v11106, 4294901760
    %11108 = vmatmul.mubr.f32.gmra.mrb[0].mxu0 %v11107
    %v11109 = vpop.f32.mrb[0].mxu0
    %v11110 = vadd.f32 %v10947, %v11109
    %v11111 = vpop.f32.mrb[0].mxu0
    %11112 = vmatprep.mubr.f32.mxu0 0.0
    %v11113 = vand.u32 %v10965, 4294901760
    %v11114 = vsub.f32 %v10965, %v11113
    %v11115 = vand.u32 %v11114, 4294901760
    %v11116 = vsub.f32 %v11114, %v11115
    %v11117 = vand.u32 %v11116, 4294901760
    %11118 = vmatmul.mubr.f32.gmra.mrb[0].mxu0 %v11117
    %v11119 = vpop.f32.mrb[0].mxu0
    %v11120 = vadd.f32 %v10947, %v11119
    %v11121 = vpop.f32.mrb[0].mxu0
    %11122 = vmatprep.mubr.f32.mxu0 0.0
    %v11123 = vand.u32 %v10968, 4294901760
    %v11124 = vsub.f32 %v10968, %v11123
    %v11125 = vand.u32 %v11124, 4294901760
    %v11126 = vsub.f32 %v11124, %v11125
    %v11127 = vand.u32 %v11126, 4294901760
    %11128 = vmatmul.mubr.f32.gmra.mrb[0].mxu0 %v11127
    %v11129 = vpop.f32.mrb[0].mxu0
    %v11130 = vadd.f32 %v10947, %v11129
    %v11131 = vpop.f32.mrb[0].mxu0
    %11132 = vmatprep.mubr.f32.mxu0 0.0
    %v11133 = vand.u32 %v10971, 4294901760
    %v11134 = vsub.f32 %v10971, %v11133
    %v11135 = vand.u32 %v11134, 4294901760
    %v11136 = vsub.f32 %v11134, %v11135
    %v11137 = vand.u32 %v11136, 4294901760
    %11138 = vmatmul.mubr.f32.gmra.mrb[0].mxu0 %v11137
    %v11139 = vpop.f32.mrb[0].mxu0
    %v11140 = vadd.f32 %v10947, %v11139
    %v11141 = vpop.f32.mrb[0].mxu0
    %11142 = vmatprep.mubr.f32.mxu0 0.0
    %v11143 = vand.u32 %v10974, 4294901760
    %v11144 = vsub.f32 %v10974, %v11143
    %v11145 = vand.u32 %v11144, 4294901760
    %v11146 = vsub.f32 %v11144, %v11145
    %v11147 = vand.u32 %v11146, 4294901760
    %11148 = vmatmul.mubr.f32.gmra.mrb[0].mxu0 %v11147
    %v11149 = vpop.f32.mrb[0].mxu0
    %v11150 = vadd.f32 %v10947, %v11149
    %v11151 = vpop.f32.mrb[0].mxu0
    %11152 = vmatprep.mubr.f32.mxu0 0.0
    %v11153 = vand.u32 %v10977, 4294901760
    %v11154 = vsub.f32 %v10977, %v11153
    %v11155 = vand.u32 %v11154, 4294901760
    %v11156 = vsub.f32 %v11154, %v11155
    %v11157 = vand.u32 %v11156, 4294901760
    %11158 = vmatmul.mubr.f32.gmra.mrb[0].mxu0 %v11157
    %v11159 = vpop.f32.mrb[0].mxu0
    %v11160 = vadd.f32 %v10947, %v11159
    %v11161 = vpop.f32.mrb[0].mxu0
    %11162 = vmatprep.mubr.f32.mxu0 0.0
    %v11163 = vand.u32 %v10980, 4294901760
    %v11164 = vsub.f32 %v10980, %v11163
    %v11165 = vand.u32 %v11164, 4294901760
    %v11166 = vsub.f32 %v11164, %v11165
    %v11167 = vand.u32 %v11166, 4294901760
    %11168 = vmatmul.mubr.f32.gmra.mrb[0].mxu0 %v11167
    %v11169 = vpop.f32.mrb[0].mxu0
    %v11170 = vadd.f32 %v10947, %v11169
    %v11171 = vpop.f32.mrb[0].mxu0
    %11172 = vmatprep.mubr.f32.mxu0 0.0
    %v11173 = vand.u32 %v10983, 4294901760
    %v11174 = vsub.f32 %v10983, %v11173
    %v11175 = vand.u32 %v11174, 4294901760
    %v11176 = vsub.f32 %v11174, %v11175
    %v11177 = vand.u32 %v11176, 4294901760
    %11178 = vmatmul.mubr.f32.gmra.mrb[0].mxu0 %v11177
    %v11179 = vpop.f32.mrb[0].mxu0
    %v11180 = vadd.f32 %v10947, %v11179
    %v11181 = vpop.f32.mrb[0].mxu0
    %11182 = vmatprep.mubr.f32.mxu0 0.0
    %v11183 = vand.u32 %v10986, 4294901760
    %v11184 = vsub.f32 %v10986, %v11183
    %v11185 = vand.u32 %v11184, 4294901760
    %v11186 = vsub.f32 %v11184, %v11185
    %v11187 = vand.u32 %v11186, 4294901760
    %11188 = vmatmul.mubr.f32.gmra.mrb[0].mxu0 %v11187
    %v11189 = vpop.f32.mrb[0].mxu0
    %v11190 = vadd.f32 %v10947, %v11189
    %v11191 = vpop.f32.mrb[0].mxu0
    %11192 = vmatprep.mubr.f32.mxu0 0.0
    %v11193 = vand.u32 %v10989, 4294901760
    %v11194 = vsub.f32 %v10989, %v11193
    %v11195 = vand.u32 %v11194, 4294901760
    %v11196 = vsub.f32 %v11194, %v11195
    %v11197 = vand.u32 %v11196, 4294901760
    %11198 = vmatmul.mubr.f32.gmra.mrb[0].mxu0 %v11197
    %v11199 = vpop.f32.mrb[0].mxu0
    %v11200 = vadd.f32 %v10947, %v11199
    %v11201 = vpop.f32.mrb[0].mxu0
    %11202 = vmatprep.mubr.f32.mxu0 0.0
    %v11203 = vand.u32 %v10992, 4294901760
    %v11204 = vsub.f32 %v10992, %v11203
    %v11205 = vand.u32 %v11204, 4294901760
    %v11206 = vsub.f32 %v11204, %v11205
    %v11207 = vand.u32 %v11206, 4294901760
    %11208 = vmatmul.mubr.f32.gmra.mrb[0].mxu0 %v11207
    %v11209 = vpop.f32.mrb[0].mxu0
    %v11210 = vadd.f32 %v10947, %v11209
    %v11211 = vpop.f32.mrb[0].mxu0
    %11212 = vmatprep.mubr.f32.mxu0 0.0
    %v11213 = vand.u32 %v10995, 4294901760
    %v11214 = vsub.f32 %v10995, %v11213
    %v11215 = vand.u32 %v11214, 4294901760
    %v11216 = vsub.f32 %v11214, %v11215
    %v11217 = vand.u32 %v11216, 4294901760
    %11218 = vmatmul.mubr.f32.gmra.mrb[0].mxu0 %v11217
    %v11219 = vpop.f32.mrb[0].mxu0
    %v11220 = vadd.f32 %v10947, %v11219
    %v11221 = vpop.f32.mrb[0].mxu0
    %11222 = vdwg.mxu0
    %11223 = vmatprep.subr.mxu0 0.0
    %v11224 = vand.u32 %v10941, 4294901760
    %v11225 = vsub.f32 %v10941, %v11224
    %v11226 = vand.u32 %v11225, 4294901760
    %v11227 = vsub.f32 %v11225, %v11226
    %v11228 = vand.u32 %v11227, 4294901760
    %11229 = vmatpush1.msra.mxu0 %v11228
    %11230 = vmatprep.subr.mxu0 0.0
    %11231 = vmatpush1.msra.mxu0 0.0
    %11232 = vmatprep.subr.mxu0 0.0
    %11233 = vmatpush1.msra.mxu0 0.0
    %11234 = vmatprep.subr.mxu0 0.0
    %11235 = vmatpush1.msra.mxu0 0.0
    %11236 = vmatprep.subr.mxu0 0.0
    %11237 = vmatpush1.msra.mxu0 0.0
    %11238 = vmatprep.subr.mxu0 0.0
    %11239 = vmatpush1.msra.mxu0 0.0
    %11240 = vmatprep.subr.mxu0 0.0
    %11241 = vmatpush1.msra.mxu0 0.0
    %11242 = vmatprep.subr.mxu0 0.0
    %11243 = vmatpush1.msra.mxu0 0.0
    %11244 = vmatprep.subr.mxu0 0.0
    %11245 = vmatpush1.msra.mxu0 0.0
    %11246 = vmatprep.subr.mxu0 0.0
    %11247 = vmatpush1.msra.mxu0 0.0
    %11248 = vmatprep.subr.mxu0 0.0
    %11249 = vmatpush1.msra.mxu0 0.0
    %11250 = vmatprep.subr.mxu0 0.0
    %11251 = vmatpush1.msra.mxu0 0.0
    %11252 = vmatprep.subr.mxu0 0.0
    %11253 = vmatpush1.msra.mxu0 0.0
    %11254 = vmatprep.subr.mxu0 0.0
    %11255 = vmatpush1.msra.mxu0 0.0
    %11256 = vmatprep.subr.mxu0 0.0
    %11257 = vmatpush1.msra.mxu0 0.0
    %11258 = vmatprep.subr.mxu0 0.0
    %11259 = vmatpush1.msra.mxu0 0.0
    %11260 = vmatprep.subr.mxu0 0.0
    %11261 = vmatpush1.msra.mxu0 0.0
    %11262 = vmatprep.subr.mxu0 0.0
    %11263 = vmatpush1.msra.mxu0 0.0
    %11264 = vmatprep.subr.mxu0 0.0
    %11265 = vmatpush1.msra.mxu0 0.0
    %11266 = vmatprep.subr.mxu0 0.0
    %11267 = vmatpush1.msra.mxu0 0.0
    %11268 = vmatprep.subr.mxu0 0.0
    %11269 = vmatpush1.msra.mxu0 0.0
    %11270 = vmatprep.subr.mxu0 0.0
    %11271 = vmatpush1.msra.mxu0 0.0
    %11272 = vmatprep.subr.mxu0 0.0
    %11273 = vmatpush1.msra.mxu0 0.0
    %11274 = vmatprep.subr.mxu0 0.0
    %11275 = vmatpush1.msra.mxu0 0.0
    %11276 = vmatprep.subr.mxu0 0.0
    %11277 = vmatpush1.msra.mxu0 0.0
    %11278 = vmatprep.subr.mxu0 0.0
    %11279 = vmatpush1.msra.mxu0 0.0
    %11280 = vmatprep.subr.mxu0 0.0
    %11281 = vmatpush1.msra.mxu0 0.0
    %11282 = vmatprep.subr.mxu0 0.0
    %11283 = vmatpush1.msra.mxu0 0.0
    %11284 = vmatprep.subr.mxu0 0.0
    %11285 = vmatpush1.msra.mxu0 0.0
    %11286 = vmatprep.subr.mxu0 0.0
    %11287 = vmatpush1.msra.mxu0 0.0
    %11288 = vmatprep.subr.mxu0 0.0
    %11289 = vmatpush1.msra.mxu0 0.0
    %11290 = vmatprep.subr.mxu0 0.0
    %11291 = vmatpush1.msra.mxu0 0.0
    %11292 = vmatprep.mubr.f32.mxu0 0.0
    %v11293 = vand.u32 %v10950, 4294901760
    %11294 = vmatmul.mubr.f32.gmra.mrb[0].mxu0 %v11293
    %v11295 = vpop.f32.mrb[0].mxu0
    %v11296 = vadd.f32 %v11070, %v11295
    %v11297 = vpop.f32.mrb[0].mxu0
    %11298 = vmatprep.mubr.f32.mxu0 0.0
    %v11299 = vand.u32 %v10953, 4294901760
    %11300 = vmatmul.mubr.f32.gmra.mrb[0].mxu0 %v11299
    %v11301 = vpop.f32.mrb[0].mxu0
    %v11302 = vadd.f32 %v11080, %v11301
    %v11303 = vpop.f32.mrb[0].mxu0
    %11304 = vmatprep.mubr.f32.mxu0 0.0
    %v11305 = vand.u32 %v10956, 4294901760
    %11306 = vmatmul.mubr.f32.gmra.mrb[0].mxu0 %v11305
    %v11307 = vpop.f32.mrb[0].mxu0
    %v11308 = vadd.f32 %v11090, %v11307
    %v11309 = vpop.f32.mrb[0].mxu0
    %11310 = vmatprep.mubr.f32.mxu0 0.0
    %v11311 = vand.u32 %v10959, 4294901760
    %11312 = vmatmul.mubr.f32.gmra.mrb[0].mxu0 %v11311
    %v11313 = vpop.f32.mrb[0].mxu0
    %v11314 = vadd.f32 %v11100, %v11313
    %v11315 = vpop.f32.mrb[0].mxu0
    %11316 = vmatprep.mubr.f32.mxu0 0.0
    %v11317 = vand.u32 %v10962, 4294901760
    %11318 = vmatmul.mubr.f32.gmra.mrb[0].mxu0 %v11317
    %v11319 = vpop.f32.mrb[0].mxu0
    %v11320 = vadd.f32 %v11110, %v11319
    %v11321 = vpop.f32.mrb[0].mxu0
    %11322 = vmatprep.mubr.f32.mxu0 0.0
    %v11323 = vand.u32 %v10965, 4294901760
    %11324 = vmatmul.mubr.f32.gmra.mrb[0].mxu0 %v11323
    %v11325 = vpop.f32.mrb[0].mxu0
    %v11326 = vadd.f32 %v11120, %v11325
    %v11327 = vpop.f32.mrb[0].mxu0
    %11328 = vmatprep.mubr.f32.mxu0 0.0
    %v11329 = vand.u32 %v10968, 4294901760
    %11330 = vmatmul.mubr.f32.gmra.mrb[0].mxu0 %v11329
    %v11331 = vpop.f32.mrb[0].mxu0
    %v11332 = vadd.f32 %v11130, %v11331
    %v11333 = vpop.f32.mrb[0].mxu0
    %11334 = vmatprep.mubr.f32.mxu0 0.0
    %v11335 = vand.u32 %v10971, 4294901760
    %11336 = vmatmul.mubr.f32.gmra.mrb[0].mxu0 %v11335
    %v11337 = vpop.f32.mrb[0].mxu0
    %v11338 = vadd.f32 %v11140, %v11337
    %v11339 = vpop.f32.mrb[0].mxu0
    %11340 = vmatprep.mubr.f32.mxu0 0.0
    %v11341 = vand.u32 %v10974, 4294901760
    %11342 = vmatmul.mubr.f32.gmra.mrb[0].mxu0 %v11341
    %v11343 = vpop.f32.mrb[0].mxu0
    %v11344 = vadd.f32 %v11150, %v11343
    %v11345 = vpop.f32.mrb[0].mxu0
    %11346 = vmatprep.mubr.f32.mxu0 0.0
    %v11347 = vand.u32 %v10977, 4294901760
    %11348 = vmatmul.mubr.f32.gmra.mrb[0].mxu0 %v11347
    %v11349 = vpop.f32.mrb[0].mxu0
    %v11350 = vadd.f32 %v11160, %v11349
    %v11351 = vpop.f32.mrb[0].mxu0
    %11352 = vmatprep.mubr.f32.mxu0 0.0
    %v11353 = vand.u32 %v10980, 4294901760
    %11354 = vmatmul.mubr.f32.gmra.mrb[0].mxu0 %v11353
    %v11355 = vpop.f32.mrb[0].mxu0
    %v11356 = vadd.f32 %v11170, %v11355
    %v11357 = vpop.f32.mrb[0].mxu0
    %11358 = vmatprep.mubr.f32.mxu0 0.0
    %v11359 = vand.u32 %v10983, 4294901760
    %11360 = vmatmul.mubr.f32.gmra.mrb[0].mxu0 %v11359
    %v11361 = vpop.f32.mrb[0].mxu0
    %v11362 = vadd.f32 %v11180, %v11361
    %v11363 = vpop.f32.mrb[0].mxu0
    %11364 = vmatprep.mubr.f32.mxu0 0.0
    %v11365 = vand.u32 %v10986, 4294901760
    %11366 = vmatmul.mubr.f32.gmra.mrb[0].mxu0 %v11365
    %v11367 = vpop.f32.mrb[0].mxu0
    %v11368 = vadd.f32 %v11190, %v11367
    %v11369 = vpop.f32.mrb[0].mxu0
    %11370 = vmatprep.mubr.f32.mxu0 0.0
    %v11371 = vand.u32 %v10989, 4294901760
    %11372 = vmatmul.mubr.f32.gmra.mrb[0].mxu0 %v11371
    %v11373 = vpop.f32.mrb[0].mxu0
    %v11374 = vadd.f32 %v11200, %v11373
    %v11375 = vpop.f32.mrb[0].mxu0
    %11376 = vmatprep.mubr.f32.mxu0 0.0
    %v11377 = vand.u32 %v10992, 4294901760
    %11378 = vmatmul.mubr.f32.gmra.mrb[0].mxu0 %v11377
    %v11379 = vpop.f32.mrb[0].mxu0
    %v11380 = vadd.f32 %v11210, %v11379
    %v11381 = vpop.f32.mrb[0].mxu0
    %11382 = vmatprep.mubr.f32.mxu0 0.0
    %v11383 = vand.u32 %v10995, 4294901760
    %11384 = vmatmul.mubr.f32.gmra.mrb[0].mxu0 %v11383
    %v11385 = vpop.f32.mrb[0].mxu0
    %v11386 = vadd.f32 %v11220, %v11385
    %v11387 = vpop.f32.mrb[0].mxu0
    %11388 = vdwg.mxu0
    %11389 = vmatprep.subr.mxu0 0.0
    %v11390 = vand.u32 %v10941, 4294901760
    %v11391 = vsub.f32 %v10941, %v11390
    %11392 = vmatpush1.msra.mxu0 %v11391
    %11393 = vmatprep.subr.mxu0 0.0
    %11394 = vmatpush1.msra.mxu0 0.0
    %11395 = vmatprep.subr.mxu0 0.0
    %11396 = vmatpush1.msra.mxu0 0.0
    %11397 = vmatprep.subr.mxu0 0.0
    %11398 = vmatpush1.msra.mxu0 0.0
    %11399 = vmatprep.subr.mxu0 0.0
    %11400 = vmatpush1.msra.mxu0 0.0
    %11401 = vmatprep.subr.mxu0 0.0
    %11402 = vmatpush1.msra.mxu0 0.0
    %11403 = vmatprep.subr.mxu0 0.0
    %11404 = vmatpush1.msra.mxu0 0.0
    %11405 = vmatprep.subr.mxu0 0.0
    %11406 = vmatpush1.msra.mxu0 0.0
    %11407 = vmatprep.subr.mxu0 0.0
    %11408 = vmatpush1.msra.mxu0 0.0
    %11409 = vmatprep.subr.mxu0 0.0
    %11410 = vmatpush1.msra.mxu0 0.0
    %11411 = vmatprep.subr.mxu0 0.0
    %11412 = vmatpush1.msra.mxu0 0.0
    %11413 = vmatprep.subr.mxu0 0.0
    %11414 = vmatpush1.msra.mxu0 0.0
    %11415 = vmatprep.subr.mxu0 0.0
    %11416 = vmatpush1.msra.mxu0 0.0
    %11417 = vmatprep.subr.mxu0 0.0
    %11418 = vmatpush1.msra.mxu0 0.0
    %11419 = vmatprep.subr.mxu0 0.0
    %11420 = vmatpush1.msra.mxu0 0.0
    %11421 = vmatprep.subr.mxu0 0.0
    %11422 = vmatpush1.msra.mxu0 0.0
    %11423 = vmatprep.subr.mxu0 0.0
    %11424 = vmatpush1.msra.mxu0 0.0
    %11425 = vmatprep.subr.mxu0 0.0
    %11426 = vmatpush1.msra.mxu0 0.0
    %11427 = vmatprep.subr.mxu0 0.0
    %11428 = vmatpush1.msra.mxu0 0.0
    %11429 = vmatprep.subr.mxu0 0.0
    %11430 = vmatpush1.msra.mxu0 0.0
    %11431 = vmatprep.subr.mxu0 0.0
    %11432 = vmatpush1.msra.mxu0 0.0
    %11433 = vmatprep.subr.mxu0 0.0
    %11434 = vmatpush1.msra.mxu0 0.0
    %11435 = vmatprep.subr.mxu0 0.0
    %11436 = vmatpush1.msra.mxu0 0.0
    %11437 = vmatprep.subr.mxu0 0.0
    %11438 = vmatpush1.msra.mxu0 0.0
    %11439 = vmatprep.subr.mxu0 0.0
    %11440 = vmatpush1.msra.mxu0 0.0
    %11441 = vmatprep.subr.mxu0 0.0
    %11442 = vmatpush1.msra.mxu0 0.0
    %11443 = vmatprep.subr.mxu0 0.0
    %11444 = vmatpush1.msra.mxu0 0.0
    %11445 = vmatprep.subr.mxu0 0.0
    %11446 = vmatpush1.msra.mxu0 0.0
    %11447 = vmatprep.subr.mxu0 0.0
    %11448 = vmatpush1.msra.mxu0 0.0
    %11449 = vmatprep.subr.mxu0 0.0
    %11450 = vmatpush1.msra.mxu0 0.0
    %11451 = vmatprep.subr.mxu0 0.0
    %11452 = vmatpush1.msra.mxu0 0.0
    %11453 = vmatprep.subr.mxu0 0.0
    %11454 = vmatpush1.msra.mxu0 0.0
    %11455 = vmatprep.mubr.f32.mxu0 0.0
    %v11456 = vand.u32 %v10950, 4294901760
    %v11457 = vsub.f32 %v10950, %v11456
    %11458 = vmatmul.mubr.f32.gmra.mrb[0].mxu0 %v11457
    %v11459 = vpop.f32.mrb[0].mxu0
    %v11460 = vadd.f32 %v11296, %v11459
    %v11461 = vpop.f32.mrb[0].mxu0
    %11462 = vmatprep.mubr.f32.mxu0 0.0
    %v11463 = vand.u32 %v10953, 4294901760
    %v11464 = vsub.f32 %v10953, %v11463
    %11465 = vmatmul.mubr.f32.gmra.mrb[0].mxu0 %v11464
    %v11466 = vpop.f32.mrb[0].mxu0
    %v11467 = vadd.f32 %v11302, %v11466
    %v11468 = vpop.f32.mrb[0].mxu0
    %11469 = vmatprep.mubr.f32.mxu0 0.0
    %v11470 = vand.u32 %v10956, 4294901760
    %v11471 = vsub.f32 %v10956, %v11470
    %11472 = vmatmul.mubr.f32.gmra.mrb[0].mxu0 %v11471
    %v11473 = vpop.f32.mrb[0].mxu0
    %v11474 = vadd.f32 %v11308, %v11473
    %v11475 = vpop.f32.mrb[0].mxu0
    %11476 = vmatprep.mubr.f32.mxu0 0.0
    %v11477 = vand.u32 %v10959, 4294901760
    %v11478 = vsub.f32 %v10959, %v11477
    %11479 = vmatmul.mubr.f32.gmra.mrb[0].mxu0 %v11478
    %v11480 = vpop.f32.mrb[0].mxu0
    %v11481 = vadd.f32 %v11314, %v11480
    %v11482 = vpop.f32.mrb[0].mxu0
    %11483 = vmatprep.mubr.f32.mxu0 0.0
    %v11484 = vand.u32 %v10962, 4294901760
    %v11485 = vsub.f32 %v10962, %v11484
    %11486 = vmatmul.mubr.f32.gmra.mrb[0].mxu0 %v11485
    %v11487 = vpop.f32.mrb[0].mxu0
    %v11488 = vadd.f32 %v11320, %v11487
    %v11489 = vpop.f32.mrb[0].mxu0
    %11490 = vmatprep.mubr.f32.mxu0 0.0
    %v11491 = vand.u32 %v10965, 4294901760
    %v11492 = vsub.f32 %v10965, %v11491
    %11493 = vmatmul.mubr.f32.gmra.mrb[0].mxu0 %v11492
    %v11494 = vpop.f32.mrb[0].mxu0
    %v11495 = vadd.f32 %v11326, %v11494
    %v11496 = vpop.f32.mrb[0].mxu0
    %11497 = vmatprep.mubr.f32.mxu0 0.0
    %v11498 = vand.u32 %v10968, 4294901760
    %v11499 = vsub.f32 %v10968, %v11498
    %11500 = vmatmul.mubr.f32.gmra.mrb[0].mxu0 %v11499
    %v11501 = vpop.f32.mrb[0].mxu0
    %v11502 = vadd.f32 %v11332, %v11501
    %v11503 = vpop.f32.mrb[0].mxu0
    %11504 = vmatprep.mubr.f32.mxu0 0.0
    %v11505 = vand.u32 %v10971, 4294901760
    %v11506 = vsub.f32 %v10971, %v11505
    %11507 = vmatmul.mubr.f32.gmra.mrb[0].mxu0 %v11506
    %v11508 = vpop.f32.mrb[0].mxu0
    %v11509 = vadd.f32 %v11338, %v11508
    %v11510 = vpop.f32.mrb[0].mxu0
    %11511 = vmatprep.mubr.f32.mxu0 0.0
    %v11512 = vand.u32 %v10974, 4294901760
    %v11513 = vsub.f32 %v10974, %v11512
    %11514 = vmatmul.mubr.f32.gmra.mrb[0].mxu0 %v11513
    %v11515 = vpop.f32.mrb[0].mxu0
    %v11516 = vadd.f32 %v11344, %v11515
    %v11517 = vpop.f32.mrb[0].mxu0
    %11518 = vmatprep.mubr.f32.mxu0 0.0
    %v11519 = vand.u32 %v10977, 4294901760
    %v11520 = vsub.f32 %v10977, %v11519
    %11521 = vmatmul.mubr.f32.gmra.mrb[0].mxu0 %v11520
    %v11522 = vpop.f32.mrb[0].mxu0
    %v11523 = vadd.f32 %v11350, %v11522
    %v11524 = vpop.f32.mrb[0].mxu0
    %11525 = vmatprep.mubr.f32.mxu0 0.0
    %v11526 = vand.u32 %v10980, 4294901760
    %v11527 = vsub.f32 %v10980, %v11526
    %11528 = vmatmul.mubr.f32.gmra.mrb[0].mxu0 %v11527
    %v11529 = vpop.f32.mrb[0].mxu0
    %v11530 = vadd.f32 %v11356, %v11529
    %v11531 = vpop.f32.mrb[0].mxu0
    %11532 = vmatprep.mubr.f32.mxu0 0.0
    %v11533 = vand.u32 %v10983, 4294901760
    %v11534 = vsub.f32 %v10983, %v11533
    %11535 = vmatmul.mubr.f32.gmra.mrb[0].mxu0 %v11534
    %v11536 = vpop.f32.mrb[0].mxu0
    %v11537 = vadd.f32 %v11362, %v11536
    %v11538 = vpop.f32.mrb[0].mxu0
    %11539 = vmatprep.mubr.f32.mxu0 0.0
    %v11540 = vand.u32 %v10986, 4294901760
    %v11541 = vsub.f32 %v10986, %v11540
    %11542 = vmatmul.mubr.f32.gmra.mrb[0].mxu0 %v11541
    %v11543 = vpop.f32.mrb[0].mxu0
    %v11544 = vadd.f32 %v11368, %v11543
    %v11545 = vpop.f32.mrb[0].mxu0
    %11546 = vmatprep.mubr.f32.mxu0 0.0
    %v11547 = vand.u32 %v10989, 4294901760
    %v11548 = vsub.f32 %v10989, %v11547
    %11549 = vmatmul.mubr.f32.gmra.mrb[0].mxu0 %v11548
    %v11550 = vpop.f32.mrb[0].mxu0
    %v11551 = vadd.f32 %v11374, %v11550
    %v11552 = vpop.f32.mrb[0].mxu0
    %11553 = vmatprep.mubr.f32.mxu0 0.0
    %v11554 = vand.u32 %v10992, 4294901760
    %v11555 = vsub.f32 %v10992, %v11554
    %11556 = vmatmul.mubr.f32.gmra.mrb[0].mxu0 %v11555
    %v11557 = vpop.f32.mrb[0].mxu0
    %v11558 = vadd.f32 %v11380, %v11557
    %v11559 = vpop.f32.mrb[0].mxu0
    %11560 = vmatprep.mubr.f32.mxu0 0.0
    %v11561 = vand.u32 %v10995, 4294901760
    %v11562 = vsub.f32 %v10995, %v11561
    %11563 = vmatmul.mubr.f32.gmra.mrb[0].mxu0 %v11562
    %v11564 = vpop.f32.mrb[0].mxu0
    %v11565 = vadd.f32 %v11386, %v11564
    %v11566 = vpop.f32.mrb[0].mxu0
    %11567 = vdwg.mxu0
    %11568 = vmatprep.subr.mxu0 0.0
    %v11569 = vand.u32 %v10941, 4294901760
    %11570 = vmatpush1.msra.mxu0 %v11569
    %11571 = vmatprep.subr.mxu0 0.0
    %11572 = vmatpush1.msra.mxu0 0.0
    %11573 = vmatprep.subr.mxu0 0.0
    %11574 = vmatpush1.msra.mxu0 0.0
    %11575 = vmatprep.subr.mxu0 0.0
    %11576 = vmatpush1.msra.mxu0 0.0
    %11577 = vmatprep.subr.mxu0 0.0
    %11578 = vmatpush1.msra.mxu0 0.0
    %11579 = vmatprep.subr.mxu0 0.0
    %11580 = vmatpush1.msra.mxu0 0.0
    %11581 = vmatprep.subr.mxu0 0.0
    %11582 = vmatpush1.msra.mxu0 0.0
    %11583 = vmatprep.subr.mxu0 0.0
    %11584 = vmatpush1.msra.mxu0 0.0
    %11585 = vmatprep.subr.mxu0 0.0
    %11586 = vmatpush1.msra.mxu0 0.0
    %11587 = vmatprep.subr.mxu0 0.0
    %11588 = vmatpush1.msra.mxu0 0.0
    %11589 = vmatprep.subr.mxu0 0.0
    %11590 = vmatpush1.msra.mxu0 0.0
    %11591 = vmatprep.subr.mxu0 0.0
    %11592 = vmatpush1.msra.mxu0 0.0
    %11593 = vmatprep.subr.mxu0 0.0
    %11594 = vmatpush1.msra.mxu0 0.0
    %11595 = vmatprep.subr.mxu0 0.0
    %11596 = vmatpush1.msra.mxu0 0.0
    %11597 = vmatprep.subr.mxu0 0.0
    %11598 = vmatpush1.msra.mxu0 0.0
    %11599 = vmatprep.subr.mxu0 0.0
    %11600 = vmatpush1.msra.mxu0 0.0
    %11601 = vmatprep.subr.mxu0 0.0
    %11602 = vmatpush1.msra.mxu0 0.0
    %11603 = vmatprep.subr.mxu0 0.0
    %11604 = vmatpush1.msra.mxu0 0.0
    %11605 = vmatprep.subr.mxu0 0.0
    %11606 = vmatpush1.msra.mxu0 0.0
    %11607 = vmatprep.subr.mxu0 0.0
    %11608 = vmatpush1.msra.mxu0 0.0
    %11609 = vmatprep.subr.mxu0 0.0
    %11610 = vmatpush1.msra.mxu0 0.0
    %11611 = vmatprep.subr.mxu0 0.0
    %11612 = vmatpush1.msra.mxu0 0.0
    %11613 = vmatprep.subr.mxu0 0.0
    %11614 = vmatpush1.msra.mxu0 0.0
    %11615 = vmatprep.subr.mxu0 0.0
    %11616 = vmatpush1.msra.mxu0 0.0
    %11617 = vmatprep.subr.mxu0 0.0
    %11618 = vmatpush1.msra.mxu0 0.0
    %11619 = vmatprep.subr.mxu0 0.0
    %11620 = vmatpush1.msra.mxu0 0.0
    %11621 = vmatprep.subr.mxu0 0.0
    %11622 = vmatpush1.msra.mxu0 0.0
    %11623 = vmatprep.subr.mxu0 0.0
    %11624 = vmatpush1.msra.mxu0 0.0
    %11625 = vmatprep.subr.mxu0 0.0
    %11626 = vmatpush1.msra.mxu0 0.0
    %11627 = vmatprep.subr.mxu0 0.0
    %11628 = vmatpush1.msra.mxu0 0.0
    %11629 = vmatprep.subr.mxu0 0.0
    %11630 = vmatpush1.msra.mxu0 0.0
    %11631 = vmatprep.subr.mxu0 0.0
    %11632 = vmatpush1.msra.mxu0 0.0
    %11633 = vmatprep.mubr.f32.mxu0 0.0
    %v11634 = vand.u32 %v10950, 4294901760
    %v11635 = vsub.f32 %v10950, %v11634
    %v11636 = vand.u32 %v11635, 4294901760
    %11637 = vmatmul.mubr.f32.gmra.mrb[0].mxu0 %v11636
    %v11638 = vpop.f32.mrb[0].mxu0
    %v11639 = vadd.f32 %v11460, %v11638
    %v11640 = vpop.f32.mrb[0].mxu0
    %11641 = vmatprep.mubr.f32.mxu0 0.0
    %v11642 = vand.u32 %v10953, 4294901760
    %v11643 = vsub.f32 %v10953, %v11642
    %v11644 = vand.u32 %v11643, 4294901760
    %11645 = vmatmul.mubr.f32.gmra.mrb[0].mxu0 %v11644
    %v11646 = vpop.f32.mrb[0].mxu0
    %v11647 = vadd.f32 %v11467, %v11646
    %v11648 = vpop.f32.mrb[0].mxu0
    %11649 = vmatprep.mubr.f32.mxu0 0.0
    %v11650 = vand.u32 %v10956, 4294901760
    %v11651 = vsub.f32 %v10956, %v11650
    %v11652 = vand.u32 %v11651, 4294901760
    %11653 = vmatmul.mubr.f32.gmra.mrb[0].mxu0 %v11652
    %v11654 = vpop.f32.mrb[0].mxu0
    %v11655 = vadd.f32 %v11474, %v11654
    %v11656 = vpop.f32.mrb[0].mxu0
    %11657 = vmatprep.mubr.f32.mxu0 0.0
    %v11658 = vand.u32 %v10959, 4294901760
    %v11659 = vsub.f32 %v10959, %v11658
    %v11660 = vand.u32 %v11659, 4294901760
    %11661 = vmatmul.mubr.f32.gmra.mrb[0].mxu0 %v11660
    %v11662 = vpop.f32.mrb[0].mxu0
    %v11663 = vadd.f32 %v11481, %v11662
    %v11664 = vpop.f32.mrb[0].mxu0
    %11665 = vmatprep.mubr.f32.mxu0 0.0
    %v11666 = vand.u32 %v10962, 4294901760
    %v11667 = vsub.f32 %v10962, %v11666
    %v11668 = vand.u32 %v11667, 4294901760
    %11669 = vmatmul.mubr.f32.gmra.mrb[0].mxu0 %v11668
    %v11670 = vpop.f32.mrb[0].mxu0
    %v11671 = vadd.f32 %v11488, %v11670
    %v11672 = vpop.f32.mrb[0].mxu0
    %11673 = vmatprep.mubr.f32.mxu0 0.0
    %v11674 = vand.u32 %v10965, 4294901760
    %v11675 = vsub.f32 %v10965, %v11674
    %v11676 = vand.u32 %v11675, 4294901760
    %11677 = vmatmul.mubr.f32.gmra.mrb[0].mxu0 %v11676
    %v11678 = vpop.f32.mrb[0].mxu0
    %v11679 = vadd.f32 %v11495, %v11678
    %v11680 = vpop.f32.mrb[0].mxu0
    %11681 = vmatprep.mubr.f32.mxu0 0.0
    %v11682 = vand.u32 %v10968, 4294901760
    %v11683 = vsub.f32 %v10968, %v11682
    %v11684 = vand.u32 %v11683, 4294901760
    %11685 = vmatmul.mubr.f32.gmra.mrb[0].mxu0 %v11684
    %v11686 = vpop.f32.mrb[0].mxu0
    %v11687 = vadd.f32 %v11502, %v11686
    %v11688 = vpop.f32.mrb[0].mxu0
    %11689 = vmatprep.mubr.f32.mxu0 0.0
    %v11690 = vand.u32 %v10971, 4294901760
    %v11691 = vsub.f32 %v10971, %v11690
    %v11692 = vand.u32 %v11691, 4294901760
    %11693 = vmatmul.mubr.f32.gmra.mrb[0].mxu0 %v11692
    %v11694 = vpop.f32.mrb[0].mxu0
    %v11695 = vadd.f32 %v11509, %v11694
    %v11696 = vpop.f32.mrb[0].mxu0
    %11697 = vmatprep.mubr.f32.mxu0 0.0
    %v11698 = vand.u32 %v10974, 4294901760
    %v11699 = vsub.f32 %v10974, %v11698
    %v11700 = vand.u32 %v11699, 4294901760
    %11701 = vmatmul.mubr.f32.gmra.mrb[0].mxu0 %v11700
    %v11702 = vpop.f32.mrb[0].mxu0
    %v11703 = vadd.f32 %v11516, %v11702
    %v11704 = vpop.f32.mrb[0].mxu0
    %11705 = vmatprep.mubr.f32.mxu0 0.0
    %v11706 = vand.u32 %v10977, 4294901760
    %v11707 = vsub.f32 %v10977, %v11706
    %v11708 = vand.u32 %v11707, 4294901760
    %11709 = vmatmul.mubr.f32.gmra.mrb[0].mxu0 %v11708
    %v11710 = vpop.f32.mrb[0].mxu0
    %v11711 = vadd.f32 %v11523, %v11710
    %v11712 = vpop.f32.mrb[0].mxu0
    %11713 = vmatprep.mubr.f32.mxu0 0.0
    %v11714 = vand.u32 %v10980, 4294901760
    %v11715 = vsub.f32 %v10980, %v11714
    %v11716 = vand.u32 %v11715, 4294901760
    %11717 = vmatmul.mubr.f32.gmra.mrb[0].mxu0 %v11716
    %v11718 = vpop.f32.mrb[0].mxu0
    %v11719 = vadd.f32 %v11530, %v11718
    %v11720 = vpop.f32.mrb[0].mxu0
    %11721 = vmatprep.mubr.f32.mxu0 0.0
    %v11722 = vand.u32 %v10983, 4294901760
    %v11723 = vsub.f32 %v10983, %v11722
    %v11724 = vand.u32 %v11723, 4294901760
    %11725 = vmatmul.mubr.f32.gmra.mrb[0].mxu0 %v11724
    %v11726 = vpop.f32.mrb[0].mxu0
    %v11727 = vadd.f32 %v11537, %v11726
    %v11728 = vpop.f32.mrb[0].mxu0
    %11729 = vmatprep.mubr.f32.mxu0 0.0
    %v11730 = vand.u32 %v10986, 4294901760
    %v11731 = vsub.f32 %v10986, %v11730
    %v11732 = vand.u32 %v11731, 4294901760
    %11733 = vmatmul.mubr.f32.gmra.mrb[0].mxu0 %v11732
    %v11734 = vpop.f32.mrb[0].mxu0
    %v11735 = vadd.f32 %v11544, %v11734
    %v11736 = vpop.f32.mrb[0].mxu0
    %11737 = vmatprep.mubr.f32.mxu0 0.0
    %v11738 = vand.u32 %v10989, 4294901760
    %v11739 = vsub.f32 %v10989, %v11738
    %v11740 = vand.u32 %v11739, 4294901760
    %11741 = vmatmul.mubr.f32.gmra.mrb[0].mxu0 %v11740
    %v11742 = vpop.f32.mrb[0].mxu0
    %v11743 = vadd.f32 %v11551, %v11742
    %v11744 = vpop.f32.mrb[0].mxu0
    %11745 = vmatprep.mubr.f32.mxu0 0.0
    %v11746 = vand.u32 %v10992, 4294901760
    %v11747 = vsub.f32 %v10992, %v11746
    %v11748 = vand.u32 %v11747, 4294901760
    %11749 = vmatmul.mubr.f32.gmra.mrb[0].mxu0 %v11748
    %v11750 = vpop.f32.mrb[0].mxu0
    %v11751 = vadd.f32 %v11558, %v11750
    %v11752 = vpop.f32.mrb[0].mxu0
    %11753 = vmatprep.mubr.f32.mxu0 0.0
    %v11754 = vand.u32 %v10995, 4294901760
    %v11755 = vsub.f32 %v10995, %v11754
    %v11756 = vand.u32 %v11755, 4294901760
    %11757 = vmatmul.mubr.f32.gmra.mrb[0].mxu0 %v11756
    %v11758 = vpop.f32.mrb[0].mxu0
    %v11759 = vadd.f32 %v11565, %v11758
    %v11760 = vpop.f32.mrb[0].mxu0
    %11761 = vdwg.mxu0
    %11762 = vmatprep.subr.mxu0 0.0
    %v11763 = vand.u32 %v10941, 4294901760
    %v11764 = vsub.f32 %v10941, %v11763
    %v11765 = vand.u32 %v11764, 4294901760
    %11766 = vmatpush1.msra.mxu0 %v11765
    %11767 = vmatprep.subr.mxu0 0.0
    %11768 = vmatpush1.msra.mxu0 0.0
    %11769 = vmatprep.subr.mxu0 0.0
    %11770 = vmatpush1.msra.mxu0 0.0
    %11771 = vmatprep.subr.mxu0 0.0
    %11772 = vmatpush1.msra.mxu0 0.0
    %11773 = vmatprep.subr.mxu0 0.0
    %11774 = vmatpush1.msra.mxu0 0.0
    %11775 = vmatprep.subr.mxu0 0.0
    %11776 = vmatpush1.msra.mxu0 0.0
    %11777 = vmatprep.subr.mxu0 0.0
    %11778 = vmatpush1.msra.mxu0 0.0
    %11779 = vmatprep.subr.mxu0 0.0
    %11780 = vmatpush1.msra.mxu0 0.0
    %11781 = vmatprep.subr.mxu0 0.0
    %11782 = vmatpush1.msra.mxu0 0.0
    %11783 = vmatprep.subr.mxu0 0.0
    %11784 = vmatpush1.msra.mxu0 0.0
    %11785 = vmatprep.subr.mxu0 0.0
    %11786 = vmatpush1.msra.mxu0 0.0
    %11787 = vmatprep.subr.mxu0 0.0
    %11788 = vmatpush1.msra.mxu0 0.0
    %11789 = vmatprep.subr.mxu0 0.0
    %11790 = vmatpush1.msra.mxu0 0.0
    %11791 = vmatprep.subr.mxu0 0.0
    %11792 = vmatpush1.msra.mxu0 0.0
    %11793 = vmatprep.subr.mxu0 0.0
    %11794 = vmatpush1.msra.mxu0 0.0
    %11795 = vmatprep.subr.mxu0 0.0
    %11796 = vmatpush1.msra.mxu0 0.0
    %11797 = vmatprep.subr.mxu0 0.0
    %11798 = vmatpush1.msra.mxu0 0.0
    %11799 = vmatprep.subr.mxu0 0.0
    %11800 = vmatpush1.msra.mxu0 0.0
    %11801 = vmatprep.subr.mxu0 0.0
    %11802 = vmatpush1.msra.mxu0 0.0
    %11803 = vmatprep.subr.mxu0 0.0
    %11804 = vmatpush1.msra.mxu0 0.0
    %11805 = vmatprep.subr.mxu0 0.0
    %11806 = vmatpush1.msra.mxu0 0.0
    %11807 = vmatprep.subr.mxu0 0.0
    %11808 = vmatpush1.msra.mxu0 0.0
    %11809 = vmatprep.subr.mxu0 0.0
    %11810 = vmatpush1.msra.mxu0 0.0
    %11811 = vmatprep.subr.mxu0 0.0
    %11812 = vmatpush1.msra.mxu0 0.0
    %11813 = vmatprep.subr.mxu0 0.0
    %11814 = vmatpush1.msra.mxu0 0.0
    %11815 = vmatprep.subr.mxu0 0.0
    %11816 = vmatpush1.msra.mxu0 0.0
    %11817 = vmatprep.subr.mxu0 0.0
    %11818 = vmatpush1.msra.mxu0 0.0
    %11819 = vmatprep.subr.mxu0 0.0
    %11820 = vmatpush1.msra.mxu0 0.0
    %11821 = vmatprep.subr.mxu0 0.0
    %11822 = vmatpush1.msra.mxu0 0.0
    %11823 = vmatprep.subr.mxu0 0.0
    %11824 = vmatpush1.msra.mxu0 0.0
    %11825 = vmatprep.subr.mxu0 0.0
    %11826 = vmatpush1.msra.mxu0 0.0
    %11827 = vmatprep.subr.mxu0 0.0
    %11828 = vmatpush1.msra.mxu0 0.0
    %11829 = vmatprep.mubr.f32.mxu0 0.0
    %v11830 = vand.u32 %v10950, 4294901760
    %11831 = vmatmul.mubr.f32.gmra.mrb[0].mxu0 %v11830
    %v11832 = vpop.f32.mrb[0].mxu0
    %v11833 = vadd.f32 %v11639, %v11832
    %v11834 = vpop.f32.mrb[0].mxu0
    %11835 = vmatprep.mubr.f32.mxu0 0.0
    %v11836 = vand.u32 %v10953, 4294901760
    %11837 = vmatmul.mubr.f32.gmra.mrb[0].mxu0 %v11836
    %v11838 = vpop.f32.mrb[0].mxu0
    %v11839 = vadd.f32 %v11647, %v11838
    %v11840 = vpop.f32.mrb[0].mxu0
    %11841 = vmatprep.mubr.f32.mxu0 0.0
    %v11842 = vand.u32 %v10956, 4294901760
    %11843 = vmatmul.mubr.f32.gmra.mrb[0].mxu0 %v11842
    %v11844 = vpop.f32.mrb[0].mxu0
    %v11845 = vadd.f32 %v11655, %v11844
    %v11846 = vpop.f32.mrb[0].mxu0
    %11847 = vmatprep.mubr.f32.mxu0 0.0
    %v11848 = vand.u32 %v10959, 4294901760
    %11849 = vmatmul.mubr.f32.gmra.mrb[0].mxu0 %v11848
    %v11850 = vpop.f32.mrb[0].mxu0
    %v11851 = vadd.f32 %v11663, %v11850
    %v11852 = vpop.f32.mrb[0].mxu0
    %11853 = vmatprep.mubr.f32.mxu0 0.0
    %v11854 = vand.u32 %v10962, 4294901760
    %11855 = vmatmul.mubr.f32.gmra.mrb[0].mxu0 %v11854
    %v11856 = vpop.f32.mrb[0].mxu0
    %v11857 = vadd.f32 %v11671, %v11856
    %v11858 = vpop.f32.mrb[0].mxu0
    %11859 = vmatprep.mubr.f32.mxu0 0.0
    %v11860 = vand.u32 %v10965, 4294901760
    %11861 = vmatmul.mubr.f32.gmra.mrb[0].mxu0 %v11860
    %v11862 = vpop.f32.mrb[0].mxu0
    %v11863 = vadd.f32 %v11679, %v11862
    %v11864 = vpop.f32.mrb[0].mxu0
    %11865 = vmatprep.mubr.f32.mxu0 0.0
    %v11866 = vand.u32 %v10968, 4294901760
    %11867 = vmatmul.mubr.f32.gmra.mrb[0].mxu0 %v11866
    %v11868 = vpop.f32.mrb[0].mxu0
    %v11869 = vadd.f32 %v11687, %v11868
    %v11870 = vpop.f32.mrb[0].mxu0
    %11871 = vmatprep.mubr.f32.mxu0 0.0
    %v11872 = vand.u32 %v10971, 4294901760
    %11873 = vmatmul.mubr.f32.gmra.mrb[0].mxu0 %v11872
    %v11874 = vpop.f32.mrb[0].mxu0
    %v11875 = vadd.f32 %v11695, %v11874
    %v11876 = vpop.f32.mrb[0].mxu0
    %11877 = vmatprep.mubr.f32.mxu0 0.0
    %v11878 = vand.u32 %v10974, 4294901760
    %11879 = vmatmul.mubr.f32.gmra.mrb[0].mxu0 %v11878
    %v11880 = vpop.f32.mrb[0].mxu0
    %v11881 = vadd.f32 %v11703, %v11880
    %v11882 = vpop.f32.mrb[0].mxu0
    %11883 = vmatprep.mubr.f32.mxu0 0.0
    %v11884 = vand.u32 %v10977, 4294901760
    %11885 = vmatmul.mubr.f32.gmra.mrb[0].mxu0 %v11884
    %v11886 = vpop.f32.mrb[0].mxu0
    %v11887 = vadd.f32 %v11711, %v11886
    %v11888 = vpop.f32.mrb[0].mxu0
    %11889 = vmatprep.mubr.f32.mxu0 0.0
    %v11890 = vand.u32 %v10980, 4294901760
    %11891 = vmatmul.mubr.f32.gmra.mrb[0].mxu0 %v11890
    %v11892 = vpop.f32.mrb[0].mxu0
    %v11893 = vadd.f32 %v11719, %v11892
    %v11894 = vpop.f32.mrb[0].mxu0
    %11895 = vmatprep.mubr.f32.mxu0 0.0
    %v11896 = vand.u32 %v10983, 4294901760
    %11897 = vmatmul.mubr.f32.gmra.mrb[0].mxu0 %v11896
    %v11898 = vpop.f32.mrb[0].mxu0
    %v11899 = vadd.f32 %v11727, %v11898
    %v11900 = vpop.f32.mrb[0].mxu0
    %11901 = vmatprep.mubr.f32.mxu0 0.0
    %v11902 = vand.u32 %v10986, 4294901760
    %11903 = vmatmul.mubr.f32.gmra.mrb[0].mxu0 %v11902
    %v11904 = vpop.f32.mrb[0].mxu0
    %v11905 = vadd.f32 %v11735, %v11904
    %v11906 = vpop.f32.mrb[0].mxu0
    %11907 = vmatprep.mubr.f32.mxu0 0.0
    %v11908 = vand.u32 %v10989, 4294901760
    %11909 = vmatmul.mubr.f32.gmra.mrb[0].mxu0 %v11908
    %v11910 = vpop.f32.mrb[0].mxu0
    %v11911 = vadd.f32 %v11743, %v11910
    %v11912 = vpop.f32.mrb[0].mxu0
    %11913 = vmatprep.mubr.f32.mxu0 0.0
    %v11914 = vand.u32 %v10992, 4294901760
    %11915 = vmatmul.mubr.f32.gmra.mrb[0].mxu0 %v11914
    %v11916 = vpop.f32.mrb[0].mxu0
    %v11917 = vadd.f32 %v11751, %v11916
    %v11918 = vpop.f32.mrb[0].mxu0
    %11919 = vmatprep.mubr.f32.mxu0 0.0
    %v11920 = vand.u32 %v10995, 4294901760
    %11921 = vmatmul.mubr.f32.gmra.mrb[0].mxu0 %v11920
    %v11922 = vpop.f32.mrb[0].mxu0
    %v11923 = vadd.f32 %v11759, %v11922
    %v11924 = vpop.f32.mrb[0].mxu0
    %11925 = vdwg.mxu0
    %11926 = vmatprep.subr.mxu0 0.0
    %v11927 = vand.u32 %v10941, 4294901760
    %11928 = vmatpush1.msra.mxu0 %v11927
    %11929 = vmatprep.subr.mxu0 0.0
    %11930 = vmatpush1.msra.mxu0 0.0
    %11931 = vmatprep.subr.mxu0 0.0
    %11932 = vmatpush1.msra.mxu0 0.0
    %11933 = vmatprep.subr.mxu0 0.0
    %11934 = vmatpush1.msra.mxu0 0.0
    %11935 = vmatprep.subr.mxu0 0.0
    %11936 = vmatpush1.msra.mxu0 0.0
    %11937 = vmatprep.subr.mxu0 0.0
    %11938 = vmatpush1.msra.mxu0 0.0
    %11939 = vmatprep.subr.mxu0 0.0
    %11940 = vmatpush1.msra.mxu0 0.0
    %11941 = vmatprep.subr.mxu0 0.0
    %11942 = vmatpush1.msra.mxu0 0.0
    %11943 = vmatprep.subr.mxu0 0.0
    %11944 = vmatpush1.msra.mxu0 0.0
    %11945 = vmatprep.subr.mxu0 0.0
    %11946 = vmatpush1.msra.mxu0 0.0
    %11947 = vmatprep.subr.mxu0 0.0
    %11948 = vmatpush1.msra.mxu0 0.0
    %11949 = vmatprep.subr.mxu0 0.0
    %11950 = vmatpush1.msra.mxu0 0.0
    %11951 = vmatprep.subr.mxu0 0.0
    %11952 = vmatpush1.msra.mxu0 0.0
    %11953 = vmatprep.subr.mxu0 0.0
    %11954 = vmatpush1.msra.mxu0 0.0
    %11955 = vmatprep.subr.mxu0 0.0
    %11956 = vmatpush1.msra.mxu0 0.0
    %11957 = vmatprep.subr.mxu0 0.0
    %11958 = vmatpush1.msra.mxu0 0.0
    %11959 = vmatprep.subr.mxu0 0.0
    %11960 = vmatpush1.msra.mxu0 0.0
    %11961 = vmatprep.subr.mxu0 0.0
    %11962 = vmatpush1.msra.mxu0 0.0
    %11963 = vmatprep.subr.mxu0 0.0
    %11964 = vmatpush1.msra.mxu0 0.0
    %11965 = vmatprep.subr.mxu0 0.0
    %11966 = vmatpush1.msra.mxu0 0.0
    %11967 = vmatprep.subr.mxu0 0.0
    %11968 = vmatpush1.msra.mxu0 0.0
    %11969 = vmatprep.subr.mxu0 0.0
    %11970 = vmatpush1.msra.mxu0 0.0
    %11971 = vmatprep.subr.mxu0 0.0
    %11972 = vmatpush1.msra.mxu0 0.0
    %11973 = vmatprep.subr.mxu0 0.0
    %11974 = vmatpush1.msra.mxu0 0.0
    %11975 = vmatprep.subr.mxu0 0.0
    %11976 = vmatpush1.msra.mxu0 0.0
    %11977 = vmatprep.subr.mxu0 0.0
    %11978 = vmatpush1.msra.mxu0 0.0
    %11979 = vmatprep.subr.mxu0 0.0
    %11980 = vmatpush1.msra.mxu0 0.0
    %11981 = vmatprep.subr.mxu0 0.0
    %11982 = vmatpush1.msra.mxu0 0.0
    %11983 = vmatprep.subr.mxu0 0.0
    %11984 = vmatpush1.msra.mxu0 0.0
    %11985 = vmatprep.subr.mxu0 0.0
    %11986 = vmatpush1.msra.mxu0 0.0
    %11987 = vmatprep.subr.mxu0 0.0
    %11988 = vmatpush1.msra.mxu0 0.0
    %11989 = vmatprep.subr.mxu0 0.0
    %11990 = vmatpush1.msra.mxu0 0.0
    %11991 = vmatprep.mubr.f32.mxu0 0.0
    %v11992 = vand.u32 %v10950, 4294901760
    %11993 = vmatmul.mubr.f32.gmra.mrb[0].mxu0 %v11992
    %v11994 = vpop.f32.mrb[0].mxu0
    %v11995 = vadd.f32 %v11833, %v11994
    %v11996 = vpop.f32.mrb[0].mxu0
    %11997 = vmatprep.mubr.f32.mxu0 0.0
    %v11998 = vand.u32 %v10953, 4294901760
    %11999 = vmatmul.mubr.f32.gmra.mrb[0].mxu0 %v11998
    %v12000 = vpop.f32.mrb[0].mxu0
    %v12001 = vadd.f32 %v11839, %v12000
    %v12002 = vpop.f32.mrb[0].mxu0
    %12003 = vmatprep.mubr.f32.mxu0 0.0
    %v12004 = vand.u32 %v10956, 4294901760
    %12005 = vmatmul.mubr.f32.gmra.mrb[0].mxu0 %v12004
    %v12006 = vpop.f32.mrb[0].mxu0
    %v12007 = vadd.f32 %v11845, %v12006
    %v12008 = vpop.f32.mrb[0].mxu0
    %12009 = vmatprep.mubr.f32.mxu0 0.0
    %v12010 = vand.u32 %v10959, 4294901760
    %12011 = vmatmul.mubr.f32.gmra.mrb[0].mxu0 %v12010
    %v12012 = vpop.f32.mrb[0].mxu0
    %v12013 = vadd.f32 %v11851, %v12012
    %v12014 = vpop.f32.mrb[0].mxu0
    %12015 = vmatprep.mubr.f32.mxu0 0.0
    %v12016 = vand.u32 %v10962, 4294901760
    %12017 = vmatmul.mubr.f32.gmra.mrb[0].mxu0 %v12016
    %v12018 = vpop.f32.mrb[0].mxu0
    %v12019 = vadd.f32 %v11857, %v12018
    %v12020 = vpop.f32.mrb[0].mxu0
    %12021 = vmatprep.mubr.f32.mxu0 0.0
    %v12022 = vand.u32 %v10965, 4294901760
    %12023 = vmatmul.mubr.f32.gmra.mrb[0].mxu0 %v12022
    %v12024 = vpop.f32.mrb[0].mxu0
    %v12025 = vadd.f32 %v11863, %v12024
    %v12026 = vpop.f32.mrb[0].mxu0
    %12027 = vmatprep.mubr.f32.mxu0 0.0
    %v12028 = vand.u32 %v10968, 4294901760
    %12029 = vmatmul.mubr.f32.gmra.mrb[0].mxu0 %v12028
    %v12030 = vpop.f32.mrb[0].mxu0
    %v12031 = vadd.f32 %v11869, %v12030
    %v12032 = vpop.f32.mrb[0].mxu0
    %12033 = vmatprep.mubr.f32.mxu0 0.0
    %v12034 = vand.u32 %v10971, 4294901760
    %12035 = vmatmul.mubr.f32.gmra.mrb[0].mxu0 %v12034
    %v12036 = vpop.f32.mrb[0].mxu0
    %v12037 = vadd.f32 %v11875, %v12036
    %v12038 = vpop.f32.mrb[0].mxu0
    %12039 = vmatprep.mubr.f32.mxu0 0.0
    %v12040 = vand.u32 %v10974, 4294901760
    %12041 = vmatmul.mubr.f32.gmra.mrb[0].mxu0 %v12040
    %v12042 = vpop.f32.mrb[0].mxu0
    %v12043 = vadd.f32 %v11881, %v12042
    %v12044 = vpop.f32.mrb[0].mxu0
    %12045 = vmatprep.mubr.f32.mxu0 0.0
    %v12046 = vand.u32 %v10977, 4294901760
    %12047 = vmatmul.mubr.f32.gmra.mrb[0].mxu0 %v12046
    %v12048 = vpop.f32.mrb[0].mxu0
    %v12049 = vadd.f32 %v11887, %v12048
    %v12050 = vpop.f32.mrb[0].mxu0
    %12051 = vmatprep.mubr.f32.mxu0 0.0
    %v12052 = vand.u32 %v10980, 4294901760
    %12053 = vmatmul.mubr.f32.gmra.mrb[0].mxu0 %v12052
    %v12054 = vpop.f32.mrb[0].mxu0
    %v12055 = vadd.f32 %v11893, %v12054
    %v12056 = vpop.f32.mrb[0].mxu0
    %12057 = vmatprep.mubr.f32.mxu0 0.0
    %v12058 = vand.u32 %v10983, 4294901760
    %12059 = vmatmul.mubr.f32.gmra.mrb[0].mxu0 %v12058
    %v12060 = vpop.f32.mrb[0].mxu0
    %v12061 = vadd.f32 %v11899, %v12060
    %v12062 = vpop.f32.mrb[0].mxu0
    %12063 = vmatprep.mubr.f32.mxu0 0.0
    %v12064 = vand.u32 %v10986, 4294901760
    %12065 = vmatmul.mubr.f32.gmra.mrb[0].mxu0 %v12064
    %v12066 = vpop.f32.mrb[0].mxu0
    %v12067 = vadd.f32 %v11905, %v12066
    %v12068 = vpop.f32.mrb[0].mxu0
    %12069 = vmatprep.mubr.f32.mxu0 0.0
    %v12070 = vand.u32 %v10989, 4294901760
    %12071 = vmatmul.mubr.f32.gmra.mrb[0].mxu0 %v12070
    %v12072 = vpop.f32.mrb[0].mxu0
    %v12073 = vadd.f32 %v11911, %v12072
    %v12074 = vpop.f32.mrb[0].mxu0
    %12075 = vmatprep.mubr.f32.mxu0 0.0
    %v12076 = vand.u32 %v10992, 4294901760
    %12077 = vmatmul.mubr.f32.gmra.mrb[0].mxu0 %v12076
    %v12078 = vpop.f32.mrb[0].mxu0
    %v12079 = vadd.f32 %v11917, %v12078
    %v12080 = vpop.f32.mrb[0].mxu0
    %12081 = vmatprep.mubr.f32.mxu0 0.0
    %v12082 = vand.u32 %v10995, 4294901760
    %12083 = vmatmul.mubr.f32.gmra.mrb[0].mxu0 %v12082
    %v12084 = vpop.f32.mrb[0].mxu0
    %v12085 = vadd.f32 %v11923, %v12084
    %v12086 = vpop.f32.mrb[0].mxu0
    %12087 = vdwg.mxu0
    %12088 = vst [vmem:[#allocation2] sm:$0xff] %v11995
    %12089 = vst [vmem:[#allocation2 + $0x8] sm:$0xff] %v12001
    %12090 = vst [vmem:[#allocation2 + $0x10] sm:$0xff] %v12007
    %12091 = vst [vmem:[#allocation2 + $0x18] sm:$0xff] %v12013
    %12092 = vst [vmem:[#allocation2 + $0x20] sm:$0xff] %v12019
    %12093 = vst [vmem:[#allocation2 + $0x28] sm:$0xff] %v12025
    %12094 = vst [vmem:[#allocation2 + $0x30] sm:$0xff] %v12031
    %12095 = vst [vmem:[#allocation2 + $0x38] sm:$0xff] %v12037
    %12096 = vst [vmem:[#allocation2 + $0x40] sm:$0xff] %v12043
    %12097 = vst [vmem:[#allocation2 + $0x48] sm:$0xff] %v12049
    %12098 = vst [vmem:[#allocation2 + $0x50] sm:$0xff] %v12055
    %12099 = vst [vmem:[#allocation2 + $0x58] sm:$0xff] %v12061
    %12100 = vst [vmem:[#allocation2 + $0x60] sm:$0xff] %v12067
    %12101 = vst [vmem:[#allocation2 + $0x68] sm:$0xff] %v12073
    %12102 = vst [vmem:[#allocation2 + $0x70] sm:$0xff] %v12079
    %12103 = vst [vmem:[#allocation2 + $0x78] sm:$0xff] %v12085
    // Predicated region
    $region22: #{tpu_custom_call.1} parent=1 // pred_check
      _
    $region23: #{tpu_custom_call.1} parent=1 // pred_check_branch
      %12105 = sbr.rel (0) target = $region25
    $region24: #{tpu_custom_call.1} parent=1 // pred_region
      %s12107 = ssub.s32 2048, 2048
      %12108 = vsyncadd [#allocation3], %s12107
      %s12109 = sshll.u32 [#allocation2], 4
      %s12110 = int_to_ptr.vmem [resolvable:$true] %s12109
      %12115 = dma.vmem_to_hbm [thread:$0]  %s12110, 2048, %s5, [#allocation3], 128, 128, 8
    $region25: #{tpu_custom_call.1} parent=1 // pred_fallthru
      _
    // Predicated region
    $region26: #{tpu_custom_call.1} parent=1 // pred_check
      _
    $region27: #{tpu_custom_call.1} parent=1 // pred_check_branch
      %12117 = sbr.rel (0) target = $region29
    $region28: #{tpu_custom_call.1} parent=1 // pred_region
      %12118 = dma.done [#allocation3], 2048
    $region29: #{tpu_custom_call.1} parent=1 // pred_fallthru
      _
    %12119 = vsyncpa [#allocation3], 1

</llo_original>
